<compile_context>
chip_gen: v7x
topology: tpu7x:2x2x1
jax: 0.10.0
libtpu: 0.0.40
codegen_flags: <defaults>
</compile_context>

<pallas_src>
import numpy as np
import jax
import jax.numpy as jnp
from jax.experimental import pallas as pl
from jax.experimental.pallas import tpu as pltpu

EPS = 1e-5
NEG_SLOPE = 0.01
PAD = 8          # front/back guard rows of the conv staging buffer (sublane pad)
VMEM_LIMIT = 32 * 1024 * 1024


def _bn_lrelu(x, scale, shift):
    t = x * scale + shift
    return jnp.where(t >= 0, t, NEG_SLOPE * t)


# ---------------------------------------------------------------------------
# Kernel A: fused (1x1 conv ∘ 2x2/stride-2 transpose conv) + skip add + BN1
# per-N partial sums.  One grid step handles TH input rows for one (n, a).
#   x1_ref : (1, TH*W, 2F)      flattened input pixels of the tile (f32)
#   w_ref  : (1, 2F, 2F)        combined weight for sub-row a, cols = (b, cout)
#   x2_ref : (1, TH, 1, W, 2F)  skip input, bit-identical view of NHWC rows 2h+a
#   s_ref  : (1, TH, 1, W, 2F)  bf16 output (same view) -> reshapes to NHWC
#   sum/sq : (1, 1, 2F)         per-(b, cout) sums, blocked per n (resident over
#                               hb, a) so the n axis can run "parallel".
# ---------------------------------------------------------------------------
def upconv_add_stats_kernel(x1_ref, w_ref, x2_ref, s_ref, sum_ref, sq_ref):
    first = (pl.program_id(1) == 0) & (pl.program_id(2) == 0)

    @pl.when(first)
    def _init():
        sum_ref[...] = jnp.zeros_like(sum_ref)
        sq_ref[...] = jnp.zeros_like(sq_ref)

    # single MXU matmul: (TH*W, 2F) x (2F, 2F)   (cols of w are (b, cout))
    y = jnp.dot(x1_ref[0], w_ref[0], preferred_element_type=jnp.float32)
    s = y + x2_ref[...].reshape(y.shape)                   # fused skip add (f32)
    s_ref[...] = s.reshape(s_ref.shape).astype(s_ref.dtype)  # bf16 store to HBM

    # BN1 partial statistics (per (b, cout) column; folded per-channel outside)
    sum_ref[...] += jnp.sum(s, axis=0).reshape(sum_ref.shape)
    sq_ref[...] += jnp.sum(s * s, axis=0).reshape(sq_ref.shape)


# ---------------------------------------------------------------------------
# Halo-tiled 3x3 conv helpers.  Each grid step stages TH2 output rows plus one
# halo row above / below (already BN+LeakyReLU'd) into a flat VMEM buffer:
#   [ PAD guard | top halo (W2) | interior (TH2*W2) | bottom halo (W2) | PAD ]
# and runs 9 per-tap MXU matmuls.  Only halos / guards are written outside the
# interior store (no full-buffer memset).  W-wrap artefacts of the flat shift
# are masked with a (M, 1) column mask (broadcast over lanes).
# ---------------------------------------------------------------------------
def _stage_tile(main_ref, halo_ref, scale, shift, xbuf_ref, *, W2, THW2, F):
    hb = pl.program_id(1)
    last = pl.num_programs(1) - 1
    P = PAD + W2
    P2 = P + THW2

    # interior: BN apply + LeakyReLU fused into the conv input path
    xbuf_ref[P:P2, :] = _bn_lrelu(main_ref[0].astype(jnp.float32), scale, shift)

    # halos: boundary tiles need literal zeros in t-space -> branch-free scalar
    # validity factor (halo rows are already zero there, but bn_lrelu(0) != 0).
    top_valid = (hb > 0).astype(jnp.float32)
    bot_valid = (hb < last).astype(jnp.float32)
    xbuf_ref[PAD:P, :] = top_valid * _bn_lrelu(
        halo_ref[0, 0, 0].astype(jnp.float32), scale, shift)
    xbuf_ref[P2:P2 + W2, :] = bot_valid * _bn_lrelu(
        halo_ref[0, 0, 1].astype(jnp.float32), scale, shift)

    # guard rows are only ever read under the column mask; zero for hygiene.
    xbuf_ref[0:PAD, :] = jnp.zeros((PAD, F), jnp.float32)
    xbuf_ref[P2 + W2:P2 + W2 + PAD, :] = jnp.zeros((PAD, F), jnp.float32)


def _conv3x3_from_xbuf(xbuf_ref, w_ref, *, W2, THW2, F):
    P = PAD + W2
    # (M, 1) column index -> broadcast masks (review item: don't build (M, F))
    col = jax.lax.broadcasted_iota(jnp.int32, (THW2, 1), 0) % W2
    not_first = col != 0
    not_last = col != (W2 - 1)

    # TODO(synk): for production F < 128, im2col the kw taps along lanes and use
    # 3 (or 1) deeper matmuls; also replace the +/-1 sublane-unaligned slices
    # with aligned loads + pltpu.roll once F is large enough to matter.
    acc = jnp.zeros((THW2, F), jnp.float32)
    for dh in (-1, 0, 1):
        base = P + dh * W2
        for dw in (-1, 0, 1):
            chunk = xbuf_ref[base + dw:base + dw + THW2, :]
            if dw == -1:
                chunk = jnp.where(not_first, chunk, 0.0)
            elif dw == 1:
                chunk = jnp.where(not_last, chunk, 0.0)
            acc = acc + jnp.dot(chunk, w_ref[(dh + 1) * 3 + (dw + 1)],
                                preferred_element_type=jnp.float32)
    return acc


def _make_conv_stats_kernel(W2, THW2, F):
    # BN1 apply + LeakyReLU + conv3x3 (w3a) + BN2 per-N partial sums.
    def kernel(x_ref, halo_ref, scale_ref, shift_ref, w_ref,
               u_ref, sum_ref, sq_ref, xbuf_ref):
        @pl.when(pl.program_id(1) == 0)
        def _init():
            sum_ref[...] = jnp.zeros_like(sum_ref)
            sq_ref[...] = jnp.zeros_like(sq_ref)

        _stage_tile(x_ref, halo_ref, scale_ref[...], shift_ref[...], xbuf_ref,
                    W2=W2, THW2=THW2, F=F)
        u = _conv3x3_from_xbuf(xbuf_ref, w_ref, W2=W2, THW2=THW2, F=F)
        u_ref[0] = u.astype(u_ref.dtype)                      # bf16 store
        sum_ref[...] += jnp.sum(u, axis=0).reshape(sum_ref.shape)
        sq_ref[...] += jnp.sum(u * u, axis=0).reshape(sq_ref.shape)
    return kernel


def _make_conv_res_kernel(W2, THW2, F):
    # BN2 apply + LeakyReLU + conv3x3 (w3b) + residual add (out = s + v).
    def kernel(x_ref, halo_ref, scale_ref, shift_ref, w_ref, res_ref,
               o_ref, xbuf_ref):
        _stage_tile(x_ref, halo_ref, scale_ref[...], shift_ref[...], xbuf_ref,
                    W2=W2, THW2=THW2, F=F)
        v = _conv3x3_from_xbuf(xbuf_ref, w_ref, W2=W2, THW2=THW2, F=F)
        o_ref[0] = res_ref[0].astype(jnp.float32) + v
    return kernel


# ---------------------------------------------------------------------------
# Tiling helpers (raised budgets per the review; VMEM independent of image
# size for the conv kernels).
# ---------------------------------------------------------------------------
def _largest_divisor_leq(n, cap):
    cap = int(max(1, min(n, cap)))
    for d in range(cap, 0, -1):
        if n % d == 0:
            return d
    return 1


def _pick_th(H, W, C2, budget_bytes=8 << 20):
    # per input row: x1(f32) + x2(f32) + s out(bf16), double-buffered
    bytes_per_row = W * C2 * (4 + 4 + 2) * 2
    cap = max(1, budget_bytes // max(bytes_per_row, 1))
    return _largest_divisor_leq(H, cap)


def _pick_th2(H2, W2, F, budget_bytes=8 << 20):
    # per output row: in(bf16)+out(f32)+res(bf16) double-buffered + xbuf(f32)
    bytes_per_row = W2 * F * ((2 + 4 + 2) * 2 + 4)
    cap = max(1, budget_bytes // max(bytes_per_row, 1))
    cap = min(cap, max(H2 // 2, 1))      # keep >=2 H-tiles (exercises halo path)
    return _largest_divisor_leq(H2, cap)


def _make_halos(x_flat, N, n_tiles, TH2, W2, F):
    # Pre-extract the one-row halos above/below each H2-tile (tiny XLA glue:
    # 2 rows per tile).  Boundary halos are zero; kernels gate them anyway.
    x_t = x_flat.reshape(N, n_tiles, TH2, W2, F)
    zrow = jnp.zeros((N, 1, W2, F), x_flat.dtype)
    top = jnp.concatenate([zrow, x_t[:, :-1, TH2 - 1]], axis=1)   # (N, T, W2, F)
    bot = jnp.concatenate([x_t[:, 1:, 0], zrow], axis=1)
    return jnp.stack([top, bot], axis=2)                          # (N, T, 2, W2, F)


# ---------------------------------------------------------------------------
# Full Up.forward wrapper (only transposes / metadata reshapes / (1,F) glue).
# ---------------------------------------------------------------------------
def up_forward(x1_nchw, x2_nchw, params):
    (w_conv1, w_up, w3a_oihw, w3b_oihw, g1, b1, g2, b2) = params
    N, C2, H, W = x1_nchw.shape
    F = C2 // 2
    H2, W2 = 2 * H, 2 * W
    Mn = H2 * W2
    M2 = N * Mn

    # ---- static weight prep (tiny, once per call) ----
    w1_2d = jnp.transpose(w_conv1[:, :, 0, 0], (1, 0))                    # (2F, F)
    wup_2d = jnp.transpose(w_up, (0, 2, 3, 1)).reshape(F, 4 * F)          # cols (a,b,co)
    w_comb = jnp.dot(w1_2d, wup_2d, precision=jax.lax.Precision.HIGHEST)  # (2F, 4F)
    w_comb_a = jnp.transpose(w_comb.reshape(C2, 2, C2), (1, 0, 2))        # (a, 2F, (b,co))
    w3a_taps = jnp.transpose(w3a_oihw, (2, 3, 1, 0)).reshape(9, F, F)     # (tap, Cin, Cout)
    w3b_taps = jnp.transpose(w3b_oihw, (2, 3, 1, 0)).reshape(9, F, F)

    # ---- activations to channels-last (unavoidable NCHW interface glue) ----
    x1_flat = jnp.transpose(x1_nchw, (0, 2, 3, 1)).reshape(N, H * W, C2)
    # (N, H, 2, W, 2F) is bit-identical to NHWC (N, H2, W2, F): free reshape.
    x2_v = jnp.transpose(x2_nchw, (0, 2, 3, 1)).reshape(N, H, 2, W, C2)

    TH = _pick_th(H, W, C2)
    THW = TH * W

    # --- Kernel A: upconv + skip add + BN1 per-N partial sums ---
    s5, s_sum, s_sq = pl.pallas_call(
        upconv_add_stats_kernel,
        out_shape=(jax.ShapeDtypeStruct((N, H, 2, W, C2), jnp.bfloat16),
                   jax.ShapeDtypeStruct((N, 1, C2), jnp.float32),
                   jax.ShapeDtypeStruct((N, 1, C2), jnp.float32)),
        grid=(N, H // TH, 2),
        in_specs=[pl.BlockSpec((1, THW, C2), lambda n, hb, a: (n, hb, 0)),
                  pl.BlockSpec((1, C2, C2), lambda n, hb, a: (a, 0, 0)),
                  pl.BlockSpec((1, TH, 1, W, C2),
                               lambda n, hb, a: (n, hb, a, 0, 0))],
        out_specs=(pl.BlockSpec((1, TH, 1, W, C2),
                                lambda n, hb, a: (n, hb, a, 0, 0)),
                   pl.BlockSpec((1, 1, C2), lambda n, hb, a: (n, 0, 0)),
                   pl.BlockSpec((1, 1, C2), lambda n, hb, a: (n, 0, 0))),
        compiler_params=pltpu.CompilerParams(
            dimension_semantics=("parallel", "arbitrary", "arbitrary"),
            vmem_limit_bytes=VMEM_LIMIT),
    )(x1_flat, w_comb_a, x2_v)

    s_flat = s5.reshape(N, Mn, F)         # bit-identical NHWC flattening (bf16)

    # BN1 batch stats -> per-channel scale/shift (tiny (1, F) XLA glue)
    ssum = (s_sum[:, 0, :F] + s_sum[:, 0, F:]).sum(axis=0, keepdims=True)
    ssq = (s_sq[:, 0, :F] + s_sq[:, 0, F:]).sum(axis=0, keepdims=True)
    mean1 = ssum / M2
    var1 = ssq / M2 - mean1 * mean1
    scale1 = g1.reshape(1, F) * jax.lax.rsqrt(var1 + EPS)
    shift1 = b1.reshape(1, F) - mean1 * scale1

    TH2 = _pick_th2(H2, W2, F)
    THW2 = TH2 * W2
    n_tiles = H2 // TH2
    XROWS = THW2 + 2 * W2 + 2 * PAD

    conv_grid = (N, n_tiles)
    block_main = pl.BlockSpec((1, THW2, F), lambda n, hb: (n, hb, 0))
    block_halo = pl.BlockSpec((1, 1, 2, W2, F), lambda n, hb: (n, hb, 0, 0, 0))
    block_vec = pl.BlockSpec((1, F), lambda n, hb: (0, 0))
    block_w = pl.BlockSpec((9, F, F), lambda n, hb: (0, 0, 0))
    block_stat = pl.BlockSpec((1, 1, F), lambda n, hb: (n, 0, 0))

    s_halos = _make_halos(s_flat, N, n_tiles, TH2, W2, F)

    # --- Kernel C1: BN1 apply + LReLU + conv3x3(w3a) + BN2 per-N partial sums ---
    u_flat, u_sum, u_sq = pl.pallas_call(
        _make_conv_stats_kernel(W2, THW2, F),
        out_shape=(jax.ShapeDtypeStruct((N, Mn, F), jnp.bfloat16),
                   jax.ShapeDtypeStruct((N, 1, F), jnp.float32),
                   jax.ShapeDtypeStruct((N, 1, F), jnp.float32)),
        grid=conv_grid,
        in_specs=[block_main, block_halo, block_vec, block_vec, block_w],
        out_specs=(block_main, block_stat, block_stat),
        scratch_shapes=[pltpu.VMEM((XROWS, F), jnp.float32)],
        compiler_params=pltpu.CompilerParams(
            dimension_semantics=("parallel", "arbitrary"),
            vmem_limit_bytes=VMEM_LIMIT),
    )(s_flat, s_halos, scale1, shift1, w3a_taps)

    mean2 = u_sum[:, 0, :].sum(axis=0, keepdims=True) / M2
    var2 = u_sq[:, 0, :].sum(axis=0, keepdims=True) / M2 - mean2 * mean2
    scale2 = g2.reshape(1, F) * jax.lax.rsqrt(var2 + EPS)
    shift2 = b2.reshape(1, F) - mean2 * scale2

    u_halos = _make_halos(u_flat, N, n_tiles, TH2, W2, F)

    # --- Kernel C2: BN2 apply + LReLU + conv3x3(w3b) + residual add ---
    out_flat = pl.pallas_call(
        _make_conv_res_kernel(W2, THW2, F),
        out_shape=jax.ShapeDtypeStruct((N, Mn, F), jnp.float32),
        grid=conv_grid,
        in_specs=[block_main, block_halo, block_vec, block_vec, block_w,
                  block_main],
        out_specs=block_main,
        scratch_shapes=[pltpu.VMEM((XROWS, F), jnp.float32)],
        compiler_params=pltpu.CompilerParams(
            dimension_semantics=("parallel", "parallel"),
            vmem_limit_bytes=VMEM_LIMIT),
    )(u_flat, u_halos, scale2, shift2, w3b_taps, s_flat)

    out_nhwc = out_flat.reshape(N, H2, W2, F)
    return jnp.transpose(out_nhwc, (0, 3, 1, 2))                          # NCHW


# ---------------------------------------------------------------------------
# Pure-JAX (NCHW, PyTorch-convention) reference for verification.
# ---------------------------------------------------------------------------
def up_reference(x1, x2, params):
    (w_conv1, w_up, w3a, w3b, g1, b1, g2, b2) = params
    F = w_conv1.shape[0]
    N, _, H, W = x1.shape
    hp = jax.lax.Precision.HIGHEST

    z = jnp.einsum('nchw,oc->nohw', x1, w_conv1[:, :, 0, 0], precision=hp)
    y = jnp.einsum('nchw,cdab->ndhawb', z, w_up, precision=hp)
    y = y.reshape(N, F, 2 * H, 2 * W)
    s = y + x2

    def bn(x, g, b):
        mu = x.mean(axis=(0, 2, 3), keepdims=True)
        var = ((x - mu) ** 2).mean(axis=(0, 2, 3), keepdims=True)
        return ((x - mu) / jnp.sqrt(var + EPS)
                * g[None, :, None, None] + b[None, :, None, None])

    def lrelu(x):
        return jnp.where(x >= 0, x, NEG_SLOPE * x)

    def conv3(x, w):
        Hc, Wc = x.shape[2], x.shape[3]
        xp = jnp.pad(x, ((0, 0), (0, 0), (1, 1), (1, 1)))
        out = jnp.zeros_like(x)
        for kh in range(3):
            for kw in range(3):
                out = out + jnp.einsum('nchw,oc->nohw',
                                       xp[:, :, kh:kh + Hc, kw:kw + Wc],
                                       w[:, :, kh, kw], precision=hp)
        return out

    t = lrelu(bn(s, g1, b1))
    u = conv3(t, w3a)
    u2 = lrelu(bn(u, g2, b2))
    v = conv3(u2, w3b)
    return s + v


if __name__ == "__main__":
    N, F, H, W = 2, 4, 8, 8      # img_in_1: (N, 2F, H, W); img_in_2: (N, F, 2H, 2W)
    key = jax.random.PRNGKey(0)
    k1, k2, k3, k4, k5, k6 = jax.random.split(key, 6)

    x1 = jax.random.normal(k1, (N, 2 * F, H, W), jnp.float32)
    x2 = jax.random.normal(k2, (N, F, 2 * H, 2 * W), jnp.float32)

    # deterministic parameter init (shapes from the module's __init__)
    w_conv1 = 0.2 * jax.random.normal(k3, (F, 2 * F, 1, 1), jnp.float32)  # Conv2d OIHW
    w_up = 0.2 * jax.random.normal(k4, (F, F, 2, 2), jnp.float32)         # ConvTranspose2d (in, out, kH, kW)
    w3a = 0.2 * jax.random.normal(k5, (F, F, 3, 3), jnp.float32)          # Res conv1 OIHW
    w3b = 0.2 * jax.random.normal(k6, (F, F, 3, 3), jnp.float32)          # Res conv2 OIHW
    g1, b1 = jnp.ones((F,), jnp.float32), jnp.zeros((F,), jnp.float32)    # BatchNorm2d defaults
    g2, b2 = jnp.ones((F,), jnp.float32), jnp.zeros((F,), jnp.float32)
    # TODO(synk): training-mode running_mean/running_var buffer updates are
    # state mutation, not part of the forward output, and are not modeled.

    params = (w_conv1, w_up, w3a, w3b, g1, b1, g2, b2)

    out = jax.block_until_ready(jax.jit(up_forward)(x1, x2, params))
    ref = jax.block_until_ready(up_reference(x1, x2, params))

    assert out.shape == (N, F, 2 * H, 2 * W) and out.dtype == jnp.float32
    # kernels use default MXU precision + bf16 intermediate slabs -> bf16-level
    # tolerance vs the HIGHEST-precision f32 reference.
    np.testing.assert_allclose(np.asarray(out), np.asarray(ref),
                               atol=4e-2, rtol=4e-2)
    print("KERNEL_OK")
</pallas_src>

<mosaic_0001>
module attributes {stable_mosaic.version = 11 : i64} {
  func.func @upconv_add_stats_kernel(%arg0: i32, %arg1: i32, %arg2: i32, %arg3: memref<1x64x8xf32, #tpu.memory_space<vmem>>, %arg4: memref<1x8x8xf32, #tpu.memory_space<vmem>>, %arg5: memref<1x8x1x8x8xf32, #tpu.memory_space<vmem>>, %arg6: memref<1x8x1x8x8xbf16, #tpu.memory_space<vmem>>, %arg7: memref<1x1x8xf32, #tpu.memory_space<vmem>>, %arg8: memref<1x1x8xf32, #tpu.memory_space<vmem>>) attributes {dimension_semantics = [#tpu.dimension_semantics<parallel>, #tpu.dimension_semantics<arbitrary>, #tpu.dimension_semantics<arbitrary>], iteration_bounds = array<i64: 2, 1, 2>, scalar_prefetch = 0 : i64, scratch_operands = 0 : i64, tpu.core_type = #tpu.core_type<tc>, window_params = [{transform_indices = @transform_0, window_bounds = array<i64: 1, 64, 8>}, {transform_indices = @transform_1, window_bounds = array<i64: 1, 8, 8>}, {transform_indices = @transform_2, window_bounds = array<i64: 1, 8, 1, 8, 8>}, {transform_indices = @transform_3, window_bounds = array<i64: 1, 8, 1, 8, 8>}, {transform_indices = @transform_4, window_bounds = array<i64: 1, 1, 8>}, {transform_indices = @transform_5, window_bounds = array<i64: 1, 1, 8>}]} {
    %c0_i32 = arith.constant 0 : i32
    %0 = arith.cmpi eq, %arg1, %c0_i32 : i32
    %c0_i32_0 = arith.constant 0 : i32
    %1 = arith.cmpi eq, %arg2, %c0_i32_0 : i32
    %2 = arith.andi %0, %1 : i1
    %3 = arith.extui %2 : i1 to i32
    %c0_i32_1 = arith.constant 0 : i32
    %4 = arith.cmpi ne, %3, %c0_i32_1 : i32
    scf.if %4 {
      %cst_31 = arith.constant 0.000000e+00 : f32
      %27 = vector.broadcast %cst_31 : f32 to vector<1x1x8xf32>
      %c0_32 = arith.constant 0 : index
      %c0_33 = arith.constant 0 : index
      %c0_34 = arith.constant 0 : index
      %28 = vector.load %arg7[%c0_32, %c0_33, %c0_34] : memref<1x1x8xf32, #tpu.memory_space<vmem>>, vector<1x1x8xf32>
      tpu.vector_store %arg7[%c0_32, %c0_33, %c0_34], %27 {strides = array<i32>} : memref<1x1x8xf32, #tpu.memory_space<vmem>>, vector<1x1x8xf32>,
      %cst_35 = arith.constant 0.000000e+00 : f32
      %29 = vector.broadcast %cst_35 : f32 to vector<1x1x8xf32>
      %c0_36 = arith.constant 0 : index
      %c0_37 = arith.constant 0 : index
      %c0_38 = arith.constant 0 : index
      %30 = vector.load %arg8[%c0_36, %c0_37, %c0_38] : memref<1x1x8xf32, #tpu.memory_space<vmem>>, vector<1x1x8xf32>
      tpu.vector_store %arg8[%c0_36, %c0_37, %c0_38], %29 {strides = array<i32>} : memref<1x1x8xf32, #tpu.memory_space<vmem>>, vector<1x1x8xf32>,
    } else {
    }
    %c0 = arith.constant 0 : index
    %c0_2 = arith.constant 0 : index
    %c0_3 = arith.constant 0 : index
    %5 = vector.load %arg3[%c0, %c0_2, %c0_3] : memref<1x64x8xf32, #tpu.memory_space<vmem>>, vector<1x64x8xf32>
    %6 = vector.shape_cast %5 : vector<1x64x8xf32> to vector<64x8xf32>
    %c0_4 = arith.constant 0 : index
    %c0_5 = arith.constant 0 : index
    %c0_6 = arith.constant 0 : index
    %7 = vector.load %arg4[%c0_4, %c0_5, %c0_6] : memref<1x8x8xf32, #tpu.memory_space<vmem>>, vector<1x8x8xf32>
    %8 = vector.shape_cast %7 : vector<1x8x8xf32> to vector<8x8xf32>
    %cst = arith.constant dense<0.000000e+00> : vector<64x8xf32>
    %9 = tpu.matmul %6, %8, %cst {dimension_numbers = #tpu.dot_dimension_numbers<[1], [0], [0], [1], [0, 0, 1, 1], [], []>} : vector<64x8xf32>, vector<8x8xf32>, vector<64x8xf32> -> vector<64x8xf32>
    %c0_7 = arith.constant 0 : index
    %c0_8 = arith.constant 0 : index
    %c0_9 = arith.constant 0 : index
    %c0_10 = arith.constant 0 : index
    %c0_11 = arith.constant 0 : index
    %10 = vector.load %arg5[%c0_7, %c0_8, %c0_9, %c0_10, %c0_11] : memref<1x8x1x8x8xf32, #tpu.memory_space<vmem>>, vector<1x8x1x8x8xf32>
    %11 = vector.shape_cast %10 : vector<1x8x1x8x8xf32> to vector<64x8xf32>
    %12 = arith.addf %9, %11 : vector<64x8xf32>
    %13 = vector.shape_cast %12 : vector<64x8xf32> to vector<1x8x1x8x8xf32>
    %14 = arith.truncf %13 : vector<1x8x1x8x8xf32> to vector<1x8x1x8x8xbf16>
    %c0_12 = arith.constant 0 : index
    %c0_13 = arith.constant 0 : index
    %c0_14 = arith.constant 0 : index
    %c0_15 = arith.constant 0 : index
    %c0_16 = arith.constant 0 : index
    %15 = vector.load %arg6[%c0_12, %c0_13, %c0_14, %c0_15, %c0_16] : memref<1x8x1x8x8xbf16, #tpu.memory_space<vmem>>, vector<1x8x1x8x8xbf16>
    tpu.vector_store %arg6[%c0_12, %c0_13, %c0_14, %c0_15, %c0_16], %14 {strides = array<i32>} : memref<1x8x1x8x8xbf16, #tpu.memory_space<vmem>>, vector<1x8x1x8x8xbf16>,
    %c0_17 = arith.constant 0 : index
    %c0_18 = arith.constant 0 : index
    %c0_19 = arith.constant 0 : index
    %16 = vector.load %arg7[%c0_17, %c0_18, %c0_19] : memref<1x1x8xf32, #tpu.memory_space<vmem>>, vector<1x1x8xf32>
    %cst_20 = arith.constant dense<0.000000e+00> : vector<8xf32>
    %17 = vector.multi_reduction <add>, %12, %cst_20 [0] : vector<64x8xf32> to vector<8xf32>
    %18 = vector.shape_cast %17 : vector<8xf32> to vector<1x1x8xf32>
    %19 = arith.addf %16, %18 : vector<1x1x8xf32>
    %c0_21 = arith.constant 0 : index
    %c0_22 = arith.constant 0 : index
    %c0_23 = arith.constant 0 : index
    %20 = vector.load %arg7[%c0_21, %c0_22, %c0_23] : memref<1x1x8xf32, #tpu.memory_space<vmem>>, vector<1x1x8xf32>
    tpu.vector_store %arg7[%c0_21, %c0_22, %c0_23], %19 {strides = array<i32>} : memref<1x1x8xf32, #tpu.memory_space<vmem>>, vector<1x1x8xf32>,
    %c0_24 = arith.constant 0 : index
    %c0_25 = arith.constant 0 : index
    %c0_26 = arith.constant 0 : index
    %21 = vector.load %arg8[%c0_24, %c0_25, %c0_26] : memref<1x1x8xf32, #tpu.memory_space<vmem>>, vector<1x1x8xf32>
    %22 = arith.mulf %12, %12 : vector<64x8xf32>
    %cst_27 = arith.constant dense<0.000000e+00> : vector<8xf32>
    %23 = vector.multi_reduction <add>, %22, %cst_27 [0] : vector<64x8xf32> to vector<8xf32>
    %24 = vector.shape_cast %23 : vector<8xf32> to vector<1x1x8xf32>
    %25 = arith.addf %21, %24 : vector<1x1x8xf32>
    %c0_28 = arith.constant 0 : index
    %c0_29 = arith.constant 0 : index
    %c0_30 = arith.constant 0 : index
    %26 = vector.load %arg8[%c0_28, %c0_29, %c0_30] : memref<1x1x8xf32, #tpu.memory_space<vmem>>, vector<1x1x8xf32>
    tpu.vector_store %arg8[%c0_28, %c0_29, %c0_30], %25 {strides = array<i32>} : memref<1x1x8xf32, #tpu.memory_space<vmem>>, vector<1x1x8xf32>,
    return
  }
  func.func @transform_0(%arg0: i32, %arg1: i32, %arg2: i32) -> (i32, i32, i32) {
    %c0_i32 = arith.constant 0 : i32
    %c0_i32_0 = arith.constant 0 : i32
    return %arg0, %arg1, %c0_i32 : i32, i32, i32
  }
  func.func @transform_1(%arg0: i32, %arg1: i32, %arg2: i32) -> (i32, i32, i32) {
    %c0_i32 = arith.constant 0 : i32
    %c0_i32_0 = arith.constant 0 : i32
    %c0_i32_1 = arith.constant 0 : i32
    return %arg2, %c0_i32, %c0_i32_0 : i32, i32, i32
  }
  func.func @transform_2(%arg0: i32, %arg1: i32, %arg2: i32) -> (i32, i32, i32, i32, i32) {
    %c0_i32 = arith.constant 0 : i32
    %c0_i32_0 = arith.constant 0 : i32
    %c0_i32_1 = arith.constant 0 : i32
    return %arg0, %arg1, %arg2, %c0_i32, %c0_i32_0 : i32, i32, i32, i32, i32
  }
  func.func @transform_3(%arg0: i32, %arg1: i32, %arg2: i32) -> (i32, i32, i32, i32, i32) {
    %c0_i32 = arith.constant 0 : i32
    %c0_i32_0 = arith.constant 0 : i32
    %c0_i32_1 = arith.constant 0 : i32
    return %arg0, %arg1, %arg2, %c0_i32, %c0_i32_0 : i32, i32, i32, i32, i32
  }
  func.func @transform_4(%arg0: i32, %arg1: i32, %arg2: i32) -> (i32, i32, i32) {
    %c0_i32 = arith.constant 0 : i32
    %c0_i32_0 = arith.constant 0 : i32
    %c0_i32_1 = arith.constant 0 : i32
    return %arg0, %c0_i32, %c0_i32_0 : i32, i32, i32
  }
  func.func @transform_5(%arg0: i32, %arg1: i32, %arg2: i32) -> (i32, i32, i32) {
    %c0_i32 = arith.constant 0 : i32
    %c0_i32_0 = arith.constant 0 : i32
    %c0_i32_1 = arith.constant 0 : i32
    return %arg0, %c0_i32, %c0_i32_0 : i32, i32, i32
  }
}

module attributes {stable_mosaic.version = 11 : i64} {
  func.func @kernel(%arg0: i32, %arg1: i32, %arg2: memref<1x128x4xbf16, #tpu.memory_space<vmem>>, %arg3: memref<1x1x2x16x4xbf16, #tpu.memory_space<vmem>>, %arg4: memref<1x4xf32, #tpu.memory_space<vmem>>, %arg5: memref<1x4xf32, #tpu.memory_space<vmem>>, %arg6: memref<9x4x4xf32, #tpu.memory_space<vmem>>, %arg7: memref<1x128x4xbf16, #tpu.memory_space<vmem>>, %arg8: memref<1x1x4xf32, #tpu.memory_space<vmem>>, %arg9: memref<1x1x4xf32, #tpu.memory_space<vmem>>, %arg10: memref<176x4xf32, #tpu.memory_space<vmem>>) attributes {dimension_semantics = [#tpu.dimension_semantics<parallel>, #tpu.dimension_semantics<arbitrary>], iteration_bounds = array<i64: 2, 2>, scalar_prefetch = 0 : i64, scratch_operands = 1 : i64, tpu.core_type = #tpu.core_type<tc>, window_params = [{transform_indices = @transform_0, window_bounds = array<i64: 1, 128, 4>}, {transform_indices = @transform_1, window_bounds = array<i64: 1, 1, 2, 16, 4>}, {pipeline_mode = #tpu.pipeline_mode<synchronous>, transform_indices = @transform_2, window_bounds = array<i64: 1, 4>}, {pipeline_mode = #tpu.pipeline_mode<synchronous>, transform_indices = @transform_3, window_bounds = array<i64: 1, 4>}, {pipeline_mode = #tpu.pipeline_mode<synchronous>, transform_indices = @transform_4, window_bounds = array<i64: 9, 4, 4>}, {transform_indices = @transform_5, window_bounds = array<i64: 1, 128, 4>}, {transform_indices = @transform_6, window_bounds = array<i64: 1, 1, 4>}, {transform_indices = @transform_7, window_bounds = array<i64: 1, 1, 4>}]} {
    %c0_i32 = arith.constant 0 : i32
    %0 = arith.cmpi eq, %arg1, %c0_i32 : i32
    %1 = arith.extui %0 : i1 to i32
    %c0_i32_0 = arith.constant 0 : i32
    %2 = arith.cmpi ne, %1, %c0_i32_0 : i32
    scf.if %2 {
      %cst_102 = arith.constant 0.000000e+00 : f32
      %164 = vector.broadcast %cst_102 : f32 to vector<1x1x4xf32>
      %c0_103 = arith.constant 0 : index
      %c0_104 = arith.constant 0 : index
      %c0_105 = arith.constant 0 : index
      %165 = vector.load %arg8[%c0_103, %c0_104, %c0_105] : memref<1x1x4xf32, #tpu.memory_space<vmem>>, vector<1x1x4xf32>
      tpu.vector_store %arg8[%c0_103, %c0_104, %c0_105], %164 {strides = array<i32>} : memref<1x1x4xf32, #tpu.memory_space<vmem>>, vector<1x1x4xf32>,
      %cst_106 = arith.constant 0.000000e+00 : f32
      %166 = vector.broadcast %cst_106 : f32 to vector<1x1x4xf32>
      %c0_107 = arith.constant 0 : index
      %c0_108 = arith.constant 0 : index
      %c0_109 = arith.constant 0 : index
      %167 = vector.load %arg9[%c0_107, %c0_108, %c0_109] : memref<1x1x4xf32, #tpu.memory_space<vmem>>, vector<1x1x4xf32>
      tpu.vector_store %arg9[%c0_107, %c0_108, %c0_109], %166 {strides = array<i32>} : memref<1x1x4xf32, #tpu.memory_space<vmem>>, vector<1x1x4xf32>,
    } else {
    }
    %c0 = arith.constant 0 : index
    %c0_1 = arith.constant 0 : index
    %3 = vector.load %arg4[%c0, %c0_1] : memref<1x4xf32, #tpu.memory_space<vmem>>, vector<1x4xf32>
    %c0_2 = arith.constant 0 : index
    %c0_3 = arith.constant 0 : index
    %4 = vector.load %arg5[%c0_2, %c0_3] : memref<1x4xf32, #tpu.memory_space<vmem>>, vector<1x4xf32>
    %c0_4 = arith.constant 0 : index
    %c0_5 = arith.constant 0 : index
    %c0_6 = arith.constant 0 : index
    %5 = vector.load %arg2[%c0_4, %c0_5, %c0_6] : memref<1x128x4xbf16, #tpu.memory_space<vmem>>, vector<1x128x4xbf16>
    %6 = vector.shape_cast %5 : vector<1x128x4xbf16> to vector<128x4xbf16>
    %7 = arith.extf %6 : vector<128x4xbf16> to vector<128x4xf32>
    %8 = vector.broadcast %3 : vector<1x4xf32> to vector<128x4xf32>
    %9 = arith.mulf %7, %8 : vector<128x4xf32>
    %10 = vector.broadcast %4 : vector<1x4xf32> to vector<128x4xf32>
    %11 = arith.addf %9, %10 : vector<128x4xf32>
    %cst = arith.constant 0.000000e+00 : f32
    %12 = vector.broadcast %cst : f32 to vector<128x4xf32>
    %13 = arith.cmpf oge, %11, %12 : vector<128x4xf32>
    %cst_7 = arith.constant 0.00999999977 : f32
    %14 = vector.broadcast %cst_7 : f32 to vector<128x4xf32>
    %15 = arith.mulf %14, %11 : vector<128x4xf32>
    %16 = arith.select %13, %11, %15 : vector<128x4xi1>, vector<128x4xf32>
    %c24 = arith.constant 24 : index
    %c0_8 = arith.constant 0 : index
    %17 = vector.load %arg10[%c24, %c0_8] : memref<176x4xf32, #tpu.memory_space<vmem>>, vector<128x4xf32>
    tpu.vector_store %arg10[%c24, %c0_8], %16 {strides = array<i32>} : memref<176x4xf32, #tpu.memory_space<vmem>>, vector<128x4xf32>,
    %c0_i32_9 = arith.constant 0 : i32
    %18 = arith.cmpi sgt, %arg1, %c0_i32_9 : i32
    %19 = arith.extui %18 : i1 to i32
    %20 = arith.sitofp %19 : i32 to f32
    %c1_i32 = arith.constant 1 : i32
    %21 = arith.cmpi slt, %arg1, %c1_i32 : i32
    %22 = arith.extui %21 : i1 to i32
    %23 = arith.sitofp %22 : i32 to f32
    %c0_10 = arith.constant 0 : index
    %c0_11 = arith.constant 0 : index
    %c0_12 = arith.constant 0 : index
    %c0_13 = arith.constant 0 : index
    %c0_14 = arith.constant 0 : index
    %24 = vector.load %arg3[%c0_10, %c0_11, %c0_12, %c0_13, %c0_14] : memref<1x1x2x16x4xbf16, #tpu.memory_space<vmem>>, vector<1x1x1x16x4xbf16>
    %25 = vector.shape_cast %24 : vector<1x1x1x16x4xbf16> to vector<16x4xbf16>
    %26 = arith.extf %25 : vector<16x4xbf16> to vector<16x4xf32>
    %27 = vector.broadcast %3 : vector<1x4xf32> to vector<16x4xf32>
    %28 = arith.mulf %26, %27 : vector<16x4xf32>
    %29 = vector.broadcast %4 : vector<1x4xf32> to vector<16x4xf32>
    %30 = arith.addf %28, %29 : vector<16x4xf32>
    %cst_15 = arith.constant 0.000000e+00 : f32
    %31 = vector.broadcast %cst_15 : f32 to vector<16x4xf32>
    %32 = arith.cmpf oge, %30, %31 : vector<16x4xf32>
    %cst_16 = arith.constant 0.00999999977 : f32
    %33 = vector.broadcast %cst_16 : f32 to vector<16x4xf32>
    %34 = arith.mulf %33, %30 : vector<16x4xf32>
    %35 = arith.select %32, %30, %34 : vector<16x4xi1>, vector<16x4xf32>
    %36 = vector.broadcast %20 : f32 to vector<16x4xf32>
    %37 = arith.mulf %36, %35 : vector<16x4xf32>
    %c8 = arith.constant 8 : index
    %c0_17 = arith.constant 0 : index
    %38 = vector.load %arg10[%c8, %c0_17] : memref<176x4xf32, #tpu.memory_space<vmem>>, vector<16x4xf32>
    tpu.vector_store %arg10[%c8, %c0_17], %37 {strides = array<i32>} : memref<176x4xf32, #tpu.memory_space<vmem>>, vector<16x4xf32>,
    %c0_18 = arith.constant 0 : index
    %c0_19 = arith.constant 0 : index
    %c1 = arith.constant 1 : index
    %c0_20 = arith.constant 0 : index
    %c0_21 = arith.constant 0 : index
    %39 = vector.load %arg3[%c0_18, %c0_19, %c1, %c0_20, %c0_21] : memref<1x1x2x16x4xbf16, #tpu.memory_space<vmem>>, vector<1x1x1x16x4xbf16>
    %40 = vector.shape_cast %39 : vector<1x1x1x16x4xbf16> to vector<16x4xbf16>
    %41 = arith.extf %40 : vector<16x4xbf16> to vector<16x4xf32>
    %42 = vector.broadcast %3 : vector<1x4xf32> to vector<16x4xf32>
    %43 = arith.mulf %41, %42 : vector<16x4xf32>
    %44 = vector.broadcast %4 : vector<1x4xf32> to vector<16x4xf32>
    %45 = arith.addf %43, %44 : vector<16x4xf32>
    %cst_22 = arith.constant 0.000000e+00 : f32
    %46 = vector.broadcast %cst_22 : f32 to vector<16x4xf32>
    %47 = arith.cmpf oge, %45, %46 : vector<16x4xf32>
    %cst_23 = arith.constant 0.00999999977 : f32
    %48 = vector.broadcast %cst_23 : f32 to vector<16x4xf32>
    %49 = arith.mulf %48, %45 : vector<16x4xf32>
    %50 = arith.select %47, %45, %49 : vector<16x4xi1>, vector<16x4xf32>
    %51 = vector.broadcast %23 : f32 to vector<16x4xf32>
    %52 = arith.mulf %51, %50 : vector<16x4xf32>
    %c152 = arith.constant 152 : index
    %c0_24 = arith.constant 0 : index
    %53 = vector.load %arg10[%c152, %c0_24] : memref<176x4xf32, #tpu.memory_space<vmem>>, vector<16x4xf32>
    tpu.vector_store %arg10[%c152, %c0_24], %52 {strides = array<i32>} : memref<176x4xf32, #tpu.memory_space<vmem>>, vector<16x4xf32>,
    %cst_25 = arith.constant 0.000000e+00 : f32
    %54 = vector.broadcast %cst_25 : f32 to vector<8x4xf32>
    %c0_26 = arith.constant 0 : index
    %c0_27 = arith.constant 0 : index
    %55 = vector.load %arg10[%c0_26, %c0_27] : memref<176x4xf32, #tpu.memory_space<vmem>>, vector<8x4xf32>
    tpu.vector_store %arg10[%c0_26, %c0_27], %54 {strides = array<i32>} : memref<176x4xf32, #tpu.memory_space<vmem>>, vector<8x4xf32>,
    %cst_28 = arith.constant 0.000000e+00 : f32
    %56 = vector.broadcast %cst_28 : f32 to vector<8x4xf32>
    %c168 = arith.constant 168 : index
    %c0_29 = arith.constant 0 : index
    %57 = vector.load %arg10[%c168, %c0_29] : memref<176x4xf32, #tpu.memory_space<vmem>>, vector<8x4xf32>
    tpu.vector_store %arg10[%c168, %c0_29], %56 {strides = array<i32>} : memref<176x4xf32, #tpu.memory_space<vmem>>, vector<8x4xf32>,
    %58 = tpu.iota {dimensions = array<i32: 0>} : vector<128x1xi32>
    %c16_i32 = arith.constant 16 : i32
    %c0_i32_30 = arith.constant 0 : i32
    %59 = arith.cmpi eq, %c16_i32, %c0_i32_30 : i32
    %c1_i32_31 = arith.constant 1 : i32
    %60 = arith.select %59, %c1_i32_31, %c16_i32 : i32
    %61 = vector.broadcast %60 : i32 to vector<128x1xi32>
    %62 = arith.remsi %58, %61 : vector<128x1xi32>
    %c0_i32_32 = arith.constant 0 : i32
    %63 = vector.broadcast %c0_i32_32 : i32 to vector<128x1xi32>
    %64 = arith.cmpi ne, %62, %63 : vector<128x1xi32>
    %c0_i32_33 = arith.constant 0 : i32
    %65 = vector.broadcast %c0_i32_33 : i32 to vector<128x1xi32>
    %66 = arith.cmpi slt, %62, %65 : vector<128x1xi32>
    %c0_i32_34 = arith.constant 0 : i32
    %67 = arith.cmpi slt, %60, %c0_i32_34 : i32
    %68 = vector.broadcast %67 : i1 to vector<128x1xi1>
    %69 = vector.broadcast %68 : vector<128x1xi1> to vector<128x1xi1>
    %70 = arith.xori %66, %69 : vector<128x1xi1>
    %71 = arith.andi %70, %64 : vector<128x1xi1>
    %72 = vector.broadcast %60 : i32 to vector<128x1xi32>
    %73 = arith.addi %62, %72 : vector<128x1xi32>
    %74 = arith.select %71, %73, %62 : vector<128x1xi1>, vector<128x1xi32>
    %c0_i32_35 = arith.constant 0 : i32
    %75 = vector.broadcast %c0_i32_35 : i32 to vector<128x1xi32>
    %76 = arith.cmpi ne, %74, %75 : vector<128x1xi32>
    %c15_i32 = arith.constant 15 : i32
    %77 = vector.broadcast %c15_i32 : i32 to vector<128x1xi32>
    %78 = arith.cmpi ne, %74, %77 : vector<128x1xi32>
    %cst_36 = arith.constant 0.000000e+00 : f32
    %79 = vector.broadcast %cst_36 : f32 to vector<128x4xf32>
    %c7 = arith.constant 7 : index
    %c0_37 = arith.constant 0 : index
    %80 = vector.load %arg10[%c7, %c0_37] : memref<176x4xf32, #tpu.memory_space<vmem>>, vector<128x4xf32>
    %cst_38 = arith.constant 0.000000e+00 : f32
    %81 = vector.shape_cast %76 : vector<128x1xi1> to vector<128x1xi1>
    %82 = vector.broadcast %81 : vector<128x1xi1> to vector<128x4xi1>
    %83 = vector.broadcast %cst_38 : f32 to vector<128x4xf32>
    %84 = arith.select %82, %80, %83 : vector<128x4xi1>, vector<128x4xf32>
    %c0_39 = arith.constant 0 : index
    %c0_40 = arith.constant 0 : index
    %c0_41 = arith.constant 0 : index
    %85 = vector.load %arg6[%c0_39, %c0_40, %c0_41] : memref<9x4x4xf32, #tpu.memory_space<vmem>>, vector<1x4x4xf32>
    %86 = vector.shape_cast %85 : vector<1x4x4xf32> to vector<4x4xf32>
    %cst_42 = arith.constant dense<0.000000e+00> : vector<128x4xf32>
    %87 = tpu.matmul %84, %86, %cst_42 {dimension_numbers = #tpu.dot_dimension_numbers<[1], [0], [0], [1], [0, 0, 1, 1], [], []>} : vector<128x4xf32>, vector<4x4xf32>, vector<128x4xf32> -> vector<128x4xf32>
    %88 = arith.addf %79, %87 : vector<128x4xf32>
    %c8_43 = arith.constant 8 : index
    %c0_44 = arith.constant 0 : index
    %89 = vector.load %arg10[%c8_43, %c0_44] : memref<176x4xf32, #tpu.memory_space<vmem>>, vector<128x4xf32>
    %c1_45 = arith.constant 1 : index
    %c0_46 = arith.constant 0 : index
    %c0_47 = arith.constant 0 : index
    %90 = vector.load %arg6[%c1_45, %c0_46, %c0_47] : memref<9x4x4xf32, #tpu.memory_space<vmem>>, vector<1x4x4xf32>
    %91 = vector.shape_cast %90 : vector<1x4x4xf32> to vector<4x4xf32>
    %cst_48 = arith.constant dense<0.000000e+00> : vector<128x4xf32>
    %92 = tpu.matmul %89, %91, %cst_48 {dimension_numbers = #tpu.dot_dimension_numbers<[1], [0], [0], [1], [0, 0, 1, 1], [], []>} : vector<128x4xf32>, vector<4x4xf32>, vector<128x4xf32> -> vector<128x4xf32>
    %93 = arith.addf %88, %92 : vector<128x4xf32>
    %c9 = arith.constant 9 : index
    %c0_49 = arith.constant 0 : index
    %94 = vector.load %arg10[%c9, %c0_49] : memref<176x4xf32, #tpu.memory_space<vmem>>, vector<128x4xf32>
    %cst_50 = arith.constant 0.000000e+00 : f32
    %95 = vector.shape_cast %78 : vector<128x1xi1> to vector<128x1xi1>
    %96 = vector.broadcast %95 : vector<128x1xi1> to vector<128x4xi1>
    %97 = vector.broadcast %cst_50 : f32 to vector<128x4xf32>
    %98 = arith.select %96, %94, %97 : vector<128x4xi1>, vector<128x4xf32>
    %c2 = arith.constant 2 : index
    %c0_51 = arith.constant 0 : index
    %c0_52 = arith.constant 0 : index
    %99 = vector.load %arg6[%c2, %c0_51, %c0_52] : memref<9x4x4xf32, #tpu.memory_space<vmem>>, vector<1x4x4xf32>
    %100 = vector.shape_cast %99 : vector<1x4x4xf32> to vector<4x4xf32>
    %cst_53 = arith.constant dense<0.000000e+00> : vector<128x4xf32>
    %101 = tpu.matmul %98, %100, %cst_53 {dimension_numbers = #tpu.dot_dimension_numbers<[1], [0], [0], [1], [0, 0, 1, 1], [], []>} : vector<128x4xf32>, vector<4x4xf32>, vector<128x4xf32> -> vector<128x4xf32>
    %102 = arith.addf %93, %101 : vector<128x4xf32>
    %c23 = arith.constant 23 : index
    %c0_54 = arith.constant 0 : index
    %103 = vector.load %arg10[%c23, %c0_54] : memref<176x4xf32, #tpu.memory_space<vmem>>, vector<128x4xf32>
    %cst_55 = arith.constant 0.000000e+00 : f32
    %104 = vector.shape_cast %76 : vector<128x1xi1> to vector<128x1xi1>
    %105 = vector.broadcast %104 : vector<128x1xi1> to vector<128x4xi1>
    %106 = vector.broadcast %cst_55 : f32 to vector<128x4xf32>
    %107 = arith.select %105, %103, %106 : vector<128x4xi1>, vector<128x4xf32>
    %c3 = arith.constant 3 : index
    %c0_56 = arith.constant 0 : index
    %c0_57 = arith.constant 0 : index
    %108 = vector.load %arg6[%c3, %c0_56, %c0_57] : memref<9x4x4xf32, #tpu.memory_space<vmem>>, vector<1x4x4xf32>
    %109 = vector.shape_cast %108 : vector<1x4x4xf32> to vector<4x4xf32>
    %cst_58 = arith.constant dense<0.000000e+00> : vector<128x4xf32>
    %110 = tpu.matmul %107, %109, %cst_58 {dimension_numbers = #tpu.dot_dimension_numbers<[1], [0], [0], [1], [0, 0, 1, 1], [], []>} : vector<128x4xf32>, vector<4x4xf32>, vector<128x4xf32> -> vector<128x4xf32>
    %111 = arith.addf %102, %110 : vector<128x4xf32>
    %c24_59 = arith.constant 24 : index
    %c0_60 = arith.constant 0 : index
    %112 = vector.load %arg10[%c24_59, %c0_60] : memref<176x4xf32, #tpu.memory_space<vmem>>, vector<128x4xf32>
    %c4 = arith.constant 4 : index
    %c0_61 = arith.constant 0 : index
    %c0_62 = arith.constant 0 : index
    %113 = vector.load %arg6[%c4, %c0_61, %c0_62] : memref<9x4x4xf32, #tpu.memory_space<vmem>>, vector<1x4x4xf32>
    %114 = vector.shape_cast %113 : vector<1x4x4xf32> to vector<4x4xf32>
    %cst_63 = arith.constant dense<0.000000e+00> : vector<128x4xf32>
    %115 = tpu.matmul %112, %114, %cst_63 {dimension_numbers = #tpu.dot_dimension_numbers<[1], [0], [0], [1], [0, 0, 1, 1], [], []>} : vector<128x4xf32>, vector<4x4xf32>, vector<128x4xf32> -> vector<128x4xf32>
    %116 = arith.addf %111, %115 : vector<128x4xf32>
    %c25 = arith.constant 25 : index
    %c0_64 = arith.constant 0 : index
    %117 = vector.load %arg10[%c25, %c0_64] : memref<176x4xf32, #tpu.memory_space<vmem>>, vector<128x4xf32>
    %cst_65 = arith.constant 0.000000e+00 : f32
    %118 = vector.shape_cast %78 : vector<128x1xi1> to vector<128x1xi1>
    %119 = vector.broadcast %118 : vector<128x1xi1> to vector<128x4xi1>
    %120 = vector.broadcast %cst_65 : f32 to vector<128x4xf32>
    %121 = arith.select %119, %117, %120 : vector<128x4xi1>, vector<128x4xf32>
    %c5 = arith.constant 5 : index
    %c0_66 = arith.constant 0 : index
    %c0_67 = arith.constant 0 : index
    %122 = vector.load %arg6[%c5, %c0_66, %c0_67] : memref<9x4x4xf32, #tpu.memory_space<vmem>>, vector<1x4x4xf32>
    %123 = vector.shape_cast %122 : vector<1x4x4xf32> to vector<4x4xf32>
    %cst_68 = arith.constant dense<0.000000e+00> : vector<128x4xf32>
    %124 = tpu.matmul %121, %123, %cst_68 {dimension_numbers = #tpu.dot_dimension_numbers<[1], [0], [0], [1], [0, 0, 1, 1], [], []>} : vector<128x4xf32>, vector<4x4xf32>, vector<128x4xf32> -> vector<128x4xf32>
    %125 = arith.addf %116, %124 : vector<128x4xf32>
    %c39 = arith.constant 39 : index
    %c0_69 = arith.constant 0 : index
    %126 = vector.load %arg10[%c39, %c0_69] : memref<176x4xf32, #tpu.memory_space<vmem>>, vector<128x4xf32>
    %cst_70 = arith.constant 0.000000e+00 : f32
    %127 = vector.shape_cast %76 : vector<128x1xi1> to vector<128x1xi1>
    %128 = vector.broadcast %127 : vector<128x1xi1> to vector<128x4xi1>
    %129 = vector.broadcast %cst_70 : f32 to vector<128x4xf32>
    %130 = arith.select %128, %126, %129 : vector<128x4xi1>, vector<128x4xf32>
    %c6 = arith.constant 6 : index
    %c0_71 = arith.constant 0 : index
    %c0_72 = arith.constant 0 : index
    %131 = vector.load %arg6[%c6, %c0_71, %c0_72] : memref<9x4x4xf32, #tpu.memory_space<vmem>>, vector<1x4x4xf32>
    %132 = vector.shape_cast %131 : vector<1x4x4xf32> to vector<4x4xf32>
    %cst_73 = arith.constant dense<0.000000e+00> : vector<128x4xf32>
    %133 = tpu.matmul %130, %132, %cst_73 {dimension_numbers = #tpu.dot_dimension_numbers<[1], [0], [0], [1], [0, 0, 1, 1], [], []>} : vector<128x4xf32>, vector<4x4xf32>, vector<128x4xf32> -> vector<128x4xf32>
    %134 = arith.addf %125, %133 : vector<128x4xf32>
    %c40 = arith.constant 40 : index
    %c0_74 = arith.constant 0 : index
    %135 = vector.load %arg10[%c40, %c0_74] : memref<176x4xf32, #tpu.memory_space<vmem>>, vector<128x4xf32>
    %c7_75 = arith.constant 7 : index
    %c0_76 = arith.constant 0 : index
    %c0_77 = arith.constant 0 : index
    %136 = vector.load %arg6[%c7_75, %c0_76, %c0_77] : memref<9x4x4xf32, #tpu.memory_space<vmem>>, vector<1x4x4xf32>
    %137 = vector.shape_cast %136 : vector<1x4x4xf32> to vector<4x4xf32>
    %cst_78 = arith.constant dense<0.000000e+00> : vector<128x4xf32>
    %138 = tpu.matmul %135, %137, %cst_78 {dimension_numbers = #tpu.dot_dimension_numbers<[1], [0], [0], [1], [0, 0, 1, 1], [], []>} : vector<128x4xf32>, vector<4x4xf32>, vector<128x4xf32> -> vector<128x4xf32>
    %139 = arith.addf %134, %138 : vector<128x4xf32>
    %c41 = arith.constant 41 : index
    %c0_79 = arith.constant 0 : index
    %140 = vector.load %arg10[%c41, %c0_79] : memref<176x4xf32, #tpu.memory_space<vmem>>, vector<128x4xf32>
    %cst_80 = arith.constant 0.000000e+00 : f32
    %141 = vector.shape_cast %78 : vector<128x1xi1> to vector<128x1xi1>
    %142 = vector.broadcast %141 : vector<128x1xi1> to vector<128x4xi1>
    %143 = vector.broadcast %cst_80 : f32 to vector<128x4xf32>
    %144 = arith.select %142, %140, %143 : vector<128x4xi1>, vector<128x4xf32>
    %c8_81 = arith.constant 8 : index
    %c0_82 = arith.constant 0 : index
    %c0_83 = arith.constant 0 : index
    %145 = vector.load %arg6[%c8_81, %c0_82, %c0_83] : memref<9x4x4xf32, #tpu.memory_space<vmem>>, vector<1x4x4xf32>
    %146 = vector.shape_cast %145 : vector<1x4x4xf32> to vector<4x4xf32>
    %cst_84 = arith.constant dense<0.000000e+00> : vector<128x4xf32>
    %147 = tpu.matmul %144, %146, %cst_84 {dimension_numbers = #tpu.dot_dimension_numbers<[1], [0], [0], [1], [0, 0, 1, 1], [], []>} : vector<128x4xf32>, vector<4x4xf32>, vector<128x4xf32> -> vector<128x4xf32>
    %148 = arith.addf %139, %147 : vector<128x4xf32>
    %149 = arith.truncf %148 : vector<128x4xf32> to vector<128x4xbf16>
    %c0_85 = arith.constant 0 : index
    %c0_86 = arith.constant 0 : index
    %c0_87 = arith.constant 0 : index
    %150 = vector.load %arg7[%c0_85, %c0_86, %c0_87] : memref<1x128x4xbf16, #tpu.memory_space<vmem>>, vector<1x128x4xbf16>
    %151 = vector.shape_cast %150 : vector<1x128x4xbf16> to vector<128x4xbf16>
    %152 = vector.shape_cast %149 : vector<128x4xbf16> to vector<1x128x4xbf16>
    tpu.vector_store %arg7[%c0_85, %c0_86, %c0_87], %152 {strides = array<i32>} : memref<1x128x4xbf16, #tpu.memory_space<vmem>>, vector<1x128x4xbf16>,
    %c0_88 = arith.constant 0 : index
    %c0_89 = arith.constant 0 : index
    %c0_90 = arith.constant 0 : index
    %153 = vector.load %arg8[%c0_88, %c0_89, %c0_90] : memref<1x1x4xf32, #tpu.memory_space<vmem>>, vector<1x1x4xf32>
    %cst_91 = arith.constant dense<0.000000e+00> : vector<4xf32>
    %154 = vector.multi_reduction <add>, %148, %cst_91 [0] : vector<128x4xf32> to vector<4xf32>
    %155 = vector.shape_cast %154 : vector<4xf32> to vector<1x1x4xf32>
    %156 = arith.addf %153, %155 : vector<1x1x4xf32>
    %c0_92 = arith.constant 0 : index
    %c0_93 = arith.constant 0 : index
    %c0_94 = arith.constant 0 : index
    %157 = vector.load %arg8[%c0_92, %c0_93, %c0_94] : memref<1x1x4xf32, #tpu.memory_space<vmem>>, vector<1x1x4xf32>
    tpu.vector_store %arg8[%c0_92, %c0_93, %c0_94], %156 {strides = array<i32>} : memref<1x1x4xf32, #tpu.memory_space<vmem>>, vector<1x1x4xf32>,
    %c0_95 = arith.constant 0 : index
    %c0_96 = arith.constant 0 : index
    %c0_97 = arith.constant 0 : index
    %158 = vector.load %arg9[%c0_95, %c0_96, %c0_97] : memref<1x1x4xf32, #tpu.memory_space<vmem>>, vector<1x1x4xf32>
    %159 = arith.mulf %148, %148 : vector<128x4xf32>
    %cst_98 = arith.constant dense<0.000000e+00> : vector<4xf32>
    %160 = vector.multi_reduction <add>, %159, %cst_98 [0] : vector<128x4xf32> to vector<4xf32>
    %161 = vector.shape_cast %160 : vector<4xf32> to vector<1x1x4xf32>
    %162 = arith.addf %158, %161 : vector<1x1x4xf32>
    %c0_99 = arith.constant 0 : index
    %c0_100 = arith.constant 0 : index
    %c0_101 = arith.constant 0 : index
    %163 = vector.load %arg9[%c0_99, %c0_100, %c0_101] : memref<1x1x4xf32, #tpu.memory_space<vmem>>, vector<1x1x4xf32>
    tpu.vector_store %arg9[%c0_99, %c0_100, %c0_101], %162 {strides = array<i32>} : memref<1x1x4xf32, #tpu.memory_space<vmem>>, vector<1x1x4xf32>,
    return
  }
  func.func @transform_0(%arg0: i32, %arg1: i32) -> (i32, i32, i32) {
    %c0_i32 = arith.constant 0 : i32
    %c0_i32_0 = arith.constant 0 : i32
    return %arg0, %arg1, %c0_i32 : i32, i32, i32
  }
  func.func @transform_1(%arg0: i32, %arg1: i32) -> (i32, i32, i32, i32, i32) {
    %c0_i32 = arith.constant 0 : i32
    %c0_i32_0 = arith.constant 0 : i32
    %c0_i32_1 = arith.constant 0 : i32
    %c0_i32_2 = arith.constant 0 : i32
    return %arg0, %arg1, %c0_i32, %c0_i32_0, %c0_i32_1 : i32, i32, i32, i32, i32
  }
  func.func @transform_2(%arg0: i32, %arg1: i32) -> (i32, i32) {
    %c0_i32 = arith.constant 0 : i32
    %c0_i32_0 = arith.constant 0 : i32
    %c0_i32_1 = arith.constant 0 : i32
    return %c0_i32, %c0_i32_0 : i32, i32
  }
  func.func @transform_3(%arg0: i32, %arg1: i32) -> (i32, i32) {
    %c0_i32 = arith.constant 0 : i32
    %c0_i32_0 = arith.constant 0 : i32
    %c0_i32_1 = arith.constant 0 : i32
    return %c0_i32, %c0_i32_0 : i32, i32
  }
  func.func @transform_4(%arg0: i32, %arg1: i32) -> (i32, i32, i32) {
    %c0_i32 = arith.constant 0 : i32
    %c0_i32_0 = arith.constant 0 : i32
    %c0_i32_1 = arith.constant 0 : i32
    %c0_i32_2 = arith.constant 0 : i32
    return %c0_i32, %c0_i32_0, %c0_i32_1 : i32, i32, i32
  }
  func.func @transform_5(%arg0: i32, %arg1: i32) -> (i32, i32, i32) {
    %c0_i32 = arith.constant 0 : i32
    %c0_i32_0 = arith.constant 0 : i32
    return %arg0, %arg1, %c0_i32 : i32, i32, i32
  }
  func.func @transform_6(%arg0: i32, %arg1: i32) -> (i32, i32, i32) {
    %c0_i32 = arith.constant 0 : i32
    %c0_i32_0 = arith.constant 0 : i32
    %c0_i32_1 = arith.constant 0 : i32
    return %arg0, %c0_i32, %c0_i32_0 : i32, i32, i32
  }
  func.func @transform_7(%arg0: i32, %arg1: i32) -> (i32, i32, i32) {
    %c0_i32 = arith.constant 0 : i32
    %c0_i32_0 = arith.constant 0 : i32
    %c0_i32_1 = arith.constant 0 : i32
    return %arg0, %c0_i32, %c0_i32_0 : i32, i32, i32
  }
}

module attributes {stable_mosaic.version = 11 : i64} {
  func.func @kernel(%arg0: i32, %arg1: i32, %arg2: memref<1x128x4xbf16, #tpu.memory_space<vmem>>, %arg3: memref<1x1x2x16x4xbf16, #tpu.memory_space<vmem>>, %arg4: memref<1x4xf32, #tpu.memory_space<vmem>>, %arg5: memref<1x4xf32, #tpu.memory_space<vmem>>, %arg6: memref<9x4x4xf32, #tpu.memory_space<vmem>>, %arg7: memref<1x128x4xbf16, #tpu.memory_space<vmem>>, %arg8: memref<1x128x4xf32, #tpu.memory_space<vmem>>, %arg9: memref<176x4xf32, #tpu.memory_space<vmem>>) attributes {dimension_semantics = [#tpu.dimension_semantics<parallel>, #tpu.dimension_semantics<parallel>], iteration_bounds = array<i64: 2, 2>, scalar_prefetch = 0 : i64, scratch_operands = 1 : i64, tpu.core_type = #tpu.core_type<tc>, window_params = [{transform_indices = @transform_0, window_bounds = array<i64: 1, 128, 4>}, {transform_indices = @transform_1, window_bounds = array<i64: 1, 1, 2, 16, 4>}, {pipeline_mode = #tpu.pipeline_mode<synchronous>, transform_indices = @transform_2, window_bounds = array<i64: 1, 4>}, {pipeline_mode = #tpu.pipeline_mode<synchronous>, transform_indices = @transform_3, window_bounds = array<i64: 1, 4>}, {pipeline_mode = #tpu.pipeline_mode<synchronous>, transform_indices = @transform_4, window_bounds = array<i64: 9, 4, 4>}, {transform_indices = @transform_5, window_bounds = array<i64: 1, 128, 4>}, {transform_indices = @transform_6, window_bounds = array<i64: 1, 128, 4>}]} {
    %c0 = arith.constant 0 : index
    %c0_0 = arith.constant 0 : index
    %0 = vector.load %arg4[%c0, %c0_0] : memref<1x4xf32, #tpu.memory_space<vmem>>, vector<1x4xf32>
    %c0_1 = arith.constant 0 : index
    %c0_2 = arith.constant 0 : index
    %1 = vector.load %arg5[%c0_1, %c0_2] : memref<1x4xf32, #tpu.memory_space<vmem>>, vector<1x4xf32>
    %c0_3 = arith.constant 0 : index
    %c0_4 = arith.constant 0 : index
    %c0_5 = arith.constant 0 : index
    %2 = vector.load %arg2[%c0_3, %c0_4, %c0_5] : memref<1x128x4xbf16, #tpu.memory_space<vmem>>, vector<1x128x4xbf16>
    %3 = vector.shape_cast %2 : vector<1x128x4xbf16> to vector<128x4xbf16>
    %4 = arith.extf %3 : vector<128x4xbf16> to vector<128x4xf32>
    %5 = vector.broadcast %0 : vector<1x4xf32> to vector<128x4xf32>
    %6 = arith.mulf %4, %5 : vector<128x4xf32>
    %7 = vector.broadcast %1 : vector<1x4xf32> to vector<128x4xf32>
    %8 = arith.addf %6, %7 : vector<128x4xf32>
    %cst = arith.constant 0.000000e+00 : f32
    %9 = vector.broadcast %cst : f32 to vector<128x4xf32>
    %10 = arith.cmpf oge, %8, %9 : vector<128x4xf32>
    %cst_6 = arith.constant 0.00999999977 : f32
    %11 = vector.broadcast %cst_6 : f32 to vector<128x4xf32>
    %12 = arith.mulf %11, %8 : vector<128x4xf32>
    %13 = arith.select %10, %8, %12 : vector<128x4xi1>, vector<128x4xf32>
    %c24 = arith.constant 24 : index
    %c0_7 = arith.constant 0 : index
    %14 = vector.load %arg9[%c24, %c0_7] : memref<176x4xf32, #tpu.memory_space<vmem>>, vector<128x4xf32>
    tpu.vector_store %arg9[%c24, %c0_7], %13 {strides = array<i32>} : memref<176x4xf32, #tpu.memory_space<vmem>>, vector<128x4xf32>,
    %c0_i32 = arith.constant 0 : i32
    %15 = arith.cmpi sgt, %arg1, %c0_i32 : i32
    %16 = arith.extui %15 : i1 to i32
    %17 = arith.sitofp %16 : i32 to f32
    %c1_i32 = arith.constant 1 : i32
    %18 = arith.cmpi slt, %arg1, %c1_i32 : i32
    %19 = arith.extui %18 : i1 to i32
    %20 = arith.sitofp %19 : i32 to f32
    %c0_8 = arith.constant 0 : index
    %c0_9 = arith.constant 0 : index
    %c0_10 = arith.constant 0 : index
    %c0_11 = arith.constant 0 : index
    %c0_12 = arith.constant 0 : index
    %21 = vector.load %arg3[%c0_8, %c0_9, %c0_10, %c0_11, %c0_12] : memref<1x1x2x16x4xbf16, #tpu.memory_space<vmem>>, vector<1x1x1x16x4xbf16>
    %22 = vector.shape_cast %21 : vector<1x1x1x16x4xbf16> to vector<16x4xbf16>
    %23 = arith.extf %22 : vector<16x4xbf16> to vector<16x4xf32>
    %24 = vector.broadcast %0 : vector<1x4xf32> to vector<16x4xf32>
    %25 = arith.mulf %23, %24 : vector<16x4xf32>
    %26 = vector.broadcast %1 : vector<1x4xf32> to vector<16x4xf32>
    %27 = arith.addf %25, %26 : vector<16x4xf32>
    %cst_13 = arith.constant 0.000000e+00 : f32
    %28 = vector.broadcast %cst_13 : f32 to vector<16x4xf32>
    %29 = arith.cmpf oge, %27, %28 : vector<16x4xf32>
    %cst_14 = arith.constant 0.00999999977 : f32
    %30 = vector.broadcast %cst_14 : f32 to vector<16x4xf32>
    %31 = arith.mulf %30, %27 : vector<16x4xf32>
    %32 = arith.select %29, %27, %31 : vector<16x4xi1>, vector<16x4xf32>
    %33 = vector.broadcast %17 : f32 to vector<16x4xf32>
    %34 = arith.mulf %33, %32 : vector<16x4xf32>
    %c8 = arith.constant 8 : index
    %c0_15 = arith.constant 0 : index
    %35 = vector.load %arg9[%c8, %c0_15] : memref<176x4xf32, #tpu.memory_space<vmem>>, vector<16x4xf32>
    tpu.vector_store %arg9[%c8, %c0_15], %34 {strides = array<i32>} : memref<176x4xf32, #tpu.memory_space<vmem>>, vector<16x4xf32>,
    %c0_16 = arith.constant 0 : index
    %c0_17 = arith.constant 0 : index
    %c1 = arith.constant 1 : index
    %c0_18 = arith.constant 0 : index
    %c0_19 = arith.constant 0 : index
    %36 = vector.load %arg3[%c0_16, %c0_17, %c1, %c0_18, %c0_19] : memref<1x1x2x16x4xbf16, #tpu.memory_space<vmem>>, vector<1x1x1x16x4xbf16>
    %37 = vector.shape_cast %36 : vector<1x1x1x16x4xbf16> to vector<16x4xbf16>
    %38 = arith.extf %37 : vector<16x4xbf16> to vector<16x4xf32>
    %39 = vector.broadcast %0 : vector<1x4xf32> to vector<16x4xf32>
    %40 = arith.mulf %38, %39 : vector<16x4xf32>
    %41 = vector.broadcast %1 : vector<1x4xf32> to vector<16x4xf32>
    %42 = arith.addf %40, %41 : vector<16x4xf32>
    %cst_20 = arith.constant 0.000000e+00 : f32
    %43 = vector.broadcast %cst_20 : f32 to vector<16x4xf32>
    %44 = arith.cmpf oge, %42, %43 : vector<16x4xf32>
    %cst_21 = arith.constant 0.00999999977 : f32
    %45 = vector.broadcast %cst_21 : f32 to vector<16x4xf32>
    %46 = arith.mulf %45, %42 : vector<16x4xf32>
    %47 = arith.select %44, %42, %46 : vector<16x4xi1>, vector<16x4xf32>
    %48 = vector.broadcast %20 : f32 to vector<16x4xf32>
    %49 = arith.mulf %48, %47 : vector<16x4xf32>
    %c152 = arith.constant 152 : index
    %c0_22 = arith.constant 0 : index
    %50 = vector.load %arg9[%c152, %c0_22] : memref<176x4xf32, #tpu.memory_space<vmem>>, vector<16x4xf32>
    tpu.vector_store %arg9[%c152, %c0_22], %49 {strides = array<i32>} : memref<176x4xf32, #tpu.memory_space<vmem>>, vector<16x4xf32>,
    %cst_23 = arith.constant 0.000000e+00 : f32
    %51 = vector.broadcast %cst_23 : f32 to vector<8x4xf32>
    %c0_24 = arith.constant 0 : index
    %c0_25 = arith.constant 0 : index
    %52 = vector.load %arg9[%c0_24, %c0_25] : memref<176x4xf32, #tpu.memory_space<vmem>>, vector<8x4xf32>
    tpu.vector_store %arg9[%c0_24, %c0_25], %51 {strides = array<i32>} : memref<176x4xf32, #tpu.memory_space<vmem>>, vector<8x4xf32>,
    %cst_26 = arith.constant 0.000000e+00 : f32
    %53 = vector.broadcast %cst_26 : f32 to vector<8x4xf32>
    %c168 = arith.constant 168 : index
    %c0_27 = arith.constant 0 : index
    %54 = vector.load %arg9[%c168, %c0_27] : memref<176x4xf32, #tpu.memory_space<vmem>>, vector<8x4xf32>
    tpu.vector_store %arg9[%c168, %c0_27], %53 {strides = array<i32>} : memref<176x4xf32, #tpu.memory_space<vmem>>, vector<8x4xf32>,
    %55 = tpu.iota {dimensions = array<i32: 0>} : vector<128x1xi32>
    %c16_i32 = arith.constant 16 : i32
    %c0_i32_28 = arith.constant 0 : i32
    %56 = arith.cmpi eq, %c16_i32, %c0_i32_28 : i32
    %c1_i32_29 = arith.constant 1 : i32
    %57 = arith.select %56, %c1_i32_29, %c16_i32 : i32
    %58 = vector.broadcast %57 : i32 to vector<128x1xi32>
    %59 = arith.remsi %55, %58 : vector<128x1xi32>
    %c0_i32_30 = arith.constant 0 : i32
    %60 = vector.broadcast %c0_i32_30 : i32 to vector<128x1xi32>
    %61 = arith.cmpi ne, %59, %60 : vector<128x1xi32>
    %c0_i32_31 = arith.constant 0 : i32
    %62 = vector.broadcast %c0_i32_31 : i32 to vector<128x1xi32>
    %63 = arith.cmpi slt, %59, %62 : vector<128x1xi32>
    %c0_i32_32 = arith.constant 0 : i32
    %64 = arith.cmpi slt, %57, %c0_i32_32 : i32
    %65 = vector.broadcast %64 : i1 to vector<128x1xi1>
    %66 = vector.broadcast %65 : vector<128x1xi1> to vector<128x1xi1>
    %67 = arith.xori %63, %66 : vector<128x1xi1>
    %68 = arith.andi %67, %61 : vector<128x1xi1>
    %69 = vector.broadcast %57 : i32 to vector<128x1xi32>
    %70 = arith.addi %59, %69 : vector<128x1xi32>
    %71 = arith.select %68, %70, %59 : vector<128x1xi1>, vector<128x1xi32>
    %c0_i32_33 = arith.constant 0 : i32
    %72 = vector.broadcast %c0_i32_33 : i32 to vector<128x1xi32>
    %73 = arith.cmpi ne, %71, %72 : vector<128x1xi32>
    %c15_i32 = arith.constant 15 : i32
    %74 = vector.broadcast %c15_i32 : i32 to vector<128x1xi32>
    %75 = arith.cmpi ne, %71, %74 : vector<128x1xi32>
    %cst_34 = arith.constant 0.000000e+00 : f32
    %76 = vector.broadcast %cst_34 : f32 to vector<128x4xf32>
    %c7 = arith.constant 7 : index
    %c0_35 = arith.constant 0 : index
    %77 = vector.load %arg9[%c7, %c0_35] : memref<176x4xf32, #tpu.memory_space<vmem>>, vector<128x4xf32>
    %cst_36 = arith.constant 0.000000e+00 : f32
    %78 = vector.shape_cast %73 : vector<128x1xi1> to vector<128x1xi1>
    %79 = vector.broadcast %78 : vector<128x1xi1> to vector<128x4xi1>
    %80 = vector.broadcast %cst_36 : f32 to vector<128x4xf32>
    %81 = arith.select %79, %77, %80 : vector<128x4xi1>, vector<128x4xf32>
    %c0_37 = arith.constant 0 : index
    %c0_38 = arith.constant 0 : index
    %c0_39 = arith.constant 0 : index
    %82 = vector.load %arg6[%c0_37, %c0_38, %c0_39] : memref<9x4x4xf32, #tpu.memory_space<vmem>>, vector<1x4x4xf32>
    %83 = vector.shape_cast %82 : vector<1x4x4xf32> to vector<4x4xf32>
    %cst_40 = arith.constant dense<0.000000e+00> : vector<128x4xf32>
    %84 = tpu.matmul %81, %83, %cst_40 {dimension_numbers = #tpu.dot_dimension_numbers<[1], [0], [0], [1], [0, 0, 1, 1], [], []>} : vector<128x4xf32>, vector<4x4xf32>, vector<128x4xf32> -> vector<128x4xf32>
    %85 = arith.addf %76, %84 : vector<128x4xf32>
    %c8_41 = arith.constant 8 : index
    %c0_42 = arith.constant 0 : index
    %86 = vector.load %arg9[%c8_41, %c0_42] : memref<176x4xf32, #tpu.memory_space<vmem>>, vector<128x4xf32>
    %c1_43 = arith.constant 1 : index
    %c0_44 = arith.constant 0 : index
    %c0_45 = arith.constant 0 : index
    %87 = vector.load %arg6[%c1_43, %c0_44, %c0_45] : memref<9x4x4xf32, #tpu.memory_space<vmem>>, vector<1x4x4xf32>
    %88 = vector.shape_cast %87 : vector<1x4x4xf32> to vector<4x4xf32>
    %cst_46 = arith.constant dense<0.000000e+00> : vector<128x4xf32>
    %89 = tpu.matmul %86, %88, %cst_46 {dimension_numbers = #tpu.dot_dimension_numbers<[1], [0], [0], [1], [0, 0, 1, 1], [], []>} : vector<128x4xf32>, vector<4x4xf32>, vector<128x4xf32> -> vector<128x4xf32>
    %90 = arith.addf %85, %89 : vector<128x4xf32>
    %c9 = arith.constant 9 : index
    %c0_47 = arith.constant 0 : index
    %91 = vector.load %arg9[%c9, %c0_47] : memref<176x4xf32, #tpu.memory_space<vmem>>, vector<128x4xf32>
    %cst_48 = arith.constant 0.000000e+00 : f32
    %92 = vector.shape_cast %75 : vector<128x1xi1> to vector<128x1xi1>
    %93 = vector.broadcast %92 : vector<128x1xi1> to vector<128x4xi1>
    %94 = vector.broadcast %cst_48 : f32 to vector<128x4xf32>
    %95 = arith.select %93, %91, %94 : vector<128x4xi1>, vector<128x4xf32>
    %c2 = arith.constant 2 : index
    %c0_49 = arith.constant 0 : index
    %c0_50 = arith.constant 0 : index
    %96 = vector.load %arg6[%c2, %c0_49, %c0_50] : memref<9x4x4xf32, #tpu.memory_space<vmem>>, vector<1x4x4xf32>
    %97 = vector.shape_cast %96 : vector<1x4x4xf32> to vector<4x4xf32>
    %cst_51 = arith.constant dense<0.000000e+00> : vector<128x4xf32>
    %98 = tpu.matmul %95, %97, %cst_51 {dimension_numbers = #tpu.dot_dimension_numbers<[1], [0], [0], [1], [0, 0, 1, 1], [], []>} : vector<128x4xf32>, vector<4x4xf32>, vector<128x4xf32> -> vector<128x4xf32>
    %99 = arith.addf %90, %98 : vector<128x4xf32>
    %c23 = arith.constant 23 : index
    %c0_52 = arith.constant 0 : index
    %100 = vector.load %arg9[%c23, %c0_52] : memref<176x4xf32, #tpu.memory_space<vmem>>, vector<128x4xf32>
    %cst_53 = arith.constant 0.000000e+00 : f32
    %101 = vector.shape_cast %73 : vector<128x1xi1> to vector<128x1xi1>
    %102 = vector.broadcast %101 : vector<128x1xi1> to vector<128x4xi1>
    %103 = vector.broadcast %cst_53 : f32 to vector<128x4xf32>
    %104 = arith.select %102, %100, %103 : vector<128x4xi1>, vector<128x4xf32>
    %c3 = arith.constant 3 : index
    %c0_54 = arith.constant 0 : index
    %c0_55 = arith.constant 0 : index
    %105 = vector.load %arg6[%c3, %c0_54, %c0_55] : memref<9x4x4xf32, #tpu.memory_space<vmem>>, vector<1x4x4xf32>
    %106 = vector.shape_cast %105 : vector<1x4x4xf32> to vector<4x4xf32>
    %cst_56 = arith.constant dense<0.000000e+00> : vector<128x4xf32>
    %107 = tpu.matmul %104, %106, %cst_56 {dimension_numbers = #tpu.dot_dimension_numbers<[1], [0], [0], [1], [0, 0, 1, 1], [], []>} : vector<128x4xf32>, vector<4x4xf32>, vector<128x4xf32> -> vector<128x4xf32>
    %108 = arith.addf %99, %107 : vector<128x4xf32>
    %c24_57 = arith.constant 24 : index
    %c0_58 = arith.constant 0 : index
    %109 = vector.load %arg9[%c24_57, %c0_58] : memref<176x4xf32, #tpu.memory_space<vmem>>, vector<128x4xf32>
    %c4 = arith.constant 4 : index
    %c0_59 = arith.constant 0 : index
    %c0_60 = arith.constant 0 : index
    %110 = vector.load %arg6[%c4, %c0_59, %c0_60] : memref<9x4x4xf32, #tpu.memory_space<vmem>>, vector<1x4x4xf32>
    %111 = vector.shape_cast %110 : vector<1x4x4xf32> to vector<4x4xf32>
    %cst_61 = arith.constant dense<0.000000e+00> : vector<128x4xf32>
    %112 = tpu.matmul %109, %111, %cst_61 {dimension_numbers = #tpu.dot_dimension_numbers<[1], [0], [0], [1], [0, 0, 1, 1], [], []>} : vector<128x4xf32>, vector<4x4xf32>, vector<128x4xf32> -> vector<128x4xf32>
    %113 = arith.addf %108, %112 : vector<128x4xf32>
    %c25 = arith.constant 25 : index
    %c0_62 = arith.constant 0 : index
    %114 = vector.load %arg9[%c25, %c0_62] : memref<176x4xf32, #tpu.memory_space<vmem>>, vector<128x4xf32>
    %cst_63 = arith.constant 0.000000e+00 : f32
    %115 = vector.shape_cast %75 : vector<128x1xi1> to vector<128x1xi1>
    %116 = vector.broadcast %115 : vector<128x1xi1> to vector<128x4xi1>
    %117 = vector.broadcast %cst_63 : f32 to vector<128x4xf32>
    %118 = arith.select %116, %114, %117 : vector<128x4xi1>, vector<128x4xf32>
    %c5 = arith.constant 5 : index
    %c0_64 = arith.constant 0 : index
    %c0_65 = arith.constant 0 : index
    %119 = vector.load %arg6[%c5, %c0_64, %c0_65] : memref<9x4x4xf32, #tpu.memory_space<vmem>>, vector<1x4x4xf32>
    %120 = vector.shape_cast %119 : vector<1x4x4xf32> to vector<4x4xf32>
    %cst_66 = arith.constant dense<0.000000e+00> : vector<128x4xf32>
    %121 = tpu.matmul %118, %120, %cst_66 {dimension_numbers = #tpu.dot_dimension_numbers<[1], [0], [0], [1], [0, 0, 1, 1], [], []>} : vector<128x4xf32>, vector<4x4xf32>, vector<128x4xf32> -> vector<128x4xf32>
    %122 = arith.addf %113, %121 : vector<128x4xf32>
    %c39 = arith.constant 39 : index
    %c0_67 = arith.constant 0 : index
    %123 = vector.load %arg9[%c39, %c0_67] : memref<176x4xf32, #tpu.memory_space<vmem>>, vector<128x4xf32>
    %cst_68 = arith.constant 0.000000e+00 : f32
    %124 = vector.shape_cast %73 : vector<128x1xi1> to vector<128x1xi1>
    %125 = vector.broadcast %124 : vector<128x1xi1> to vector<128x4xi1>
    %126 = vector.broadcast %cst_68 : f32 to vector<128x4xf32>
    %127 = arith.select %125, %123, %126 : vector<128x4xi1>, vector<128x4xf32>
    %c6 = arith.constant 6 : index
    %c0_69 = arith.constant 0 : index
    %c0_70 = arith.constant 0 : index
    %128 = vector.load %arg6[%c6, %c0_69, %c0_70] : memref<9x4x4xf32, #tpu.memory_space<vmem>>, vector<1x4x4xf32>
    %129 = vector.shape_cast %128 : vector<1x4x4xf32> to vector<4x4xf32>
    %cst_71 = arith.constant dense<0.000000e+00> : vector<128x4xf32>
    %130 = tpu.matmul %127, %129, %cst_71 {dimension_numbers = #tpu.dot_dimension_numbers<[1], [0], [0], [1], [0, 0, 1, 1], [], []>} : vector<128x4xf32>, vector<4x4xf32>, vector<128x4xf32> -> vector<128x4xf32>
    %131 = arith.addf %122, %130 : vector<128x4xf32>
    %c40 = arith.constant 40 : index
    %c0_72 = arith.constant 0 : index
    %132 = vector.load %arg9[%c40, %c0_72] : memref<176x4xf32, #tpu.memory_space<vmem>>, vector<128x4xf32>
    %c7_73 = arith.constant 7 : index
    %c0_74 = arith.constant 0 : index
    %c0_75 = arith.constant 0 : index
    %133 = vector.load %arg6[%c7_73, %c0_74, %c0_75] : memref<9x4x4xf32, #tpu.memory_space<vmem>>, vector<1x4x4xf32>
    %134 = vector.shape_cast %133 : vector<1x4x4xf32> to vector<4x4xf32>
    %cst_76 = arith.constant dense<0.000000e+00> : vector<128x4xf32>
    %135 = tpu.matmul %132, %134, %cst_76 {dimension_numbers = #tpu.dot_dimension_numbers<[1], [0], [0], [1], [0, 0, 1, 1], [], []>} : vector<128x4xf32>, vector<4x4xf32>, vector<128x4xf32> -> vector<128x4xf32>
    %136 = arith.addf %131, %135 : vector<128x4xf32>
    %c41 = arith.constant 41 : index
    %c0_77 = arith.constant 0 : index
    %137 = vector.load %arg9[%c41, %c0_77] : memref<176x4xf32, #tpu.memory_space<vmem>>, vector<128x4xf32>
    %cst_78 = arith.constant 0.000000e+00 : f32
    %138 = vector.shape_cast %75 : vector<128x1xi1> to vector<128x1xi1>
    %139 = vector.broadcast %138 : vector<128x1xi1> to vector<128x4xi1>
    %140 = vector.broadcast %cst_78 : f32 to vector<128x4xf32>
    %141 = arith.select %139, %137, %140 : vector<128x4xi1>, vector<128x4xf32>
    %c8_79 = arith.constant 8 : index
    %c0_80 = arith.constant 0 : index
    %c0_81 = arith.constant 0 : index
    %142 = vector.load %arg6[%c8_79, %c0_80, %c0_81] : memref<9x4x4xf32, #tpu.memory_space<vmem>>, vector<1x4x4xf32>
    %143 = vector.shape_cast %142 : vector<1x4x4xf32> to vector<4x4xf32>
    %cst_82 = arith.constant dense<0.000000e+00> : vector<128x4xf32>
    %144 = tpu.matmul %141, %143, %cst_82 {dimension_numbers = #tpu.dot_dimension_numbers<[1], [0], [0], [1], [0, 0, 1, 1], [], []>} : vector<128x4xf32>, vector<4x4xf32>, vector<128x4xf32> -> vector<128x4xf32>
    %145 = arith.addf %136, %144 : vector<128x4xf32>
    %c0_83 = arith.constant 0 : index
    %c0_84 = arith.constant 0 : index
    %c0_85 = arith.constant 0 : index
    %146 = vector.load %arg7[%c0_83, %c0_84, %c0_85] : memref<1x128x4xbf16, #tpu.memory_space<vmem>>, vector<1x128x4xbf16>
    %147 = vector.shape_cast %146 : vector<1x128x4xbf16> to vector<128x4xbf16>
    %148 = arith.extf %147 : vector<128x4xbf16> to vector<128x4xf32>
    %149 = arith.addf %148, %145 : vector<128x4xf32>
    %c0_86 = arith.constant 0 : index
    %c0_87 = arith.constant 0 : index
    %c0_88 = arith.constant 0 : index
    %150 = vector.load %arg8[%c0_86, %c0_87, %c0_88] : memref<1x128x4xf32, #tpu.memory_space<vmem>>, vector<1x128x4xf32>
    %151 = vector.shape_cast %150 : vector<1x128x4xf32> to vector<128x4xf32>
    %152 = vector.shape_cast %149 : vector<128x4xf32> to vector<1x128x4xf32>
    tpu.vector_store %arg8[%c0_86, %c0_87, %c0_88], %152 {strides = array<i32>} : memref<1x128x4xf32, #tpu.memory_space<vmem>>, vector<1x128x4xf32>,
    return
  }
  func.func @transform_0(%arg0: i32, %arg1: i32) -> (i32, i32, i32) {
    %c0_i32 = arith.constant 0 : i32
    %c0_i32_0 = arith.constant 0 : i32
    return %arg0, %arg1, %c0_i32 : i32, i32, i32
  }
  func.func @transform_1(%arg0: i32, %arg1: i32) -> (i32, i32, i32, i32, i32) {
    %c0_i32 = arith.constant 0 : i32
    %c0_i32_0 = arith.constant 0 : i32
    %c0_i32_1 = arith.constant 0 : i32
    %c0_i32_2 = arith.constant 0 : i32
    return %arg0, %arg1, %c0_i32, %c0_i32_0, %c0_i32_1 : i32, i32, i32, i32, i32
  }
  func.func @transform_2(%arg0: i32, %arg1: i32) -> (i32, i32) {
    %c0_i32 = arith.constant 0 : i32
    %c0_i32_0 = arith.constant 0 : i32
    %c0_i32_1 = arith.constant 0 : i32
    return %c0_i32, %c0_i32_0 : i32, i32
  }
  func.func @transform_3(%arg0: i32, %arg1: i32) -> (i32, i32) {
    %c0_i32 = arith.constant 0 : i32
    %c0_i32_0 = arith.constant 0 : i32
    %c0_i32_1 = arith.constant 0 : i32
    return %c0_i32, %c0_i32_0 : i32, i32
  }
  func.func @transform_4(%arg0: i32, %arg1: i32) -> (i32, i32, i32) {
    %c0_i32 = arith.constant 0 : i32
    %c0_i32_0 = arith.constant 0 : i32
    %c0_i32_1 = arith.constant 0 : i32
    %c0_i32_2 = arith.constant 0 : i32
    return %c0_i32, %c0_i32_0, %c0_i32_1 : i32, i32, i32
  }
  func.func @transform_5(%arg0: i32, %arg1: i32) -> (i32, i32, i32) {
    %c0_i32 = arith.constant 0 : i32
    %c0_i32_0 = arith.constant 0 : i32
    return %arg0, %arg1, %c0_i32 : i32, i32, i32
  }
  func.func @transform_6(%arg0: i32, %arg1: i32) -> (i32, i32, i32) {
    %c0_i32 = arith.constant 0 : i32
    %c0_i32_0 = arith.constant 0 : i32
    return %arg0, %arg1, %c0_i32 : i32, i32, i32
  }
}

</mosaic_0001>

<llo_original>
// kernel: up_forward.3
$region0: #{up_forward.3}
  #allocation0 [shape = 'u32[]', space=smem, size = 0x4, offset = 0x4, fixed_abs, tag = 'smem constant byte address 0x4 - core index']
  #allocation1 [shape = 'u32[144,128]{1,0:T(1,128)}', space=vmem, size = 0x12000, scoped, tag = 'internal scratch']
  %s0 = inlined_call_operand.vmem [shape: f32[2,64,8], index: 0, kind: input, shape index: {}]
  %s1 = inlined_call_operand.vmem [shape: f32[2,8,8], index: 1, kind: input, shape index: {}]
  %s2 = inlined_call_operand.vmem [shape: f32[2,8,2,8,8], index: 2, kind: input, shape index: {}]
  %s3 = inlined_call_operand.vmem [shape: bf16[2,8,2,8,8], index: 3, kind: output, shape index: {0}]
  %s4 = inlined_call_operand.vmem [shape: f32[2,1,8], index: 4, kind: output, shape index: {1}]
  %s5 = inlined_call_operand.vmem [shape: f32[2,1,8], index: 5, kind: output, shape index: {2}]
  %6 = xla_tuple %s3, %s4, %s5
  %s7 = sld [smem:[#allocation0]]
  $region140: #{up_forward.3} parent=0
    _
  %s9 = ssub.s32 1, %s7
  %s10 = scalar_select 0, %s9, %s7
  $region1: #{up_forward.3} parent=0
    #allocation2 [shape = 'u8[65536]{0}', space=vmem, size = 0x10000, scoped, tag = 'input window, operand 2']
    #allocation3 [shape = 'u8[32768]{0}', space=vmem, size = 0x8000, scoped, tag = 'output window, operand 0']
    loop: start=0, step=1, limit=6
    $region2: #{up_forward.3} parent=1 // loop_pre_header
      _
    $region3: #{up_forward.3} parent=1 // loop_header
      %s12 = sphi 0, %s16
      %p13 = scmp.ge.s32.totalorder %s12, 6
      %s19 = sphi 0, %s38
      %s20 = sphi 0, %s34
      %s21 = sphi 0, %s30
      %s22 = sphi 0, %s19
      %s23 = sphi 0, %s20
      %s24 = sphi 0, %s21
      %s25 = sphi 0, %s22
      %s26 = sphi 0, %s23
      %s27 = sphi 0, %s24
      %s43 = sphi 0, %s45
      %s46 = sphi 0, %s43
      %s47 = sphi 0, %s46
      %s63 = sphi 0, %s47
      %s69 = sphi 0, %s71
      %s72 = sphi 0, %s69
      %s73 = sphi 0, %s72
      %s89 = sphi 0, %s73
      %s99 = sphi 0, %s101
      %s102 = sphi 0, %s99
      %s103 = sphi 0, %s102
      %s119 = sphi 0, %s103
      %s129 = sphi 0, %s131
      %s132 = sphi 0, %s129
      %s133 = sphi 0, %s132
      %s149 = sphi 0, %s133
      %s155 = sphi 0, %s157
      %s158 = sphi 0, %s155
      %s159 = sphi 0, %s158
      %s175 = sphi 0, %s159
      %s181 = sphi 0, %s183
      %s184 = sphi 0, %s181
      %s185 = sphi 0, %s184
      %s201 = sphi 0, %s185
    $region4: #{up_forward.3} parent=1 // loop_header_branch
      %15 = sbr.rel (%p13) target = $region8
    $region5: #{up_forward.3} parent=1 // loop_body
      %s17 = ssub.s32 %s12, 1
      %s18 = ssub.s32 %s12, 2
      %s28 = sadd.s32 1, %s21
      %p29 = scmp.ge.s32.totalorder %s28, 2
      %s30 = scalar_select %p29, 0, %s28
      %s31 = sadd.s32 1, %s20
      %s32 = scalar_select %p29, %s31, %s20
      %p33 = scmp.ge.s32.totalorder %s32, 1
      %s34 = scalar_select %p33, 0, %s32
      %s35 = sadd.s32 1, %s19
      %s36 = scalar_select %p33, %s35, %s19
      %p37 = scmp.ge.s32.totalorder %s36, 2
      %s38 = scalar_select %p37, 0, %s36
      %s39 = ssub.s32 %s19, %s38
      %s40 = ssub.s32 %s20, %s34
      %s41 = sor.u32 %s39, %s40
      %p42 = scmp.eq.s32.totalorder %s41, 0
      %s44 = sadd.s32 %s43, 1
      %s45 = scalar_select %p42, %s43, %s44
      %p48 = pneg %p42
      %p49 = scmp.eq.s32.totalorder %s12, 3
      %p50 = por %p48, %p49
      %p51 = scmp.ne.s32.totalorder %s43, %s46
      %p52 = scmp.eq.s32.totalorder %s12, 0
      %p53 = por %p51, %p52
      %p54 = scmp.ne.s32.totalorder %s43, %s46
      %p55 = scmp.eq.s32.totalorder %s17, 3
      %p56 = por %p54, %p55
      %p57 = scmp.ne.s32.totalorder %s46, %s47
      %p58 = scmp.eq.s32.totalorder %s17, 0
      %p59 = por %p57, %p58
      %p60 = scmp.ne.s32.totalorder %s46, %s47
      %p61 = scmp.eq.s32.totalorder %s18, 3
      %p62 = por %p60, %p61
      %p64 = scmp.ne.s32.totalorder %s47, %s63
      %p65 = scmp.eq.s32.totalorder %s18, 0
      %p66 = por %p64, %p65
      %s67 = ssub.s32 %s21, %s30
      %p68 = scmp.eq.s32.totalorder %s67, 0
      %s70 = sadd.s32 %s69, 1
      %s71 = scalar_select %p68, %s69, %s70
      %p74 = pneg %p68
      %p75 = scmp.eq.s32.totalorder %s12, 3
      %p76 = por %p74, %p75
      %p77 = scmp.ne.s32.totalorder %s69, %s72
      %p78 = scmp.eq.s32.totalorder %s12, 0
      %p79 = por %p77, %p78
      %p80 = scmp.ne.s32.totalorder %s69, %s72
      %p81 = scmp.eq.s32.totalorder %s17, 3
      %p82 = por %p80, %p81
      %p83 = scmp.ne.s32.totalorder %s72, %s73
      %p84 = scmp.eq.s32.totalorder %s17, 0
      %p85 = por %p83, %p84
      %p86 = scmp.ne.s32.totalorder %s72, %s73
      %p87 = scmp.eq.s32.totalorder %s18, 3
      %p88 = por %p86, %p87
      %p90 = scmp.ne.s32.totalorder %s73, %s89
      %p91 = scmp.eq.s32.totalorder %s18, 0
      %p92 = por %p90, %p91
      %s93 = ssub.s32 %s19, %s38
      %s94 = ssub.s32 %s20, %s34
      %s95 = sor.u32 %s93, %s94
      %s96 = ssub.s32 %s21, %s30
      %s97 = sor.u32 %s95, %s96
      %p98 = scmp.eq.s32.totalorder %s97, 0
      %s100 = sadd.s32 %s99, 1
      %s101 = scalar_select %p98, %s99, %s100
      %p104 = pneg %p98
      %p105 = scmp.eq.s32.totalorder %s12, 3
      %p106 = por %p104, %p105
      %p107 = scmp.ne.s32.totalorder %s99, %s102
      %p108 = scmp.eq.s32.totalorder %s12, 0
      %p109 = por %p107, %p108
      %p110 = scmp.ne.s32.totalorder %s99, %s102
      %p111 = scmp.eq.s32.totalorder %s17, 3
      %p112 = por %p110, %p111
      %p113 = scmp.ne.s32.totalorder %s102, %s103
      %p114 = scmp.eq.s32.totalorder %s17, 0
      %p115 = por %p113, %p114
      %p116 = scmp.ne.s32.totalorder %s102, %s103
      %p117 = scmp.eq.s32.totalorder %s18, 3
      %p118 = por %p116, %p117
      %p120 = scmp.ne.s32.totalorder %s103, %s119
      %p121 = scmp.eq.s32.totalorder %s18, 0
      %p122 = por %p120, %p121
      %s123 = ssub.s32 %s19, %s38
      %s124 = ssub.s32 %s20, %s34
      %s125 = sor.u32 %s123, %s124
      %s126 = ssub.s32 %s21, %s30
      %s127 = sor.u32 %s125, %s126
      %p128 = scmp.eq.s32.totalorder %s127, 0
      %s130 = sadd.s32 %s129, 1
      %s131 = scalar_select %p128, %s129, %s130
      %p134 = pneg %p128
      %p135 = scmp.eq.s32.totalorder %s12, 3
      %p136 = por %p134, %p135
      %p137 = scmp.ne.s32.totalorder %s129, %s132
      %p138 = scmp.eq.s32.totalorder %s12, 0
      %p139 = por %p137, %p138
      %p140 = scmp.ne.s32.totalorder %s129, %s132
      %p141 = scmp.eq.s32.totalorder %s17, 3
      %p142 = por %p140, %p141
      %p143 = scmp.ne.s32.totalorder %s132, %s133
      %p144 = scmp.eq.s32.totalorder %s17, 0
      %p145 = por %p143, %p144
      %p146 = scmp.ne.s32.totalorder %s132, %s133
      %p147 = scmp.eq.s32.totalorder %s18, 3
      %p148 = por %p146, %p147
      %p150 = scmp.ne.s32.totalorder %s133, %s149
      %p151 = scmp.eq.s32.totalorder %s18, 0
      %p152 = por %p150, %p151
      %s153 = ssub.s32 %s19, %s38
      %p154 = scmp.eq.s32.totalorder %s153, 0
      %s156 = sadd.s32 %s155, 1
      %s157 = scalar_select %p154, %s155, %s156
      %p160 = pneg %p154
      %p161 = scmp.eq.s32.totalorder %s12, 3
      %p162 = por %p160, %p161
      %p163 = scmp.ne.s32.totalorder %s155, %s158
      %p164 = scmp.eq.s32.totalorder %s12, 0
      %p165 = por %p163, %p164
      %p166 = scmp.ne.s32.totalorder %s155, %s158
      %p167 = scmp.eq.s32.totalorder %s17, 3
      %p168 = por %p166, %p167
      %p169 = scmp.ne.s32.totalorder %s158, %s159
      %p170 = scmp.eq.s32.totalorder %s17, 0
      %p171 = por %p169, %p170
      %p172 = scmp.ne.s32.totalorder %s158, %s159
      %p173 = scmp.eq.s32.totalorder %s18, 3
      %p174 = por %p172, %p173
      %p176 = scmp.ne.s32.totalorder %s159, %s175
      %p177 = scmp.eq.s32.totalorder %s18, 0
      %p178 = por %p176, %p177
      %s179 = ssub.s32 %s19, %s38
      %p180 = scmp.eq.s32.totalorder %s179, 0
      %s182 = sadd.s32 %s181, 1
      %s183 = scalar_select %p180, %s181, %s182
      %p186 = pneg %p180
      %p187 = scmp.eq.s32.totalorder %s12, 3
      %p188 = por %p186, %p187
      %p189 = scmp.ne.s32.totalorder %s181, %s184
      %p190 = scmp.eq.s32.totalorder %s12, 0
      %p191 = por %p189, %p190
      %p192 = scmp.ne.s32.totalorder %s181, %s184
      %p193 = scmp.eq.s32.totalorder %s17, 3
      %p194 = por %p192, %p193
      %p195 = scmp.ne.s32.totalorder %s184, %s185
      %p196 = scmp.eq.s32.totalorder %s17, 0
      %p197 = por %p195, %p196
      %p198 = scmp.ne.s32.totalorder %s184, %s185
      %p199 = scmp.eq.s32.totalorder %s18, 3
      %p200 = por %p198, %p199
      %p202 = scmp.ne.s32.totalorder %s185, %s201
      %p203 = scmp.eq.s32.totalorder %s18, 0
      %p204 = por %p202, %p203
      %p205 = scmp.le.s32.totalorder 1, %s12
      %p206 = scmp.lt.s32.totalorder %s12, 5
      %p207 = pnand %p205, %p206
      %p208 = pneg %p207
      // Predicated region
      $region9: #{up_forward.3} parent=5 // pred_check
        _
      $region10: #{up_forward.3} parent=5 // pred_check_branch
        %210 = sbr.rel (%p207) target = $region12
      $region11: #{up_forward.3} parent=5 // pred_region
        %s211 = ssub.s32 %s12, 1
      $region12: #{up_forward.3} parent=5 // pred_fallthru
        _
      %p212 = scmp.lt.s32.totalorder %s12, 4
      // Predicated region
      $region13: #{up_forward.3} parent=5 // pred_check
        %p213 = pneg %p212
      $region14: #{up_forward.3} parent=5 // pred_check_branch
        %215 = sbr.rel (%p213) target = $region16
      $region15: #{up_forward.3} parent=5 // pred_region
        // Predicated region
        $region17: #{up_forward.3} parent=15 // pred_check
          %p216 = pneg %p53
        $region18: #{up_forward.3} parent=15 // pred_check_branch
          %218 = sbr.rel (%p216) target = $region20
        $region19: #{up_forward.3} parent=15 // pred_region
          %s219 = smul.u32 8, %s20
          %p220 = scmp.lt.s32.totalorder %s19, 1
          %s221 = scalar_select %p220, %s19, 1
          %p222 = scmp.lt.s32.totalorder %s219, 7
          %s223 = scalar_select %p222, %s219, 7
          %s224 = smul.addr %s221, 8
          %s225 = sadd.s32 %s223, %s224
          %s226 = smul.addr %s225, 8
          %s227 = scalar_lea.vmem %s0, %s226
          %s228 = smul.u32 8, %s20
        $region20: #{up_forward.3} parent=15 // pred_fallthru
          _
        // Predicated region
        $region21: #{up_forward.3} parent=15 // pred_check
          %p229 = pneg %p79
        $region22: #{up_forward.3} parent=15 // pred_check_branch
          %231 = sbr.rel (%p229) target = $region24
        $region23: #{up_forward.3} parent=15 // pred_region
          %p232 = scmp.lt.s32.totalorder %s21, 1
          %s233 = scalar_select %p232, %s21, 1
          %s234 = smul.addr %s233, 8
          %s235 = scalar_lea.vmem %s1, %s234
        $region24: #{up_forward.3} parent=15 // pred_fallthru
          _
        // Predicated region
        $region25: #{up_forward.3} parent=15 // pred_check
          %p236 = pneg %p109
        $region26: #{up_forward.3} parent=15 // pred_check_branch
          %238 = sbr.rel (%p236) target = $region28
        $region27: #{up_forward.3} parent=15 // pred_region
          %s239 = sand.u32 %s99, 1
          %s240 = sand.u32 %s99, 1
          %s241 = smul.addr %s240, 64
          %s242 = scalar_lea.vmem [#allocation2], %s241
          %s243 = smul.u32 8, %s20
          %s244 = smul.addr %s243, 2
          %s245 = sadd.s32 %s21, %s244
          %s246 = smul.addr %s19, 16
          %s247 = sadd.s32 %s245, %s246
          %s248 = smul.addr %s247, 8
          %s249 = scalar_lea.vmem %s2, %s248
          // Predicated region
          $region29: #{up_forward.3} parent=27 // pred_check
            _
          $region30: #{up_forward.3} parent=27 // pred_check_branch
            %251 = sbr.rel (0) target = $region32
          $region31: #{up_forward.3} parent=27 // pred_region
            // Predicated region
            $region33: #{up_forward.3} parent=31 // pred_check
              _
            $region34: #{up_forward.3} parent=31 // pred_check_branch
              %253 = sbr.rel (0) target = $region36
            $region35: #{up_forward.3} parent=31 // pred_region
              // Predicated region
              $region48: #{up_forward.3} parent=35 // pred_check
                _
              $region49: #{up_forward.3} parent=35 // pred_check_branch
                %282 = sbr.rel (0) target = $region51
              $region50: #{up_forward.3} parent=35 // pred_region
                loop: start=0, step=1, limit=1
                $region52: #{up_forward.3} parent=50 // loop_pre_header
                  _
                $region53: #{up_forward.3} parent=50 // loop_header
                  %s284 = sphi 0, %s288
                  %p285 = scmp.ge.s32.totalorder %s284, 1
                  %s289 = sphi %s249, %s249
                  %s290 = sphi %s242, %s242
                $region54: #{up_forward.3} parent=50 // loop_header_branch
                  %287 = sbr.rel (%p285) target = $region58
                $region55: #{up_forward.3} parent=50 // loop_body
                  %v291 = vld [vmem:[%s289] sm:$0xff]
                  %292 = vst [vmem:[%s290] sm:$0xff] %v291
                  %v293 = vld [vmem:[%s289 + $0x10] sm:$0xff]
                  %294 = vst [vmem:[%s290 + $0x8] sm:$0xff] %v293
                  %v295 = vld [vmem:[%s289 + $0x20] sm:$0xff]
                  %296 = vst [vmem:[%s290 + $0x10] sm:$0xff] %v295
                  %v297 = vld [vmem:[%s289 + $0x30] sm:$0xff]
                  %298 = vst [vmem:[%s290 + $0x18] sm:$0xff] %v297
                  %v299 = vld [vmem:[%s289 + $0x40] sm:$0xff]
                  %300 = vst [vmem:[%s290 + $0x20] sm:$0xff] %v299
                  %v301 = vld [vmem:[%s289 + $0x50] sm:$0xff]
                  %302 = vst [vmem:[%s290 + $0x28] sm:$0xff] %v301
                  %v303 = vld [vmem:[%s289 + $0x60] sm:$0xff]
                  %304 = vst [vmem:[%s290 + $0x30] sm:$0xff] %v303
                  %v305 = vld [vmem:[%s289 + $0x70] sm:$0xff]
                  %306 = vst [vmem:[%s290 + $0x38] sm:$0xff] %v305
                $region56: #{up_forward.3} parent=50 // loop_footer
                  %s288 = sadd.s32 1, %s284
                $region57: #{up_forward.3} parent=50 // loop_footer_branch
                  %283 = sbr.rel target = $region53
                $region58: #{up_forward.3} parent=50 // loop_exit
                  _
              $region51: #{up_forward.3} parent=35 // pred_fallthru
                _
              // Predicated region
              $region59: #{up_forward.3} parent=35 // pred_check
                _
              $region60: #{up_forward.3} parent=35 // pred_check_branch
                %308 = sbr.rel target = $region62
              $region61: #{up_forward.3} parent=35 // pred_region
                _
              $region62: #{up_forward.3} parent=35 // pred_fallthru
                _
            $region36: #{up_forward.3} parent=31 // pred_fallthru
              _
            // Predicated region
            $region37: #{up_forward.3} parent=31 // pred_check
              _
            $region38: #{up_forward.3} parent=31 // pred_check_branch
              %255 = sbr.rel target = $region40
            $region39: #{up_forward.3} parent=31 // pred_region
              loop: start=0, step=1, limit=1
              $region41: #{up_forward.3} parent=39 // loop_pre_header
                _
              $region42: #{up_forward.3} parent=39 // loop_header
                %s258 = sphi 0, %s262
                %p259 = scmp.ge.s32.totalorder %s258, 1
                %s263 = sphi %s249, %s249
                %s264 = sphi %s242, %s242
              $region43: #{up_forward.3} parent=39 // loop_header_branch
                %261 = sbr.rel (%p259) target = $region47
              $region44: #{up_forward.3} parent=39 // loop_body
                %v265 = vld [vmem:[%s263] sm:$0xff]
                %266 = vst [vmem:[%s264] sm:$0xff] %v265
                %v267 = vld [vmem:[%s263 + $0x10] sm:$0xff]
                %268 = vst [vmem:[%s264 + $0x8] sm:$0xff] %v267
                %v269 = vld [vmem:[%s263 + $0x20] sm:$0xff]
                %270 = vst [vmem:[%s264 + $0x10] sm:$0xff] %v269
                %v271 = vld [vmem:[%s263 + $0x30] sm:$0xff]
                %272 = vst [vmem:[%s264 + $0x18] sm:$0xff] %v271
                %v273 = vld [vmem:[%s263 + $0x40] sm:$0xff]
                %274 = vst [vmem:[%s264 + $0x20] sm:$0xff] %v273
                %v275 = vld [vmem:[%s263 + $0x50] sm:$0xff]
                %276 = vst [vmem:[%s264 + $0x28] sm:$0xff] %v275
                %v277 = vld [vmem:[%s263 + $0x60] sm:$0xff]
                %278 = vst [vmem:[%s264 + $0x30] sm:$0xff] %v277
                %v279 = vld [vmem:[%s263 + $0x70] sm:$0xff]
                %280 = vst [vmem:[%s264 + $0x38] sm:$0xff] %v279
              $region45: #{up_forward.3} parent=39 // loop_footer
                %s262 = sadd.s32 1, %s258
              $region46: #{up_forward.3} parent=39 // loop_footer_branch
                %257 = sbr.rel target = $region42
              $region47: #{up_forward.3} parent=39 // loop_exit
                _
            $region40: #{up_forward.3} parent=31 // pred_fallthru
              _
          $region32: #{up_forward.3} parent=27 // pred_fallthru
            _
          %309 = vnop
        $region28: #{up_forward.3} parent=15 // pred_fallthru
          _
      $region16: #{up_forward.3} parent=5 // pred_fallthru
        _
      %p310 = scmp.le.s32.totalorder 1, %s12
      %p311 = scmp.lt.s32.totalorder %s12, 5
      %p312 = pnand %p310, %p311
      %p313 = pneg %p312
      // Predicated region
      $region63: #{up_forward.3} parent=5 // pred_check
        _
      $region64: #{up_forward.3} parent=5 // pred_check_branch
        %315 = sbr.rel (%p312) target = $region66
      $region65: #{up_forward.3} parent=5 // pred_region
        %s316 = ssub.s32 %s12, 1
        %s317 = sand.u32 %s102, 1
        %s318 = sand.u32 %s102, 1
        %s319 = smul.addr %s318, 64
        %s320 = scalar_lea.vmem [#allocation2], %s319
        // Predicated region
        $region67: #{up_forward.3} parent=65 // pred_check
          %p321 = pneg %p115
        $region68: #{up_forward.3} parent=65 // pred_check_branch
          %323 = sbr.rel (%p321) target = $region70
        $region69: #{up_forward.3} parent=65 // pred_region
          _
        $region70: #{up_forward.3} parent=65 // pred_fallthru
          _
        %s324 = smul.u32 8, %s23
        %p325 = scmp.lt.s32.totalorder %s22, 1
        %s326 = scalar_select %p325, %s22, 1
        %p327 = scmp.lt.s32.totalorder %s324, 7
        %s328 = scalar_select %p327, %s324, 7
        %s329 = smul.addr %s326, 8
        %s330 = sadd.s32 %s328, %s329
        %s331 = smul.addr %s330, 8
        %s332 = scalar_lea.vmem %s0, %s331
        %p333 = pneg %p59
        %p334 = pneg %p56
        %p335 = scmp.lt.s32.totalorder %s24, 1
        %s336 = scalar_select %p335, %s24, 1
        %s337 = smul.addr %s336, 8
        %s338 = scalar_lea.vmem %s1, %s337
        %p339 = pneg %p85
        %p340 = pneg %p82
        %s341 = sand.u32 %s102, 1
        %s342 = sand.u32 %s102, 1
        %s343 = smul.addr %s342, 64
        %s344 = scalar_lea.vmem [#allocation2], %s343
        %p345 = pneg %p115
        %p346 = pneg %p112
        %p347 = pneg %p145
        %p348 = pneg %p142
        %s349 = sand.u32 %s132, 1
        %s350 = sand.u32 %s132, 1
        %s351 = smul.addr %s350, 32
        %s352 = scalar_lea.vmem [#allocation3], %s351
        %p353 = pneg %p171
        %p354 = pneg %p168
        %p355 = scmp.lt.s32.totalorder %s22, 1
        %s356 = scalar_select %p355, %s22, 1
        %s357 = scalar_lea.vmem %s4, %s356
        %p358 = pneg %p197
        %p359 = pneg %p194
        %p360 = scmp.lt.s32.totalorder %s22, 1
        %s361 = scalar_select %p360, %s22, 1
        %s362 = scalar_lea.vmem %s5, %s361
        %s363 = smul.u32 8, %s23
        %p364 = scmp.lt.s32.totalorder %s22, 1
        %s365 = scalar_select %p364, %s22, 1
        %p366 = scmp.lt.s32.totalorder %s363, 7
        %s367 = scalar_select %p366, %s363, 7
        %s368 = smul.addr %s365, 8
        %s369 = sadd.s32 %s367, %s368
        %s370 = smul.addr %s369, 8
        %s371 = scalar_lea.vmem %s0, %s370
        %s372 = smul.u32 8, %s23
        %p373 = scmp.lt.s32.totalorder %s24, 1
        %s374 = scalar_select %p373, %s24, 1
        %s375 = smul.addr %s374, 8
        %s376 = scalar_lea.vmem %s1, %s375
        %s377 = smul.u32 8, %s23
        %s378 = smul.u32 8, %s23
        %p379 = scmp.lt.s32.totalorder %s22, 1
        %s380 = scalar_select %p379, %s22, 1
        %s381 = scalar_lea.vmem %s4, %s380
        %p382 = scmp.lt.s32.totalorder %s22, 1
        %s383 = scalar_select %p382, %s22, 1
        %s384 = scalar_lea.vmem %s5, %s383
        %p385 = scmp.eq.s32.totalorder %s23, 0
        %p386 = scmp.eq.s32.totalorder %s24, 0
        %p387 = pnand %p385, %p386
        %p388 = pneg %p387
        // Predicated region
        $region71: #{up_forward.3} parent=65 // pred_check
          _
        $region72: #{up_forward.3} parent=65 // pred_check_branch
          %390 = sbr.rel (%p387) target = $region74
        $region73: #{up_forward.3} parent=65 // pred_region
          %vm391 = vcmask 57344
          %392 = vst.msk [vmem:[%s381] sm:$0x1] %vm391, 0.0
          %393 = vst.msk [vmem:[%s384] sm:$0x1] %vm391, 0.0
        $region74: #{up_forward.3} parent=65 // pred_fallthru
          _
        %v394 = vld [vmem:[%s371] sm:$0xff]
        %v395 = vld [vmem:[%s371 + $0x8] sm:$0xff]
        %v396 = vld [vmem:[%s371 + $0x10] sm:$0xff]
        %v397 = vld [vmem:[%s371 + $0x18] sm:$0xff]
        %v398 = vld [vmem:[%s371 + $0x20] sm:$0xff]
        %v399 = vld [vmem:[%s371 + $0x28] sm:$0xff]
        %v400 = vld [vmem:[%s371 + $0x30] sm:$0xff]
        %v401 = vld [vmem:[%s371 + $0x38] sm:$0xff]
        %v402 = vld [vmem:[%s376] sm:$0xff]
        %v403 = vld [vmem:[%s320] sm:$0xff]
        %v404 = vld [vmem:[%s320 + $0x8] sm:$0xff]
        %v405 = vld [vmem:[%s320 + $0x10] sm:$0xff]
        %v406 = vld [vmem:[%s320 + $0x18] sm:$0xff]
        %v407 = vld [vmem:[%s320 + $0x20] sm:$0xff]
        %v408 = vld [vmem:[%s320 + $0x28] sm:$0xff]
        %v409 = vld [vmem:[%s320 + $0x30] sm:$0xff]
        %v410 = vld [vmem:[%s320 + $0x38] sm:$0xff]
        %vm411 = vcmask 64512
        %v413 = vsel %vm411, %v394, 0
        %v416 = vsel %vm411, %v395, 0
        %v419 = vsel %vm411, %v396, 0
        %v422 = vsel %vm411, %v397, 0
        %v425 = vsel %vm411, %v398, 0
        %v428 = vsel %vm411, %v399, 0
        %v431 = vsel %vm411, %v400, 0
        %v434 = vsel %vm411, %v401, 0
        %436 = vmatprep.subr.mxu0 0.0
        %437 = vmatpush1.msra.mxu0 %v402
        %438 = vmatprep.subr.mxu0 0.0
        %439 = vmatpush1.msra.mxu0 0.0
        %440 = vmatprep.subr.mxu0 0.0
        %441 = vmatpush1.msra.mxu0 0.0
        %442 = vmatprep.subr.mxu0 0.0
        %443 = vmatpush1.msra.mxu0 0.0
        %444 = vmatprep.subr.mxu0 0.0
        %445 = vmatpush1.msra.mxu0 0.0
        %446 = vmatprep.subr.mxu0 0.0
        %447 = vmatpush1.msra.mxu0 0.0
        %448 = vmatprep.subr.mxu0 0.0
        %449 = vmatpush1.msra.mxu0 0.0
        %450 = vmatprep.subr.mxu0 0.0
        %451 = vmatpush1.msra.mxu0 0.0
        %452 = vmatprep.subr.mxu0 0.0
        %453 = vmatpush1.msra.mxu0 0.0
        %454 = vmatprep.subr.mxu0 0.0
        %455 = vmatpush1.msra.mxu0 0.0
        %456 = vmatprep.subr.mxu0 0.0
        %457 = vmatpush1.msra.mxu0 0.0
        %458 = vmatprep.subr.mxu0 0.0
        %459 = vmatpush1.msra.mxu0 0.0
        %460 = vmatprep.subr.mxu0 0.0
        %461 = vmatpush1.msra.mxu0 0.0
        %462 = vmatprep.subr.mxu0 0.0
        %463 = vmatpush1.msra.mxu0 0.0
        %464 = vmatprep.subr.mxu0 0.0
        %465 = vmatpush1.msra.mxu0 0.0
        %466 = vmatprep.subr.mxu0 0.0
        %467 = vmatpush1.msra.mxu0 0.0
        %468 = vmatprep.subr.mxu0 0.0
        %469 = vmatpush1.msra.mxu0 0.0
        %470 = vmatprep.subr.mxu0 0.0
        %471 = vmatpush1.msra.mxu0 0.0
        %472 = vmatprep.subr.mxu0 0.0
        %473 = vmatpush1.msra.mxu0 0.0
        %474 = vmatprep.subr.mxu0 0.0
        %475 = vmatpush1.msra.mxu0 0.0
        %476 = vmatprep.subr.mxu0 0.0
        %477 = vmatpush1.msra.mxu0 0.0
        %478 = vmatprep.subr.mxu0 0.0
        %479 = vmatpush1.msra.mxu0 0.0
        %480 = vmatprep.subr.mxu0 0.0
        %481 = vmatpush1.msra.mxu0 0.0
        %482 = vmatprep.subr.mxu0 0.0
        %483 = vmatpush1.msra.mxu0 0.0
        %484 = vmatprep.subr.mxu0 0.0
        %485 = vmatpush1.msra.mxu0 0.0
        %486 = vmatprep.subr.mxu0 0.0
        %487 = vmatpush1.msra.mxu0 0.0
        %488 = vmatprep.subr.mxu0 0.0
        %489 = vmatpush1.msra.mxu0 0.0
        %490 = vmatprep.subr.mxu0 0.0
        %491 = vmatpush1.msra.mxu0 0.0
        %492 = vmatprep.subr.mxu0 0.0
        %493 = vmatpush1.msra.mxu0 0.0
        %494 = vmatprep.subr.mxu0 0.0
        %495 = vmatpush1.msra.mxu0 0.0
        %496 = vmatprep.subr.mxu0 0.0
        %497 = vmatpush1.msra.mxu0 0.0
        %498 = vmatprep.subr.mxu0 0.0
        %499 = vmatpush1.msra.mxu0 0.0
        %500 = vmatprep.mubr.f32.mxu0 0.0
        %501 = vmatmul.mubr.f32.gmra.mrb[0].mxu0 %v413
        %v502 = vpop.f32.mrb[0].mxu0
        %v503 = vadd.f32 %v403, %v502
        %v504 = vpop.f32.mrb[0].mxu0
        %505 = vmatprep.mubr.f32.mxu0 0.0
        %506 = vmatmul.mubr.f32.gmra.mrb[0].mxu0 %v416
        %v507 = vpop.f32.mrb[0].mxu0
        %v508 = vadd.f32 %v404, %v507
        %v509 = vpop.f32.mrb[0].mxu0
        %510 = vmatprep.mubr.f32.mxu0 0.0
        %511 = vmatmul.mubr.f32.gmra.mrb[0].mxu0 %v419
        %v512 = vpop.f32.mrb[0].mxu0
        %v513 = vadd.f32 %v405, %v512
        %v514 = vpop.f32.mrb[0].mxu0
        %515 = vmatprep.mubr.f32.mxu0 0.0
        %516 = vmatmul.mubr.f32.gmra.mrb[0].mxu0 %v422
        %v517 = vpop.f32.mrb[0].mxu0
        %v518 = vadd.f32 %v406, %v517
        %v519 = vpop.f32.mrb[0].mxu0
        %520 = vmatprep.mubr.f32.mxu0 0.0
        %521 = vmatmul.mubr.f32.gmra.mrb[0].mxu0 %v425
        %v522 = vpop.f32.mrb[0].mxu0
        %v523 = vadd.f32 %v407, %v522
        %v524 = vpop.f32.mrb[0].mxu0
        %525 = vmatprep.mubr.f32.mxu0 0.0
        %526 = vmatmul.mubr.f32.gmra.mrb[0].mxu0 %v428
        %v527 = vpop.f32.mrb[0].mxu0
        %v528 = vadd.f32 %v408, %v527
        %v529 = vpop.f32.mrb[0].mxu0
        %530 = vmatprep.mubr.f32.mxu0 0.0
        %531 = vmatmul.mubr.f32.gmra.mrb[0].mxu0 %v431
        %v532 = vpop.f32.mrb[0].mxu0
        %v533 = vadd.f32 %v409, %v532
        %v534 = vpop.f32.mrb[0].mxu0
        %535 = vmatprep.mubr.f32.mxu0 0.0
        %536 = vmatmul.mubr.f32.gmra.mrb[0].mxu0 %v434
        %v537 = vpop.f32.mrb[0].mxu0
        %v538 = vadd.f32 %v410, %v537
        %v539 = vpop.f32.mrb[0].mxu0
        %540 = vdwg.mxu0
        %v541 = vpack.c.bf16 %v503, %v503
        %v542 = vpack.c.bf16 %v508, %v508
        %v543 = vpack.c.bf16 %v513, %v513
        %v544 = vpack.c.bf16 %v518, %v518
        %v545 = vpack.c.bf16 %v523, %v523
        %v546 = vpack.c.bf16 %v528, %v528
        %v547 = vpack.c.bf16 %v533, %v533
        %v548 = vpack.c.bf16 %v538, %v538
        %vm549 = vcmask 60416
        %550 = vst.msk [vmem:[%s352] sm:$0xf] %vm549, %v541
        %551 = vst.msk [vmem:[%s352 + $0x4] sm:$0xf] %vm549, %v542
        %552 = vst.msk [vmem:[%s352 + $0x8] sm:$0xf] %vm549, %v543
        %553 = vst.msk [vmem:[%s352 + $0xc] sm:$0xf] %vm549, %v544
        %554 = vst.msk [vmem:[%s352 + $0x10] sm:$0xf] %vm549, %v545
        %555 = vst.msk [vmem:[%s352 + $0x14] sm:$0xf] %vm549, %v546
        %556 = vst.msk [vmem:[%s352 + $0x18] sm:$0xf] %vm549, %v547
        %557 = vst.msk [vmem:[%s352 + $0x1c] sm:$0xf] %vm549, %v548
        %v558 = vld [vmem:[%s381] sm:$0x1]
        %v559 = vsel %vm411, %v503, 0.0
        %v560 = vsel %vm411, %v508, 0.0
        %v561 = vadd.f32 %v559, %v560
        %v562 = vsel %vm411, %v513, 0.0
        %v563 = vadd.f32 %v561, %v562
        %v564 = vsel %vm411, %v518, 0.0
        %v565 = vadd.f32 %v563, %v564
        %v566 = vsel %vm411, %v523, 0.0
        %v567 = vadd.f32 %v565, %v566
        %v568 = vsel %vm411, %v528, 0.0
        %v569 = vadd.f32 %v567, %v568
        %v570 = vsel %vm411, %v533, 0.0
        %v571 = vadd.f32 %v569, %v570
        %v572 = vsel %vm411, %v538, 0.0
        %v573 = vadd.f32 %v571, %v572
        %v574 = vrot.slane %v573, 4
        %v575 = vadd.f32 %v573, %v574
        %v576 = vrot.slane %v575, 2
        %v577 = vadd.f32 %v575, %v576
        %v578 = vrot.slane %v577, 1
        %v579 = vadd.f32 %v577, %v578
        %v580 = vadd.f32 %v558, %v579
        %vm581 = vcmask 57344
        %582 = vst.msk [vmem:[%s381] sm:$0x1] %vm581, %v580
        %v583 = vld [vmem:[%s384] sm:$0x1]
        %v584 = vmul.f32 %v503, %v503
        %v585 = vmul.f32 %v508, %v508
        %v586 = vmul.f32 %v513, %v513
        %v587 = vmul.f32 %v518, %v518
        %v588 = vmul.f32 %v523, %v523
        %v589 = vmul.f32 %v528, %v528
        %v590 = vmul.f32 %v533, %v533
        %v591 = vmul.f32 %v538, %v538
        %v592 = vsel %vm411, %v584, 0.0
        %v593 = vsel %vm411, %v585, 0.0
        %v594 = vadd.f32 %v592, %v593
        %v595 = vsel %vm411, %v586, 0.0
        %v596 = vadd.f32 %v594, %v595
        %v597 = vsel %vm411, %v587, 0.0
        %v598 = vadd.f32 %v596, %v597
        %v599 = vsel %vm411, %v588, 0.0
        %v600 = vadd.f32 %v598, %v599
        %v601 = vsel %vm411, %v589, 0.0
        %v602 = vadd.f32 %v600, %v601
        %v603 = vsel %vm411, %v590, 0.0
        %v604 = vadd.f32 %v602, %v603
        %v605 = vsel %vm411, %v591, 0.0
        %v606 = vadd.f32 %v604, %v605
        %v607 = vrot.slane %v606, 4
        %v608 = vadd.f32 %v606, %v607
        %v609 = vrot.slane %v608, 2
        %v610 = vadd.f32 %v608, %v609
        %v611 = vrot.slane %v610, 1
        %v612 = vadd.f32 %v610, %v611
        %v613 = vadd.f32 %v583, %v612
        %614 = vst.msk [vmem:[%s384] sm:$0x1] %vm581, %v613
        %s615 = sand.u32 %s132, 1
        %s616 = sand.u32 %s132, 1
        %s617 = smul.addr %s616, 32
        %s618 = scalar_lea.vmem [#allocation3], %s617
        %p619 = scmp.lt.s32.totalorder %s22, 1
        %s620 = scalar_select %p619, %s22, 1
        %s621 = scalar_lea.vmem %s4, %s620
        %p622 = scmp.lt.s32.totalorder %s22, 1
        %s623 = scalar_select %p622, %s22, 1
        %s624 = scalar_lea.vmem %s5, %s623
        // Predicated region
        $region75: #{up_forward.3} parent=65 // pred_check
          %p625 = pneg %p142
        $region76: #{up_forward.3} parent=65 // pred_check_branch
          %627 = sbr.rel (%p625) target = $region78
        $region77: #{up_forward.3} parent=65 // pred_region
          %s628 = smul.u32 8, %s23
          %s629 = smul.addr %s628, 2
          %s630 = sadd.s32 %s24, %s629
          %s631 = smul.addr %s22, 16
          %s632 = sadd.s32 %s630, %s631
          %s633 = smul.addr %s632, 4
          %s634 = scalar_lea.vmem %s3, %s633
          // Predicated region
          $region79: #{up_forward.3} parent=77 // pred_check
            _
          $region80: #{up_forward.3} parent=77 // pred_check_branch
            %636 = sbr.rel (0) target = $region82
          $region81: #{up_forward.3} parent=77 // pred_region
            // Predicated region
            $region83: #{up_forward.3} parent=81 // pred_check
              _
            $region84: #{up_forward.3} parent=81 // pred_check_branch
              %638 = sbr.rel target = $region86
            $region85: #{up_forward.3} parent=81 // pred_region
              // Predicated region
              $region98: #{up_forward.3} parent=85 // pred_check
                _
              $region99: #{up_forward.3} parent=85 // pred_check_branch
                %667 = sbr.rel (0) target = $region101
              $region100: #{up_forward.3} parent=85 // pred_region
                loop: start=0, step=1, limit=1
                $region102: #{up_forward.3} parent=100 // loop_pre_header
                  _
                $region103: #{up_forward.3} parent=100 // loop_header
                  %s669 = sphi 0, %s673
                  %p670 = scmp.ge.s32.totalorder %s669, 1
                  %s674 = sphi %s618, %s618
                  %s675 = sphi %s634, %s634
                $region104: #{up_forward.3} parent=100 // loop_header_branch
                  %672 = sbr.rel (%p670) target = $region108
                $region105: #{up_forward.3} parent=100 // loop_body
                  _
                $region106: #{up_forward.3} parent=100 // loop_footer
                  %s673 = sadd.s32 1, %s669
                $region107: #{up_forward.3} parent=100 // loop_footer_branch
                  %668 = sbr.rel target = $region103
                $region108: #{up_forward.3} parent=100 // loop_exit
                  _
                loop: start=0, step=1, limit=1
                $region109: #{up_forward.3} parent=100 // loop_pre_header
                  _
                $region110: #{up_forward.3} parent=100 // loop_header
                  %s678 = sphi 0, %s682
                  %p679 = scmp.ge.s32.totalorder %s678, 1
                  %s683 = sphi %s618, %s618
                  %s684 = sphi %s634, %s634
                $region111: #{up_forward.3} parent=100 // loop_header_branch
                  %681 = sbr.rel (%p679) target = $region115
                $region112: #{up_forward.3} parent=100 // loop_body
                  %v685 = vld [vmem:[%s683] sm:$0xf]
                  %686 = vst [vmem:[%s684] sm:$0xf] %v685
                  %v687 = vld [vmem:[%s683 + $0x4] sm:$0xf]
                  %688 = vst [vmem:[%s684 + $0x8] sm:$0xf] %v687
                  %v689 = vld [vmem:[%s683 + $0x8] sm:$0xf]
                  %690 = vst [vmem:[%s684 + $0x10] sm:$0xf] %v689
                  %v691 = vld [vmem:[%s683 + $0xc] sm:$0xf]
                  %692 = vst [vmem:[%s684 + $0x18] sm:$0xf] %v691
                  %v693 = vld [vmem:[%s683 + $0x10] sm:$0xf]
                  %694 = vst [vmem:[%s684 + $0x20] sm:$0xf] %v693
                  %v695 = vld [vmem:[%s683 + $0x14] sm:$0xf]
                  %696 = vst [vmem:[%s684 + $0x28] sm:$0xf] %v695
                  %v697 = vld [vmem:[%s683 + $0x18] sm:$0xf]
                  %698 = vst [vmem:[%s684 + $0x30] sm:$0xf] %v697
                  %v699 = vld [vmem:[%s683 + $0x1c] sm:$0xf]
                  %700 = vst [vmem:[%s684 + $0x38] sm:$0xf] %v699
                $region113: #{up_forward.3} parent=100 // loop_footer
                  %s682 = sadd.s32 1, %s678
                $region114: #{up_forward.3} parent=100 // loop_footer_branch
                  %677 = sbr.rel target = $region110
                $region115: #{up_forward.3} parent=100 // loop_exit
                  _
              $region101: #{up_forward.3} parent=85 // pred_fallthru
                _
            $region86: #{up_forward.3} parent=81 // pred_fallthru
              _
            // Predicated region
            $region87: #{up_forward.3} parent=81 // pred_check
              _
            $region88: #{up_forward.3} parent=81 // pred_check_branch
              %640 = sbr.rel (0) target = $region90
            $region89: #{up_forward.3} parent=81 // pred_region
              loop: start=0, step=1, limit=1
              $region91: #{up_forward.3} parent=89 // loop_pre_header
                _
              $region92: #{up_forward.3} parent=89 // loop_header
                %s643 = sphi 0, %s647
                %p644 = scmp.ge.s32.totalorder %s643, 1
                %s648 = sphi %s618, %s618
                %s649 = sphi %s634, %s634
              $region93: #{up_forward.3} parent=89 // loop_header_branch
                %646 = sbr.rel (%p644) target = $region97
              $region94: #{up_forward.3} parent=89 // loop_body
                %v650 = vld [vmem:[%s648] sm:$0xf]
                %651 = vst [vmem:[%s649] sm:$0xf] %v650
                %v652 = vld [vmem:[%s648 + $0x4] sm:$0xf]
                %653 = vst [vmem:[%s649 + $0x8] sm:$0xf] %v652
                %v654 = vld [vmem:[%s648 + $0x8] sm:$0xf]
                %655 = vst [vmem:[%s649 + $0x10] sm:$0xf] %v654
                %v656 = vld [vmem:[%s648 + $0xc] sm:$0xf]
                %657 = vst [vmem:[%s649 + $0x18] sm:$0xf] %v656
                %v658 = vld [vmem:[%s648 + $0x10] sm:$0xf]
                %659 = vst [vmem:[%s649 + $0x20] sm:$0xf] %v658
                %v660 = vld [vmem:[%s648 + $0x14] sm:$0xf]
                %661 = vst [vmem:[%s649 + $0x28] sm:$0xf] %v660
                %v662 = vld [vmem:[%s648 + $0x18] sm:$0xf]
                %663 = vst [vmem:[%s649 + $0x30] sm:$0xf] %v662
                %v664 = vld [vmem:[%s648 + $0x1c] sm:$0xf]
                %665 = vst [vmem:[%s649 + $0x38] sm:$0xf] %v664
              $region95: #{up_forward.3} parent=89 // loop_footer
                %s647 = sadd.s32 1, %s643
              $region96: #{up_forward.3} parent=89 // loop_footer_branch
                %642 = sbr.rel target = $region92
              $region97: #{up_forward.3} parent=89 // loop_exit
                _
            $region90: #{up_forward.3} parent=81 // pred_fallthru
              _
          $region82: #{up_forward.3} parent=77 // pred_fallthru
            _
          %701 = vnop
        $region78: #{up_forward.3} parent=65 // pred_fallthru
          _
        // Predicated region
        $region116: #{up_forward.3} parent=65 // pred_check
          %p702 = pneg %p168
        $region117: #{up_forward.3} parent=65 // pred_check_branch
          %704 = sbr.rel (%p702) target = $region119
        $region118: #{up_forward.3} parent=65 // pred_region
          _
        $region119: #{up_forward.3} parent=65 // pred_fallthru
          _
        // Predicated region
        $region120: #{up_forward.3} parent=65 // pred_check
          %p705 = pneg %p194
        $region121: #{up_forward.3} parent=65 // pred_check_branch
          %707 = sbr.rel (%p705) target = $region123
        $region122: #{up_forward.3} parent=65 // pred_region
          _
        $region123: #{up_forward.3} parent=65 // pred_fallthru
          _
      $region66: #{up_forward.3} parent=5 // pred_fallthru
        _
      %p708 = scmp.le.s32.totalorder 2, %s12
      // Predicated region
      $region124: #{up_forward.3} parent=5 // pred_check
        %p709 = pneg %p708
      $region125: #{up_forward.3} parent=5 // pred_check_branch
        %711 = sbr.rel (%p709) target = $region127
      $region126: #{up_forward.3} parent=5 // pred_region
        %s712 = ssub.s32 %s12, 2
        // Predicated region
        $region128: #{up_forward.3} parent=126 // pred_check
          %p713 = pneg %p148
        $region129: #{up_forward.3} parent=126 // pred_check_branch
          %715 = sbr.rel (%p713) target = $region131
        $region130: #{up_forward.3} parent=126 // pred_region
          %s716 = sand.u32 %s133, 1
          %s717 = sand.u32 %s133, 1
          %s718 = smul.addr %s717, 32
          %s719 = scalar_lea.vmem [#allocation3], %s718
        $region131: #{up_forward.3} parent=126 // pred_fallthru
          _
        // Predicated region
        $region132: #{up_forward.3} parent=126 // pred_check
          %p720 = pneg %p174
        $region133: #{up_forward.3} parent=126 // pred_check_branch
          %722 = sbr.rel (%p720) target = $region135
        $region134: #{up_forward.3} parent=126 // pred_region
          %p723 = scmp.lt.s32.totalorder %s25, 1
          %s724 = scalar_select %p723, %s25, 1
          %s725 = scalar_lea.vmem %s4, %s724
        $region135: #{up_forward.3} parent=126 // pred_fallthru
          _
        // Predicated region
        $region136: #{up_forward.3} parent=126 // pred_check
          %p726 = pneg %p200
        $region137: #{up_forward.3} parent=126 // pred_check_branch
          %728 = sbr.rel (%p726) target = $region139
        $region138: #{up_forward.3} parent=126 // pred_region
          %p729 = scmp.lt.s32.totalorder %s25, 1
          %s730 = scalar_select %p729, %s25, 1
          %s731 = scalar_lea.vmem %s5, %s730
        $region139: #{up_forward.3} parent=126 // pred_fallthru
          _
      $region127: #{up_forward.3} parent=5 // pred_fallthru
        _
    $region6: #{up_forward.3} parent=1 // loop_footer
      %s16 = sadd.s32 1, %s12
    $region7: #{up_forward.3} parent=1 // loop_footer_branch
      %11 = sbr.rel target = $region3
    $region8: #{up_forward.3} parent=1 // loop_exit
      _

// kernel: up_forward.4
$region0: #{up_forward.4}
  #allocation0 [shape = 'u32[]', space=smem, size = 0x4, offset = 0x4, fixed_abs, tag = 'smem constant byte address 0x4 - core index']
  #allocation1 [shape = 'u32[144,128]{1,0:T(1,128)}', space=vmem, size = 0x12000, scoped, tag = 'internal scratch']
  #allocation2 [shape = 'f32[176,4]{1,0:T(8,128)}', space=vmem, size = 0x16000, scoped, tag = 'scratch operand']
  %s0 = inlined_call_operand.vmem [shape: bf16[2,256,4], index: 0, kind: input, shape index: {}]
  %s1 = inlined_call_operand.vmem [shape: bf16[2,2,2,16,4], index: 1, kind: input, shape index: {}]
  %s2 = inlined_call_operand.vmem [shape: f32[1,4], index: 2, kind: input, shape index: {}]
  %s3 = inlined_call_operand.vmem [shape: f32[1,4], index: 3, kind: input, shape index: {}]
  %s4 = inlined_call_operand.vmem [shape: f32[9,4,4], index: 4, kind: input, shape index: {}]
  %s5 = inlined_call_operand.vmem [shape: bf16[2,256,4], index: 5, kind: output, shape index: {0}]
  %s6 = inlined_call_operand.vmem [shape: f32[2,1,4], index: 6, kind: output, shape index: {1}]
  %s7 = inlined_call_operand.vmem [shape: f32[2,1,4], index: 7, kind: output, shape index: {2}]
  %8 = xla_tuple %s5, %s6, %s7
  %s9 = sld [smem:[#allocation0]]
  $region73: #{up_forward.4} parent=0
    _
  %s11 = ssub.s32 1, %s9
  %s12 = scalar_select 0, %s11, %s9
  loop: start=0, step=1, limit=6
  $region2: #{up_forward.4} parent=0 // loop_pre_header
    _
  $region3: #{up_forward.4} parent=0 // loop_header
    %s14 = sphi 0, %s18
    %p15 = scmp.ge.s32.totalorder %s14, 6
    %s21 = sphi 0, %s33
    %s22 = sphi 0, %s29
    %s23 = sphi 0, %s21
    %s24 = sphi 0, %s22
    %s25 = sphi 0, %s23
    %s26 = sphi 0, %s24
    %s38 = sphi 0, %s40
    %s41 = sphi 0, %s38
    %s42 = sphi 0, %s41
    %s58 = sphi 0, %s42
    %s66 = sphi 0, %s68
    %s69 = sphi 0, %s66
    %s70 = sphi 0, %s69
    %s86 = sphi 0, %s70
    %s90 = sphi 0, %s90
    %s92 = sphi 0, %s90
    %s93 = sphi 0, %s92
    %s107 = sphi 0, %s93
    %s111 = sphi 0, %s111
    %s113 = sphi 0, %s111
    %s114 = sphi 0, %s113
    %s128 = sphi 0, %s114
    %s132 = sphi 0, %s132
    %s134 = sphi 0, %s132
    %s135 = sphi 0, %s134
    %s149 = sphi 0, %s135
    %s157 = sphi 0, %s159
    %s160 = sphi 0, %s157
    %s161 = sphi 0, %s160
    %s177 = sphi 0, %s161
    %s183 = sphi 0, %s185
    %s186 = sphi 0, %s183
    %s187 = sphi 0, %s186
    %s203 = sphi 0, %s187
    %s209 = sphi 0, %s211
    %s212 = sphi 0, %s209
    %s213 = sphi 0, %s212
    %s229 = sphi 0, %s213
  $region4: #{up_forward.4} parent=0 // loop_header_branch
    %17 = sbr.rel (%p15) target = $region8
  $region5: #{up_forward.4} parent=0 // loop_body
    %s19 = ssub.s32 %s14, 1
    %s20 = ssub.s32 %s14, 2
    %s27 = sadd.s32 1, %s22
    %p28 = scmp.ge.s32.totalorder %s27, 2
    %s29 = scalar_select %p28, 0, %s27
    %s30 = sadd.s32 1, %s21
    %s31 = scalar_select %p28, %s30, %s21
    %p32 = scmp.ge.s32.totalorder %s31, 2
    %s33 = scalar_select %p32, 0, %s31
    %s34 = ssub.s32 %s21, %s33
    %s35 = ssub.s32 %s22, %s29
    %s36 = sor.u32 %s34, %s35
    %p37 = scmp.eq.s32.totalorder %s36, 0
    %s39 = sadd.s32 %s38, 1
    %s40 = scalar_select %p37, %s38, %s39
    %p43 = pneg %p37
    %p44 = scmp.eq.s32.totalorder %s14, 3
    %p45 = por %p43, %p44
    %p46 = scmp.ne.s32.totalorder %s38, %s41
    %p47 = scmp.eq.s32.totalorder %s14, 0
    %p48 = por %p46, %p47
    %p49 = scmp.ne.s32.totalorder %s38, %s41
    %p50 = scmp.eq.s32.totalorder %s19, 3
    %p51 = por %p49, %p50
    %p52 = scmp.ne.s32.totalorder %s41, %s42
    %p53 = scmp.eq.s32.totalorder %s19, 0
    %p54 = por %p52, %p53
    %p55 = scmp.ne.s32.totalorder %s41, %s42
    %p56 = scmp.eq.s32.totalorder %s20, 3
    %p57 = por %p55, %p56
    %p59 = scmp.ne.s32.totalorder %s42, %s58
    %p60 = scmp.eq.s32.totalorder %s20, 0
    %p61 = por %p59, %p60
    %s62 = ssub.s32 %s21, %s33
    %s63 = ssub.s32 %s22, %s29
    %s64 = sor.u32 %s62, %s63
    %p65 = scmp.eq.s32.totalorder %s64, 0
    %s67 = sadd.s32 %s66, 1
    %s68 = scalar_select %p65, %s66, %s67
    %p71 = pneg %p65
    %p72 = scmp.eq.s32.totalorder %s14, 3
    %p73 = por %p71, %p72
    %p74 = scmp.ne.s32.totalorder %s66, %s69
    %p75 = scmp.eq.s32.totalorder %s14, 0
    %p76 = por %p74, %p75
    %p77 = scmp.ne.s32.totalorder %s66, %s69
    %p78 = scmp.eq.s32.totalorder %s19, 3
    %p79 = por %p77, %p78
    %p80 = scmp.ne.s32.totalorder %s69, %s70
    %p81 = scmp.eq.s32.totalorder %s19, 0
    %p82 = por %p80, %p81
    %p83 = scmp.ne.s32.totalorder %s69, %s70
    %p84 = scmp.eq.s32.totalorder %s20, 3
    %p85 = por %p83, %p84
    %p87 = scmp.ne.s32.totalorder %s70, %s86
    %p88 = scmp.eq.s32.totalorder %s20, 0
    %p89 = por %p87, %p88
    %s91 = sadd.s32 %s90, 1
    %p94 = scmp.eq.s32.totalorder %s14, 3
    %p95 = scmp.ne.s32.totalorder %s90, %s92
    %p96 = scmp.eq.s32.totalorder %s14, 0
    %p97 = por %p95, %p96
    %p98 = scmp.ne.s32.totalorder %s90, %s92
    %p99 = scmp.eq.s32.totalorder %s19, 3
    %p100 = por %p98, %p99
    %p101 = scmp.ne.s32.totalorder %s92, %s93
    %p102 = scmp.eq.s32.totalorder %s19, 0
    %p103 = por %p101, %p102
    %p104 = scmp.ne.s32.totalorder %s92, %s93
    %p105 = scmp.eq.s32.totalorder %s20, 3
    %p106 = por %p104, %p105
    %p108 = scmp.ne.s32.totalorder %s93, %s107
    %p109 = scmp.eq.s32.totalorder %s20, 0
    %p110 = por %p108, %p109
    %s112 = sadd.s32 %s111, 1
    %p115 = scmp.eq.s32.totalorder %s14, 3
    %p116 = scmp.ne.s32.totalorder %s111, %s113
    %p117 = scmp.eq.s32.totalorder %s14, 0
    %p118 = por %p116, %p117
    %p119 = scmp.ne.s32.totalorder %s111, %s113
    %p120 = scmp.eq.s32.totalorder %s19, 3
    %p121 = por %p119, %p120
    %p122 = scmp.ne.s32.totalorder %s113, %s114
    %p123 = scmp.eq.s32.totalorder %s19, 0
    %p124 = por %p122, %p123
    %p125 = scmp.ne.s32.totalorder %s113, %s114
    %p126 = scmp.eq.s32.totalorder %s20, 3
    %p127 = por %p125, %p126
    %p129 = scmp.ne.s32.totalorder %s114, %s128
    %p130 = scmp.eq.s32.totalorder %s20, 0
    %p131 = por %p129, %p130
    %s133 = sadd.s32 %s132, 1
    %p136 = scmp.eq.s32.totalorder %s14, 3
    %p137 = scmp.ne.s32.totalorder %s132, %s134
    %p138 = scmp.eq.s32.totalorder %s14, 0
    %p139 = por %p137, %p138
    %p140 = scmp.ne.s32.totalorder %s132, %s134
    %p141 = scmp.eq.s32.totalorder %s19, 3
    %p142 = por %p140, %p141
    %p143 = scmp.ne.s32.totalorder %s134, %s135
    %p144 = scmp.eq.s32.totalorder %s19, 0
    %p145 = por %p143, %p144
    %p146 = scmp.ne.s32.totalorder %s134, %s135
    %p147 = scmp.eq.s32.totalorder %s20, 3
    %p148 = por %p146, %p147
    %p150 = scmp.ne.s32.totalorder %s135, %s149
    %p151 = scmp.eq.s32.totalorder %s20, 0
    %p152 = por %p150, %p151
    %s153 = ssub.s32 %s21, %s33
    %s154 = ssub.s32 %s22, %s29
    %s155 = sor.u32 %s153, %s154
    %p156 = scmp.eq.s32.totalorder %s155, 0
    %s158 = sadd.s32 %s157, 1
    %s159 = scalar_select %p156, %s157, %s158
    %p162 = pneg %p156
    %p163 = scmp.eq.s32.totalorder %s14, 3
    %p164 = por %p162, %p163
    %p165 = scmp.ne.s32.totalorder %s157, %s160
    %p166 = scmp.eq.s32.totalorder %s14, 0
    %p167 = por %p165, %p166
    %p168 = scmp.ne.s32.totalorder %s157, %s160
    %p169 = scmp.eq.s32.totalorder %s19, 3
    %p170 = por %p168, %p169
    %p171 = scmp.ne.s32.totalorder %s160, %s161
    %p172 = scmp.eq.s32.totalorder %s19, 0
    %p173 = por %p171, %p172
    %p174 = scmp.ne.s32.totalorder %s160, %s161
    %p175 = scmp.eq.s32.totalorder %s20, 3
    %p176 = por %p174, %p175
    %p178 = scmp.ne.s32.totalorder %s161, %s177
    %p179 = scmp.eq.s32.totalorder %s20, 0
    %p180 = por %p178, %p179
    %s181 = ssub.s32 %s21, %s33
    %p182 = scmp.eq.s32.totalorder %s181, 0
    %s184 = sadd.s32 %s183, 1
    %s185 = scalar_select %p182, %s183, %s184
    %p188 = pneg %p182
    %p189 = scmp.eq.s32.totalorder %s14, 3
    %p190 = por %p188, %p189
    %p191 = scmp.ne.s32.totalorder %s183, %s186
    %p192 = scmp.eq.s32.totalorder %s14, 0
    %p193 = por %p191, %p192
    %p194 = scmp.ne.s32.totalorder %s183, %s186
    %p195 = scmp.eq.s32.totalorder %s19, 3
    %p196 = por %p194, %p195
    %p197 = scmp.ne.s32.totalorder %s186, %s187
    %p198 = scmp.eq.s32.totalorder %s19, 0
    %p199 = por %p197, %p198
    %p200 = scmp.ne.s32.totalorder %s186, %s187
    %p201 = scmp.eq.s32.totalorder %s20, 3
    %p202 = por %p200, %p201
    %p204 = scmp.ne.s32.totalorder %s187, %s203
    %p205 = scmp.eq.s32.totalorder %s20, 0
    %p206 = por %p204, %p205
    %s207 = ssub.s32 %s21, %s33
    %p208 = scmp.eq.s32.totalorder %s207, 0
    %s210 = sadd.s32 %s209, 1
    %s211 = scalar_select %p208, %s209, %s210
    %p214 = pneg %p208
    %p215 = scmp.eq.s32.totalorder %s14, 3
    %p216 = por %p214, %p215
    %p217 = scmp.ne.s32.totalorder %s209, %s212
    %p218 = scmp.eq.s32.totalorder %s14, 0
    %p219 = por %p217, %p218
    %p220 = scmp.ne.s32.totalorder %s209, %s212
    %p221 = scmp.eq.s32.totalorder %s19, 3
    %p222 = por %p220, %p221
    %p223 = scmp.ne.s32.totalorder %s212, %s213
    %p224 = scmp.eq.s32.totalorder %s19, 0
    %p225 = por %p223, %p224
    %p226 = scmp.ne.s32.totalorder %s212, %s213
    %p227 = scmp.eq.s32.totalorder %s20, 3
    %p228 = por %p226, %p227
    %p230 = scmp.ne.s32.totalorder %s213, %s229
    %p231 = scmp.eq.s32.totalorder %s20, 0
    %p232 = por %p230, %p231
    %p233 = scmp.le.s32.totalorder 1, %s14
    %p234 = scmp.lt.s32.totalorder %s14, 5
    %p235 = pnand %p233, %p234
    %p236 = pneg %p235
    // Predicated region
    $region9: #{up_forward.4} parent=5 // pred_check
      _
    $region10: #{up_forward.4} parent=5 // pred_check_branch
      %238 = sbr.rel (%p235) target = $region12
    $region11: #{up_forward.4} parent=5 // pred_region
      %s239 = ssub.s32 %s14, 1
      // Predicated region
      $region13: #{up_forward.4} parent=11 // pred_check
        %p240 = pneg %p103
      $region14: #{up_forward.4} parent=11 // pred_check_branch
        %242 = sbr.rel (%p240) target = $region16
      $region15: #{up_forward.4} parent=11 // pred_region
        _
      $region16: #{up_forward.4} parent=11 // pred_fallthru
        _
      // Predicated region
      $region17: #{up_forward.4} parent=11 // pred_check
        %p243 = pneg %p124
      $region18: #{up_forward.4} parent=11 // pred_check_branch
        %245 = sbr.rel (%p243) target = $region20
      $region19: #{up_forward.4} parent=11 // pred_region
        _
      $region20: #{up_forward.4} parent=11 // pred_fallthru
        _
      // Predicated region
      $region21: #{up_forward.4} parent=11 // pred_check
        %p246 = pneg %p145
      $region22: #{up_forward.4} parent=11 // pred_check_branch
        %248 = sbr.rel (%p246) target = $region24
      $region23: #{up_forward.4} parent=11 // pred_region
        _
      $region24: #{up_forward.4} parent=11 // pred_fallthru
        _
    $region12: #{up_forward.4} parent=5 // pred_fallthru
      _
    %p249 = scmp.lt.s32.totalorder %s14, 4
    // Predicated region
    $region25: #{up_forward.4} parent=5 // pred_check
      %p250 = pneg %p249
    $region26: #{up_forward.4} parent=5 // pred_check_branch
      %252 = sbr.rel (%p250) target = $region28
    $region27: #{up_forward.4} parent=5 // pred_region
      // Predicated region
      $region29: #{up_forward.4} parent=27 // pred_check
        %p253 = pneg %p48
      $region30: #{up_forward.4} parent=27 // pred_check_branch
        %255 = sbr.rel (%p253) target = $region32
      $region31: #{up_forward.4} parent=27 // pred_region
        %s256 = smul.u32 16, %s22
        %p257 = scmp.lt.s32.totalorder %s21, 1
        %s258 = scalar_select %p257, %s21, 1
        %p259 = scmp.lt.s32.totalorder %s256, 31
        %s260 = scalar_select %p259, %s256, 31
        %s261 = smul.addr %s258, 32
        %s262 = sadd.s32 %s260, %s261
        %s263 = smul.addr %s262, 4
        %s264 = scalar_lea.vmem %s0, %s263
        %s265 = smul.u32 16, %s22
      $region32: #{up_forward.4} parent=27 // pred_fallthru
        _
      // Predicated region
      $region33: #{up_forward.4} parent=27 // pred_check
        %p266 = pneg %p76
      $region34: #{up_forward.4} parent=27 // pred_check_branch
        %268 = sbr.rel (%p266) target = $region36
      $region35: #{up_forward.4} parent=27 // pred_region
        %p269 = scmp.lt.s32.totalorder %s21, 1
        %s270 = scalar_select %p269, %s21, 1
        %p271 = scmp.lt.s32.totalorder %s22, 1
        %s272 = scalar_select %p271, %s22, 1
        %s273 = smul.addr %s272, 4
        %s274 = smul.addr %s270, 8
        %s275 = sadd.s32 %s273, %s274
        %s276 = smul.addr %s275, 4
        %s277 = scalar_lea.vmem %s1, %s276
      $region36: #{up_forward.4} parent=27 // pred_fallthru
        _
    $region28: #{up_forward.4} parent=5 // pred_fallthru
      _
    %p278 = scmp.le.s32.totalorder 1, %s14
    %p279 = scmp.lt.s32.totalorder %s14, 5
    %p280 = pnand %p278, %p279
    %p281 = pneg %p280
    // Predicated region
    $region37: #{up_forward.4} parent=5 // pred_check
      _
    $region38: #{up_forward.4} parent=5 // pred_check_branch
      %283 = sbr.rel (%p280) target = $region40
    $region39: #{up_forward.4} parent=5 // pred_region
      %s284 = ssub.s32 %s14, 1
      %s285 = smul.u32 16, %s24
      %p286 = scmp.lt.s32.totalorder %s23, 1
      %s287 = scalar_select %p286, %s23, 1
      %p288 = scmp.lt.s32.totalorder %s285, 31
      %s289 = scalar_select %p288, %s285, 31
      %s290 = smul.addr %s287, 32
      %s291 = sadd.s32 %s289, %s290
      %s292 = smul.addr %s291, 4
      %s293 = scalar_lea.vmem %s0, %s292
      %p294 = pneg %p54
      %p295 = pneg %p51
      %p296 = scmp.lt.s32.totalorder %s23, 1
      %s297 = scalar_select %p296, %s23, 1
      %p298 = scmp.lt.s32.totalorder %s24, 1
      %s299 = scalar_select %p298, %s24, 1
      %s300 = smul.addr %s299, 4
      %s301 = smul.addr %s297, 8
      %s302 = sadd.s32 %s300, %s301
      %s303 = smul.addr %s302, 4
      %s304 = scalar_lea.vmem %s1, %s303
      %p305 = pneg %p82
      %p306 = pneg %p79
      %p307 = pneg %p103
      %p308 = pneg %p100
      %p309 = pneg %p124
      %p310 = pneg %p121
      %p311 = pneg %p145
      %p312 = pneg %p142
      %p313 = pneg %p173
      %p314 = pneg %p170
      %s315 = smul.u32 16, %s24
      %p316 = scmp.lt.s32.totalorder %s23, 1
      %s317 = scalar_select %p316, %s23, 1
      %p318 = scmp.lt.s32.totalorder %s315, 31
      %s319 = scalar_select %p318, %s315, 31
      %s320 = smul.addr %s317, 32
      %s321 = sadd.s32 %s319, %s320
      %s322 = smul.addr %s321, 4
      %s323 = scalar_lea.vmem %s5, %s322
      %p324 = pneg %p199
      %p325 = pneg %p196
      %p326 = scmp.lt.s32.totalorder %s23, 1
      %s327 = scalar_select %p326, %s23, 1
      %s328 = scalar_lea.vmem %s6, %s327
      %p329 = pneg %p225
      %p330 = pneg %p222
      %p331 = scmp.lt.s32.totalorder %s23, 1
      %s332 = scalar_select %p331, %s23, 1
      %s333 = scalar_lea.vmem %s7, %s332
      %s334 = smul.u32 16, %s24
      %p335 = scmp.lt.s32.totalorder %s23, 1
      %s336 = scalar_select %p335, %s23, 1
      %p337 = scmp.lt.s32.totalorder %s334, 31
      %s338 = scalar_select %p337, %s334, 31
      %s339 = smul.addr %s336, 32
      %s340 = sadd.s32 %s338, %s339
      %s341 = smul.addr %s340, 4
      %s342 = scalar_lea.vmem %s0, %s341
      %s343 = smul.u32 16, %s24
      %p344 = scmp.lt.s32.totalorder %s23, 1
      %s345 = scalar_select %p344, %s23, 1
      %p346 = scmp.lt.s32.totalorder %s24, 1
      %s347 = scalar_select %p346, %s24, 1
      %s348 = smul.addr %s347, 4
      %s349 = smul.addr %s345, 8
      %s350 = sadd.s32 %s348, %s349
      %s351 = smul.addr %s350, 4
      %s352 = scalar_lea.vmem %s1, %s351
      %s353 = smul.u32 16, %s24
      %p354 = scmp.lt.s32.totalorder %s23, 1
      %s355 = scalar_select %p354, %s23, 1
      %p356 = scmp.lt.s32.totalorder %s353, 31
      %s357 = scalar_select %p356, %s353, 31
      %s358 = smul.addr %s355, 32
      %s359 = sadd.s32 %s357, %s358
      %s360 = smul.addr %s359, 4
      %s361 = scalar_lea.vmem %s5, %s360
      %s362 = smul.u32 16, %s24
      %p363 = scmp.lt.s32.totalorder %s23, 1
      %s364 = scalar_select %p363, %s23, 1
      %s365 = scalar_lea.vmem %s6, %s364
      %p366 = scmp.lt.s32.totalorder %s23, 1
      %s367 = scalar_select %p366, %s23, 1
      %s368 = scalar_lea.vmem %s7, %s367
      %p369 = scmp.eq.s32.totalorder %s24, 0
      // Predicated region
      $region41: #{up_forward.4} parent=39 // pred_check
        %p370 = pneg %p369
      $region42: #{up_forward.4} parent=39 // pred_check_branch
        %372 = sbr.rel (%p370) target = $region44
      $region43: #{up_forward.4} parent=39 // pred_region
        %vm373 = vcmask 24576
        %374 = vst.msk [vmem:[%s365] sm:$0x1] %vm373, 0.0
        %375 = vst.msk [vmem:[%s368] sm:$0x1] %vm373, 0.0
      $region44: #{up_forward.4} parent=39 // pred_fallthru
        _
      %v376 = vld [vmem:[%s2] sm:$0x1]
      %v377 = vld [vmem:[%s3] sm:$0x1]
      %v378 = vld [vmem:[%s342] sm:$0xf]
      %v379 = vld [vmem:[%s342 + $0x4] sm:$0xf]
      %v380 = vld [vmem:[%s342 + $0x8] sm:$0xf]
      %v381 = vld [vmem:[%s342 + $0xc] sm:$0xf]
      %v382 = vld [vmem:[%s342 + $0x10] sm:$0xf]
      %v383 = vld [vmem:[%s342 + $0x14] sm:$0xf]
      %v384 = vld [vmem:[%s342 + $0x18] sm:$0xf]
      %v385 = vld [vmem:[%s342 + $0x1c] sm:$0xf]
      %v386 = vld [vmem:[%s342 + $0x20] sm:$0xf]
      %v387 = vld [vmem:[%s342 + $0x24] sm:$0xf]
      %v388 = vld [vmem:[%s342 + $0x28] sm:$0xf]
      %v389 = vld [vmem:[%s342 + $0x2c] sm:$0xf]
      %v390 = vld [vmem:[%s342 + $0x30] sm:$0xf]
      %v391 = vld [vmem:[%s342 + $0x34] sm:$0xf]
      %v392 = vld [vmem:[%s342 + $0x38] sm:$0xf]
      %v393 = vld [vmem:[%s342 + $0x3c] sm:$0xf]
      %v394 = vunpack.c.l.bf16 %v378
      %v395 = vunpack.c.l.bf16 %v379
      %v396 = vunpack.c.l.bf16 %v380
      %v397 = vunpack.c.l.bf16 %v381
      %v398 = vunpack.c.l.bf16 %v382
      %v399 = vunpack.c.l.bf16 %v383
      %v400 = vunpack.c.l.bf16 %v384
      %v401 = vunpack.c.l.bf16 %v385
      %v402 = vunpack.c.l.bf16 %v386
      %v403 = vunpack.c.l.bf16 %v387
      %v404 = vunpack.c.l.bf16 %v388
      %v405 = vunpack.c.l.bf16 %v389
      %v406 = vunpack.c.l.bf16 %v390
      %v407 = vunpack.c.l.bf16 %v391
      %v408 = vunpack.c.l.bf16 %v392
      %v409 = vunpack.c.l.bf16 %v393
      %v411 = vlaneseq
      %v412 = vshrl.u32 %v411, 7
      %v413 = vsub.s32 0, %v412
      %v414 = vrot.slane %v376, %v413
      %v416 = vmul.f32 %v394, %v414
      %v417 = vmul.f32 %v395, %v414
      %v418 = vmul.f32 %v396, %v414
      %v419 = vmul.f32 %v397, %v414
      %v420 = vmul.f32 %v398, %v414
      %v421 = vmul.f32 %v399, %v414
      %v422 = vmul.f32 %v400, %v414
      %v423 = vmul.f32 %v401, %v414
      %v424 = vmul.f32 %v402, %v414
      %v425 = vmul.f32 %v403, %v414
      %v426 = vmul.f32 %v404, %v414
      %v427 = vmul.f32 %v405, %v414
      %v428 = vmul.f32 %v406, %v414
      %v429 = vmul.f32 %v407, %v414
      %v430 = vmul.f32 %v408, %v414
      %v431 = vmul.f32 %v409, %v414
      %v433 = vlaneseq
      %v434 = vshrl.u32 %v433, 7
      %v435 = vsub.s32 0, %v434
      %v436 = vrot.slane %v377, %v435
      %v438 = vadd.f32 %v416, %v436
      %v439 = vadd.f32 %v417, %v436
      %v440 = vadd.f32 %v418, %v436
      %v441 = vadd.f32 %v419, %v436
      %v442 = vadd.f32 %v420, %v436
      %v443 = vadd.f32 %v421, %v436
      %v444 = vadd.f32 %v422, %v436
      %v445 = vadd.f32 %v423, %v436
      %v446 = vadd.f32 %v424, %v436
      %v447 = vadd.f32 %v425, %v436
      %v448 = vadd.f32 %v426, %v436
      %v449 = vadd.f32 %v427, %v436
      %v450 = vadd.f32 %v428, %v436
      %v451 = vadd.f32 %v429, %v436
      %v452 = vadd.f32 %v430, %v436
      %v453 = vadd.f32 %v431, %v436
      %vm454 = vcmp.ge.f32.partialorder %v438, 0.0
      %vm455 = vcmp.ge.f32.partialorder %v439, 0.0
      %vm456 = vcmp.ge.f32.partialorder %v440, 0.0
      %vm457 = vcmp.ge.f32.partialorder %v441, 0.0
      %vm458 = vcmp.ge.f32.partialorder %v442, 0.0
      %vm459 = vcmp.ge.f32.partialorder %v443, 0.0
      %vm460 = vcmp.ge.f32.partialorder %v444, 0.0
      %vm461 = vcmp.ge.f32.partialorder %v445, 0.0
      %vm462 = vcmp.ge.f32.partialorder %v446, 0.0
      %vm463 = vcmp.ge.f32.partialorder %v447, 0.0
      %vm464 = vcmp.ge.f32.partialorder %v448, 0.0
      %vm465 = vcmp.ge.f32.partialorder %v449, 0.0
      %vm466 = vcmp.ge.f32.partialorder %v450, 0.0
      %vm467 = vcmp.ge.f32.partialorder %v451, 0.0
      %vm468 = vcmp.ge.f32.partialorder %v452, 0.0
      %vm469 = vcmp.ge.f32.partialorder %v453, 0.0
      %v470 = vmul.f32 %v438, 0.01
      %v471 = vmul.f32 %v439, 0.01
      %v472 = vmul.f32 %v440, 0.01
      %v473 = vmul.f32 %v441, 0.01
      %v474 = vmul.f32 %v442, 0.01
      %v475 = vmul.f32 %v443, 0.01
      %v476 = vmul.f32 %v444, 0.01
      %v477 = vmul.f32 %v445, 0.01
      %v478 = vmul.f32 %v446, 0.01
      %v479 = vmul.f32 %v447, 0.01
      %v480 = vmul.f32 %v448, 0.01
      %v481 = vmul.f32 %v449, 0.01
      %v482 = vmul.f32 %v450, 0.01
      %v483 = vmul.f32 %v451, 0.01
      %v484 = vmul.f32 %v452, 0.01
      %v485 = vmul.f32 %v453, 0.01
      %v486 = vsel %vm454, %v438, %v470
      %v487 = vsel %vm455, %v439, %v471
      %v488 = vsel %vm456, %v440, %v472
      %v489 = vsel %vm457, %v441, %v473
      %v490 = vsel %vm458, %v442, %v474
      %v491 = vsel %vm459, %v443, %v475
      %v492 = vsel %vm460, %v444, %v476
      %v493 = vsel %vm461, %v445, %v477
      %v494 = vsel %vm462, %v446, %v478
      %v495 = vsel %vm463, %v447, %v479
      %v496 = vsel %vm464, %v448, %v480
      %v497 = vsel %vm465, %v449, %v481
      %v498 = vsel %vm466, %v450, %v482
      %v499 = vsel %vm467, %v451, %v483
      %v500 = vsel %vm468, %v452, %v484
      %v501 = vsel %vm469, %v453, %v485
      %vm502 = vcmask 31744
      %503 = vst.msk [vmem:[#allocation2 + $0x18] sm:$0xff] %vm502, %v486
      %504 = vst.msk [vmem:[#allocation2 + $0x20] sm:$0xff] %vm502, %v487
      %505 = vst.msk [vmem:[#allocation2 + $0x28] sm:$0xff] %vm502, %v488
      %506 = vst.msk [vmem:[#allocation2 + $0x30] sm:$0xff] %vm502, %v489
      %507 = vst.msk [vmem:[#allocation2 + $0x38] sm:$0xff] %vm502, %v490
      %508 = vst.msk [vmem:[#allocation2 + $0x40] sm:$0xff] %vm502, %v491
      %509 = vst.msk [vmem:[#allocation2 + $0x48] sm:$0xff] %vm502, %v492
      %510 = vst.msk [vmem:[#allocation2 + $0x50] sm:$0xff] %vm502, %v493
      %511 = vst.msk [vmem:[#allocation2 + $0x58] sm:$0xff] %vm502, %v494
      %512 = vst.msk [vmem:[#allocation2 + $0x60] sm:$0xff] %vm502, %v495
      %513 = vst.msk [vmem:[#allocation2 + $0x68] sm:$0xff] %vm502, %v496
      %514 = vst.msk [vmem:[#allocation2 + $0x70] sm:$0xff] %vm502, %v497
      %515 = vst.msk [vmem:[#allocation2 + $0x78] sm:$0xff] %vm502, %v498
      %516 = vst.msk [vmem:[#allocation2 + $0x80] sm:$0xff] %vm502, %v499
      %517 = vst.msk [vmem:[#allocation2 + $0x88] sm:$0xff] %vm502, %v500
      %518 = vst.msk [vmem:[#allocation2 + $0x90] sm:$0xff] %vm502, %v501
      %p519 = scmp.gt.s32.totalorder %s24, 0
      %s520 = scalar_select %p519, 1, 0
      %s521 = scvt.s32.f32 %s520
      %p522 = scmp.lt.s32.totalorder %s24, 1
      %s523 = scalar_select %p522, 1, 0
      %s524 = scvt.s32.f32 %s523
      %v525 = vld [vmem:[%s352] sm:$0xf]
      %v526 = vld [vmem:[%s352 + $0x4] sm:$0xf]
      %v527 = vunpack.c.l.bf16 %v525
      %v528 = vunpack.c.l.bf16 %v526
      %v529 = vmul.f32 %v527, %v414
      %v530 = vmul.f32 %v528, %v414
      %v531 = vadd.f32 %v529, %v436
      %v532 = vadd.f32 %v530, %v436
      %vm533 = vcmp.ge.f32.partialorder %v531, 0.0
      %vm534 = vcmp.ge.f32.partialorder %v532, 0.0
      %v535 = vmul.f32 %v531, 0.01
      %v536 = vmul.f32 %v532, 0.01
      %v537 = vsel %vm533, %v531, %v535
      %v538 = vsel %vm534, %v532, %v536
      %v539 = vstv %s521
      %v540 = vmul.f32 %v539, %v537
      %v541 = vmul.f32 %v539, %v538
      %542 = vst.msk [vmem:[#allocation2 + $0x8] sm:$0xff] %vm502, %v540
      %543 = vst.msk [vmem:[#allocation2 + $0x10] sm:$0xff] %vm502, %v541
      %s544 = scalar_lea.vmem %s352, 8
      %v545 = vld [vmem:[%s544] sm:$0xf]
      %v546 = vld [vmem:[%s544 + $0x4] sm:$0xf]
      %v547 = vunpack.c.l.bf16 %v545
      %v548 = vunpack.c.l.bf16 %v546
      %v549 = vmul.f32 %v547, %v414
      %v550 = vmul.f32 %v548, %v414
      %v551 = vadd.f32 %v549, %v436
      %v552 = vadd.f32 %v550, %v436
      %vm553 = vcmp.ge.f32.partialorder %v551, 0.0
      %vm554 = vcmp.ge.f32.partialorder %v552, 0.0
      %v555 = vmul.f32 %v551, 0.01
      %v556 = vmul.f32 %v552, 0.01
      %v557 = vsel %vm553, %v551, %v555
      %v558 = vsel %vm554, %v552, %v556
      %v559 = vstv %s524
      %v560 = vmul.f32 %v559, %v557
      %v561 = vmul.f32 %v559, %v558
      %562 = vst.msk [vmem:[#allocation2 + $0x98] sm:$0xff] %vm502, %v560
      %563 = vst.msk [vmem:[#allocation2 + $0xa0] sm:$0xff] %vm502, %v561
      %564 = vst.msk [vmem:[#allocation2] sm:$0xff] %vm502, 0.0
      %565 = vst.msk [vmem:[#allocation2 + $0xa8] sm:$0xff] %vm502, 0.0
      %v566 = vlaneseq
      %v567 = vshrl.u32 %v566, 7
      %v568 = vadd.s32 %v567, 8
      %v569 = vadd.s32 %v567, 16
      %v570 = vadd.s32 %v567, 24
      %v571 = vadd.s32 %v567, 32
      %v572 = vadd.s32 %v567, 40
      %v573 = vadd.s32 %v567, 48
      %v574 = vadd.s32 %v567, 56
      %v575 = vadd.s32 %v567, 64
      %v576 = vadd.s32 %v567, 72
      %v577 = vadd.s32 %v567, 80
      %v578 = vadd.s32 %v567, 88
      %v579 = vadd.s32 %v567, 96
      %v580 = vadd.s32 %v567, 104
      %v581 = vadd.s32 %v567, 112
      %v582 = vadd.s32 %v567, 120
      %vm583 = vcmp.lt.s32.totalorder %v567, 0
      %v584 = vsub.s32 0, %v567
      %v585 = vsel %vm583, %v584, %v567
      %v586 = vshrl.u32 %v585, 4
      %v587 = vand.u32 %v585, 15
      %v588 = vsub.s32 0, %v587
      %v589 = vsel %vm583, %v588, %v587
      %vm590 = vcmp.lt.s32.totalorder %v568, 0
      %v591 = vsub.s32 0, %v568
      %v592 = vsel %vm590, %v591, %v568
      %v593 = vshrl.u32 %v592, 4
      %v594 = vand.u32 %v592, 15
      %v595 = vsub.s32 0, %v594
      %v596 = vsel %vm590, %v595, %v594
      %vm597 = vcmp.lt.s32.totalorder %v569, 0
      %v598 = vsub.s32 0, %v569
      %v599 = vsel %vm597, %v598, %v569
      %v600 = vshrl.u32 %v599, 4
      %v601 = vand.u32 %v599, 15
      %v602 = vsub.s32 0, %v601
      %v603 = vsel %vm597, %v602, %v601
      %vm604 = vcmp.lt.s32.totalorder %v570, 0
      %v605 = vsub.s32 0, %v570
      %v606 = vsel %vm604, %v605, %v570
      %v607 = vshrl.u32 %v606, 4
      %v608 = vand.u32 %v606, 15
      %v609 = vsub.s32 0, %v608
      %v610 = vsel %vm604, %v609, %v608
      %vm611 = vcmp.lt.s32.totalorder %v571, 0
      %v612 = vsub.s32 0, %v571
      %v613 = vsel %vm611, %v612, %v571
      %v614 = vshrl.u32 %v613, 4
      %v615 = vand.u32 %v613, 15
      %v616 = vsub.s32 0, %v615
      %v617 = vsel %vm611, %v616, %v615
      %vm618 = vcmp.lt.s32.totalorder %v572, 0
      %v619 = vsub.s32 0, %v572
      %v620 = vsel %vm618, %v619, %v572
      %v621 = vshrl.u32 %v620, 4
      %v622 = vand.u32 %v620, 15
      %v623 = vsub.s32 0, %v622
      %v624 = vsel %vm618, %v623, %v622
      %vm625 = vcmp.lt.s32.totalorder %v573, 0
      %v626 = vsub.s32 0, %v573
      %v627 = vsel %vm625, %v626, %v573
      %v628 = vshrl.u32 %v627, 4
      %v629 = vand.u32 %v627, 15
      %v630 = vsub.s32 0, %v629
      %v631 = vsel %vm625, %v630, %v629
      %vm632 = vcmp.lt.s32.totalorder %v574, 0
      %v633 = vsub.s32 0, %v574
      %v634 = vsel %vm632, %v633, %v574
      %v635 = vshrl.u32 %v634, 4
      %v636 = vand.u32 %v634, 15
      %v637 = vsub.s32 0, %v636
      %v638 = vsel %vm632, %v637, %v636
      %vm639 = vcmp.lt.s32.totalorder %v575, 0
      %v640 = vsub.s32 0, %v575
      %v641 = vsel %vm639, %v640, %v575
      %v642 = vshrl.u32 %v641, 4
      %v643 = vand.u32 %v641, 15
      %v644 = vsub.s32 0, %v643
      %v645 = vsel %vm639, %v644, %v643
      %vm646 = vcmp.lt.s32.totalorder %v576, 0
      %v647 = vsub.s32 0, %v576
      %v648 = vsel %vm646, %v647, %v576
      %v649 = vshrl.u32 %v648, 4
      %v650 = vand.u32 %v648, 15
      %v651 = vsub.s32 0, %v650
      %v652 = vsel %vm646, %v651, %v650
      %vm653 = vcmp.lt.s32.totalorder %v577, 0
      %v654 = vsub.s32 0, %v577
      %v655 = vsel %vm653, %v654, %v577
      %v656 = vshrl.u32 %v655, 4
      %v657 = vand.u32 %v655, 15
      %v658 = vsub.s32 0, %v657
      %v659 = vsel %vm653, %v658, %v657
      %vm660 = vcmp.lt.s32.totalorder %v578, 0
      %v661 = vsub.s32 0, %v578
      %v662 = vsel %vm660, %v661, %v578
      %v663 = vshrl.u32 %v662, 4
      %v664 = vand.u32 %v662, 15
      %v665 = vsub.s32 0, %v664
      %v666 = vsel %vm660, %v665, %v664
      %vm667 = vcmp.lt.s32.totalorder %v579, 0
      %v668 = vsub.s32 0, %v579
      %v669 = vsel %vm667, %v668, %v579
      %v670 = vshrl.u32 %v669, 4
      %v671 = vand.u32 %v669, 15
      %v672 = vsub.s32 0, %v671
      %v673 = vsel %vm667, %v672, %v671
      %vm674 = vcmp.lt.s32.totalorder %v580, 0
      %v675 = vsub.s32 0, %v580
      %v676 = vsel %vm674, %v675, %v580
      %v677 = vshrl.u32 %v676, 4
      %v678 = vand.u32 %v676, 15
      %v679 = vsub.s32 0, %v678
      %v680 = vsel %vm674, %v679, %v678
      %vm681 = vcmp.lt.s32.totalorder %v581, 0
      %v682 = vsub.s32 0, %v581
      %v683 = vsel %vm681, %v682, %v581
      %v684 = vshrl.u32 %v683, 4
      %v685 = vand.u32 %v683, 15
      %v686 = vsub.s32 0, %v685
      %v687 = vsel %vm681, %v686, %v685
      %vm688 = vcmp.lt.s32.totalorder %v582, 0
      %v689 = vsub.s32 0, %v582
      %v690 = vsel %vm688, %v689, %v582
      %v691 = vshrl.u32 %v690, 4
      %v692 = vand.u32 %v690, 15
      %v693 = vsub.s32 0, %v692
      %v694 = vsel %vm688, %v693, %v692
      %vm695 = vcmp.ne.s32.totalorder %v589, 0
      %vm696 = vcmp.ne.s32.totalorder %v596, 0
      %vm697 = vcmp.ne.s32.totalorder %v603, 0
      %vm698 = vcmp.ne.s32.totalorder %v610, 0
      %vm699 = vcmp.ne.s32.totalorder %v617, 0
      %vm700 = vcmp.ne.s32.totalorder %v624, 0
      %vm701 = vcmp.ne.s32.totalorder %v631, 0
      %vm702 = vcmp.ne.s32.totalorder %v638, 0
      %vm703 = vcmp.ne.s32.totalorder %v645, 0
      %vm704 = vcmp.ne.s32.totalorder %v652, 0
      %vm705 = vcmp.ne.s32.totalorder %v659, 0
      %vm706 = vcmp.ne.s32.totalorder %v666, 0
      %vm707 = vcmp.ne.s32.totalorder %v673, 0
      %vm708 = vcmp.ne.s32.totalorder %v680, 0
      %vm709 = vcmp.ne.s32.totalorder %v687, 0
      %vm710 = vcmp.ne.s32.totalorder %v694, 0
      %vm711 = vcmp.lt.s32.totalorder %v589, 0
      %vm712 = vcmp.lt.s32.totalorder %v596, 0
      %vm713 = vcmp.lt.s32.totalorder %v603, 0
      %vm714 = vcmp.lt.s32.totalorder %v610, 0
      %vm715 = vcmp.lt.s32.totalorder %v617, 0
      %vm716 = vcmp.lt.s32.totalorder %v624, 0
      %vm717 = vcmp.lt.s32.totalorder %v631, 0
      %vm718 = vcmp.lt.s32.totalorder %v638, 0
      %vm719 = vcmp.lt.s32.totalorder %v645, 0
      %vm720 = vcmp.lt.s32.totalorder %v652, 0
      %vm721 = vcmp.lt.s32.totalorder %v659, 0
      %vm722 = vcmp.lt.s32.totalorder %v666, 0
      %vm723 = vcmp.lt.s32.totalorder %v673, 0
      %vm724 = vcmp.lt.s32.totalorder %v680, 0
      %vm725 = vcmp.lt.s32.totalorder %v687, 0
      %vm726 = vcmp.lt.s32.totalorder %v694, 0
      %vm727 = vmand %vm711, %vm695
      %vm728 = vmand %vm712, %vm696
      %vm729 = vmand %vm713, %vm697
      %vm730 = vmand %vm714, %vm698
      %vm731 = vmand %vm715, %vm699
      %vm732 = vmand %vm716, %vm700
      %vm733 = vmand %vm717, %vm701
      %vm734 = vmand %vm718, %vm702
      %vm735 = vmand %vm719, %vm703
      %vm736 = vmand %vm720, %vm704
      %vm737 = vmand %vm721, %vm705
      %vm738 = vmand %vm722, %vm706
      %vm739 = vmand %vm723, %vm707
      %vm740 = vmand %vm724, %vm708
      %vm741 = vmand %vm725, %vm709
      %vm742 = vmand %vm726, %vm710
      %v743 = vadd.s32 %v589, 16
      %v744 = vadd.s32 %v596, 16
      %v745 = vadd.s32 %v603, 16
      %v746 = vadd.s32 %v610, 16
      %v747 = vadd.s32 %v617, 16
      %v748 = vadd.s32 %v624, 16
      %v749 = vadd.s32 %v631, 16
      %v750 = vadd.s32 %v638, 16
      %v751 = vadd.s32 %v645, 16
      %v752 = vadd.s32 %v652, 16
      %v753 = vadd.s32 %v659, 16
      %v754 = vadd.s32 %v666, 16
      %v755 = vadd.s32 %v673, 16
      %v756 = vadd.s32 %v680, 16
      %v757 = vadd.s32 %v687, 16
      %v758 = vadd.s32 %v694, 16
      %v759 = vsel %vm727, %v743, %v589
      %v760 = vsel %vm728, %v744, %v596
      %v761 = vsel %vm729, %v745, %v603
      %v762 = vsel %vm730, %v746, %v610
      %v763 = vsel %vm731, %v747, %v617
      %v764 = vsel %vm732, %v748, %v624
      %v765 = vsel %vm733, %v749, %v631
      %v766 = vsel %vm734, %v750, %v638
      %v767 = vsel %vm735, %v751, %v645
      %v768 = vsel %vm736, %v752, %v652
      %v769 = vsel %vm737, %v753, %v659
      %v770 = vsel %vm738, %v754, %v666
      %v771 = vsel %vm739, %v755, %v673
      %v772 = vsel %vm740, %v756, %v680
      %v773 = vsel %vm741, %v757, %v687
      %v774 = vsel %vm742, %v758, %v694
      %vm775 = vcmp.ne.s32.totalorder %v759, 0
      %vm776 = vcmp.ne.s32.totalorder %v760, 0
      %vm777 = vcmp.ne.s32.totalorder %v761, 0
      %vm778 = vcmp.ne.s32.totalorder %v762, 0
      %vm779 = vcmp.ne.s32.totalorder %v763, 0
      %vm780 = vcmp.ne.s32.totalorder %v764, 0
      %vm781 = vcmp.ne.s32.totalorder %v765, 0
      %vm782 = vcmp.ne.s32.totalorder %v766, 0
      %vm783 = vcmp.ne.s32.totalorder %v767, 0
      %vm784 = vcmp.ne.s32.totalorder %v768, 0
      %vm785 = vcmp.ne.s32.totalorder %v769, 0
      %vm786 = vcmp.ne.s32.totalorder %v770, 0
      %vm787 = vcmp.ne.s32.totalorder %v771, 0
      %vm788 = vcmp.ne.s32.totalorder %v772, 0
      %vm789 = vcmp.ne.s32.totalorder %v773, 0
      %vm790 = vcmp.ne.s32.totalorder %v774, 0
      %vm791 = vcmp.ne.s32.totalorder %v759, 15
      %vm792 = vcmp.ne.s32.totalorder %v760, 15
      %vm793 = vcmp.ne.s32.totalorder %v761, 15
      %vm794 = vcmp.ne.s32.totalorder %v762, 15
      %vm795 = vcmp.ne.s32.totalorder %v763, 15
      %vm796 = vcmp.ne.s32.totalorder %v764, 15
      %vm797 = vcmp.ne.s32.totalorder %v765, 15
      %vm798 = vcmp.ne.s32.totalorder %v766, 15
      %vm799 = vcmp.ne.s32.totalorder %v767, 15
      %vm800 = vcmp.ne.s32.totalorder %v768, 15
      %vm801 = vcmp.ne.s32.totalorder %v769, 15
      %vm802 = vcmp.ne.s32.totalorder %v770, 15
      %vm803 = vcmp.ne.s32.totalorder %v771, 15
      %vm804 = vcmp.ne.s32.totalorder %v772, 15
      %vm805 = vcmp.ne.s32.totalorder %v773, 15
      %vm806 = vcmp.ne.s32.totalorder %v774, 15
      %v807 = vld [vmem:[#allocation2 + $0x7] sm:$0xff]
      %v808 = vld [vmem:[#allocation2 + $0xf] sm:$0xff]
      %v809 = vld [vmem:[#allocation2 + $0x17] sm:$0xff]
      %v810 = vld [vmem:[#allocation2 + $0x1f] sm:$0xff]
      %v811 = vld [vmem:[#allocation2 + $0x27] sm:$0xff]
      %v812 = vld [vmem:[#allocation2 + $0x2f] sm:$0xff]
      %v813 = vld [vmem:[#allocation2 + $0x37] sm:$0xff]
      %v814 = vld [vmem:[#allocation2 + $0x3f] sm:$0xff]
      %v815 = vld [vmem:[#allocation2 + $0x47] sm:$0xff]
      %v816 = vld [vmem:[#allocation2 + $0x4f] sm:$0xff]
      %v817 = vld [vmem:[#allocation2 + $0x57] sm:$0xff]
      %v818 = vld [vmem:[#allocation2 + $0x5f] sm:$0xff]
      %v819 = vld [vmem:[#allocation2 + $0x67] sm:$0xff]
      %v820 = vld [vmem:[#allocation2 + $0x6f] sm:$0xff]
      %v821 = vld [vmem:[#allocation2 + $0x77] sm:$0xff]
      %v822 = vld [vmem:[#allocation2 + $0x7f] sm:$0xff]
      %v823 = vsel %vm775, 1, 0
      %v824 = vsel %vm776, 1, 0
      %v825 = vsel %vm777, 1, 0
      %v826 = vsel %vm778, 1, 0
      %v827 = vsel %vm779, 1, 0
      %v828 = vsel %vm780, 1, 0
      %v829 = vsel %vm781, 1, 0
      %v830 = vsel %vm782, 1, 0
      %v831 = vsel %vm783, 1, 0
      %v832 = vsel %vm784, 1, 0
      %v833 = vsel %vm785, 1, 0
      %v834 = vsel %vm786, 1, 0
      %v835 = vsel %vm787, 1, 0
      %v836 = vsel %vm788, 1, 0
      %v837 = vsel %vm789, 1, 0
      %v838 = vsel %vm790, 1, 0
      %vm839 = vcmp.eq.s32.totalorder %v823, 1
      %vm840 = vcmp.eq.s32.totalorder %v824, 1
      %vm841 = vcmp.eq.s32.totalorder %v825, 1
      %vm842 = vcmp.eq.s32.totalorder %v826, 1
      %vm843 = vcmp.eq.s32.totalorder %v827, 1
      %vm844 = vcmp.eq.s32.totalorder %v828, 1
      %vm845 = vcmp.eq.s32.totalorder %v829, 1
      %vm846 = vcmp.eq.s32.totalorder %v830, 1
      %vm847 = vcmp.eq.s32.totalorder %v831, 1
      %vm848 = vcmp.eq.s32.totalorder %v832, 1
      %vm849 = vcmp.eq.s32.totalorder %v833, 1
      %vm850 = vcmp.eq.s32.totalorder %v834, 1
      %vm851 = vcmp.eq.s32.totalorder %v835, 1
      %vm852 = vcmp.eq.s32.totalorder %v836, 1
      %vm853 = vcmp.eq.s32.totalorder %v837, 1
      %vm854 = vcmp.eq.s32.totalorder %v838, 1
      %v855 = vsel %vm839, %v807, 0.0
      %v856 = vsel %vm840, %v808, 0.0
      %v857 = vsel %vm841, %v809, 0.0
      %v858 = vsel %vm842, %v810, 0.0
      %v859 = vsel %vm843, %v811, 0.0
      %v860 = vsel %vm844, %v812, 0.0
      %v861 = vsel %vm845, %v813, 0.0
      %v862 = vsel %vm846, %v814, 0.0
      %v863 = vsel %vm847, %v815, 0.0
      %v864 = vsel %vm848, %v816, 0.0
      %v865 = vsel %vm849, %v817, 0.0
      %v866 = vsel %vm850, %v818, 0.0
      %v867 = vsel %vm851, %v819, 0.0
      %v868 = vsel %vm852, %v820, 0.0
      %v869 = vsel %vm853, %v821, 0.0
      %v870 = vsel %vm854, %v822, 0.0
      %v871 = vld [vmem:[%s4] sm:$0xf]
      %v872 = vld [vmem:[#allocation2 + $0x8] sm:$0xff]
      %v873 = vld [vmem:[#allocation2 + $0x10] sm:$0xff]
      %v874 = vld [vmem:[#allocation2 + $0x18] sm:$0xff]
      %v875 = vld [vmem:[#allocation2 + $0x20] sm:$0xff]
      %v876 = vld [vmem:[#allocation2 + $0x28] sm:$0xff]
      %v877 = vld [vmem:[#allocation2 + $0x30] sm:$0xff]
      %v878 = vld [vmem:[#allocation2 + $0x38] sm:$0xff]
      %v879 = vld [vmem:[#allocation2 + $0x40] sm:$0xff]
      %v880 = vld [vmem:[#allocation2 + $0x48] sm:$0xff]
      %v881 = vld [vmem:[#allocation2 + $0x50] sm:$0xff]
      %v882 = vld [vmem:[#allocation2 + $0x58] sm:$0xff]
      %v883 = vld [vmem:[#allocation2 + $0x60] sm:$0xff]
      %v884 = vld [vmem:[#allocation2 + $0x68] sm:$0xff]
      %v885 = vld [vmem:[#allocation2 + $0x70] sm:$0xff]
      %v886 = vld [vmem:[#allocation2 + $0x78] sm:$0xff]
      %v887 = vld [vmem:[#allocation2 + $0x80] sm:$0xff]
      %s888 = scalar_lea.vmem %s4, 4
      %v889 = vld [vmem:[%s888] sm:$0xf]
      %v891 = vsel %vm502, %v872, 0
      %v894 = vsel %vm502, %v873, 0
      %v897 = vsel %vm502, %v874, 0
      %v900 = vsel %vm502, %v875, 0
      %v903 = vsel %vm502, %v876, 0
      %v906 = vsel %vm502, %v877, 0
      %v909 = vsel %vm502, %v878, 0
      %v912 = vsel %vm502, %v879, 0
      %v915 = vsel %vm502, %v880, 0
      %v918 = vsel %vm502, %v881, 0
      %v921 = vsel %vm502, %v882, 0
      %v924 = vsel %vm502, %v883, 0
      %v927 = vsel %vm502, %v884, 0
      %v930 = vsel %vm502, %v885, 0
      %v933 = vsel %vm502, %v886, 0
      %v936 = vsel %vm502, %v887, 0
      %vm938 = vcmask 1043456
      %v940 = vsel %vm938, %v889, 0
      %942 = vmatprep.subr.mxu0 0.0
      %943 = vmatpush1.msra.mxu0 %v940
      %944 = vmatprep.subr.mxu0 0.0
      %945 = vmatpush1.msra.mxu0 0.0
      %946 = vmatprep.subr.mxu0 0.0
      %947 = vmatpush1.msra.mxu0 0.0
      %948 = vmatprep.subr.mxu0 0.0
      %949 = vmatpush1.msra.mxu0 0.0
      %950 = vmatprep.subr.mxu0 0.0
      %951 = vmatpush1.msra.mxu0 0.0
      %952 = vmatprep.subr.mxu0 0.0
      %953 = vmatpush1.msra.mxu0 0.0
      %954 = vmatprep.subr.mxu0 0.0
      %955 = vmatpush1.msra.mxu0 0.0
      %956 = vmatprep.subr.mxu0 0.0
      %957 = vmatpush1.msra.mxu0 0.0
      %958 = vmatprep.subr.mxu0 0.0
      %959 = vmatpush1.msra.mxu0 0.0
      %960 = vmatprep.subr.mxu0 0.0
      %961 = vmatpush1.msra.mxu0 0.0
      %962 = vmatprep.subr.mxu0 0.0
      %963 = vmatpush1.msra.mxu0 0.0
      %964 = vmatprep.subr.mxu0 0.0
      %965 = vmatpush1.msra.mxu0 0.0
      %966 = vmatprep.subr.mxu0 0.0
      %967 = vmatpush1.msra.mxu0 0.0
      %968 = vmatprep.subr.mxu0 0.0
      %969 = vmatpush1.msra.mxu0 0.0
      %970 = vmatprep.subr.mxu0 0.0
      %971 = vmatpush1.msra.mxu0 0.0
      %972 = vmatprep.subr.mxu0 0.0
      %973 = vmatpush1.msra.mxu0 0.0
      %974 = vmatprep.subr.mxu0 0.0
      %975 = vmatpush1.msra.mxu0 0.0
      %976 = vmatprep.subr.mxu0 0.0
      %977 = vmatpush1.msra.mxu0 0.0
      %978 = vmatprep.subr.mxu0 0.0
      %979 = vmatpush1.msra.mxu0 0.0
      %980 = vmatprep.subr.mxu0 0.0
      %981 = vmatpush1.msra.mxu0 0.0
      %982 = vmatprep.subr.mxu0 0.0
      %983 = vmatpush1.msra.mxu0 0.0
      %984 = vmatprep.subr.mxu0 0.0
      %985 = vmatpush1.msra.mxu0 0.0
      %986 = vmatprep.subr.mxu0 0.0
      %987 = vmatpush1.msra.mxu0 0.0
      %988 = vmatprep.subr.mxu0 0.0
      %989 = vmatpush1.msra.mxu0 0.0
      %990 = vmatprep.subr.mxu0 0.0
      %991 = vmatpush1.msra.mxu0 0.0
      %992 = vmatprep.subr.mxu0 0.0
      %993 = vmatpush1.msra.mxu0 0.0
      %994 = vmatprep.subr.mxu0 0.0
      %995 = vmatpush1.msra.mxu0 0.0
      %996 = vmatprep.subr.mxu0 0.0
      %997 = vmatpush1.msra.mxu0 0.0
      %998 = vmatprep.subr.mxu0 0.0
      %999 = vmatpush1.msra.mxu0 0.0
      %1000 = vmatprep.subr.mxu0 0.0
      %1001 = vmatpush1.msra.mxu0 0.0
      %1002 = vmatprep.subr.mxu0 0.0
      %1003 = vmatpush1.msra.mxu0 0.0
      %1004 = vmatprep.subr.mxu0 0.0
      %1005 = vmatpush1.msra.mxu0 0.0
      %1006 = vmatprep.mubr.f32.mxu0 0.0
      %1007 = vmatmul.mubr.f32.gmra.mrb[0].mxu0 %v891
      %v1008 = vpop.f32.mrb[0].mxu0
      %v1009 = vadd.f32 0.0, %v1008
      %v1010 = vpop.f32.mrb[0].mxu0
      %1011 = vmatprep.mubr.f32.mxu0 0.0
      %1012 = vmatmul.mubr.f32.gmra.mrb[0].mxu0 %v894
      %v1013 = vpop.f32.mrb[0].mxu0
      %v1014 = vadd.f32 0.0, %v1013
      %v1015 = vpop.f32.mrb[0].mxu0
      %1016 = vmatprep.mubr.f32.mxu0 0.0
      %1017 = vmatmul.mubr.f32.gmra.mrb[0].mxu0 %v897
      %v1018 = vpop.f32.mrb[0].mxu0
      %v1019 = vadd.f32 0.0, %v1018
      %v1020 = vpop.f32.mrb[0].mxu0
      %1021 = vmatprep.mubr.f32.mxu0 0.0
      %1022 = vmatmul.mubr.f32.gmra.mrb[0].mxu0 %v900
      %v1023 = vpop.f32.mrb[0].mxu0
      %v1024 = vadd.f32 0.0, %v1023
      %v1025 = vpop.f32.mrb[0].mxu0
      %1026 = vmatprep.mubr.f32.mxu0 0.0
      %1027 = vmatmul.mubr.f32.gmra.mrb[0].mxu0 %v903
      %v1028 = vpop.f32.mrb[0].mxu0
      %v1029 = vadd.f32 0.0, %v1028
      %v1030 = vpop.f32.mrb[0].mxu0
      %1031 = vmatprep.mubr.f32.mxu0 0.0
      %1032 = vmatmul.mubr.f32.gmra.mrb[0].mxu0 %v906
      %v1033 = vpop.f32.mrb[0].mxu0
      %v1034 = vadd.f32 0.0, %v1033
      %v1035 = vpop.f32.mrb[0].mxu0
      %1036 = vmatprep.mubr.f32.mxu0 0.0
      %1037 = vmatmul.mubr.f32.gmra.mrb[0].mxu0 %v909
      %v1038 = vpop.f32.mrb[0].mxu0
      %v1039 = vadd.f32 0.0, %v1038
      %v1040 = vpop.f32.mrb[0].mxu0
      %1041 = vmatprep.mubr.f32.mxu0 0.0
      %1042 = vmatmul.mubr.f32.gmra.mrb[0].mxu0 %v912
      %v1043 = vpop.f32.mrb[0].mxu0
      %v1044 = vadd.f32 0.0, %v1043
      %v1045 = vpop.f32.mrb[0].mxu0
      %1046 = vmatprep.mubr.f32.mxu0 0.0
      %1047 = vmatmul.mubr.f32.gmra.mrb[0].mxu0 %v915
      %v1048 = vpop.f32.mrb[0].mxu0
      %v1049 = vadd.f32 0.0, %v1048
      %v1050 = vpop.f32.mrb[0].mxu0
      %1051 = vmatprep.mubr.f32.mxu0 0.0
      %1052 = vmatmul.mubr.f32.gmra.mrb[0].mxu0 %v918
      %v1053 = vpop.f32.mrb[0].mxu0
      %v1054 = vadd.f32 0.0, %v1053
      %v1055 = vpop.f32.mrb[0].mxu0
      %1056 = vmatprep.mubr.f32.mxu0 0.0
      %1057 = vmatmul.mubr.f32.gmra.mrb[0].mxu0 %v921
      %v1058 = vpop.f32.mrb[0].mxu0
      %v1059 = vadd.f32 0.0, %v1058
      %v1060 = vpop.f32.mrb[0].mxu0
      %1061 = vmatprep.mubr.f32.mxu0 0.0
      %1062 = vmatmul.mubr.f32.gmra.mrb[0].mxu0 %v924
      %v1063 = vpop.f32.mrb[0].mxu0
      %v1064 = vadd.f32 0.0, %v1063
      %v1065 = vpop.f32.mrb[0].mxu0
      %1066 = vmatprep.mubr.f32.mxu0 0.0
      %1067 = vmatmul.mubr.f32.gmra.mrb[0].mxu0 %v927
      %v1068 = vpop.f32.mrb[0].mxu0
      %v1069 = vadd.f32 0.0, %v1068
      %v1070 = vpop.f32.mrb[0].mxu0
      %1071 = vmatprep.mubr.f32.mxu0 0.0
      %1072 = vmatmul.mubr.f32.gmra.mrb[0].mxu0 %v930
      %v1073 = vpop.f32.mrb[0].mxu0
      %v1074 = vadd.f32 0.0, %v1073
      %v1075 = vpop.f32.mrb[0].mxu0
      %1076 = vmatprep.mubr.f32.mxu0 0.0
      %1077 = vmatmul.mubr.f32.gmra.mrb[0].mxu0 %v933
      %v1078 = vpop.f32.mrb[0].mxu0
      %v1079 = vadd.f32 0.0, %v1078
      %v1080 = vpop.f32.mrb[0].mxu0
      %1081 = vmatprep.mubr.f32.mxu0 0.0
      %1082 = vmatmul.mubr.f32.gmra.mrb[0].mxu0 %v936
      %v1083 = vpop.f32.mrb[0].mxu0
      %v1084 = vadd.f32 0.0, %v1083
      %v1085 = vpop.f32.mrb[0].mxu0
      %1086 = vdwg.mxu0
      %v1088 = vsel %vm502, %v855, 0
      %v1091 = vsel %vm502, %v856, 0
      %v1094 = vsel %vm502, %v857, 0
      %v1097 = vsel %vm502, %v858, 0
      %v1100 = vsel %vm502, %v859, 0
      %v1103 = vsel %vm502, %v860, 0
      %v1106 = vsel %vm502, %v861, 0
      %v1109 = vsel %vm502, %v862, 0
      %v1112 = vsel %vm502, %v863, 0
      %v1115 = vsel %vm502, %v864, 0
      %v1118 = vsel %vm502, %v865, 0
      %v1121 = vsel %vm502, %v866, 0
      %v1124 = vsel %vm502, %v867, 0
      %v1127 = vsel %vm502, %v868, 0
      %v1130 = vsel %vm502, %v869, 0
      %v1133 = vsel %vm502, %v870, 0
      %v1136 = vsel %vm938, %v871, 0
      %1138 = vmatprep.subr.mxu0 0.0
      %1139 = vmatpush1.msra.mxu0 %v1136
      %1140 = vmatprep.subr.mxu0 0.0
      %1141 = vmatpush1.msra.mxu0 0.0
      %1142 = vmatprep.subr.mxu0 0.0
      %1143 = vmatpush1.msra.mxu0 0.0
      %1144 = vmatprep.subr.mxu0 0.0
      %1145 = vmatpush1.msra.mxu0 0.0
      %1146 = vmatprep.subr.mxu0 0.0
      %1147 = vmatpush1.msra.mxu0 0.0
      %1148 = vmatprep.subr.mxu0 0.0
      %1149 = vmatpush1.msra.mxu0 0.0
      %1150 = vmatprep.subr.mxu0 0.0
      %1151 = vmatpush1.msra.mxu0 0.0
      %1152 = vmatprep.subr.mxu0 0.0
      %1153 = vmatpush1.msra.mxu0 0.0
      %1154 = vmatprep.subr.mxu0 0.0
      %1155 = vmatpush1.msra.mxu0 0.0
      %1156 = vmatprep.subr.mxu0 0.0
      %1157 = vmatpush1.msra.mxu0 0.0
      %1158 = vmatprep.subr.mxu0 0.0
      %1159 = vmatpush1.msra.mxu0 0.0
      %1160 = vmatprep.subr.mxu0 0.0
      %1161 = vmatpush1.msra.mxu0 0.0
      %1162 = vmatprep.subr.mxu0 0.0
      %1163 = vmatpush1.msra.mxu0 0.0
      %1164 = vmatprep.subr.mxu0 0.0
      %1165 = vmatpush1.msra.mxu0 0.0
      %1166 = vmatprep.subr.mxu0 0.0
      %1167 = vmatpush1.msra.mxu0 0.0
      %1168 = vmatprep.subr.mxu0 0.0
      %1169 = vmatpush1.msra.mxu0 0.0
      %1170 = vmatprep.subr.mxu0 0.0
      %1171 = vmatpush1.msra.mxu0 0.0
      %1172 = vmatprep.subr.mxu0 0.0
      %1173 = vmatpush1.msra.mxu0 0.0
      %1174 = vmatprep.subr.mxu0 0.0
      %1175 = vmatpush1.msra.mxu0 0.0
      %1176 = vmatprep.subr.mxu0 0.0
      %1177 = vmatpush1.msra.mxu0 0.0
      %1178 = vmatprep.subr.mxu0 0.0
      %1179 = vmatpush1.msra.mxu0 0.0
      %1180 = vmatprep.subr.mxu0 0.0
      %1181 = vmatpush1.msra.mxu0 0.0
      %1182 = vmatprep.subr.mxu0 0.0
      %1183 = vmatpush1.msra.mxu0 0.0
      %1184 = vmatprep.subr.mxu0 0.0
      %1185 = vmatpush1.msra.mxu0 0.0
      %1186 = vmatprep.subr.mxu0 0.0
      %1187 = vmatpush1.msra.mxu0 0.0
      %1188 = vmatprep.subr.mxu0 0.0
      %1189 = vmatpush1.msra.mxu0 0.0
      %1190 = vmatprep.subr.mxu0 0.0
      %1191 = vmatpush1.msra.mxu0 0.0
      %1192 = vmatprep.subr.mxu0 0.0
      %1193 = vmatpush1.msra.mxu0 0.0
      %1194 = vmatprep.subr.mxu0 0.0
      %1195 = vmatpush1.msra.mxu0 0.0
      %1196 = vmatprep.subr.mxu0 0.0
      %1197 = vmatpush1.msra.mxu0 0.0
      %1198 = vmatprep.subr.mxu0 0.0
      %1199 = vmatpush1.msra.mxu0 0.0
      %1200 = vmatprep.subr.mxu0 0.0
      %1201 = vmatpush1.msra.mxu0 0.0
      %1202 = vmatprep.mubr.f32.mxu0 0.0
      %1203 = vmatmul.mubr.f32.gmra.mrb[0].mxu0 %v1088
      %v1204 = vpop.f32.mrb[0].mxu0
      %v1205 = vadd.f32 %v1009, %v1204
      %v1206 = vpop.f32.mrb[0].mxu0
      %1207 = vmatprep.mubr.f32.mxu0 0.0
      %1208 = vmatmul.mubr.f32.gmra.mrb[0].mxu0 %v1091
      %v1209 = vpop.f32.mrb[0].mxu0
      %v1210 = vadd.f32 %v1014, %v1209
      %v1211 = vpop.f32.mrb[0].mxu0
      %1212 = vmatprep.mubr.f32.mxu0 0.0
      %1213 = vmatmul.mubr.f32.gmra.mrb[0].mxu0 %v1094
      %v1214 = vpop.f32.mrb[0].mxu0
      %v1215 = vadd.f32 %v1019, %v1214
      %v1216 = vpop.f32.mrb[0].mxu0
      %1217 = vmatprep.mubr.f32.mxu0 0.0
      %1218 = vmatmul.mubr.f32.gmra.mrb[0].mxu0 %v1097
      %v1219 = vpop.f32.mrb[0].mxu0
      %v1220 = vadd.f32 %v1024, %v1219
      %v1221 = vpop.f32.mrb[0].mxu0
      %1222 = vmatprep.mubr.f32.mxu0 0.0
      %1223 = vmatmul.mubr.f32.gmra.mrb[0].mxu0 %v1100
      %v1224 = vpop.f32.mrb[0].mxu0
      %v1225 = vadd.f32 %v1029, %v1224
      %v1226 = vpop.f32.mrb[0].mxu0
      %1227 = vmatprep.mubr.f32.mxu0 0.0
      %1228 = vmatmul.mubr.f32.gmra.mrb[0].mxu0 %v1103
      %v1229 = vpop.f32.mrb[0].mxu0
      %v1230 = vadd.f32 %v1034, %v1229
      %v1231 = vpop.f32.mrb[0].mxu0
      %1232 = vmatprep.mubr.f32.mxu0 0.0
      %1233 = vmatmul.mubr.f32.gmra.mrb[0].mxu0 %v1106
      %v1234 = vpop.f32.mrb[0].mxu0
      %v1235 = vadd.f32 %v1039, %v1234
      %v1236 = vpop.f32.mrb[0].mxu0
      %1237 = vmatprep.mubr.f32.mxu0 0.0
      %1238 = vmatmul.mubr.f32.gmra.mrb[0].mxu0 %v1109
      %v1239 = vpop.f32.mrb[0].mxu0
      %v1240 = vadd.f32 %v1044, %v1239
      %v1241 = vpop.f32.mrb[0].mxu0
      %1242 = vmatprep.mubr.f32.mxu0 0.0
      %1243 = vmatmul.mubr.f32.gmra.mrb[0].mxu0 %v1112
      %v1244 = vpop.f32.mrb[0].mxu0
      %v1245 = vadd.f32 %v1049, %v1244
      %v1246 = vpop.f32.mrb[0].mxu0
      %1247 = vmatprep.mubr.f32.mxu0 0.0
      %1248 = vmatmul.mubr.f32.gmra.mrb[0].mxu0 %v1115
      %v1249 = vpop.f32.mrb[0].mxu0
      %v1250 = vadd.f32 %v1054, %v1249
      %v1251 = vpop.f32.mrb[0].mxu0
      %1252 = vmatprep.mubr.f32.mxu0 0.0
      %1253 = vmatmul.mubr.f32.gmra.mrb[0].mxu0 %v1118
      %v1254 = vpop.f32.mrb[0].mxu0
      %v1255 = vadd.f32 %v1059, %v1254
      %v1256 = vpop.f32.mrb[0].mxu0
      %1257 = vmatprep.mubr.f32.mxu0 0.0
      %1258 = vmatmul.mubr.f32.gmra.mrb[0].mxu0 %v1121
      %v1259 = vpop.f32.mrb[0].mxu0
      %v1260 = vadd.f32 %v1064, %v1259
      %v1261 = vpop.f32.mrb[0].mxu0
      %1262 = vmatprep.mubr.f32.mxu0 0.0
      %1263 = vmatmul.mubr.f32.gmra.mrb[0].mxu0 %v1124
      %v1264 = vpop.f32.mrb[0].mxu0
      %v1265 = vadd.f32 %v1069, %v1264
      %v1266 = vpop.f32.mrb[0].mxu0
      %1267 = vmatprep.mubr.f32.mxu0 0.0
      %1268 = vmatmul.mubr.f32.gmra.mrb[0].mxu0 %v1127
      %v1269 = vpop.f32.mrb[0].mxu0
      %v1270 = vadd.f32 %v1074, %v1269
      %v1271 = vpop.f32.mrb[0].mxu0
      %1272 = vmatprep.mubr.f32.mxu0 0.0
      %1273 = vmatmul.mubr.f32.gmra.mrb[0].mxu0 %v1130
      %v1274 = vpop.f32.mrb[0].mxu0
      %v1275 = vadd.f32 %v1079, %v1274
      %v1276 = vpop.f32.mrb[0].mxu0
      %1277 = vmatprep.mubr.f32.mxu0 0.0
      %1278 = vmatmul.mubr.f32.gmra.mrb[0].mxu0 %v1133
      %v1279 = vpop.f32.mrb[0].mxu0
      %v1280 = vadd.f32 %v1084, %v1279
      %v1281 = vpop.f32.mrb[0].mxu0
      %1282 = vdwg.mxu0
      %v1283 = vld [vmem:[#allocation2 + $0x9] sm:$0xff]
      %v1284 = vld [vmem:[#allocation2 + $0x11] sm:$0xff]
      %v1285 = vld [vmem:[#allocation2 + $0x19] sm:$0xff]
      %v1286 = vld [vmem:[#allocation2 + $0x21] sm:$0xff]
      %v1287 = vld [vmem:[#allocation2 + $0x29] sm:$0xff]
      %v1288 = vld [vmem:[#allocation2 + $0x31] sm:$0xff]
      %v1289 = vld [vmem:[#allocation2 + $0x39] sm:$0xff]
      %v1290 = vld [vmem:[#allocation2 + $0x41] sm:$0xff]
      %v1291 = vld [vmem:[#allocation2 + $0x49] sm:$0xff]
      %v1292 = vld [vmem:[#allocation2 + $0x51] sm:$0xff]
      %v1293 = vld [vmem:[#allocation2 + $0x59] sm:$0xff]
      %v1294 = vld [vmem:[#allocation2 + $0x61] sm:$0xff]
      %v1295 = vld [vmem:[#allocation2 + $0x69] sm:$0xff]
      %v1296 = vld [vmem:[#allocation2 + $0x71] sm:$0xff]
      %v1297 = vld [vmem:[#allocation2 + $0x79] sm:$0xff]
      %v1298 = vld [vmem:[#allocation2 + $0x81] sm:$0xff]
      %v1299 = vsel %vm791, 1, 0
      %v1300 = vsel %vm792, 1, 0
      %v1301 = vsel %vm793, 1, 0
      %v1302 = vsel %vm794, 1, 0
      %v1303 = vsel %vm795, 1, 0
      %v1304 = vsel %vm796, 1, 0
      %v1305 = vsel %vm797, 1, 0
      %v1306 = vsel %vm798, 1, 0
      %v1307 = vsel %vm799, 1, 0
      %v1308 = vsel %vm800, 1, 0
      %v1309 = vsel %vm801, 1, 0
      %v1310 = vsel %vm802, 1, 0
      %v1311 = vsel %vm803, 1, 0
      %v1312 = vsel %vm804, 1, 0
      %v1313 = vsel %vm805, 1, 0
      %v1314 = vsel %vm806, 1, 0
      %vm1315 = vcmp.eq.s32.totalorder %v1299, 1
      %vm1316 = vcmp.eq.s32.totalorder %v1300, 1
      %vm1317 = vcmp.eq.s32.totalorder %v1301, 1
      %vm1318 = vcmp.eq.s32.totalorder %v1302, 1
      %vm1319 = vcmp.eq.s32.totalorder %v1303, 1
      %vm1320 = vcmp.eq.s32.totalorder %v1304, 1
      %vm1321 = vcmp.eq.s32.totalorder %v1305, 1
      %vm1322 = vcmp.eq.s32.totalorder %v1306, 1
      %vm1323 = vcmp.eq.s32.totalorder %v1307, 1
      %vm1324 = vcmp.eq.s32.totalorder %v1308, 1
      %vm1325 = vcmp.eq.s32.totalorder %v1309, 1
      %vm1326 = vcmp.eq.s32.totalorder %v1310, 1
      %vm1327 = vcmp.eq.s32.totalorder %v1311, 1
      %vm1328 = vcmp.eq.s32.totalorder %v1312, 1
      %vm1329 = vcmp.eq.s32.totalorder %v1313, 1
      %vm1330 = vcmp.eq.s32.totalorder %v1314, 1
      %v1331 = vsel %vm1315, %v1283, 0.0
      %v1332 = vsel %vm1316, %v1284, 0.0
      %v1333 = vsel %vm1317, %v1285, 0.0
      %v1334 = vsel %vm1318, %v1286, 0.0
      %v1335 = vsel %vm1319, %v1287, 0.0
      %v1336 = vsel %vm1320, %v1288, 0.0
      %v1337 = vsel %vm1321, %v1289, 0.0
      %v1338 = vsel %vm1322, %v1290, 0.0
      %v1339 = vsel %vm1323, %v1291, 0.0
      %v1340 = vsel %vm1324, %v1292, 0.0
      %v1341 = vsel %vm1325, %v1293, 0.0
      %v1342 = vsel %vm1326, %v1294, 0.0
      %v1343 = vsel %vm1327, %v1295, 0.0
      %v1344 = vsel %vm1328, %v1296, 0.0
      %v1345 = vsel %vm1329, %v1297, 0.0
      %v1346 = vsel %vm1330, %v1298, 0.0
      %s1347 = scalar_lea.vmem %s4, 8
      %v1348 = vld [vmem:[%s1347] sm:$0xf]
      %v1350 = vsel %vm502, %v1331, 0
      %v1353 = vsel %vm502, %v1332, 0
      %v1356 = vsel %vm502, %v1333, 0
      %v1359 = vsel %vm502, %v1334, 0
      %v1362 = vsel %vm502, %v1335, 0
      %v1365 = vsel %vm502, %v1336, 0
      %v1368 = vsel %vm502, %v1337, 0
      %v1371 = vsel %vm502, %v1338, 0
      %v1374 = vsel %vm502, %v1339, 0
      %v1377 = vsel %vm502, %v1340, 0
      %v1380 = vsel %vm502, %v1341, 0
      %v1383 = vsel %vm502, %v1342, 0
      %v1386 = vsel %vm502, %v1343, 0
      %v1389 = vsel %vm502, %v1344, 0
      %v1392 = vsel %vm502, %v1345, 0
      %v1395 = vsel %vm502, %v1346, 0
      %v1398 = vsel %vm938, %v1348, 0
      %1400 = vmatprep.subr.mxu0 0.0
      %1401 = vmatpush1.msra.mxu0 %v1398
      %1402 = vmatprep.subr.mxu0 0.0
      %1403 = vmatpush1.msra.mxu0 0.0
      %1404 = vmatprep.subr.mxu0 0.0
      %1405 = vmatpush1.msra.mxu0 0.0
      %1406 = vmatprep.subr.mxu0 0.0
      %1407 = vmatpush1.msra.mxu0 0.0
      %1408 = vmatprep.subr.mxu0 0.0
      %1409 = vmatpush1.msra.mxu0 0.0
      %1410 = vmatprep.subr.mxu0 0.0
      %1411 = vmatpush1.msra.mxu0 0.0
      %1412 = vmatprep.subr.mxu0 0.0
      %1413 = vmatpush1.msra.mxu0 0.0
      %1414 = vmatprep.subr.mxu0 0.0
      %1415 = vmatpush1.msra.mxu0 0.0
      %1416 = vmatprep.subr.mxu0 0.0
      %1417 = vmatpush1.msra.mxu0 0.0
      %1418 = vmatprep.subr.mxu0 0.0
      %1419 = vmatpush1.msra.mxu0 0.0
      %1420 = vmatprep.subr.mxu0 0.0
      %1421 = vmatpush1.msra.mxu0 0.0
      %1422 = vmatprep.subr.mxu0 0.0
      %1423 = vmatpush1.msra.mxu0 0.0
      %1424 = vmatprep.subr.mxu0 0.0
      %1425 = vmatpush1.msra.mxu0 0.0
      %1426 = vmatprep.subr.mxu0 0.0
      %1427 = vmatpush1.msra.mxu0 0.0
      %1428 = vmatprep.subr.mxu0 0.0
      %1429 = vmatpush1.msra.mxu0 0.0
      %1430 = vmatprep.subr.mxu0 0.0
      %1431 = vmatpush1.msra.mxu0 0.0
      %1432 = vmatprep.subr.mxu0 0.0
      %1433 = vmatpush1.msra.mxu0 0.0
      %1434 = vmatprep.subr.mxu0 0.0
      %1435 = vmatpush1.msra.mxu0 0.0
      %1436 = vmatprep.subr.mxu0 0.0
      %1437 = vmatpush1.msra.mxu0 0.0
      %1438 = vmatprep.subr.mxu0 0.0
      %1439 = vmatpush1.msra.mxu0 0.0
      %1440 = vmatprep.subr.mxu0 0.0
      %1441 = vmatpush1.msra.mxu0 0.0
      %1442 = vmatprep.subr.mxu0 0.0
      %1443 = vmatpush1.msra.mxu0 0.0
      %1444 = vmatprep.subr.mxu0 0.0
      %1445 = vmatpush1.msra.mxu0 0.0
      %1446 = vmatprep.subr.mxu0 0.0
      %1447 = vmatpush1.msra.mxu0 0.0
      %1448 = vmatprep.subr.mxu0 0.0
      %1449 = vmatpush1.msra.mxu0 0.0
      %1450 = vmatprep.subr.mxu0 0.0
      %1451 = vmatpush1.msra.mxu0 0.0
      %1452 = vmatprep.subr.mxu0 0.0
      %1453 = vmatpush1.msra.mxu0 0.0
      %1454 = vmatprep.subr.mxu0 0.0
      %1455 = vmatpush1.msra.mxu0 0.0
      %1456 = vmatprep.subr.mxu0 0.0
      %1457 = vmatpush1.msra.mxu0 0.0
      %1458 = vmatprep.subr.mxu0 0.0
      %1459 = vmatpush1.msra.mxu0 0.0
      %1460 = vmatprep.subr.mxu0 0.0
      %1461 = vmatpush1.msra.mxu0 0.0
      %1462 = vmatprep.subr.mxu0 0.0
      %1463 = vmatpush1.msra.mxu0 0.0
      %1464 = vmatprep.mubr.f32.mxu0 0.0
      %1465 = vmatmul.mubr.f32.gmra.mrb[0].mxu0 %v1350
      %v1466 = vpop.f32.mrb[0].mxu0
      %v1467 = vadd.f32 0.0, %v1466
      %v1468 = vpop.f32.mrb[0].mxu0
      %1469 = vmatprep.mubr.f32.mxu0 0.0
      %1470 = vmatmul.mubr.f32.gmra.mrb[0].mxu0 %v1353
      %v1471 = vpop.f32.mrb[0].mxu0
      %v1472 = vadd.f32 0.0, %v1471
      %v1473 = vpop.f32.mrb[0].mxu0
      %1474 = vmatprep.mubr.f32.mxu0 0.0
      %1475 = vmatmul.mubr.f32.gmra.mrb[0].mxu0 %v1356
      %v1476 = vpop.f32.mrb[0].mxu0
      %v1477 = vadd.f32 0.0, %v1476
      %v1478 = vpop.f32.mrb[0].mxu0
      %1479 = vmatprep.mubr.f32.mxu0 0.0
      %1480 = vmatmul.mubr.f32.gmra.mrb[0].mxu0 %v1359
      %v1481 = vpop.f32.mrb[0].mxu0
      %v1482 = vadd.f32 0.0, %v1481
      %v1483 = vpop.f32.mrb[0].mxu0
      %1484 = vmatprep.mubr.f32.mxu0 0.0
      %1485 = vmatmul.mubr.f32.gmra.mrb[0].mxu0 %v1362
      %v1486 = vpop.f32.mrb[0].mxu0
      %v1487 = vadd.f32 0.0, %v1486
      %v1488 = vpop.f32.mrb[0].mxu0
      %1489 = vmatprep.mubr.f32.mxu0 0.0
      %1490 = vmatmul.mubr.f32.gmra.mrb[0].mxu0 %v1365
      %v1491 = vpop.f32.mrb[0].mxu0
      %v1492 = vadd.f32 0.0, %v1491
      %v1493 = vpop.f32.mrb[0].mxu0
      %1494 = vmatprep.mubr.f32.mxu0 0.0
      %1495 = vmatmul.mubr.f32.gmra.mrb[0].mxu0 %v1368
      %v1496 = vpop.f32.mrb[0].mxu0
      %v1497 = vadd.f32 0.0, %v1496
      %v1498 = vpop.f32.mrb[0].mxu0
      %1499 = vmatprep.mubr.f32.mxu0 0.0
      %1500 = vmatmul.mubr.f32.gmra.mrb[0].mxu0 %v1371
      %v1501 = vpop.f32.mrb[0].mxu0
      %v1502 = vadd.f32 0.0, %v1501
      %v1503 = vpop.f32.mrb[0].mxu0
      %1504 = vmatprep.mubr.f32.mxu0 0.0
      %1505 = vmatmul.mubr.f32.gmra.mrb[0].mxu0 %v1374
      %v1506 = vpop.f32.mrb[0].mxu0
      %v1507 = vadd.f32 0.0, %v1506
      %v1508 = vpop.f32.mrb[0].mxu0
      %1509 = vmatprep.mubr.f32.mxu0 0.0
      %1510 = vmatmul.mubr.f32.gmra.mrb[0].mxu0 %v1377
      %v1511 = vpop.f32.mrb[0].mxu0
      %v1512 = vadd.f32 0.0, %v1511
      %v1513 = vpop.f32.mrb[0].mxu0
      %1514 = vmatprep.mubr.f32.mxu0 0.0
      %1515 = vmatmul.mubr.f32.gmra.mrb[0].mxu0 %v1380
      %v1516 = vpop.f32.mrb[0].mxu0
      %v1517 = vadd.f32 0.0, %v1516
      %v1518 = vpop.f32.mrb[0].mxu0
      %1519 = vmatprep.mubr.f32.mxu0 0.0
      %1520 = vmatmul.mubr.f32.gmra.mrb[0].mxu0 %v1383
      %v1521 = vpop.f32.mrb[0].mxu0
      %v1522 = vadd.f32 0.0, %v1521
      %v1523 = vpop.f32.mrb[0].mxu0
      %1524 = vmatprep.mubr.f32.mxu0 0.0
      %1525 = vmatmul.mubr.f32.gmra.mrb[0].mxu0 %v1386
      %v1526 = vpop.f32.mrb[0].mxu0
      %v1527 = vadd.f32 0.0, %v1526
      %v1528 = vpop.f32.mrb[0].mxu0
      %1529 = vmatprep.mubr.f32.mxu0 0.0
      %1530 = vmatmul.mubr.f32.gmra.mrb[0].mxu0 %v1389
      %v1531 = vpop.f32.mrb[0].mxu0
      %v1532 = vadd.f32 0.0, %v1531
      %v1533 = vpop.f32.mrb[0].mxu0
      %1534 = vmatprep.mubr.f32.mxu0 0.0
      %1535 = vmatmul.mubr.f32.gmra.mrb[0].mxu0 %v1392
      %v1536 = vpop.f32.mrb[0].mxu0
      %v1537 = vadd.f32 0.0, %v1536
      %v1538 = vpop.f32.mrb[0].mxu0
      %1539 = vmatprep.mubr.f32.mxu0 0.0
      %1540 = vmatmul.mubr.f32.gmra.mrb[0].mxu0 %v1395
      %v1541 = vpop.f32.mrb[0].mxu0
      %v1542 = vadd.f32 0.0, %v1541
      %v1543 = vpop.f32.mrb[0].mxu0
      %1544 = vdwg.mxu0
      %v1545 = vadd.f32 %v1205, %v1467
      %v1546 = vadd.f32 %v1210, %v1472
      %v1547 = vadd.f32 %v1215, %v1477
      %v1548 = vadd.f32 %v1220, %v1482
      %v1549 = vadd.f32 %v1225, %v1487
      %v1550 = vadd.f32 %v1230, %v1492
      %v1551 = vadd.f32 %v1235, %v1497
      %v1552 = vadd.f32 %v1240, %v1502
      %v1553 = vadd.f32 %v1245, %v1507
      %v1554 = vadd.f32 %v1250, %v1512
      %v1555 = vadd.f32 %v1255, %v1517
      %v1556 = vadd.f32 %v1260, %v1522
      %v1557 = vadd.f32 %v1265, %v1527
      %v1558 = vadd.f32 %v1270, %v1532
      %v1559 = vadd.f32 %v1275, %v1537
      %v1560 = vadd.f32 %v1280, %v1542
      %v1561 = vld [vmem:[#allocation2 + $0x17] sm:$0xff]
      %v1562 = vld [vmem:[#allocation2 + $0x1f] sm:$0xff]
      %v1563 = vld [vmem:[#allocation2 + $0x27] sm:$0xff]
      %v1564 = vld [vmem:[#allocation2 + $0x2f] sm:$0xff]
      %v1565 = vld [vmem:[#allocation2 + $0x37] sm:$0xff]
      %v1566 = vld [vmem:[#allocation2 + $0x3f] sm:$0xff]
      %v1567 = vld [vmem:[#allocation2 + $0x47] sm:$0xff]
      %v1568 = vld [vmem:[#allocation2 + $0x4f] sm:$0xff]
      %v1569 = vld [vmem:[#allocation2 + $0x57] sm:$0xff]
      %v1570 = vld [vmem:[#allocation2 + $0x5f] sm:$0xff]
      %v1571 = vld [vmem:[#allocation2 + $0x67] sm:$0xff]
      %v1572 = vld [vmem:[#allocation2 + $0x6f] sm:$0xff]
      %v1573 = vld [vmem:[#allocation2 + $0x77] sm:$0xff]
      %v1574 = vld [vmem:[#allocation2 + $0x7f] sm:$0xff]
      %v1575 = vld [vmem:[#allocation2 + $0x87] sm:$0xff]
      %v1576 = vld [vmem:[#allocation2 + $0x8f] sm:$0xff]
      %v1577 = vsel %vm839, %v1561, 0.0
      %v1578 = vsel %vm840, %v1562, 0.0
      %v1579 = vsel %vm841, %v1563, 0.0
      %v1580 = vsel %vm842, %v1564, 0.0
      %v1581 = vsel %vm843, %v1565, 0.0
      %v1582 = vsel %vm844, %v1566, 0.0
      %v1583 = vsel %vm845, %v1567, 0.0
      %v1584 = vsel %vm846, %v1568, 0.0
      %v1585 = vsel %vm847, %v1569, 0.0
      %v1586 = vsel %vm848, %v1570, 0.0
      %v1587 = vsel %vm849, %v1571, 0.0
      %v1588 = vsel %vm850, %v1572, 0.0
      %v1589 = vsel %vm851, %v1573, 0.0
      %v1590 = vsel %vm852, %v1574, 0.0
      %v1591 = vsel %vm853, %v1575, 0.0
      %v1592 = vsel %vm854, %v1576, 0.0
      %s1593 = scalar_lea.vmem %s4, 12
      %v1594 = vld [vmem:[%s1593] sm:$0xf]
      %v1596 = vsel %vm502, %v1577, 0
      %v1599 = vsel %vm502, %v1578, 0
      %v1602 = vsel %vm502, %v1579, 0
      %v1605 = vsel %vm502, %v1580, 0
      %v1608 = vsel %vm502, %v1581, 0
      %v1611 = vsel %vm502, %v1582, 0
      %v1614 = vsel %vm502, %v1583, 0
      %v1617 = vsel %vm502, %v1584, 0
      %v1620 = vsel %vm502, %v1585, 0
      %v1623 = vsel %vm502, %v1586, 0
      %v1626 = vsel %vm502, %v1587, 0
      %v1629 = vsel %vm502, %v1588, 0
      %v1632 = vsel %vm502, %v1589, 0
      %v1635 = vsel %vm502, %v1590, 0
      %v1638 = vsel %vm502, %v1591, 0
      %v1641 = vsel %vm502, %v1592, 0
      %v1644 = vsel %vm938, %v1594, 0
      %1646 = vmatprep.subr.mxu0 0.0
      %1647 = vmatpush1.msra.mxu0 %v1644
      %1648 = vmatprep.subr.mxu0 0.0
      %1649 = vmatpush1.msra.mxu0 0.0
      %1650 = vmatprep.subr.mxu0 0.0
      %1651 = vmatpush1.msra.mxu0 0.0
      %1652 = vmatprep.subr.mxu0 0.0
      %1653 = vmatpush1.msra.mxu0 0.0
      %1654 = vmatprep.subr.mxu0 0.0
      %1655 = vmatpush1.msra.mxu0 0.0
      %1656 = vmatprep.subr.mxu0 0.0
      %1657 = vmatpush1.msra.mxu0 0.0
      %1658 = vmatprep.subr.mxu0 0.0
      %1659 = vmatpush1.msra.mxu0 0.0
      %1660 = vmatprep.subr.mxu0 0.0
      %1661 = vmatpush1.msra.mxu0 0.0
      %1662 = vmatprep.subr.mxu0 0.0
      %1663 = vmatpush1.msra.mxu0 0.0
      %1664 = vmatprep.subr.mxu0 0.0
      %1665 = vmatpush1.msra.mxu0 0.0
      %1666 = vmatprep.subr.mxu0 0.0
      %1667 = vmatpush1.msra.mxu0 0.0
      %1668 = vmatprep.subr.mxu0 0.0
      %1669 = vmatpush1.msra.mxu0 0.0
      %1670 = vmatprep.subr.mxu0 0.0
      %1671 = vmatpush1.msra.mxu0 0.0
      %1672 = vmatprep.subr.mxu0 0.0
      %1673 = vmatpush1.msra.mxu0 0.0
      %1674 = vmatprep.subr.mxu0 0.0
      %1675 = vmatpush1.msra.mxu0 0.0
      %1676 = vmatprep.subr.mxu0 0.0
      %1677 = vmatpush1.msra.mxu0 0.0
      %1678 = vmatprep.subr.mxu0 0.0
      %1679 = vmatpush1.msra.mxu0 0.0
      %1680 = vmatprep.subr.mxu0 0.0
      %1681 = vmatpush1.msra.mxu0 0.0
      %1682 = vmatprep.subr.mxu0 0.0
      %1683 = vmatpush1.msra.mxu0 0.0
      %1684 = vmatprep.subr.mxu0 0.0
      %1685 = vmatpush1.msra.mxu0 0.0
      %1686 = vmatprep.subr.mxu0 0.0
      %1687 = vmatpush1.msra.mxu0 0.0
      %1688 = vmatprep.subr.mxu0 0.0
      %1689 = vmatpush1.msra.mxu0 0.0
      %1690 = vmatprep.subr.mxu0 0.0
      %1691 = vmatpush1.msra.mxu0 0.0
      %1692 = vmatprep.subr.mxu0 0.0
      %1693 = vmatpush1.msra.mxu0 0.0
      %1694 = vmatprep.subr.mxu0 0.0
      %1695 = vmatpush1.msra.mxu0 0.0
      %1696 = vmatprep.subr.mxu0 0.0
      %1697 = vmatpush1.msra.mxu0 0.0
      %1698 = vmatprep.subr.mxu0 0.0
      %1699 = vmatpush1.msra.mxu0 0.0
      %1700 = vmatprep.subr.mxu0 0.0
      %1701 = vmatpush1.msra.mxu0 0.0
      %1702 = vmatprep.subr.mxu0 0.0
      %1703 = vmatpush1.msra.mxu0 0.0
      %1704 = vmatprep.subr.mxu0 0.0
      %1705 = vmatpush1.msra.mxu0 0.0
      %1706 = vmatprep.subr.mxu0 0.0
      %1707 = vmatpush1.msra.mxu0 0.0
      %1708 = vmatprep.subr.mxu0 0.0
      %1709 = vmatpush1.msra.mxu0 0.0
      %1710 = vmatprep.mubr.f32.mxu0 0.0
      %1711 = vmatmul.mubr.f32.gmra.mrb[0].mxu0 %v1596
      %v1712 = vpop.f32.mrb[0].mxu0
      %v1713 = vadd.f32 0.0, %v1712
      %v1714 = vpop.f32.mrb[0].mxu0
      %1715 = vmatprep.mubr.f32.mxu0 0.0
      %1716 = vmatmul.mubr.f32.gmra.mrb[0].mxu0 %v1599
      %v1717 = vpop.f32.mrb[0].mxu0
      %v1718 = vadd.f32 0.0, %v1717
      %v1719 = vpop.f32.mrb[0].mxu0
      %1720 = vmatprep.mubr.f32.mxu0 0.0
      %1721 = vmatmul.mubr.f32.gmra.mrb[0].mxu0 %v1602
      %v1722 = vpop.f32.mrb[0].mxu0
      %v1723 = vadd.f32 0.0, %v1722
      %v1724 = vpop.f32.mrb[0].mxu0
      %1725 = vmatprep.mubr.f32.mxu0 0.0
      %1726 = vmatmul.mubr.f32.gmra.mrb[0].mxu0 %v1605
      %v1727 = vpop.f32.mrb[0].mxu0
      %v1728 = vadd.f32 0.0, %v1727
      %v1729 = vpop.f32.mrb[0].mxu0
      %1730 = vmatprep.mubr.f32.mxu0 0.0
      %1731 = vmatmul.mubr.f32.gmra.mrb[0].mxu0 %v1608
      %v1732 = vpop.f32.mrb[0].mxu0
      %v1733 = vadd.f32 0.0, %v1732
      %v1734 = vpop.f32.mrb[0].mxu0
      %1735 = vmatprep.mubr.f32.mxu0 0.0
      %1736 = vmatmul.mubr.f32.gmra.mrb[0].mxu0 %v1611
      %v1737 = vpop.f32.mrb[0].mxu0
      %v1738 = vadd.f32 0.0, %v1737
      %v1739 = vpop.f32.mrb[0].mxu0
      %1740 = vmatprep.mubr.f32.mxu0 0.0
      %1741 = vmatmul.mubr.f32.gmra.mrb[0].mxu0 %v1614
      %v1742 = vpop.f32.mrb[0].mxu0
      %v1743 = vadd.f32 0.0, %v1742
      %v1744 = vpop.f32.mrb[0].mxu0
      %1745 = vmatprep.mubr.f32.mxu0 0.0
      %1746 = vmatmul.mubr.f32.gmra.mrb[0].mxu0 %v1617
      %v1747 = vpop.f32.mrb[0].mxu0
      %v1748 = vadd.f32 0.0, %v1747
      %v1749 = vpop.f32.mrb[0].mxu0
      %1750 = vmatprep.mubr.f32.mxu0 0.0
      %1751 = vmatmul.mubr.f32.gmra.mrb[0].mxu0 %v1620
      %v1752 = vpop.f32.mrb[0].mxu0
      %v1753 = vadd.f32 0.0, %v1752
      %v1754 = vpop.f32.mrb[0].mxu0
      %1755 = vmatprep.mubr.f32.mxu0 0.0
      %1756 = vmatmul.mubr.f32.gmra.mrb[0].mxu0 %v1623
      %v1757 = vpop.f32.mrb[0].mxu0
      %v1758 = vadd.f32 0.0, %v1757
      %v1759 = vpop.f32.mrb[0].mxu0
      %1760 = vmatprep.mubr.f32.mxu0 0.0
      %1761 = vmatmul.mubr.f32.gmra.mrb[0].mxu0 %v1626
      %v1762 = vpop.f32.mrb[0].mxu0
      %v1763 = vadd.f32 0.0, %v1762
      %v1764 = vpop.f32.mrb[0].mxu0
      %1765 = vmatprep.mubr.f32.mxu0 0.0
      %1766 = vmatmul.mubr.f32.gmra.mrb[0].mxu0 %v1629
      %v1767 = vpop.f32.mrb[0].mxu0
      %v1768 = vadd.f32 0.0, %v1767
      %v1769 = vpop.f32.mrb[0].mxu0
      %1770 = vmatprep.mubr.f32.mxu0 0.0
      %1771 = vmatmul.mubr.f32.gmra.mrb[0].mxu0 %v1632
      %v1772 = vpop.f32.mrb[0].mxu0
      %v1773 = vadd.f32 0.0, %v1772
      %v1774 = vpop.f32.mrb[0].mxu0
      %1775 = vmatprep.mubr.f32.mxu0 0.0
      %1776 = vmatmul.mubr.f32.gmra.mrb[0].mxu0 %v1635
      %v1777 = vpop.f32.mrb[0].mxu0
      %v1778 = vadd.f32 0.0, %v1777
      %v1779 = vpop.f32.mrb[0].mxu0
      %1780 = vmatprep.mubr.f32.mxu0 0.0
      %1781 = vmatmul.mubr.f32.gmra.mrb[0].mxu0 %v1638
      %v1782 = vpop.f32.mrb[0].mxu0
      %v1783 = vadd.f32 0.0, %v1782
      %v1784 = vpop.f32.mrb[0].mxu0
      %1785 = vmatprep.mubr.f32.mxu0 0.0
      %1786 = vmatmul.mubr.f32.gmra.mrb[0].mxu0 %v1641
      %v1787 = vpop.f32.mrb[0].mxu0
      %v1788 = vadd.f32 0.0, %v1787
      %v1789 = vpop.f32.mrb[0].mxu0
      %1790 = vdwg.mxu0
      %v1791 = vadd.f32 %v1545, %v1713
      %v1792 = vadd.f32 %v1546, %v1718
      %v1793 = vadd.f32 %v1547, %v1723
      %v1794 = vadd.f32 %v1548, %v1728
      %v1795 = vadd.f32 %v1549, %v1733
      %v1796 = vadd.f32 %v1550, %v1738
      %v1797 = vadd.f32 %v1551, %v1743
      %v1798 = vadd.f32 %v1552, %v1748
      %v1799 = vadd.f32 %v1553, %v1753
      %v1800 = vadd.f32 %v1554, %v1758
      %v1801 = vadd.f32 %v1555, %v1763
      %v1802 = vadd.f32 %v1556, %v1768
      %v1803 = vadd.f32 %v1557, %v1773
      %v1804 = vadd.f32 %v1558, %v1778
      %v1805 = vadd.f32 %v1559, %v1783
      %v1806 = vadd.f32 %v1560, %v1788
      %v1807 = vld [vmem:[#allocation2 + $0x18] sm:$0xff]
      %v1808 = vld [vmem:[#allocation2 + $0x20] sm:$0xff]
      %v1809 = vld [vmem:[#allocation2 + $0x28] sm:$0xff]
      %v1810 = vld [vmem:[#allocation2 + $0x30] sm:$0xff]
      %v1811 = vld [vmem:[#allocation2 + $0x38] sm:$0xff]
      %v1812 = vld [vmem:[#allocation2 + $0x40] sm:$0xff]
      %v1813 = vld [vmem:[#allocation2 + $0x48] sm:$0xff]
      %v1814 = vld [vmem:[#allocation2 + $0x50] sm:$0xff]
      %v1815 = vld [vmem:[#allocation2 + $0x58] sm:$0xff]
      %v1816 = vld [vmem:[#allocation2 + $0x60] sm:$0xff]
      %v1817 = vld [vmem:[#allocation2 + $0x68] sm:$0xff]
      %v1818 = vld [vmem:[#allocation2 + $0x70] sm:$0xff]
      %v1819 = vld [vmem:[#allocation2 + $0x78] sm:$0xff]
      %v1820 = vld [vmem:[#allocation2 + $0x80] sm:$0xff]
      %v1821 = vld [vmem:[#allocation2 + $0x88] sm:$0xff]
      %v1822 = vld [vmem:[#allocation2 + $0x90] sm:$0xff]
      %s1823 = scalar_lea.vmem %s4, 16
      %v1824 = vld [vmem:[%s1823] sm:$0xf]
      %v1826 = vsel %vm502, %v1807, 0
      %v1829 = vsel %vm502, %v1808, 0
      %v1832 = vsel %vm502, %v1809, 0
      %v1835 = vsel %vm502, %v1810, 0
      %v1838 = vsel %vm502, %v1811, 0
      %v1841 = vsel %vm502, %v1812, 0
      %v1844 = vsel %vm502, %v1813, 0
      %v1847 = vsel %vm502, %v1814, 0
      %v1850 = vsel %vm502, %v1815, 0
      %v1853 = vsel %vm502, %v1816, 0
      %v1856 = vsel %vm502, %v1817, 0
      %v1859 = vsel %vm502, %v1818, 0
      %v1862 = vsel %vm502, %v1819, 0
      %v1865 = vsel %vm502, %v1820, 0
      %v1868 = vsel %vm502, %v1821, 0
      %v1871 = vsel %vm502, %v1822, 0
      %v1874 = vsel %vm938, %v1824, 0
      %1876 = vmatprep.subr.mxu0 0.0
      %1877 = vmatpush1.msra.mxu0 %v1874
      %1878 = vmatprep.subr.mxu0 0.0
      %1879 = vmatpush1.msra.mxu0 0.0
      %1880 = vmatprep.subr.mxu0 0.0
      %1881 = vmatpush1.msra.mxu0 0.0
      %1882 = vmatprep.subr.mxu0 0.0
      %1883 = vmatpush1.msra.mxu0 0.0
      %1884 = vmatprep.subr.mxu0 0.0
      %1885 = vmatpush1.msra.mxu0 0.0
      %1886 = vmatprep.subr.mxu0 0.0
      %1887 = vmatpush1.msra.mxu0 0.0
      %1888 = vmatprep.subr.mxu0 0.0
      %1889 = vmatpush1.msra.mxu0 0.0
      %1890 = vmatprep.subr.mxu0 0.0
      %1891 = vmatpush1.msra.mxu0 0.0
      %1892 = vmatprep.subr.mxu0 0.0
      %1893 = vmatpush1.msra.mxu0 0.0
      %1894 = vmatprep.subr.mxu0 0.0
      %1895 = vmatpush1.msra.mxu0 0.0
      %1896 = vmatprep.subr.mxu0 0.0
      %1897 = vmatpush1.msra.mxu0 0.0
      %1898 = vmatprep.subr.mxu0 0.0
      %1899 = vmatpush1.msra.mxu0 0.0
      %1900 = vmatprep.subr.mxu0 0.0
      %1901 = vmatpush1.msra.mxu0 0.0
      %1902 = vmatprep.subr.mxu0 0.0
      %1903 = vmatpush1.msra.mxu0 0.0
      %1904 = vmatprep.subr.mxu0 0.0
      %1905 = vmatpush1.msra.mxu0 0.0
      %1906 = vmatprep.subr.mxu0 0.0
      %1907 = vmatpush1.msra.mxu0 0.0
      %1908 = vmatprep.subr.mxu0 0.0
      %1909 = vmatpush1.msra.mxu0 0.0
      %1910 = vmatprep.subr.mxu0 0.0
      %1911 = vmatpush1.msra.mxu0 0.0
      %1912 = vmatprep.subr.mxu0 0.0
      %1913 = vmatpush1.msra.mxu0 0.0
      %1914 = vmatprep.subr.mxu0 0.0
      %1915 = vmatpush1.msra.mxu0 0.0
      %1916 = vmatprep.subr.mxu0 0.0
      %1917 = vmatpush1.msra.mxu0 0.0
      %1918 = vmatprep.subr.mxu0 0.0
      %1919 = vmatpush1.msra.mxu0 0.0
      %1920 = vmatprep.subr.mxu0 0.0
      %1921 = vmatpush1.msra.mxu0 0.0
      %1922 = vmatprep.subr.mxu0 0.0
      %1923 = vmatpush1.msra.mxu0 0.0
      %1924 = vmatprep.subr.mxu0 0.0
      %1925 = vmatpush1.msra.mxu0 0.0
      %1926 = vmatprep.subr.mxu0 0.0
      %1927 = vmatpush1.msra.mxu0 0.0
      %1928 = vmatprep.subr.mxu0 0.0
      %1929 = vmatpush1.msra.mxu0 0.0
      %1930 = vmatprep.subr.mxu0 0.0
      %1931 = vmatpush1.msra.mxu0 0.0
      %1932 = vmatprep.subr.mxu0 0.0
      %1933 = vmatpush1.msra.mxu0 0.0
      %1934 = vmatprep.subr.mxu0 0.0
      %1935 = vmatpush1.msra.mxu0 0.0
      %1936 = vmatprep.subr.mxu0 0.0
      %1937 = vmatpush1.msra.mxu0 0.0
      %1938 = vmatprep.subr.mxu0 0.0
      %1939 = vmatpush1.msra.mxu0 0.0
      %1940 = vmatprep.mubr.f32.mxu0 0.0
      %1941 = vmatmul.mubr.f32.gmra.mrb[0].mxu0 %v1826
      %v1942 = vpop.f32.mrb[0].mxu0
      %v1943 = vadd.f32 0.0, %v1942
      %v1944 = vpop.f32.mrb[0].mxu0
      %1945 = vmatprep.mubr.f32.mxu0 0.0
      %1946 = vmatmul.mubr.f32.gmra.mrb[0].mxu0 %v1829
      %v1947 = vpop.f32.mrb[0].mxu0
      %v1948 = vadd.f32 0.0, %v1947
      %v1949 = vpop.f32.mrb[0].mxu0
      %1950 = vmatprep.mubr.f32.mxu0 0.0
      %1951 = vmatmul.mubr.f32.gmra.mrb[0].mxu0 %v1832
      %v1952 = vpop.f32.mrb[0].mxu0
      %v1953 = vadd.f32 0.0, %v1952
      %v1954 = vpop.f32.mrb[0].mxu0
      %1955 = vmatprep.mubr.f32.mxu0 0.0
      %1956 = vmatmul.mubr.f32.gmra.mrb[0].mxu0 %v1835
      %v1957 = vpop.f32.mrb[0].mxu0
      %v1958 = vadd.f32 0.0, %v1957
      %v1959 = vpop.f32.mrb[0].mxu0
      %1960 = vmatprep.mubr.f32.mxu0 0.0
      %1961 = vmatmul.mubr.f32.gmra.mrb[0].mxu0 %v1838
      %v1962 = vpop.f32.mrb[0].mxu0
      %v1963 = vadd.f32 0.0, %v1962
      %v1964 = vpop.f32.mrb[0].mxu0
      %1965 = vmatprep.mubr.f32.mxu0 0.0
      %1966 = vmatmul.mubr.f32.gmra.mrb[0].mxu0 %v1841
      %v1967 = vpop.f32.mrb[0].mxu0
      %v1968 = vadd.f32 0.0, %v1967
      %v1969 = vpop.f32.mrb[0].mxu0
      %1970 = vmatprep.mubr.f32.mxu0 0.0
      %1971 = vmatmul.mubr.f32.gmra.mrb[0].mxu0 %v1844
      %v1972 = vpop.f32.mrb[0].mxu0
      %v1973 = vadd.f32 0.0, %v1972
      %v1974 = vpop.f32.mrb[0].mxu0
      %1975 = vmatprep.mubr.f32.mxu0 0.0
      %1976 = vmatmul.mubr.f32.gmra.mrb[0].mxu0 %v1847
      %v1977 = vpop.f32.mrb[0].mxu0
      %v1978 = vadd.f32 0.0, %v1977
      %v1979 = vpop.f32.mrb[0].mxu0
      %1980 = vmatprep.mubr.f32.mxu0 0.0
      %1981 = vmatmul.mubr.f32.gmra.mrb[0].mxu0 %v1850
      %v1982 = vpop.f32.mrb[0].mxu0
      %v1983 = vadd.f32 0.0, %v1982
      %v1984 = vpop.f32.mrb[0].mxu0
      %1985 = vmatprep.mubr.f32.mxu0 0.0
      %1986 = vmatmul.mubr.f32.gmra.mrb[0].mxu0 %v1853
      %v1987 = vpop.f32.mrb[0].mxu0
      %v1988 = vadd.f32 0.0, %v1987
      %v1989 = vpop.f32.mrb[0].mxu0
      %1990 = vmatprep.mubr.f32.mxu0 0.0
      %1991 = vmatmul.mubr.f32.gmra.mrb[0].mxu0 %v1856
      %v1992 = vpop.f32.mrb[0].mxu0
      %v1993 = vadd.f32 0.0, %v1992
      %v1994 = vpop.f32.mrb[0].mxu0
      %1995 = vmatprep.mubr.f32.mxu0 0.0
      %1996 = vmatmul.mubr.f32.gmra.mrb[0].mxu0 %v1859
      %v1997 = vpop.f32.mrb[0].mxu0
      %v1998 = vadd.f32 0.0, %v1997
      %v1999 = vpop.f32.mrb[0].mxu0
      %2000 = vmatprep.mubr.f32.mxu0 0.0
      %2001 = vmatmul.mubr.f32.gmra.mrb[0].mxu0 %v1862
      %v2002 = vpop.f32.mrb[0].mxu0
      %v2003 = vadd.f32 0.0, %v2002
      %v2004 = vpop.f32.mrb[0].mxu0
      %2005 = vmatprep.mubr.f32.mxu0 0.0
      %2006 = vmatmul.mubr.f32.gmra.mrb[0].mxu0 %v1865
      %v2007 = vpop.f32.mrb[0].mxu0
      %v2008 = vadd.f32 0.0, %v2007
      %v2009 = vpop.f32.mrb[0].mxu0
      %2010 = vmatprep.mubr.f32.mxu0 0.0
      %2011 = vmatmul.mubr.f32.gmra.mrb[0].mxu0 %v1868
      %v2012 = vpop.f32.mrb[0].mxu0
      %v2013 = vadd.f32 0.0, %v2012
      %v2014 = vpop.f32.mrb[0].mxu0
      %2015 = vmatprep.mubr.f32.mxu0 0.0
      %2016 = vmatmul.mubr.f32.gmra.mrb[0].mxu0 %v1871
      %v2017 = vpop.f32.mrb[0].mxu0
      %v2018 = vadd.f32 0.0, %v2017
      %v2019 = vpop.f32.mrb[0].mxu0
      %2020 = vdwg.mxu0
      %v2021 = vadd.f32 %v1791, %v1943
      %v2022 = vadd.f32 %v1792, %v1948
      %v2023 = vadd.f32 %v1793, %v1953
      %v2024 = vadd.f32 %v1794, %v1958
      %v2025 = vadd.f32 %v1795, %v1963
      %v2026 = vadd.f32 %v1796, %v1968
      %v2027 = vadd.f32 %v1797, %v1973
      %v2028 = vadd.f32 %v1798, %v1978
      %v2029 = vadd.f32 %v1799, %v1983
      %v2030 = vadd.f32 %v1800, %v1988
      %v2031 = vadd.f32 %v1801, %v1993
      %v2032 = vadd.f32 %v1802, %v1998
      %v2033 = vadd.f32 %v1803, %v2003
      %v2034 = vadd.f32 %v1804, %v2008
      %v2035 = vadd.f32 %v1805, %v2013
      %v2036 = vadd.f32 %v1806, %v2018
      %v2037 = vld [vmem:[#allocation2 + $0x19] sm:$0xff]
      %v2038 = vld [vmem:[#allocation2 + $0x21] sm:$0xff]
      %v2039 = vld [vmem:[#allocation2 + $0x29] sm:$0xff]
      %v2040 = vld [vmem:[#allocation2 + $0x31] sm:$0xff]
      %v2041 = vld [vmem:[#allocation2 + $0x39] sm:$0xff]
      %v2042 = vld [vmem:[#allocation2 + $0x41] sm:$0xff]
      %v2043 = vld [vmem:[#allocation2 + $0x49] sm:$0xff]
      %v2044 = vld [vmem:[#allocation2 + $0x51] sm:$0xff]
      %v2045 = vld [vmem:[#allocation2 + $0x59] sm:$0xff]
      %v2046 = vld [vmem:[#allocation2 + $0x61] sm:$0xff]
      %v2047 = vld [vmem:[#allocation2 + $0x69] sm:$0xff]
      %v2048 = vld [vmem:[#allocation2 + $0x71] sm:$0xff]
      %v2049 = vld [vmem:[#allocation2 + $0x79] sm:$0xff]
      %v2050 = vld [vmem:[#allocation2 + $0x81] sm:$0xff]
      %v2051 = vld [vmem:[#allocation2 + $0x89] sm:$0xff]
      %v2052 = vld [vmem:[#allocation2 + $0x91] sm:$0xff]
      %v2053 = vsel %vm1315, %v2037, 0.0
      %v2054 = vsel %vm1316, %v2038, 0.0
      %v2055 = vsel %vm1317, %v2039, 0.0
      %v2056 = vsel %vm1318, %v2040, 0.0
      %v2057 = vsel %vm1319, %v2041, 0.0
      %v2058 = vsel %vm1320, %v2042, 0.0
      %v2059 = vsel %vm1321, %v2043, 0.0
      %v2060 = vsel %vm1322, %v2044, 0.0
      %v2061 = vsel %vm1323, %v2045, 0.0
      %v2062 = vsel %vm1324, %v2046, 0.0
      %v2063 = vsel %vm1325, %v2047, 0.0
      %v2064 = vsel %vm1326, %v2048, 0.0
      %v2065 = vsel %vm1327, %v2049, 0.0
      %v2066 = vsel %vm1328, %v2050, 0.0
      %v2067 = vsel %vm1329, %v2051, 0.0
      %v2068 = vsel %vm1330, %v2052, 0.0
      %s2069 = scalar_lea.vmem %s4, 20
      %v2070 = vld [vmem:[%s2069] sm:$0xf]
      %v2072 = vsel %vm502, %v2053, 0
      %v2075 = vsel %vm502, %v2054, 0
      %v2078 = vsel %vm502, %v2055, 0
      %v2081 = vsel %vm502, %v2056, 0
      %v2084 = vsel %vm502, %v2057, 0
      %v2087 = vsel %vm502, %v2058, 0
      %v2090 = vsel %vm502, %v2059, 0
      %v2093 = vsel %vm502, %v2060, 0
      %v2096 = vsel %vm502, %v2061, 0
      %v2099 = vsel %vm502, %v2062, 0
      %v2102 = vsel %vm502, %v2063, 0
      %v2105 = vsel %vm502, %v2064, 0
      %v2108 = vsel %vm502, %v2065, 0
      %v2111 = vsel %vm502, %v2066, 0
      %v2114 = vsel %vm502, %v2067, 0
      %v2117 = vsel %vm502, %v2068, 0
      %v2120 = vsel %vm938, %v2070, 0
      %2122 = vmatprep.subr.mxu0 0.0
      %2123 = vmatpush1.msra.mxu0 %v2120
      %2124 = vmatprep.subr.mxu0 0.0
      %2125 = vmatpush1.msra.mxu0 0.0
      %2126 = vmatprep.subr.mxu0 0.0
      %2127 = vmatpush1.msra.mxu0 0.0
      %2128 = vmatprep.subr.mxu0 0.0
      %2129 = vmatpush1.msra.mxu0 0.0
      %2130 = vmatprep.subr.mxu0 0.0
      %2131 = vmatpush1.msra.mxu0 0.0
      %2132 = vmatprep.subr.mxu0 0.0
      %2133 = vmatpush1.msra.mxu0 0.0
      %2134 = vmatprep.subr.mxu0 0.0
      %2135 = vmatpush1.msra.mxu0 0.0
      %2136 = vmatprep.subr.mxu0 0.0
      %2137 = vmatpush1.msra.mxu0 0.0
      %2138 = vmatprep.subr.mxu0 0.0
      %2139 = vmatpush1.msra.mxu0 0.0
      %2140 = vmatprep.subr.mxu0 0.0
      %2141 = vmatpush1.msra.mxu0 0.0
      %2142 = vmatprep.subr.mxu0 0.0
      %2143 = vmatpush1.msra.mxu0 0.0
      %2144 = vmatprep.subr.mxu0 0.0
      %2145 = vmatpush1.msra.mxu0 0.0
      %2146 = vmatprep.subr.mxu0 0.0
      %2147 = vmatpush1.msra.mxu0 0.0
      %2148 = vmatprep.subr.mxu0 0.0
      %2149 = vmatpush1.msra.mxu0 0.0
      %2150 = vmatprep.subr.mxu0 0.0
      %2151 = vmatpush1.msra.mxu0 0.0
      %2152 = vmatprep.subr.mxu0 0.0
      %2153 = vmatpush1.msra.mxu0 0.0
      %2154 = vmatprep.subr.mxu0 0.0
      %2155 = vmatpush1.msra.mxu0 0.0
      %2156 = vmatprep.subr.mxu0 0.0
      %2157 = vmatpush1.msra.mxu0 0.0
      %2158 = vmatprep.subr.mxu0 0.0
      %2159 = vmatpush1.msra.mxu0 0.0
      %2160 = vmatprep.subr.mxu0 0.0
      %2161 = vmatpush1.msra.mxu0 0.0
      %2162 = vmatprep.subr.mxu0 0.0
      %2163 = vmatpush1.msra.mxu0 0.0
      %2164 = vmatprep.subr.mxu0 0.0
      %2165 = vmatpush1.msra.mxu0 0.0
      %2166 = vmatprep.subr.mxu0 0.0
      %2167 = vmatpush1.msra.mxu0 0.0
      %2168 = vmatprep.subr.mxu0 0.0
      %2169 = vmatpush1.msra.mxu0 0.0
      %2170 = vmatprep.subr.mxu0 0.0
      %2171 = vmatpush1.msra.mxu0 0.0
      %2172 = vmatprep.subr.mxu0 0.0
      %2173 = vmatpush1.msra.mxu0 0.0
      %2174 = vmatprep.subr.mxu0 0.0
      %2175 = vmatpush1.msra.mxu0 0.0
      %2176 = vmatprep.subr.mxu0 0.0
      %2177 = vmatpush1.msra.mxu0 0.0
      %2178 = vmatprep.subr.mxu0 0.0
      %2179 = vmatpush1.msra.mxu0 0.0
      %2180 = vmatprep.subr.mxu0 0.0
      %2181 = vmatpush1.msra.mxu0 0.0
      %2182 = vmatprep.subr.mxu0 0.0
      %2183 = vmatpush1.msra.mxu0 0.0
      %2184 = vmatprep.subr.mxu0 0.0
      %2185 = vmatpush1.msra.mxu0 0.0
      %2186 = vmatprep.mubr.f32.mxu0 0.0
      %2187 = vmatmul.mubr.f32.gmra.mrb[0].mxu0 %v2072
      %v2188 = vpop.f32.mrb[0].mxu0
      %v2189 = vadd.f32 0.0, %v2188
      %v2190 = vpop.f32.mrb[0].mxu0
      %2191 = vmatprep.mubr.f32.mxu0 0.0
      %2192 = vmatmul.mubr.f32.gmra.mrb[0].mxu0 %v2075
      %v2193 = vpop.f32.mrb[0].mxu0
      %v2194 = vadd.f32 0.0, %v2193
      %v2195 = vpop.f32.mrb[0].mxu0
      %2196 = vmatprep.mubr.f32.mxu0 0.0
      %2197 = vmatmul.mubr.f32.gmra.mrb[0].mxu0 %v2078
      %v2198 = vpop.f32.mrb[0].mxu0
      %v2199 = vadd.f32 0.0, %v2198
      %v2200 = vpop.f32.mrb[0].mxu0
      %2201 = vmatprep.mubr.f32.mxu0 0.0
      %2202 = vmatmul.mubr.f32.gmra.mrb[0].mxu0 %v2081
      %v2203 = vpop.f32.mrb[0].mxu0
      %v2204 = vadd.f32 0.0, %v2203
      %v2205 = vpop.f32.mrb[0].mxu0
      %2206 = vmatprep.mubr.f32.mxu0 0.0
      %2207 = vmatmul.mubr.f32.gmra.mrb[0].mxu0 %v2084
      %v2208 = vpop.f32.mrb[0].mxu0
      %v2209 = vadd.f32 0.0, %v2208
      %v2210 = vpop.f32.mrb[0].mxu0
      %2211 = vmatprep.mubr.f32.mxu0 0.0
      %2212 = vmatmul.mubr.f32.gmra.mrb[0].mxu0 %v2087
      %v2213 = vpop.f32.mrb[0].mxu0
      %v2214 = vadd.f32 0.0, %v2213
      %v2215 = vpop.f32.mrb[0].mxu0
      %2216 = vmatprep.mubr.f32.mxu0 0.0
      %2217 = vmatmul.mubr.f32.gmra.mrb[0].mxu0 %v2090
      %v2218 = vpop.f32.mrb[0].mxu0
      %v2219 = vadd.f32 0.0, %v2218
      %v2220 = vpop.f32.mrb[0].mxu0
      %2221 = vmatprep.mubr.f32.mxu0 0.0
      %2222 = vmatmul.mubr.f32.gmra.mrb[0].mxu0 %v2093
      %v2223 = vpop.f32.mrb[0].mxu0
      %v2224 = vadd.f32 0.0, %v2223
      %v2225 = vpop.f32.mrb[0].mxu0
      %2226 = vmatprep.mubr.f32.mxu0 0.0
      %2227 = vmatmul.mubr.f32.gmra.mrb[0].mxu0 %v2096
      %v2228 = vpop.f32.mrb[0].mxu0
      %v2229 = vadd.f32 0.0, %v2228
      %v2230 = vpop.f32.mrb[0].mxu0
      %2231 = vmatprep.mubr.f32.mxu0 0.0
      %2232 = vmatmul.mubr.f32.gmra.mrb[0].mxu0 %v2099
      %v2233 = vpop.f32.mrb[0].mxu0
      %v2234 = vadd.f32 0.0, %v2233
      %v2235 = vpop.f32.mrb[0].mxu0
      %2236 = vmatprep.mubr.f32.mxu0 0.0
      %2237 = vmatmul.mubr.f32.gmra.mrb[0].mxu0 %v2102
      %v2238 = vpop.f32.mrb[0].mxu0
      %v2239 = vadd.f32 0.0, %v2238
      %v2240 = vpop.f32.mrb[0].mxu0
      %2241 = vmatprep.mubr.f32.mxu0 0.0
      %2242 = vmatmul.mubr.f32.gmra.mrb[0].mxu0 %v2105
      %v2243 = vpop.f32.mrb[0].mxu0
      %v2244 = vadd.f32 0.0, %v2243
      %v2245 = vpop.f32.mrb[0].mxu0
      %2246 = vmatprep.mubr.f32.mxu0 0.0
      %2247 = vmatmul.mubr.f32.gmra.mrb[0].mxu0 %v2108
      %v2248 = vpop.f32.mrb[0].mxu0
      %v2249 = vadd.f32 0.0, %v2248
      %v2250 = vpop.f32.mrb[0].mxu0
      %2251 = vmatprep.mubr.f32.mxu0 0.0
      %2252 = vmatmul.mubr.f32.gmra.mrb[0].mxu0 %v2111
      %v2253 = vpop.f32.mrb[0].mxu0
      %v2254 = vadd.f32 0.0, %v2253
      %v2255 = vpop.f32.mrb[0].mxu0
      %2256 = vmatprep.mubr.f32.mxu0 0.0
      %2257 = vmatmul.mubr.f32.gmra.mrb[0].mxu0 %v2114
      %v2258 = vpop.f32.mrb[0].mxu0
      %v2259 = vadd.f32 0.0, %v2258
      %v2260 = vpop.f32.mrb[0].mxu0
      %2261 = vmatprep.mubr.f32.mxu0 0.0
      %2262 = vmatmul.mubr.f32.gmra.mrb[0].mxu0 %v2117
      %v2263 = vpop.f32.mrb[0].mxu0
      %v2264 = vadd.f32 0.0, %v2263
      %v2265 = vpop.f32.mrb[0].mxu0
      %2266 = vdwg.mxu0
      %v2267 = vadd.f32 %v2021, %v2189
      %v2268 = vadd.f32 %v2022, %v2194
      %v2269 = vadd.f32 %v2023, %v2199
      %v2270 = vadd.f32 %v2024, %v2204
      %v2271 = vadd.f32 %v2025, %v2209
      %v2272 = vadd.f32 %v2026, %v2214
      %v2273 = vadd.f32 %v2027, %v2219
      %v2274 = vadd.f32 %v2028, %v2224
      %v2275 = vadd.f32 %v2029, %v2229
      %v2276 = vadd.f32 %v2030, %v2234
      %v2277 = vadd.f32 %v2031, %v2239
      %v2278 = vadd.f32 %v2032, %v2244
      %v2279 = vadd.f32 %v2033, %v2249
      %v2280 = vadd.f32 %v2034, %v2254
      %v2281 = vadd.f32 %v2035, %v2259
      %v2282 = vadd.f32 %v2036, %v2264
      %v2283 = vld [vmem:[#allocation2 + $0x27] sm:$0xff]
      %v2284 = vld [vmem:[#allocation2 + $0x2f] sm:$0xff]
      %v2285 = vld [vmem:[#allocation2 + $0x37] sm:$0xff]
      %v2286 = vld [vmem:[#allocation2 + $0x3f] sm:$0xff]
      %v2287 = vld [vmem:[#allocation2 + $0x47] sm:$0xff]
      %v2288 = vld [vmem:[#allocation2 + $0x4f] sm:$0xff]
      %v2289 = vld [vmem:[#allocation2 + $0x57] sm:$0xff]
      %v2290 = vld [vmem:[#allocation2 + $0x5f] sm:$0xff]
      %v2291 = vld [vmem:[#allocation2 + $0x67] sm:$0xff]
      %v2292 = vld [vmem:[#allocation2 + $0x6f] sm:$0xff]
      %v2293 = vld [vmem:[#allocation2 + $0x77] sm:$0xff]
      %v2294 = vld [vmem:[#allocation2 + $0x7f] sm:$0xff]
      %v2295 = vld [vmem:[#allocation2 + $0x87] sm:$0xff]
      %v2296 = vld [vmem:[#allocation2 + $0x8f] sm:$0xff]
      %v2297 = vld [vmem:[#allocation2 + $0x97] sm:$0xff]
      %v2298 = vld [vmem:[#allocation2 + $0x9f] sm:$0xff]
      %v2299 = vsel %vm839, %v2283, 0.0
      %v2300 = vsel %vm840, %v2284, 0.0
      %v2301 = vsel %vm841, %v2285, 0.0
      %v2302 = vsel %vm842, %v2286, 0.0
      %v2303 = vsel %vm843, %v2287, 0.0
      %v2304 = vsel %vm844, %v2288, 0.0
      %v2305 = vsel %vm845, %v2289, 0.0
      %v2306 = vsel %vm846, %v2290, 0.0
      %v2307 = vsel %vm847, %v2291, 0.0
      %v2308 = vsel %vm848, %v2292, 0.0
      %v2309 = vsel %vm849, %v2293, 0.0
      %v2310 = vsel %vm850, %v2294, 0.0
      %v2311 = vsel %vm851, %v2295, 0.0
      %v2312 = vsel %vm852, %v2296, 0.0
      %v2313 = vsel %vm853, %v2297, 0.0
      %v2314 = vsel %vm854, %v2298, 0.0
      %s2315 = scalar_lea.vmem %s4, 24
      %v2316 = vld [vmem:[%s2315] sm:$0xf]
      %v2318 = vsel %vm502, %v2299, 0
      %v2321 = vsel %vm502, %v2300, 0
      %v2324 = vsel %vm502, %v2301, 0
      %v2327 = vsel %vm502, %v2302, 0
      %v2330 = vsel %vm502, %v2303, 0
      %v2333 = vsel %vm502, %v2304, 0
      %v2336 = vsel %vm502, %v2305, 0
      %v2339 = vsel %vm502, %v2306, 0
      %v2342 = vsel %vm502, %v2307, 0
      %v2345 = vsel %vm502, %v2308, 0
      %v2348 = vsel %vm502, %v2309, 0
      %v2351 = vsel %vm502, %v2310, 0
      %v2354 = vsel %vm502, %v2311, 0
      %v2357 = vsel %vm502, %v2312, 0
      %v2360 = vsel %vm502, %v2313, 0
      %v2363 = vsel %vm502, %v2314, 0
      %v2366 = vsel %vm938, %v2316, 0
      %2368 = vmatprep.subr.mxu0 0.0
      %2369 = vmatpush1.msra.mxu0 %v2366
      %2370 = vmatprep.subr.mxu0 0.0
      %2371 = vmatpush1.msra.mxu0 0.0
      %2372 = vmatprep.subr.mxu0 0.0
      %2373 = vmatpush1.msra.mxu0 0.0
      %2374 = vmatprep.subr.mxu0 0.0
      %2375 = vmatpush1.msra.mxu0 0.0
      %2376 = vmatprep.subr.mxu0 0.0
      %2377 = vmatpush1.msra.mxu0 0.0
      %2378 = vmatprep.subr.mxu0 0.0
      %2379 = vmatpush1.msra.mxu0 0.0
      %2380 = vmatprep.subr.mxu0 0.0
      %2381 = vmatpush1.msra.mxu0 0.0
      %2382 = vmatprep.subr.mxu0 0.0
      %2383 = vmatpush1.msra.mxu0 0.0
      %2384 = vmatprep.subr.mxu0 0.0
      %2385 = vmatpush1.msra.mxu0 0.0
      %2386 = vmatprep.subr.mxu0 0.0
      %2387 = vmatpush1.msra.mxu0 0.0
      %2388 = vmatprep.subr.mxu0 0.0
      %2389 = vmatpush1.msra.mxu0 0.0
      %2390 = vmatprep.subr.mxu0 0.0
      %2391 = vmatpush1.msra.mxu0 0.0
      %2392 = vmatprep.subr.mxu0 0.0
      %2393 = vmatpush1.msra.mxu0 0.0
      %2394 = vmatprep.subr.mxu0 0.0
      %2395 = vmatpush1.msra.mxu0 0.0
      %2396 = vmatprep.subr.mxu0 0.0
      %2397 = vmatpush1.msra.mxu0 0.0
      %2398 = vmatprep.subr.mxu0 0.0
      %2399 = vmatpush1.msra.mxu0 0.0
      %2400 = vmatprep.subr.mxu0 0.0
      %2401 = vmatpush1.msra.mxu0 0.0
      %2402 = vmatprep.subr.mxu0 0.0
      %2403 = vmatpush1.msra.mxu0 0.0
      %2404 = vmatprep.subr.mxu0 0.0
      %2405 = vmatpush1.msra.mxu0 0.0
      %2406 = vmatprep.subr.mxu0 0.0
      %2407 = vmatpush1.msra.mxu0 0.0
      %2408 = vmatprep.subr.mxu0 0.0
      %2409 = vmatpush1.msra.mxu0 0.0
      %2410 = vmatprep.subr.mxu0 0.0
      %2411 = vmatpush1.msra.mxu0 0.0
      %2412 = vmatprep.subr.mxu0 0.0
      %2413 = vmatpush1.msra.mxu0 0.0
      %2414 = vmatprep.subr.mxu0 0.0
      %2415 = vmatpush1.msra.mxu0 0.0
      %2416 = vmatprep.subr.mxu0 0.0
      %2417 = vmatpush1.msra.mxu0 0.0
      %2418 = vmatprep.subr.mxu0 0.0
      %2419 = vmatpush1.msra.mxu0 0.0
      %2420 = vmatprep.subr.mxu0 0.0
      %2421 = vmatpush1.msra.mxu0 0.0
      %2422 = vmatprep.subr.mxu0 0.0
      %2423 = vmatpush1.msra.mxu0 0.0
      %2424 = vmatprep.subr.mxu0 0.0
      %2425 = vmatpush1.msra.mxu0 0.0
      %2426 = vmatprep.subr.mxu0 0.0
      %2427 = vmatpush1.msra.mxu0 0.0
      %2428 = vmatprep.subr.mxu0 0.0
      %2429 = vmatpush1.msra.mxu0 0.0
      %2430 = vmatprep.subr.mxu0 0.0
      %2431 = vmatpush1.msra.mxu0 0.0
      %2432 = vmatprep.mubr.f32.mxu0 0.0
      %2433 = vmatmul.mubr.f32.gmra.mrb[0].mxu0 %v2318
      %v2434 = vpop.f32.mrb[0].mxu0
      %v2435 = vadd.f32 0.0, %v2434
      %v2436 = vpop.f32.mrb[0].mxu0
      %2437 = vmatprep.mubr.f32.mxu0 0.0
      %2438 = vmatmul.mubr.f32.gmra.mrb[0].mxu0 %v2321
      %v2439 = vpop.f32.mrb[0].mxu0
      %v2440 = vadd.f32 0.0, %v2439
      %v2441 = vpop.f32.mrb[0].mxu0
      %2442 = vmatprep.mubr.f32.mxu0 0.0
      %2443 = vmatmul.mubr.f32.gmra.mrb[0].mxu0 %v2324
      %v2444 = vpop.f32.mrb[0].mxu0
      %v2445 = vadd.f32 0.0, %v2444
      %v2446 = vpop.f32.mrb[0].mxu0
      %2447 = vmatprep.mubr.f32.mxu0 0.0
      %2448 = vmatmul.mubr.f32.gmra.mrb[0].mxu0 %v2327
      %v2449 = vpop.f32.mrb[0].mxu0
      %v2450 = vadd.f32 0.0, %v2449
      %v2451 = vpop.f32.mrb[0].mxu0
      %2452 = vmatprep.mubr.f32.mxu0 0.0
      %2453 = vmatmul.mubr.f32.gmra.mrb[0].mxu0 %v2330
      %v2454 = vpop.f32.mrb[0].mxu0
      %v2455 = vadd.f32 0.0, %v2454
      %v2456 = vpop.f32.mrb[0].mxu0
      %2457 = vmatprep.mubr.f32.mxu0 0.0
      %2458 = vmatmul.mubr.f32.gmra.mrb[0].mxu0 %v2333
      %v2459 = vpop.f32.mrb[0].mxu0
      %v2460 = vadd.f32 0.0, %v2459
      %v2461 = vpop.f32.mrb[0].mxu0
      %2462 = vmatprep.mubr.f32.mxu0 0.0
      %2463 = vmatmul.mubr.f32.gmra.mrb[0].mxu0 %v2336
      %v2464 = vpop.f32.mrb[0].mxu0
      %v2465 = vadd.f32 0.0, %v2464
      %v2466 = vpop.f32.mrb[0].mxu0
      %2467 = vmatprep.mubr.f32.mxu0 0.0
      %2468 = vmatmul.mubr.f32.gmra.mrb[0].mxu0 %v2339
      %v2469 = vpop.f32.mrb[0].mxu0
      %v2470 = vadd.f32 0.0, %v2469
      %v2471 = vpop.f32.mrb[0].mxu0
      %2472 = vmatprep.mubr.f32.mxu0 0.0
      %2473 = vmatmul.mubr.f32.gmra.mrb[0].mxu0 %v2342
      %v2474 = vpop.f32.mrb[0].mxu0
      %v2475 = vadd.f32 0.0, %v2474
      %v2476 = vpop.f32.mrb[0].mxu0
      %2477 = vmatprep.mubr.f32.mxu0 0.0
      %2478 = vmatmul.mubr.f32.gmra.mrb[0].mxu0 %v2345
      %v2479 = vpop.f32.mrb[0].mxu0
      %v2480 = vadd.f32 0.0, %v2479
      %v2481 = vpop.f32.mrb[0].mxu0
      %2482 = vmatprep.mubr.f32.mxu0 0.0
      %2483 = vmatmul.mubr.f32.gmra.mrb[0].mxu0 %v2348
      %v2484 = vpop.f32.mrb[0].mxu0
      %v2485 = vadd.f32 0.0, %v2484
      %v2486 = vpop.f32.mrb[0].mxu0
      %2487 = vmatprep.mubr.f32.mxu0 0.0
      %2488 = vmatmul.mubr.f32.gmra.mrb[0].mxu0 %v2351
      %v2489 = vpop.f32.mrb[0].mxu0
      %v2490 = vadd.f32 0.0, %v2489
      %v2491 = vpop.f32.mrb[0].mxu0
      %2492 = vmatprep.mubr.f32.mxu0 0.0
      %2493 = vmatmul.mubr.f32.gmra.mrb[0].mxu0 %v2354
      %v2494 = vpop.f32.mrb[0].mxu0
      %v2495 = vadd.f32 0.0, %v2494
      %v2496 = vpop.f32.mrb[0].mxu0
      %2497 = vmatprep.mubr.f32.mxu0 0.0
      %2498 = vmatmul.mubr.f32.gmra.mrb[0].mxu0 %v2357
      %v2499 = vpop.f32.mrb[0].mxu0
      %v2500 = vadd.f32 0.0, %v2499
      %v2501 = vpop.f32.mrb[0].mxu0
      %2502 = vmatprep.mubr.f32.mxu0 0.0
      %2503 = vmatmul.mubr.f32.gmra.mrb[0].mxu0 %v2360
      %v2504 = vpop.f32.mrb[0].mxu0
      %v2505 = vadd.f32 0.0, %v2504
      %v2506 = vpop.f32.mrb[0].mxu0
      %2507 = vmatprep.mubr.f32.mxu0 0.0
      %2508 = vmatmul.mubr.f32.gmra.mrb[0].mxu0 %v2363
      %v2509 = vpop.f32.mrb[0].mxu0
      %v2510 = vadd.f32 0.0, %v2509
      %v2511 = vpop.f32.mrb[0].mxu0
      %2512 = vdwg.mxu0
      %v2513 = vadd.f32 %v2267, %v2435
      %v2514 = vadd.f32 %v2268, %v2440
      %v2515 = vadd.f32 %v2269, %v2445
      %v2516 = vadd.f32 %v2270, %v2450
      %v2517 = vadd.f32 %v2271, %v2455
      %v2518 = vadd.f32 %v2272, %v2460
      %v2519 = vadd.f32 %v2273, %v2465
      %v2520 = vadd.f32 %v2274, %v2470
      %v2521 = vadd.f32 %v2275, %v2475
      %v2522 = vadd.f32 %v2276, %v2480
      %v2523 = vadd.f32 %v2277, %v2485
      %v2524 = vadd.f32 %v2278, %v2490
      %v2525 = vadd.f32 %v2279, %v2495
      %v2526 = vadd.f32 %v2280, %v2500
      %v2527 = vadd.f32 %v2281, %v2505
      %v2528 = vadd.f32 %v2282, %v2510
      %v2529 = vld [vmem:[#allocation2 + $0x28] sm:$0xff]
      %v2530 = vld [vmem:[#allocation2 + $0x30] sm:$0xff]
      %v2531 = vld [vmem:[#allocation2 + $0x38] sm:$0xff]
      %v2532 = vld [vmem:[#allocation2 + $0x40] sm:$0xff]
      %v2533 = vld [vmem:[#allocation2 + $0x48] sm:$0xff]
      %v2534 = vld [vmem:[#allocation2 + $0x50] sm:$0xff]
      %v2535 = vld [vmem:[#allocation2 + $0x58] sm:$0xff]
      %v2536 = vld [vmem:[#allocation2 + $0x60] sm:$0xff]
      %v2537 = vld [vmem:[#allocation2 + $0x68] sm:$0xff]
      %v2538 = vld [vmem:[#allocation2 + $0x70] sm:$0xff]
      %v2539 = vld [vmem:[#allocation2 + $0x78] sm:$0xff]
      %v2540 = vld [vmem:[#allocation2 + $0x80] sm:$0xff]
      %v2541 = vld [vmem:[#allocation2 + $0x88] sm:$0xff]
      %v2542 = vld [vmem:[#allocation2 + $0x90] sm:$0xff]
      %v2543 = vld [vmem:[#allocation2 + $0x98] sm:$0xff]
      %v2544 = vld [vmem:[#allocation2 + $0xa0] sm:$0xff]
      %s2545 = scalar_lea.vmem %s4, 28
      %v2546 = vld [vmem:[%s2545] sm:$0xf]
      %v2548 = vsel %vm502, %v2529, 0
      %v2551 = vsel %vm502, %v2530, 0
      %v2554 = vsel %vm502, %v2531, 0
      %v2557 = vsel %vm502, %v2532, 0
      %v2560 = vsel %vm502, %v2533, 0
      %v2563 = vsel %vm502, %v2534, 0
      %v2566 = vsel %vm502, %v2535, 0
      %v2569 = vsel %vm502, %v2536, 0
      %v2572 = vsel %vm502, %v2537, 0
      %v2575 = vsel %vm502, %v2538, 0
      %v2578 = vsel %vm502, %v2539, 0
      %v2581 = vsel %vm502, %v2540, 0
      %v2584 = vsel %vm502, %v2541, 0
      %v2587 = vsel %vm502, %v2542, 0
      %v2590 = vsel %vm502, %v2543, 0
      %v2593 = vsel %vm502, %v2544, 0
      %v2596 = vsel %vm938, %v2546, 0
      %2598 = vmatprep.subr.mxu0 0.0
      %2599 = vmatpush1.msra.mxu0 %v2596
      %2600 = vmatprep.subr.mxu0 0.0
      %2601 = vmatpush1.msra.mxu0 0.0
      %2602 = vmatprep.subr.mxu0 0.0
      %2603 = vmatpush1.msra.mxu0 0.0
      %2604 = vmatprep.subr.mxu0 0.0
      %2605 = vmatpush1.msra.mxu0 0.0
      %2606 = vmatprep.subr.mxu0 0.0
      %2607 = vmatpush1.msra.mxu0 0.0
      %2608 = vmatprep.subr.mxu0 0.0
      %2609 = vmatpush1.msra.mxu0 0.0
      %2610 = vmatprep.subr.mxu0 0.0
      %2611 = vmatpush1.msra.mxu0 0.0
      %2612 = vmatprep.subr.mxu0 0.0
      %2613 = vmatpush1.msra.mxu0 0.0
      %2614 = vmatprep.subr.mxu0 0.0
      %2615 = vmatpush1.msra.mxu0 0.0
      %2616 = vmatprep.subr.mxu0 0.0
      %2617 = vmatpush1.msra.mxu0 0.0
      %2618 = vmatprep.subr.mxu0 0.0
      %2619 = vmatpush1.msra.mxu0 0.0
      %2620 = vmatprep.subr.mxu0 0.0
      %2621 = vmatpush1.msra.mxu0 0.0
      %2622 = vmatprep.subr.mxu0 0.0
      %2623 = vmatpush1.msra.mxu0 0.0
      %2624 = vmatprep.subr.mxu0 0.0
      %2625 = vmatpush1.msra.mxu0 0.0
      %2626 = vmatprep.subr.mxu0 0.0
      %2627 = vmatpush1.msra.mxu0 0.0
      %2628 = vmatprep.subr.mxu0 0.0
      %2629 = vmatpush1.msra.mxu0 0.0
      %2630 = vmatprep.subr.mxu0 0.0
      %2631 = vmatpush1.msra.mxu0 0.0
      %2632 = vmatprep.subr.mxu0 0.0
      %2633 = vmatpush1.msra.mxu0 0.0
      %2634 = vmatprep.subr.mxu0 0.0
      %2635 = vmatpush1.msra.mxu0 0.0
      %2636 = vmatprep.subr.mxu0 0.0
      %2637 = vmatpush1.msra.mxu0 0.0
      %2638 = vmatprep.subr.mxu0 0.0
      %2639 = vmatpush1.msra.mxu0 0.0
      %2640 = vmatprep.subr.mxu0 0.0
      %2641 = vmatpush1.msra.mxu0 0.0
      %2642 = vmatprep.subr.mxu0 0.0
      %2643 = vmatpush1.msra.mxu0 0.0
      %2644 = vmatprep.subr.mxu0 0.0
      %2645 = vmatpush1.msra.mxu0 0.0
      %2646 = vmatprep.subr.mxu0 0.0
      %2647 = vmatpush1.msra.mxu0 0.0
      %2648 = vmatprep.subr.mxu0 0.0
      %2649 = vmatpush1.msra.mxu0 0.0
      %2650 = vmatprep.subr.mxu0 0.0
      %2651 = vmatpush1.msra.mxu0 0.0
      %2652 = vmatprep.subr.mxu0 0.0
      %2653 = vmatpush1.msra.mxu0 0.0
      %2654 = vmatprep.subr.mxu0 0.0
      %2655 = vmatpush1.msra.mxu0 0.0
      %2656 = vmatprep.subr.mxu0 0.0
      %2657 = vmatpush1.msra.mxu0 0.0
      %2658 = vmatprep.subr.mxu0 0.0
      %2659 = vmatpush1.msra.mxu0 0.0
      %2660 = vmatprep.subr.mxu0 0.0
      %2661 = vmatpush1.msra.mxu0 0.0
      %2662 = vmatprep.mubr.f32.mxu0 0.0
      %2663 = vmatmul.mubr.f32.gmra.mrb[0].mxu0 %v2548
      %v2664 = vpop.f32.mrb[0].mxu0
      %v2665 = vadd.f32 0.0, %v2664
      %v2666 = vpop.f32.mrb[0].mxu0
      %2667 = vmatprep.mubr.f32.mxu0 0.0
      %2668 = vmatmul.mubr.f32.gmra.mrb[0].mxu0 %v2551
      %v2669 = vpop.f32.mrb[0].mxu0
      %v2670 = vadd.f32 0.0, %v2669
      %v2671 = vpop.f32.mrb[0].mxu0
      %2672 = vmatprep.mubr.f32.mxu0 0.0
      %2673 = vmatmul.mubr.f32.gmra.mrb[0].mxu0 %v2554
      %v2674 = vpop.f32.mrb[0].mxu0
      %v2675 = vadd.f32 0.0, %v2674
      %v2676 = vpop.f32.mrb[0].mxu0
      %2677 = vmatprep.mubr.f32.mxu0 0.0
      %2678 = vmatmul.mubr.f32.gmra.mrb[0].mxu0 %v2557
      %v2679 = vpop.f32.mrb[0].mxu0
      %v2680 = vadd.f32 0.0, %v2679
      %v2681 = vpop.f32.mrb[0].mxu0
      %2682 = vmatprep.mubr.f32.mxu0 0.0
      %2683 = vmatmul.mubr.f32.gmra.mrb[0].mxu0 %v2560
      %v2684 = vpop.f32.mrb[0].mxu0
      %v2685 = vadd.f32 0.0, %v2684
      %v2686 = vpop.f32.mrb[0].mxu0
      %2687 = vmatprep.mubr.f32.mxu0 0.0
      %2688 = vmatmul.mubr.f32.gmra.mrb[0].mxu0 %v2563
      %v2689 = vpop.f32.mrb[0].mxu0
      %v2690 = vadd.f32 0.0, %v2689
      %v2691 = vpop.f32.mrb[0].mxu0
      %2692 = vmatprep.mubr.f32.mxu0 0.0
      %2693 = vmatmul.mubr.f32.gmra.mrb[0].mxu0 %v2566
      %v2694 = vpop.f32.mrb[0].mxu0
      %v2695 = vadd.f32 0.0, %v2694
      %v2696 = vpop.f32.mrb[0].mxu0
      %2697 = vmatprep.mubr.f32.mxu0 0.0
      %2698 = vmatmul.mubr.f32.gmra.mrb[0].mxu0 %v2569
      %v2699 = vpop.f32.mrb[0].mxu0
      %v2700 = vadd.f32 0.0, %v2699
      %v2701 = vpop.f32.mrb[0].mxu0
      %2702 = vmatprep.mubr.f32.mxu0 0.0
      %2703 = vmatmul.mubr.f32.gmra.mrb[0].mxu0 %v2572
      %v2704 = vpop.f32.mrb[0].mxu0
      %v2705 = vadd.f32 0.0, %v2704
      %v2706 = vpop.f32.mrb[0].mxu0
      %2707 = vmatprep.mubr.f32.mxu0 0.0
      %2708 = vmatmul.mubr.f32.gmra.mrb[0].mxu0 %v2575
      %v2709 = vpop.f32.mrb[0].mxu0
      %v2710 = vadd.f32 0.0, %v2709
      %v2711 = vpop.f32.mrb[0].mxu0
      %2712 = vmatprep.mubr.f32.mxu0 0.0
      %2713 = vmatmul.mubr.f32.gmra.mrb[0].mxu0 %v2578
      %v2714 = vpop.f32.mrb[0].mxu0
      %v2715 = vadd.f32 0.0, %v2714
      %v2716 = vpop.f32.mrb[0].mxu0
      %2717 = vmatprep.mubr.f32.mxu0 0.0
      %2718 = vmatmul.mubr.f32.gmra.mrb[0].mxu0 %v2581
      %v2719 = vpop.f32.mrb[0].mxu0
      %v2720 = vadd.f32 0.0, %v2719
      %v2721 = vpop.f32.mrb[0].mxu0
      %2722 = vmatprep.mubr.f32.mxu0 0.0
      %2723 = vmatmul.mubr.f32.gmra.mrb[0].mxu0 %v2584
      %v2724 = vpop.f32.mrb[0].mxu0
      %v2725 = vadd.f32 0.0, %v2724
      %v2726 = vpop.f32.mrb[0].mxu0
      %2727 = vmatprep.mubr.f32.mxu0 0.0
      %2728 = vmatmul.mubr.f32.gmra.mrb[0].mxu0 %v2587
      %v2729 = vpop.f32.mrb[0].mxu0
      %v2730 = vadd.f32 0.0, %v2729
      %v2731 = vpop.f32.mrb[0].mxu0
      %2732 = vmatprep.mubr.f32.mxu0 0.0
      %2733 = vmatmul.mubr.f32.gmra.mrb[0].mxu0 %v2590
      %v2734 = vpop.f32.mrb[0].mxu0
      %v2735 = vadd.f32 0.0, %v2734
      %v2736 = vpop.f32.mrb[0].mxu0
      %2737 = vmatprep.mubr.f32.mxu0 0.0
      %2738 = vmatmul.mubr.f32.gmra.mrb[0].mxu0 %v2593
      %v2739 = vpop.f32.mrb[0].mxu0
      %v2740 = vadd.f32 0.0, %v2739
      %v2741 = vpop.f32.mrb[0].mxu0
      %2742 = vdwg.mxu0
      %v2743 = vadd.f32 %v2513, %v2665
      %v2744 = vadd.f32 %v2514, %v2670
      %v2745 = vadd.f32 %v2515, %v2675
      %v2746 = vadd.f32 %v2516, %v2680
      %v2747 = vadd.f32 %v2517, %v2685
      %v2748 = vadd.f32 %v2518, %v2690
      %v2749 = vadd.f32 %v2519, %v2695
      %v2750 = vadd.f32 %v2520, %v2700
      %v2751 = vadd.f32 %v2521, %v2705
      %v2752 = vadd.f32 %v2522, %v2710
      %v2753 = vadd.f32 %v2523, %v2715
      %v2754 = vadd.f32 %v2524, %v2720
      %v2755 = vadd.f32 %v2525, %v2725
      %v2756 = vadd.f32 %v2526, %v2730
      %v2757 = vadd.f32 %v2527, %v2735
      %v2758 = vadd.f32 %v2528, %v2740
      %v2759 = vld [vmem:[#allocation2 + $0x29] sm:$0xff]
      %v2760 = vld [vmem:[#allocation2 + $0x31] sm:$0xff]
      %v2761 = vld [vmem:[#allocation2 + $0x39] sm:$0xff]
      %v2762 = vld [vmem:[#allocation2 + $0x41] sm:$0xff]
      %v2763 = vld [vmem:[#allocation2 + $0x49] sm:$0xff]
      %v2764 = vld [vmem:[#allocation2 + $0x51] sm:$0xff]
      %v2765 = vld [vmem:[#allocation2 + $0x59] sm:$0xff]
      %v2766 = vld [vmem:[#allocation2 + $0x61] sm:$0xff]
      %v2767 = vld [vmem:[#allocation2 + $0x69] sm:$0xff]
      %v2768 = vld [vmem:[#allocation2 + $0x71] sm:$0xff]
      %v2769 = vld [vmem:[#allocation2 + $0x79] sm:$0xff]
      %v2770 = vld [vmem:[#allocation2 + $0x81] sm:$0xff]
      %v2771 = vld [vmem:[#allocation2 + $0x89] sm:$0xff]
      %v2772 = vld [vmem:[#allocation2 + $0x91] sm:$0xff]
      %v2773 = vld [vmem:[#allocation2 + $0x99] sm:$0xff]
      %v2774 = vld [vmem:[#allocation2 + $0xa1] sm:$0xff]
      %v2775 = vsel %vm1315, %v2759, 0.0
      %v2776 = vsel %vm1316, %v2760, 0.0
      %v2777 = vsel %vm1317, %v2761, 0.0
      %v2778 = vsel %vm1318, %v2762, 0.0
      %v2779 = vsel %vm1319, %v2763, 0.0
      %v2780 = vsel %vm1320, %v2764, 0.0
      %v2781 = vsel %vm1321, %v2765, 0.0
      %v2782 = vsel %vm1322, %v2766, 0.0
      %v2783 = vsel %vm1323, %v2767, 0.0
      %v2784 = vsel %vm1324, %v2768, 0.0
      %v2785 = vsel %vm1325, %v2769, 0.0
      %v2786 = vsel %vm1326, %v2770, 0.0
      %v2787 = vsel %vm1327, %v2771, 0.0
      %v2788 = vsel %vm1328, %v2772, 0.0
      %v2789 = vsel %vm1329, %v2773, 0.0
      %v2790 = vsel %vm1330, %v2774, 0.0
      %s2791 = scalar_lea.vmem %s4, 32
      %v2792 = vld [vmem:[%s2791] sm:$0xf]
      %v2794 = vsel %vm502, %v2775, 0
      %v2797 = vsel %vm502, %v2776, 0
      %v2800 = vsel %vm502, %v2777, 0
      %v2803 = vsel %vm502, %v2778, 0
      %v2806 = vsel %vm502, %v2779, 0
      %v2809 = vsel %vm502, %v2780, 0
      %v2812 = vsel %vm502, %v2781, 0
      %v2815 = vsel %vm502, %v2782, 0
      %v2818 = vsel %vm502, %v2783, 0
      %v2821 = vsel %vm502, %v2784, 0
      %v2824 = vsel %vm502, %v2785, 0
      %v2827 = vsel %vm502, %v2786, 0
      %v2830 = vsel %vm502, %v2787, 0
      %v2833 = vsel %vm502, %v2788, 0
      %v2836 = vsel %vm502, %v2789, 0
      %v2839 = vsel %vm502, %v2790, 0
      %v2842 = vsel %vm938, %v2792, 0
      %2844 = vmatprep.subr.mxu0 0.0
      %2845 = vmatpush1.msra.mxu0 %v2842
      %2846 = vmatprep.subr.mxu0 0.0
      %2847 = vmatpush1.msra.mxu0 0.0
      %2848 = vmatprep.subr.mxu0 0.0
      %2849 = vmatpush1.msra.mxu0 0.0
      %2850 = vmatprep.subr.mxu0 0.0
      %2851 = vmatpush1.msra.mxu0 0.0
      %2852 = vmatprep.subr.mxu0 0.0
      %2853 = vmatpush1.msra.mxu0 0.0
      %2854 = vmatprep.subr.mxu0 0.0
      %2855 = vmatpush1.msra.mxu0 0.0
      %2856 = vmatprep.subr.mxu0 0.0
      %2857 = vmatpush1.msra.mxu0 0.0
      %2858 = vmatprep.subr.mxu0 0.0
      %2859 = vmatpush1.msra.mxu0 0.0
      %2860 = vmatprep.subr.mxu0 0.0
      %2861 = vmatpush1.msra.mxu0 0.0
      %2862 = vmatprep.subr.mxu0 0.0
      %2863 = vmatpush1.msra.mxu0 0.0
      %2864 = vmatprep.subr.mxu0 0.0
      %2865 = vmatpush1.msra.mxu0 0.0
      %2866 = vmatprep.subr.mxu0 0.0
      %2867 = vmatpush1.msra.mxu0 0.0
      %2868 = vmatprep.subr.mxu0 0.0
      %2869 = vmatpush1.msra.mxu0 0.0
      %2870 = vmatprep.subr.mxu0 0.0
      %2871 = vmatpush1.msra.mxu0 0.0
      %2872 = vmatprep.subr.mxu0 0.0
      %2873 = vmatpush1.msra.mxu0 0.0
      %2874 = vmatprep.subr.mxu0 0.0
      %2875 = vmatpush1.msra.mxu0 0.0
      %2876 = vmatprep.subr.mxu0 0.0
      %2877 = vmatpush1.msra.mxu0 0.0
      %2878 = vmatprep.subr.mxu0 0.0
      %2879 = vmatpush1.msra.mxu0 0.0
      %2880 = vmatprep.subr.mxu0 0.0
      %2881 = vmatpush1.msra.mxu0 0.0
      %2882 = vmatprep.subr.mxu0 0.0
      %2883 = vmatpush1.msra.mxu0 0.0
      %2884 = vmatprep.subr.mxu0 0.0
      %2885 = vmatpush1.msra.mxu0 0.0
      %2886 = vmatprep.subr.mxu0 0.0
      %2887 = vmatpush1.msra.mxu0 0.0
      %2888 = vmatprep.subr.mxu0 0.0
      %2889 = vmatpush1.msra.mxu0 0.0
      %2890 = vmatprep.subr.mxu0 0.0
      %2891 = vmatpush1.msra.mxu0 0.0
      %2892 = vmatprep.subr.mxu0 0.0
      %2893 = vmatpush1.msra.mxu0 0.0
      %2894 = vmatprep.subr.mxu0 0.0
      %2895 = vmatpush1.msra.mxu0 0.0
      %2896 = vmatprep.subr.mxu0 0.0
      %2897 = vmatpush1.msra.mxu0 0.0
      %2898 = vmatprep.subr.mxu0 0.0
      %2899 = vmatpush1.msra.mxu0 0.0
      %2900 = vmatprep.subr.mxu0 0.0
      %2901 = vmatpush1.msra.mxu0 0.0
      %2902 = vmatprep.subr.mxu0 0.0
      %2903 = vmatpush1.msra.mxu0 0.0
      %2904 = vmatprep.subr.mxu0 0.0
      %2905 = vmatpush1.msra.mxu0 0.0
      %2906 = vmatprep.subr.mxu0 0.0
      %2907 = vmatpush1.msra.mxu0 0.0
      %2908 = vmatprep.mubr.f32.mxu0 0.0
      %2909 = vmatmul.mubr.f32.gmra.mrb[0].mxu0 %v2794
      %v2910 = vpop.f32.mrb[0].mxu0
      %v2911 = vadd.f32 0.0, %v2910
      %v2912 = vpop.f32.mrb[0].mxu0
      %2913 = vmatprep.mubr.f32.mxu0 0.0
      %2914 = vmatmul.mubr.f32.gmra.mrb[0].mxu0 %v2797
      %v2915 = vpop.f32.mrb[0].mxu0
      %v2916 = vadd.f32 0.0, %v2915
      %v2917 = vpop.f32.mrb[0].mxu0
      %2918 = vmatprep.mubr.f32.mxu0 0.0
      %2919 = vmatmul.mubr.f32.gmra.mrb[0].mxu0 %v2800
      %v2920 = vpop.f32.mrb[0].mxu0
      %v2921 = vadd.f32 0.0, %v2920
      %v2922 = vpop.f32.mrb[0].mxu0
      %2923 = vmatprep.mubr.f32.mxu0 0.0
      %2924 = vmatmul.mubr.f32.gmra.mrb[0].mxu0 %v2803
      %v2925 = vpop.f32.mrb[0].mxu0
      %v2926 = vadd.f32 0.0, %v2925
      %v2927 = vpop.f32.mrb[0].mxu0
      %2928 = vmatprep.mubr.f32.mxu0 0.0
      %2929 = vmatmul.mubr.f32.gmra.mrb[0].mxu0 %v2806
      %v2930 = vpop.f32.mrb[0].mxu0
      %v2931 = vadd.f32 0.0, %v2930
      %v2932 = vpop.f32.mrb[0].mxu0
      %2933 = vmatprep.mubr.f32.mxu0 0.0
      %2934 = vmatmul.mubr.f32.gmra.mrb[0].mxu0 %v2809
      %v2935 = vpop.f32.mrb[0].mxu0
      %v2936 = vadd.f32 0.0, %v2935
      %v2937 = vpop.f32.mrb[0].mxu0
      %2938 = vmatprep.mubr.f32.mxu0 0.0
      %2939 = vmatmul.mubr.f32.gmra.mrb[0].mxu0 %v2812
      %v2940 = vpop.f32.mrb[0].mxu0
      %v2941 = vadd.f32 0.0, %v2940
      %v2942 = vpop.f32.mrb[0].mxu0
      %2943 = vmatprep.mubr.f32.mxu0 0.0
      %2944 = vmatmul.mubr.f32.gmra.mrb[0].mxu0 %v2815
      %v2945 = vpop.f32.mrb[0].mxu0
      %v2946 = vadd.f32 0.0, %v2945
      %v2947 = vpop.f32.mrb[0].mxu0
      %2948 = vmatprep.mubr.f32.mxu0 0.0
      %2949 = vmatmul.mubr.f32.gmra.mrb[0].mxu0 %v2818
      %v2950 = vpop.f32.mrb[0].mxu0
      %v2951 = vadd.f32 0.0, %v2950
      %v2952 = vpop.f32.mrb[0].mxu0
      %2953 = vmatprep.mubr.f32.mxu0 0.0
      %2954 = vmatmul.mubr.f32.gmra.mrb[0].mxu0 %v2821
      %v2955 = vpop.f32.mrb[0].mxu0
      %v2956 = vadd.f32 0.0, %v2955
      %v2957 = vpop.f32.mrb[0].mxu0
      %2958 = vmatprep.mubr.f32.mxu0 0.0
      %2959 = vmatmul.mubr.f32.gmra.mrb[0].mxu0 %v2824
      %v2960 = vpop.f32.mrb[0].mxu0
      %v2961 = vadd.f32 0.0, %v2960
      %v2962 = vpop.f32.mrb[0].mxu0
      %2963 = vmatprep.mubr.f32.mxu0 0.0
      %2964 = vmatmul.mubr.f32.gmra.mrb[0].mxu0 %v2827
      %v2965 = vpop.f32.mrb[0].mxu0
      %v2966 = vadd.f32 0.0, %v2965
      %v2967 = vpop.f32.mrb[0].mxu0
      %2968 = vmatprep.mubr.f32.mxu0 0.0
      %2969 = vmatmul.mubr.f32.gmra.mrb[0].mxu0 %v2830
      %v2970 = vpop.f32.mrb[0].mxu0
      %v2971 = vadd.f32 0.0, %v2970
      %v2972 = vpop.f32.mrb[0].mxu0
      %2973 = vmatprep.mubr.f32.mxu0 0.0
      %2974 = vmatmul.mubr.f32.gmra.mrb[0].mxu0 %v2833
      %v2975 = vpop.f32.mrb[0].mxu0
      %v2976 = vadd.f32 0.0, %v2975
      %v2977 = vpop.f32.mrb[0].mxu0
      %2978 = vmatprep.mubr.f32.mxu0 0.0
      %2979 = vmatmul.mubr.f32.gmra.mrb[0].mxu0 %v2836
      %v2980 = vpop.f32.mrb[0].mxu0
      %v2981 = vadd.f32 0.0, %v2980
      %v2982 = vpop.f32.mrb[0].mxu0
      %2983 = vmatprep.mubr.f32.mxu0 0.0
      %2984 = vmatmul.mubr.f32.gmra.mrb[0].mxu0 %v2839
      %v2985 = vpop.f32.mrb[0].mxu0
      %v2986 = vadd.f32 0.0, %v2985
      %v2987 = vpop.f32.mrb[0].mxu0
      %2988 = vdwg.mxu0
      %v2989 = vadd.f32 %v2743, %v2911
      %v2990 = vadd.f32 %v2744, %v2916
      %v2991 = vadd.f32 %v2745, %v2921
      %v2992 = vadd.f32 %v2746, %v2926
      %v2993 = vadd.f32 %v2747, %v2931
      %v2994 = vadd.f32 %v2748, %v2936
      %v2995 = vadd.f32 %v2749, %v2941
      %v2996 = vadd.f32 %v2750, %v2946
      %v2997 = vadd.f32 %v2751, %v2951
      %v2998 = vadd.f32 %v2752, %v2956
      %v2999 = vadd.f32 %v2753, %v2961
      %v3000 = vadd.f32 %v2754, %v2966
      %v3001 = vadd.f32 %v2755, %v2971
      %v3002 = vadd.f32 %v2756, %v2976
      %v3003 = vadd.f32 %v2757, %v2981
      %v3004 = vadd.f32 %v2758, %v2986
      %v3005 = vpack.c.bf16 %v2990, %v2989
      %v3006 = vpack.c.bf16 %v2992, %v2991
      %v3007 = vpack.c.bf16 %v2994, %v2993
      %v3008 = vpack.c.bf16 %v2996, %v2995
      %v3009 = vpack.c.bf16 %v2998, %v2997
      %v3010 = vpack.c.bf16 %v3000, %v2999
      %v3011 = vpack.c.bf16 %v3002, %v3001
      %v3012 = vpack.c.bf16 %v3004, %v3003
      %v3021 = vunpack.c.l.b16 %v3005
      %v3022 = vunpack.c.h.b16 %v3005
      %v3023 = vunpack.c.l.b16 %v3006
      %v3024 = vunpack.c.h.b16 %v3006
      %v3025 = vunpack.c.l.b16 %v3007
      %v3026 = vunpack.c.h.b16 %v3007
      %v3027 = vunpack.c.l.b16 %v3008
      %v3028 = vunpack.c.h.b16 %v3008
      %v3029 = vunpack.c.l.b16 %v3009
      %v3030 = vunpack.c.h.b16 %v3009
      %v3031 = vunpack.c.l.b16 %v3010
      %v3032 = vunpack.c.h.b16 %v3010
      %v3033 = vunpack.c.l.b16 %v3011
      %v3034 = vunpack.c.h.b16 %v3011
      %v3035 = vunpack.c.l.b16 %v3012
      %v3036 = vunpack.c.h.b16 %v3012
      %v3037 = vpack.c.b16 %v3021, %v3021
      %v3038 = vpack.c.b16 %v3022, %v3022
      %v3039 = vpack.c.b16 %v3023, %v3023
      %v3040 = vpack.c.b16 %v3024, %v3024
      %v3041 = vpack.c.b16 %v3025, %v3025
      %v3042 = vpack.c.b16 %v3026, %v3026
      %v3043 = vpack.c.b16 %v3027, %v3027
      %v3044 = vpack.c.b16 %v3028, %v3028
      %v3045 = vpack.c.b16 %v3029, %v3029
      %v3046 = vpack.c.b16 %v3030, %v3030
      %v3047 = vpack.c.b16 %v3031, %v3031
      %v3048 = vpack.c.b16 %v3032, %v3032
      %v3049 = vpack.c.b16 %v3033, %v3033
      %v3050 = vpack.c.b16 %v3034, %v3034
      %v3051 = vpack.c.b16 %v3035, %v3035
      %v3052 = vpack.c.b16 %v3036, %v3036
      %vm3069 = vcmask 27648
      %3070 = vst.msk [vmem:[%s361] sm:$0xf] %vm3069, %v3037
      %3071 = vst.msk [vmem:[%s361 + $0x4] sm:$0xf] %vm3069, %v3038
      %3072 = vst.msk [vmem:[%s361 + $0x8] sm:$0xf] %vm3069, %v3039
      %3073 = vst.msk [vmem:[%s361 + $0xc] sm:$0xf] %vm3069, %v3040
      %3074 = vst.msk [vmem:[%s361 + $0x10] sm:$0xf] %vm3069, %v3041
      %3075 = vst.msk [vmem:[%s361 + $0x14] sm:$0xf] %vm3069, %v3042
      %3076 = vst.msk [vmem:[%s361 + $0x18] sm:$0xf] %vm3069, %v3043
      %3077 = vst.msk [vmem:[%s361 + $0x1c] sm:$0xf] %vm3069, %v3044
      %3078 = vst.msk [vmem:[%s361 + $0x20] sm:$0xf] %vm3069, %v3045
      %3079 = vst.msk [vmem:[%s361 + $0x24] sm:$0xf] %vm3069, %v3046
      %3080 = vst.msk [vmem:[%s361 + $0x28] sm:$0xf] %vm3069, %v3047
      %3081 = vst.msk [vmem:[%s361 + $0x2c] sm:$0xf] %vm3069, %v3048
      %3082 = vst.msk [vmem:[%s361 + $0x30] sm:$0xf] %vm3069, %v3049
      %3083 = vst.msk [vmem:[%s361 + $0x34] sm:$0xf] %vm3069, %v3050
      %3084 = vst.msk [vmem:[%s361 + $0x38] sm:$0xf] %vm3069, %v3051
      %3085 = vst.msk [vmem:[%s361 + $0x3c] sm:$0xf] %vm3069, %v3052
      %v3086 = vld [vmem:[%s365] sm:$0x1]
      %v3087 = vsel %vm502, %v2989, 0.0
      %v3088 = vsel %vm502, %v2990, 0.0
      %v3089 = vadd.f32 %v3087, %v3088
      %v3090 = vsel %vm502, %v2991, 0.0
      %v3091 = vadd.f32 %v3089, %v3090
      %v3092 = vsel %vm502, %v2992, 0.0
      %v3093 = vadd.f32 %v3091, %v3092
      %v3094 = vsel %vm502, %v2993, 0.0
      %v3095 = vadd.f32 %v3093, %v3094
      %v3096 = vsel %vm502, %v2994, 0.0
      %v3097 = vadd.f32 %v3095, %v3096
      %v3098 = vsel %vm502, %v2995, 0.0
      %v3099 = vadd.f32 %v3097, %v3098
      %v3100 = vsel %vm502, %v2996, 0.0
      %v3101 = vadd.f32 %v3099, %v3100
      %v3102 = vsel %vm502, %v2997, 0.0
      %v3103 = vadd.f32 %v3101, %v3102
      %v3104 = vsel %vm502, %v2998, 0.0
      %v3105 = vadd.f32 %v3103, %v3104
      %v3106 = vsel %vm502, %v2999, 0.0
      %v3107 = vadd.f32 %v3105, %v3106
      %v3108 = vsel %vm502, %v3000, 0.0
      %v3109 = vadd.f32 %v3107, %v3108
      %v3110 = vsel %vm502, %v3001, 0.0
      %v3111 = vadd.f32 %v3109, %v3110
      %v3112 = vsel %vm502, %v3002, 0.0
      %v3113 = vadd.f32 %v3111, %v3112
      %v3114 = vsel %vm502, %v3003, 0.0
      %v3115 = vadd.f32 %v3113, %v3114
      %v3116 = vsel %vm502, %v3004, 0.0
      %v3117 = vadd.f32 %v3115, %v3116
      %v3118 = vrot.slane %v3117, 4
      %v3119 = vadd.f32 %v3117, %v3118
      %v3120 = vrot.slane %v3119, 2
      %v3121 = vadd.f32 %v3119, %v3120
      %v3122 = vrot.slane %v3121, 1
      %v3123 = vadd.f32 %v3121, %v3122
      %v3124 = vadd.f32 %v3086, %v3123
      %vm3125 = vcmask 24576
      %3126 = vst.msk [vmem:[%s365] sm:$0x1] %vm3125, %v3124
      %v3127 = vld [vmem:[%s368] sm:$0x1]
      %v3128 = vmul.f32 %v2989, %v2989
      %v3129 = vmul.f32 %v2990, %v2990
      %v3130 = vmul.f32 %v2991, %v2991
      %v3131 = vmul.f32 %v2992, %v2992
      %v3132 = vmul.f32 %v2993, %v2993
      %v3133 = vmul.f32 %v2994, %v2994
      %v3134 = vmul.f32 %v2995, %v2995
      %v3135 = vmul.f32 %v2996, %v2996
      %v3136 = vmul.f32 %v2997, %v2997
      %v3137 = vmul.f32 %v2998, %v2998
      %v3138 = vmul.f32 %v2999, %v2999
      %v3139 = vmul.f32 %v3000, %v3000
      %v3140 = vmul.f32 %v3001, %v3001
      %v3141 = vmul.f32 %v3002, %v3002
      %v3142 = vmul.f32 %v3003, %v3003
      %v3143 = vmul.f32 %v3004, %v3004
      %v3144 = vsel %vm502, %v3128, 0.0
      %v3145 = vsel %vm502, %v3129, 0.0
      %v3146 = vadd.f32 %v3144, %v3145
      %v3147 = vsel %vm502, %v3130, 0.0
      %v3148 = vadd.f32 %v3146, %v3147
      %v3149 = vsel %vm502, %v3131, 0.0
      %v3150 = vadd.f32 %v3148, %v3149
      %v3151 = vsel %vm502, %v3132, 0.0
      %v3152 = vadd.f32 %v3150, %v3151
      %v3153 = vsel %vm502, %v3133, 0.0
      %v3154 = vadd.f32 %v3152, %v3153
      %v3155 = vsel %vm502, %v3134, 0.0
      %v3156 = vadd.f32 %v3154, %v3155
      %v3157 = vsel %vm502, %v3135, 0.0
      %v3158 = vadd.f32 %v3156, %v3157
      %v3159 = vsel %vm502, %v3136, 0.0
      %v3160 = vadd.f32 %v3158, %v3159
      %v3161 = vsel %vm502, %v3137, 0.0
      %v3162 = vadd.f32 %v3160, %v3161
      %v3163 = vsel %vm502, %v3138, 0.0
      %v3164 = vadd.f32 %v3162, %v3163
      %v3165 = vsel %vm502, %v3139, 0.0
      %v3166 = vadd.f32 %v3164, %v3165
      %v3167 = vsel %vm502, %v3140, 0.0
      %v3168 = vadd.f32 %v3166, %v3167
      %v3169 = vsel %vm502, %v3141, 0.0
      %v3170 = vadd.f32 %v3168, %v3169
      %v3171 = vsel %vm502, %v3142, 0.0
      %v3172 = vadd.f32 %v3170, %v3171
      %v3173 = vsel %vm502, %v3143, 0.0
      %v3174 = vadd.f32 %v3172, %v3173
      %v3175 = vrot.slane %v3174, 4
      %v3176 = vadd.f32 %v3174, %v3175
      %v3177 = vrot.slane %v3176, 2
      %v3178 = vadd.f32 %v3176, %v3177
      %v3179 = vrot.slane %v3178, 1
      %v3180 = vadd.f32 %v3178, %v3179
      %v3181 = vadd.f32 %v3127, %v3180
      %3182 = vst.msk [vmem:[%s368] sm:$0x1] %vm3125, %v3181
      %s3183 = smul.u32 16, %s24
      %p3184 = scmp.lt.s32.totalorder %s23, 1
      %s3185 = scalar_select %p3184, %s23, 1
      %p3186 = scmp.lt.s32.totalorder %s3183, 31
      %s3187 = scalar_select %p3186, %s3183, 31
      %s3188 = smul.addr %s3185, 32
      %s3189 = sadd.s32 %s3187, %s3188
      %s3190 = smul.addr %s3189, 4
      %s3191 = scalar_lea.vmem %s5, %s3190
      %p3192 = scmp.lt.s32.totalorder %s23, 1
      %s3193 = scalar_select %p3192, %s23, 1
      %s3194 = scalar_lea.vmem %s6, %s3193
      %p3195 = scmp.lt.s32.totalorder %s23, 1
      %s3196 = scalar_select %p3195, %s23, 1
      %s3197 = scalar_lea.vmem %s7, %s3196
      // Predicated region
      $region45: #{up_forward.4} parent=39 // pred_check
        %p3198 = pneg %p170
      $region46: #{up_forward.4} parent=39 // pred_check_branch
        %3200 = sbr.rel (%p3198) target = $region48
      $region47: #{up_forward.4} parent=39 // pred_region
        %s3201 = smul.u32 16, %s24
      $region48: #{up_forward.4} parent=39 // pred_fallthru
        _
      // Predicated region
      $region49: #{up_forward.4} parent=39 // pred_check
        %p3202 = pneg %p196
      $region50: #{up_forward.4} parent=39 // pred_check_branch
        %3204 = sbr.rel (%p3202) target = $region52
      $region51: #{up_forward.4} parent=39 // pred_region
        _
      $region52: #{up_forward.4} parent=39 // pred_fallthru
        _
      // Predicated region
      $region53: #{up_forward.4} parent=39 // pred_check
        %p3205 = pneg %p222
      $region54: #{up_forward.4} parent=39 // pred_check_branch
        %3207 = sbr.rel (%p3205) target = $region56
      $region55: #{up_forward.4} parent=39 // pred_region
        _
      $region56: #{up_forward.4} parent=39 // pred_fallthru
        _
    $region40: #{up_forward.4} parent=5 // pred_fallthru
      _
    %p3208 = scmp.le.s32.totalorder 2, %s14
    // Predicated region
    $region57: #{up_forward.4} parent=5 // pred_check
      %p3209 = pneg %p3208
    $region58: #{up_forward.4} parent=5 // pred_check_branch
      %3211 = sbr.rel (%p3209) target = $region60
    $region59: #{up_forward.4} parent=5 // pred_region
      %s3212 = ssub.s32 %s14, 2
      // Predicated region
      $region61: #{up_forward.4} parent=59 // pred_check
        %p3213 = pneg %p176
      $region62: #{up_forward.4} parent=59 // pred_check_branch
        %3215 = sbr.rel (%p3213) target = $region64
      $region63: #{up_forward.4} parent=59 // pred_region
        %s3216 = smul.u32 16, %s26
        %p3217 = scmp.lt.s32.totalorder %s25, 1
        %s3218 = scalar_select %p3217, %s25, 1
        %p3219 = scmp.lt.s32.totalorder %s3216, 31
        %s3220 = scalar_select %p3219, %s3216, 31
        %s3221 = smul.addr %s3218, 32
        %s3222 = sadd.s32 %s3220, %s3221
        %s3223 = smul.addr %s3222, 4
        %s3224 = scalar_lea.vmem %s5, %s3223
      $region64: #{up_forward.4} parent=59 // pred_fallthru
        _
      // Predicated region
      $region65: #{up_forward.4} parent=59 // pred_check
        %p3225 = pneg %p202
      $region66: #{up_forward.4} parent=59 // pred_check_branch
        %3227 = sbr.rel (%p3225) target = $region68
      $region67: #{up_forward.4} parent=59 // pred_region
        %p3228 = scmp.lt.s32.totalorder %s25, 1
        %s3229 = scalar_select %p3228, %s25, 1
        %s3230 = scalar_lea.vmem %s6, %s3229
      $region68: #{up_forward.4} parent=59 // pred_fallthru
        _
      // Predicated region
      $region69: #{up_forward.4} parent=59 // pred_check
        %p3231 = pneg %p228
      $region70: #{up_forward.4} parent=59 // pred_check_branch
        %3233 = sbr.rel (%p3231) target = $region72
      $region71: #{up_forward.4} parent=59 // pred_region
        %p3234 = scmp.lt.s32.totalorder %s25, 1
        %s3235 = scalar_select %p3234, %s25, 1
        %s3236 = scalar_lea.vmem %s7, %s3235
      $region72: #{up_forward.4} parent=59 // pred_fallthru
        _
    $region60: #{up_forward.4} parent=5 // pred_fallthru
      _
  $region6: #{up_forward.4} parent=0 // loop_footer
    %s18 = sadd.s32 1, %s14
  $region7: #{up_forward.4} parent=0 // loop_footer_branch
    %13 = sbr.rel target = $region3
  $region8: #{up_forward.4} parent=0 // loop_exit
    _

// kernel: up_forward.5
$region0: #{up_forward.5}
  #allocation0 [shape = 'u32[]', space=smem, size = 0x4, offset = 0x4, fixed_abs, tag = 'smem constant byte address 0x4 - core index']
  #allocation1 [shape = 'u32[144,128]{1,0:T(1,128)}', space=vmem, size = 0x12000, scoped, tag = 'internal scratch']
  #allocation2 [shape = 'f32[176,4]{1,0:T(8,128)}', space=vmem, size = 0x16000, scoped, tag = 'scratch operand']
  %s0 = inlined_call_operand.vmem [shape: bf16[2,256,4], index: 0, kind: input, shape index: {}]
  %s1 = inlined_call_operand.vmem [shape: bf16[2,2,2,16,4], index: 1, kind: input, shape index: {}]
  %s2 = inlined_call_operand.vmem [shape: f32[1,4], index: 2, kind: input, shape index: {}]
  %s3 = inlined_call_operand.vmem [shape: f32[1,4], index: 3, kind: input, shape index: {}]
  %s4 = inlined_call_operand.vmem [shape: f32[9,4,4], index: 4, kind: input, shape index: {}]
  %s5 = inlined_call_operand.vmem [shape: bf16[2,256,4], index: 5, kind: input, shape index: {}]
  %s6 = inlined_call_operand.vmem [shape: f32[2,256,4], index: 6, kind: output, shape index: {}]
  %s7 = sld [smem:[#allocation0]]
  $region57: #{up_forward.5} parent=0
    _
  %s9 = ssub.s32 1, %s7
  %s10 = scalar_select 0, %s9, %s7
  loop: start=0, step=1, limit=6
  $region2: #{up_forward.5} parent=0 // loop_pre_header
    _
  $region3: #{up_forward.5} parent=0 // loop_header
    %s12 = sphi 0, %s16
    %p13 = scmp.ge.s32.totalorder %s12, 6
    %s19 = sphi 0, %s31
    %s20 = sphi 0, %s27
    %s21 = sphi 0, %s19
    %s22 = sphi 0, %s20
    %s23 = sphi 0, %s21
    %s24 = sphi 0, %s22
    %s36 = sphi 0, %s38
    %s39 = sphi 0, %s36
    %s40 = sphi 0, %s39
    %s56 = sphi 0, %s40
    %s64 = sphi 0, %s66
    %s67 = sphi 0, %s64
    %s68 = sphi 0, %s67
    %s84 = sphi 0, %s68
    %s88 = sphi 0, %s88
    %s90 = sphi 0, %s88
    %s91 = sphi 0, %s90
    %s105 = sphi 0, %s91
    %s109 = sphi 0, %s109
    %s111 = sphi 0, %s109
    %s112 = sphi 0, %s111
    %s126 = sphi 0, %s112
    %s130 = sphi 0, %s130
    %s132 = sphi 0, %s130
    %s133 = sphi 0, %s132
    %s147 = sphi 0, %s133
    %s155 = sphi 0, %s157
    %s158 = sphi 0, %s155
    %s159 = sphi 0, %s158
    %s175 = sphi 0, %s159
    %s183 = sphi 0, %s185
    %s186 = sphi 0, %s183
    %s187 = sphi 0, %s186
    %s203 = sphi 0, %s187
  $region4: #{up_forward.5} parent=0 // loop_header_branch
    %15 = sbr.rel (%p13) target = $region8
  $region5: #{up_forward.5} parent=0 // loop_body
    %s17 = ssub.s32 %s12, 1
    %s18 = ssub.s32 %s12, 2
    %s25 = sadd.s32 1, %s20
    %p26 = scmp.ge.s32.totalorder %s25, 2
    %s27 = scalar_select %p26, 0, %s25
    %s28 = sadd.s32 1, %s19
    %s29 = scalar_select %p26, %s28, %s19
    %p30 = scmp.ge.s32.totalorder %s29, 2
    %s31 = scalar_select %p30, 0, %s29
    %s32 = ssub.s32 %s19, %s31
    %s33 = ssub.s32 %s20, %s27
    %s34 = sor.u32 %s32, %s33
    %p35 = scmp.eq.s32.totalorder %s34, 0
    %s37 = sadd.s32 %s36, 1
    %s38 = scalar_select %p35, %s36, %s37
    %p41 = pneg %p35
    %p42 = scmp.eq.s32.totalorder %s12, 3
    %p43 = por %p41, %p42
    %p44 = scmp.ne.s32.totalorder %s36, %s39
    %p45 = scmp.eq.s32.totalorder %s12, 0
    %p46 = por %p44, %p45
    %p47 = scmp.ne.s32.totalorder %s36, %s39
    %p48 = scmp.eq.s32.totalorder %s17, 3
    %p49 = por %p47, %p48
    %p50 = scmp.ne.s32.totalorder %s39, %s40
    %p51 = scmp.eq.s32.totalorder %s17, 0
    %p52 = por %p50, %p51
    %p53 = scmp.ne.s32.totalorder %s39, %s40
    %p54 = scmp.eq.s32.totalorder %s18, 3
    %p55 = por %p53, %p54
    %p57 = scmp.ne.s32.totalorder %s40, %s56
    %p58 = scmp.eq.s32.totalorder %s18, 0
    %p59 = por %p57, %p58
    %s60 = ssub.s32 %s19, %s31
    %s61 = ssub.s32 %s20, %s27
    %s62 = sor.u32 %s60, %s61
    %p63 = scmp.eq.s32.totalorder %s62, 0
    %s65 = sadd.s32 %s64, 1
    %s66 = scalar_select %p63, %s64, %s65
    %p69 = pneg %p63
    %p70 = scmp.eq.s32.totalorder %s12, 3
    %p71 = por %p69, %p70
    %p72 = scmp.ne.s32.totalorder %s64, %s67
    %p73 = scmp.eq.s32.totalorder %s12, 0
    %p74 = por %p72, %p73
    %p75 = scmp.ne.s32.totalorder %s64, %s67
    %p76 = scmp.eq.s32.totalorder %s17, 3
    %p77 = por %p75, %p76
    %p78 = scmp.ne.s32.totalorder %s67, %s68
    %p79 = scmp.eq.s32.totalorder %s17, 0
    %p80 = por %p78, %p79
    %p81 = scmp.ne.s32.totalorder %s67, %s68
    %p82 = scmp.eq.s32.totalorder %s18, 3
    %p83 = por %p81, %p82
    %p85 = scmp.ne.s32.totalorder %s68, %s84
    %p86 = scmp.eq.s32.totalorder %s18, 0
    %p87 = por %p85, %p86
    %s89 = sadd.s32 %s88, 1
    %p92 = scmp.eq.s32.totalorder %s12, 3
    %p93 = scmp.ne.s32.totalorder %s88, %s90
    %p94 = scmp.eq.s32.totalorder %s12, 0
    %p95 = por %p93, %p94
    %p96 = scmp.ne.s32.totalorder %s88, %s90
    %p97 = scmp.eq.s32.totalorder %s17, 3
    %p98 = por %p96, %p97
    %p99 = scmp.ne.s32.totalorder %s90, %s91
    %p100 = scmp.eq.s32.totalorder %s17, 0
    %p101 = por %p99, %p100
    %p102 = scmp.ne.s32.totalorder %s90, %s91
    %p103 = scmp.eq.s32.totalorder %s18, 3
    %p104 = por %p102, %p103
    %p106 = scmp.ne.s32.totalorder %s91, %s105
    %p107 = scmp.eq.s32.totalorder %s18, 0
    %p108 = por %p106, %p107
    %s110 = sadd.s32 %s109, 1
    %p113 = scmp.eq.s32.totalorder %s12, 3
    %p114 = scmp.ne.s32.totalorder %s109, %s111
    %p115 = scmp.eq.s32.totalorder %s12, 0
    %p116 = por %p114, %p115
    %p117 = scmp.ne.s32.totalorder %s109, %s111
    %p118 = scmp.eq.s32.totalorder %s17, 3
    %p119 = por %p117, %p118
    %p120 = scmp.ne.s32.totalorder %s111, %s112
    %p121 = scmp.eq.s32.totalorder %s17, 0
    %p122 = por %p120, %p121
    %p123 = scmp.ne.s32.totalorder %s111, %s112
    %p124 = scmp.eq.s32.totalorder %s18, 3
    %p125 = por %p123, %p124
    %p127 = scmp.ne.s32.totalorder %s112, %s126
    %p128 = scmp.eq.s32.totalorder %s18, 0
    %p129 = por %p127, %p128
    %s131 = sadd.s32 %s130, 1
    %p134 = scmp.eq.s32.totalorder %s12, 3
    %p135 = scmp.ne.s32.totalorder %s130, %s132
    %p136 = scmp.eq.s32.totalorder %s12, 0
    %p137 = por %p135, %p136
    %p138 = scmp.ne.s32.totalorder %s130, %s132
    %p139 = scmp.eq.s32.totalorder %s17, 3
    %p140 = por %p138, %p139
    %p141 = scmp.ne.s32.totalorder %s132, %s133
    %p142 = scmp.eq.s32.totalorder %s17, 0
    %p143 = por %p141, %p142
    %p144 = scmp.ne.s32.totalorder %s132, %s133
    %p145 = scmp.eq.s32.totalorder %s18, 3
    %p146 = por %p144, %p145
    %p148 = scmp.ne.s32.totalorder %s133, %s147
    %p149 = scmp.eq.s32.totalorder %s18, 0
    %p150 = por %p148, %p149
    %s151 = ssub.s32 %s19, %s31
    %s152 = ssub.s32 %s20, %s27
    %s153 = sor.u32 %s151, %s152
    %p154 = scmp.eq.s32.totalorder %s153, 0
    %s156 = sadd.s32 %s155, 1
    %s157 = scalar_select %p154, %s155, %s156
    %p160 = pneg %p154
    %p161 = scmp.eq.s32.totalorder %s12, 3
    %p162 = por %p160, %p161
    %p163 = scmp.ne.s32.totalorder %s155, %s158
    %p164 = scmp.eq.s32.totalorder %s12, 0
    %p165 = por %p163, %p164
    %p166 = scmp.ne.s32.totalorder %s155, %s158
    %p167 = scmp.eq.s32.totalorder %s17, 3
    %p168 = por %p166, %p167
    %p169 = scmp.ne.s32.totalorder %s158, %s159
    %p170 = scmp.eq.s32.totalorder %s17, 0
    %p171 = por %p169, %p170
    %p172 = scmp.ne.s32.totalorder %s158, %s159
    %p173 = scmp.eq.s32.totalorder %s18, 3
    %p174 = por %p172, %p173
    %p176 = scmp.ne.s32.totalorder %s159, %s175
    %p177 = scmp.eq.s32.totalorder %s18, 0
    %p178 = por %p176, %p177
    %s179 = ssub.s32 %s19, %s31
    %s180 = ssub.s32 %s20, %s27
    %s181 = sor.u32 %s179, %s180
    %p182 = scmp.eq.s32.totalorder %s181, 0
    %s184 = sadd.s32 %s183, 1
    %s185 = scalar_select %p182, %s183, %s184
    %p188 = pneg %p182
    %p189 = scmp.eq.s32.totalorder %s12, 3
    %p190 = por %p188, %p189
    %p191 = scmp.ne.s32.totalorder %s183, %s186
    %p192 = scmp.eq.s32.totalorder %s12, 0
    %p193 = por %p191, %p192
    %p194 = scmp.ne.s32.totalorder %s183, %s186
    %p195 = scmp.eq.s32.totalorder %s17, 3
    %p196 = por %p194, %p195
    %p197 = scmp.ne.s32.totalorder %s186, %s187
    %p198 = scmp.eq.s32.totalorder %s17, 0
    %p199 = por %p197, %p198
    %p200 = scmp.ne.s32.totalorder %s186, %s187
    %p201 = scmp.eq.s32.totalorder %s18, 3
    %p202 = por %p200, %p201
    %p204 = scmp.ne.s32.totalorder %s187, %s203
    %p205 = scmp.eq.s32.totalorder %s18, 0
    %p206 = por %p204, %p205
    %p207 = scmp.le.s32.totalorder 1, %s12
    %p208 = scmp.lt.s32.totalorder %s12, 5
    %p209 = pnand %p207, %p208
    %p210 = pneg %p209
    // Predicated region
    $region9: #{up_forward.5} parent=5 // pred_check
      _
    $region10: #{up_forward.5} parent=5 // pred_check_branch
      %212 = sbr.rel (%p209) target = $region12
    $region11: #{up_forward.5} parent=5 // pred_region
      %s213 = ssub.s32 %s12, 1
      // Predicated region
      $region13: #{up_forward.5} parent=11 // pred_check
        %p214 = pneg %p101
      $region14: #{up_forward.5} parent=11 // pred_check_branch
        %216 = sbr.rel (%p214) target = $region16
      $region15: #{up_forward.5} parent=11 // pred_region
        _
      $region16: #{up_forward.5} parent=11 // pred_fallthru
        _
      // Predicated region
      $region17: #{up_forward.5} parent=11 // pred_check
        %p217 = pneg %p122
      $region18: #{up_forward.5} parent=11 // pred_check_branch
        %219 = sbr.rel (%p217) target = $region20
      $region19: #{up_forward.5} parent=11 // pred_region
        _
      $region20: #{up_forward.5} parent=11 // pred_fallthru
        _
      // Predicated region
      $region21: #{up_forward.5} parent=11 // pred_check
        %p220 = pneg %p143
      $region22: #{up_forward.5} parent=11 // pred_check_branch
        %222 = sbr.rel (%p220) target = $region24
      $region23: #{up_forward.5} parent=11 // pred_region
        _
      $region24: #{up_forward.5} parent=11 // pred_fallthru
        _
    $region12: #{up_forward.5} parent=5 // pred_fallthru
      _
    %p223 = scmp.lt.s32.totalorder %s12, 4
    // Predicated region
    $region25: #{up_forward.5} parent=5 // pred_check
      %p224 = pneg %p223
    $region26: #{up_forward.5} parent=5 // pred_check_branch
      %226 = sbr.rel (%p224) target = $region28
    $region27: #{up_forward.5} parent=5 // pred_region
      // Predicated region
      $region29: #{up_forward.5} parent=27 // pred_check
        %p227 = pneg %p46
      $region30: #{up_forward.5} parent=27 // pred_check_branch
        %229 = sbr.rel (%p227) target = $region32
      $region31: #{up_forward.5} parent=27 // pred_region
        %s230 = smul.u32 16, %s20
        %p231 = scmp.lt.s32.totalorder %s19, 1
        %s232 = scalar_select %p231, %s19, 1
        %p233 = scmp.lt.s32.totalorder %s230, 31
        %s234 = scalar_select %p233, %s230, 31
        %s235 = smul.addr %s232, 32
        %s236 = sadd.s32 %s234, %s235
        %s237 = smul.addr %s236, 4
        %s238 = scalar_lea.vmem %s0, %s237
        %s239 = smul.u32 16, %s20
      $region32: #{up_forward.5} parent=27 // pred_fallthru
        _
      // Predicated region
      $region33: #{up_forward.5} parent=27 // pred_check
        %p240 = pneg %p74
      $region34: #{up_forward.5} parent=27 // pred_check_branch
        %242 = sbr.rel (%p240) target = $region36
      $region35: #{up_forward.5} parent=27 // pred_region
        %p243 = scmp.lt.s32.totalorder %s19, 1
        %s244 = scalar_select %p243, %s19, 1
        %p245 = scmp.lt.s32.totalorder %s20, 1
        %s246 = scalar_select %p245, %s20, 1
        %s247 = smul.addr %s246, 4
        %s248 = smul.addr %s244, 8
        %s249 = sadd.s32 %s247, %s248
        %s250 = smul.addr %s249, 4
        %s251 = scalar_lea.vmem %s1, %s250
      $region36: #{up_forward.5} parent=27 // pred_fallthru
        _
      // Predicated region
      $region37: #{up_forward.5} parent=27 // pred_check
        %p252 = pneg %p165
      $region38: #{up_forward.5} parent=27 // pred_check_branch
        %254 = sbr.rel (%p252) target = $region40
      $region39: #{up_forward.5} parent=27 // pred_region
        %s255 = smul.u32 16, %s20
        %p256 = scmp.lt.s32.totalorder %s19, 1
        %s257 = scalar_select %p256, %s19, 1
        %p258 = scmp.lt.s32.totalorder %s255, 31
        %s259 = scalar_select %p258, %s255, 31
        %s260 = smul.addr %s257, 32
        %s261 = sadd.s32 %s259, %s260
        %s262 = smul.addr %s261, 4
        %s263 = scalar_lea.vmem %s5, %s262
        %s264 = smul.u32 16, %s20
      $region40: #{up_forward.5} parent=27 // pred_fallthru
        _
    $region28: #{up_forward.5} parent=5 // pred_fallthru
      _
    %p265 = scmp.le.s32.totalorder 1, %s12
    %p266 = scmp.lt.s32.totalorder %s12, 5
    %p267 = pnand %p265, %p266
    %p268 = pneg %p267
    // Predicated region
    $region41: #{up_forward.5} parent=5 // pred_check
      _
    $region42: #{up_forward.5} parent=5 // pred_check_branch
      %270 = sbr.rel (%p267) target = $region44
    $region43: #{up_forward.5} parent=5 // pred_region
      %s271 = ssub.s32 %s12, 1
      %s272 = smul.u32 16, %s22
      %p273 = scmp.lt.s32.totalorder %s21, 1
      %s274 = scalar_select %p273, %s21, 1
      %p275 = scmp.lt.s32.totalorder %s272, 31
      %s276 = scalar_select %p275, %s272, 31
      %s277 = smul.addr %s274, 32
      %s278 = sadd.s32 %s276, %s277
      %s279 = smul.addr %s278, 4
      %s280 = scalar_lea.vmem %s0, %s279
      %p281 = pneg %p52
      %p282 = pneg %p49
      %p283 = scmp.lt.s32.totalorder %s21, 1
      %s284 = scalar_select %p283, %s21, 1
      %p285 = scmp.lt.s32.totalorder %s22, 1
      %s286 = scalar_select %p285, %s22, 1
      %s287 = smul.addr %s286, 4
      %s288 = smul.addr %s284, 8
      %s289 = sadd.s32 %s287, %s288
      %s290 = smul.addr %s289, 4
      %s291 = scalar_lea.vmem %s1, %s290
      %p292 = pneg %p80
      %p293 = pneg %p77
      %p294 = pneg %p101
      %p295 = pneg %p98
      %p296 = pneg %p122
      %p297 = pneg %p119
      %p298 = pneg %p143
      %p299 = pneg %p140
      %s300 = smul.u32 16, %s22
      %p301 = scmp.lt.s32.totalorder %s21, 1
      %s302 = scalar_select %p301, %s21, 1
      %p303 = scmp.lt.s32.totalorder %s300, 31
      %s304 = scalar_select %p303, %s300, 31
      %s305 = smul.addr %s302, 32
      %s306 = sadd.s32 %s304, %s305
      %s307 = smul.addr %s306, 4
      %s308 = scalar_lea.vmem %s5, %s307
      %p309 = pneg %p171
      %p310 = pneg %p168
      %p311 = pneg %p199
      %p312 = pneg %p196
      %s313 = smul.u32 16, %s22
      %p314 = scmp.lt.s32.totalorder %s21, 1
      %s315 = scalar_select %p314, %s21, 1
      %p316 = scmp.lt.s32.totalorder %s313, 31
      %s317 = scalar_select %p316, %s313, 31
      %s318 = smul.addr %s315, 32
      %s319 = sadd.s32 %s317, %s318
      %s320 = smul.addr %s319, 8
      %s321 = scalar_lea.vmem %s6, %s320
      %s322 = smul.u32 16, %s22
      %p323 = scmp.lt.s32.totalorder %s21, 1
      %s324 = scalar_select %p323, %s21, 1
      %p325 = scmp.lt.s32.totalorder %s322, 31
      %s326 = scalar_select %p325, %s322, 31
      %s327 = smul.addr %s324, 32
      %s328 = sadd.s32 %s326, %s327
      %s329 = smul.addr %s328, 4
      %s330 = scalar_lea.vmem %s0, %s329
      %s331 = smul.u32 16, %s22
      %p332 = scmp.lt.s32.totalorder %s21, 1
      %s333 = scalar_select %p332, %s21, 1
      %p334 = scmp.lt.s32.totalorder %s22, 1
      %s335 = scalar_select %p334, %s22, 1
      %s336 = smul.addr %s335, 4
      %s337 = smul.addr %s333, 8
      %s338 = sadd.s32 %s336, %s337
      %s339 = smul.addr %s338, 4
      %s340 = scalar_lea.vmem %s1, %s339
      %s341 = smul.u32 16, %s22
      %p342 = scmp.lt.s32.totalorder %s21, 1
      %s343 = scalar_select %p342, %s21, 1
      %p344 = scmp.lt.s32.totalorder %s341, 31
      %s345 = scalar_select %p344, %s341, 31
      %s346 = smul.addr %s343, 32
      %s347 = sadd.s32 %s345, %s346
      %s348 = smul.addr %s347, 4
      %s349 = scalar_lea.vmem %s5, %s348
      %s350 = smul.u32 16, %s22
      %s351 = smul.u32 16, %s22
      %p352 = scmp.lt.s32.totalorder %s21, 1
      %s353 = scalar_select %p352, %s21, 1
      %p354 = scmp.lt.s32.totalorder %s351, 31
      %s355 = scalar_select %p354, %s351, 31
      %s356 = smul.addr %s353, 32
      %s357 = sadd.s32 %s355, %s356
      %s358 = smul.addr %s357, 8
      %s359 = scalar_lea.vmem %s6, %s358
      %s360 = smul.u32 16, %s22
      %v361 = vld [vmem:[%s2] sm:$0x1]
      %v362 = vld [vmem:[%s3] sm:$0x1]
      %v363 = vld [vmem:[%s330] sm:$0xf]
      %v364 = vld [vmem:[%s330 + $0x4] sm:$0xf]
      %v365 = vld [vmem:[%s330 + $0x8] sm:$0xf]
      %v366 = vld [vmem:[%s330 + $0xc] sm:$0xf]
      %v367 = vld [vmem:[%s330 + $0x10] sm:$0xf]
      %v368 = vld [vmem:[%s330 + $0x14] sm:$0xf]
      %v369 = vld [vmem:[%s330 + $0x18] sm:$0xf]
      %v370 = vld [vmem:[%s330 + $0x1c] sm:$0xf]
      %v371 = vld [vmem:[%s330 + $0x20] sm:$0xf]
      %v372 = vld [vmem:[%s330 + $0x24] sm:$0xf]
      %v373 = vld [vmem:[%s330 + $0x28] sm:$0xf]
      %v374 = vld [vmem:[%s330 + $0x2c] sm:$0xf]
      %v375 = vld [vmem:[%s330 + $0x30] sm:$0xf]
      %v376 = vld [vmem:[%s330 + $0x34] sm:$0xf]
      %v377 = vld [vmem:[%s330 + $0x38] sm:$0xf]
      %v378 = vld [vmem:[%s330 + $0x3c] sm:$0xf]
      %v379 = vunpack.c.l.bf16 %v363
      %v380 = vunpack.c.l.bf16 %v364
      %v381 = vunpack.c.l.bf16 %v365
      %v382 = vunpack.c.l.bf16 %v366
      %v383 = vunpack.c.l.bf16 %v367
      %v384 = vunpack.c.l.bf16 %v368
      %v385 = vunpack.c.l.bf16 %v369
      %v386 = vunpack.c.l.bf16 %v370
      %v387 = vunpack.c.l.bf16 %v371
      %v388 = vunpack.c.l.bf16 %v372
      %v389 = vunpack.c.l.bf16 %v373
      %v390 = vunpack.c.l.bf16 %v374
      %v391 = vunpack.c.l.bf16 %v375
      %v392 = vunpack.c.l.bf16 %v376
      %v393 = vunpack.c.l.bf16 %v377
      %v394 = vunpack.c.l.bf16 %v378
      %v396 = vlaneseq
      %v397 = vshrl.u32 %v396, 7
      %v398 = vsub.s32 0, %v397
      %v399 = vrot.slane %v361, %v398
      %v401 = vmul.f32 %v379, %v399
      %v402 = vmul.f32 %v380, %v399
      %v403 = vmul.f32 %v381, %v399
      %v404 = vmul.f32 %v382, %v399
      %v405 = vmul.f32 %v383, %v399
      %v406 = vmul.f32 %v384, %v399
      %v407 = vmul.f32 %v385, %v399
      %v408 = vmul.f32 %v386, %v399
      %v409 = vmul.f32 %v387, %v399
      %v410 = vmul.f32 %v388, %v399
      %v411 = vmul.f32 %v389, %v399
      %v412 = vmul.f32 %v390, %v399
      %v413 = vmul.f32 %v391, %v399
      %v414 = vmul.f32 %v392, %v399
      %v415 = vmul.f32 %v393, %v399
      %v416 = vmul.f32 %v394, %v399
      %v418 = vlaneseq
      %v419 = vshrl.u32 %v418, 7
      %v420 = vsub.s32 0, %v419
      %v421 = vrot.slane %v362, %v420
      %v423 = vadd.f32 %v401, %v421
      %v424 = vadd.f32 %v402, %v421
      %v425 = vadd.f32 %v403, %v421
      %v426 = vadd.f32 %v404, %v421
      %v427 = vadd.f32 %v405, %v421
      %v428 = vadd.f32 %v406, %v421
      %v429 = vadd.f32 %v407, %v421
      %v430 = vadd.f32 %v408, %v421
      %v431 = vadd.f32 %v409, %v421
      %v432 = vadd.f32 %v410, %v421
      %v433 = vadd.f32 %v411, %v421
      %v434 = vadd.f32 %v412, %v421
      %v435 = vadd.f32 %v413, %v421
      %v436 = vadd.f32 %v414, %v421
      %v437 = vadd.f32 %v415, %v421
      %v438 = vadd.f32 %v416, %v421
      %vm439 = vcmp.ge.f32.partialorder %v423, 0.0
      %vm440 = vcmp.ge.f32.partialorder %v424, 0.0
      %vm441 = vcmp.ge.f32.partialorder %v425, 0.0
      %vm442 = vcmp.ge.f32.partialorder %v426, 0.0
      %vm443 = vcmp.ge.f32.partialorder %v427, 0.0
      %vm444 = vcmp.ge.f32.partialorder %v428, 0.0
      %vm445 = vcmp.ge.f32.partialorder %v429, 0.0
      %vm446 = vcmp.ge.f32.partialorder %v430, 0.0
      %vm447 = vcmp.ge.f32.partialorder %v431, 0.0
      %vm448 = vcmp.ge.f32.partialorder %v432, 0.0
      %vm449 = vcmp.ge.f32.partialorder %v433, 0.0
      %vm450 = vcmp.ge.f32.partialorder %v434, 0.0
      %vm451 = vcmp.ge.f32.partialorder %v435, 0.0
      %vm452 = vcmp.ge.f32.partialorder %v436, 0.0
      %vm453 = vcmp.ge.f32.partialorder %v437, 0.0
      %vm454 = vcmp.ge.f32.partialorder %v438, 0.0
      %v455 = vmul.f32 %v423, 0.01
      %v456 = vmul.f32 %v424, 0.01
      %v457 = vmul.f32 %v425, 0.01
      %v458 = vmul.f32 %v426, 0.01
      %v459 = vmul.f32 %v427, 0.01
      %v460 = vmul.f32 %v428, 0.01
      %v461 = vmul.f32 %v429, 0.01
      %v462 = vmul.f32 %v430, 0.01
      %v463 = vmul.f32 %v431, 0.01
      %v464 = vmul.f32 %v432, 0.01
      %v465 = vmul.f32 %v433, 0.01
      %v466 = vmul.f32 %v434, 0.01
      %v467 = vmul.f32 %v435, 0.01
      %v468 = vmul.f32 %v436, 0.01
      %v469 = vmul.f32 %v437, 0.01
      %v470 = vmul.f32 %v438, 0.01
      %v471 = vsel %vm439, %v423, %v455
      %v472 = vsel %vm440, %v424, %v456
      %v473 = vsel %vm441, %v425, %v457
      %v474 = vsel %vm442, %v426, %v458
      %v475 = vsel %vm443, %v427, %v459
      %v476 = vsel %vm444, %v428, %v460
      %v477 = vsel %vm445, %v429, %v461
      %v478 = vsel %vm446, %v430, %v462
      %v479 = vsel %vm447, %v431, %v463
      %v480 = vsel %vm448, %v432, %v464
      %v481 = vsel %vm449, %v433, %v465
      %v482 = vsel %vm450, %v434, %v466
      %v483 = vsel %vm451, %v435, %v467
      %v484 = vsel %vm452, %v436, %v468
      %v485 = vsel %vm453, %v437, %v469
      %v486 = vsel %vm454, %v438, %v470
      %vm487 = vcmask 31744
      %488 = vst.msk [vmem:[#allocation2 + $0x18] sm:$0xff] %vm487, %v471
      %489 = vst.msk [vmem:[#allocation2 + $0x20] sm:$0xff] %vm487, %v472
      %490 = vst.msk [vmem:[#allocation2 + $0x28] sm:$0xff] %vm487, %v473
      %491 = vst.msk [vmem:[#allocation2 + $0x30] sm:$0xff] %vm487, %v474
      %492 = vst.msk [vmem:[#allocation2 + $0x38] sm:$0xff] %vm487, %v475
      %493 = vst.msk [vmem:[#allocation2 + $0x40] sm:$0xff] %vm487, %v476
      %494 = vst.msk [vmem:[#allocation2 + $0x48] sm:$0xff] %vm487, %v477
      %495 = vst.msk [vmem:[#allocation2 + $0x50] sm:$0xff] %vm487, %v478
      %496 = vst.msk [vmem:[#allocation2 + $0x58] sm:$0xff] %vm487, %v479
      %497 = vst.msk [vmem:[#allocation2 + $0x60] sm:$0xff] %vm487, %v480
      %498 = vst.msk [vmem:[#allocation2 + $0x68] sm:$0xff] %vm487, %v481
      %499 = vst.msk [vmem:[#allocation2 + $0x70] sm:$0xff] %vm487, %v482
      %500 = vst.msk [vmem:[#allocation2 + $0x78] sm:$0xff] %vm487, %v483
      %501 = vst.msk [vmem:[#allocation2 + $0x80] sm:$0xff] %vm487, %v484
      %502 = vst.msk [vmem:[#allocation2 + $0x88] sm:$0xff] %vm487, %v485
      %503 = vst.msk [vmem:[#allocation2 + $0x90] sm:$0xff] %vm487, %v486
      %p504 = scmp.gt.s32.totalorder %s22, 0
      %s505 = scalar_select %p504, 1, 0
      %s506 = scvt.s32.f32 %s505
      %p507 = scmp.lt.s32.totalorder %s22, 1
      %s508 = scalar_select %p507, 1, 0
      %s509 = scvt.s32.f32 %s508
      %v510 = vld [vmem:[%s340] sm:$0xf]
      %v511 = vld [vmem:[%s340 + $0x4] sm:$0xf]
      %v512 = vunpack.c.l.bf16 %v510
      %v513 = vunpack.c.l.bf16 %v511
      %v514 = vmul.f32 %v512, %v399
      %v515 = vmul.f32 %v513, %v399
      %v516 = vadd.f32 %v514, %v421
      %v517 = vadd.f32 %v515, %v421
      %vm518 = vcmp.ge.f32.partialorder %v516, 0.0
      %vm519 = vcmp.ge.f32.partialorder %v517, 0.0
      %v520 = vmul.f32 %v516, 0.01
      %v521 = vmul.f32 %v517, 0.01
      %v522 = vsel %vm518, %v516, %v520
      %v523 = vsel %vm519, %v517, %v521
      %v524 = vstv %s506
      %v525 = vmul.f32 %v524, %v522
      %v526 = vmul.f32 %v524, %v523
      %527 = vst.msk [vmem:[#allocation2 + $0x8] sm:$0xff] %vm487, %v525
      %528 = vst.msk [vmem:[#allocation2 + $0x10] sm:$0xff] %vm487, %v526
      %s529 = scalar_lea.vmem %s340, 8
      %v530 = vld [vmem:[%s529] sm:$0xf]
      %v531 = vld [vmem:[%s529 + $0x4] sm:$0xf]
      %v532 = vunpack.c.l.bf16 %v530
      %v533 = vunpack.c.l.bf16 %v531
      %v534 = vmul.f32 %v532, %v399
      %v535 = vmul.f32 %v533, %v399
      %v536 = vadd.f32 %v534, %v421
      %v537 = vadd.f32 %v535, %v421
      %vm538 = vcmp.ge.f32.partialorder %v536, 0.0
      %vm539 = vcmp.ge.f32.partialorder %v537, 0.0
      %v540 = vmul.f32 %v536, 0.01
      %v541 = vmul.f32 %v537, 0.01
      %v542 = vsel %vm538, %v536, %v540
      %v543 = vsel %vm539, %v537, %v541
      %v544 = vstv %s509
      %v545 = vmul.f32 %v544, %v542
      %v546 = vmul.f32 %v544, %v543
      %547 = vst.msk [vmem:[#allocation2 + $0x98] sm:$0xff] %vm487, %v545
      %548 = vst.msk [vmem:[#allocation2 + $0xa0] sm:$0xff] %vm487, %v546
      %549 = vst.msk [vmem:[#allocation2] sm:$0xff] %vm487, 0.0
      %550 = vst.msk [vmem:[#allocation2 + $0xa8] sm:$0xff] %vm487, 0.0
      %v551 = vlaneseq
      %v552 = vshrl.u32 %v551, 7
      %v553 = vadd.s32 %v552, 8
      %v554 = vadd.s32 %v552, 16
      %v555 = vadd.s32 %v552, 24
      %v556 = vadd.s32 %v552, 32
      %v557 = vadd.s32 %v552, 40
      %v558 = vadd.s32 %v552, 48
      %v559 = vadd.s32 %v552, 56
      %v560 = vadd.s32 %v552, 64
      %v561 = vadd.s32 %v552, 72
      %v562 = vadd.s32 %v552, 80
      %v563 = vadd.s32 %v552, 88
      %v564 = vadd.s32 %v552, 96
      %v565 = vadd.s32 %v552, 104
      %v566 = vadd.s32 %v552, 112
      %v567 = vadd.s32 %v552, 120
      %vm568 = vcmp.lt.s32.totalorder %v552, 0
      %v569 = vsub.s32 0, %v552
      %v570 = vsel %vm568, %v569, %v552
      %v571 = vshrl.u32 %v570, 4
      %v572 = vand.u32 %v570, 15
      %v573 = vsub.s32 0, %v572
      %v574 = vsel %vm568, %v573, %v572
      %vm575 = vcmp.lt.s32.totalorder %v553, 0
      %v576 = vsub.s32 0, %v553
      %v577 = vsel %vm575, %v576, %v553
      %v578 = vshrl.u32 %v577, 4
      %v579 = vand.u32 %v577, 15
      %v580 = vsub.s32 0, %v579
      %v581 = vsel %vm575, %v580, %v579
      %vm582 = vcmp.lt.s32.totalorder %v554, 0
      %v583 = vsub.s32 0, %v554
      %v584 = vsel %vm582, %v583, %v554
      %v585 = vshrl.u32 %v584, 4
      %v586 = vand.u32 %v584, 15
      %v587 = vsub.s32 0, %v586
      %v588 = vsel %vm582, %v587, %v586
      %vm589 = vcmp.lt.s32.totalorder %v555, 0
      %v590 = vsub.s32 0, %v555
      %v591 = vsel %vm589, %v590, %v555
      %v592 = vshrl.u32 %v591, 4
      %v593 = vand.u32 %v591, 15
      %v594 = vsub.s32 0, %v593
      %v595 = vsel %vm589, %v594, %v593
      %vm596 = vcmp.lt.s32.totalorder %v556, 0
      %v597 = vsub.s32 0, %v556
      %v598 = vsel %vm596, %v597, %v556
      %v599 = vshrl.u32 %v598, 4
      %v600 = vand.u32 %v598, 15
      %v601 = vsub.s32 0, %v600
      %v602 = vsel %vm596, %v601, %v600
      %vm603 = vcmp.lt.s32.totalorder %v557, 0
      %v604 = vsub.s32 0, %v557
      %v605 = vsel %vm603, %v604, %v557
      %v606 = vshrl.u32 %v605, 4
      %v607 = vand.u32 %v605, 15
      %v608 = vsub.s32 0, %v607
      %v609 = vsel %vm603, %v608, %v607
      %vm610 = vcmp.lt.s32.totalorder %v558, 0
      %v611 = vsub.s32 0, %v558
      %v612 = vsel %vm610, %v611, %v558
      %v613 = vshrl.u32 %v612, 4
      %v614 = vand.u32 %v612, 15
      %v615 = vsub.s32 0, %v614
      %v616 = vsel %vm610, %v615, %v614
      %vm617 = vcmp.lt.s32.totalorder %v559, 0
      %v618 = vsub.s32 0, %v559
      %v619 = vsel %vm617, %v618, %v559
      %v620 = vshrl.u32 %v619, 4
      %v621 = vand.u32 %v619, 15
      %v622 = vsub.s32 0, %v621
      %v623 = vsel %vm617, %v622, %v621
      %vm624 = vcmp.lt.s32.totalorder %v560, 0
      %v625 = vsub.s32 0, %v560
      %v626 = vsel %vm624, %v625, %v560
      %v627 = vshrl.u32 %v626, 4
      %v628 = vand.u32 %v626, 15
      %v629 = vsub.s32 0, %v628
      %v630 = vsel %vm624, %v629, %v628
      %vm631 = vcmp.lt.s32.totalorder %v561, 0
      %v632 = vsub.s32 0, %v561
      %v633 = vsel %vm631, %v632, %v561
      %v634 = vshrl.u32 %v633, 4
      %v635 = vand.u32 %v633, 15
      %v636 = vsub.s32 0, %v635
      %v637 = vsel %vm631, %v636, %v635
      %vm638 = vcmp.lt.s32.totalorder %v562, 0
      %v639 = vsub.s32 0, %v562
      %v640 = vsel %vm638, %v639, %v562
      %v641 = vshrl.u32 %v640, 4
      %v642 = vand.u32 %v640, 15
      %v643 = vsub.s32 0, %v642
      %v644 = vsel %vm638, %v643, %v642
      %vm645 = vcmp.lt.s32.totalorder %v563, 0
      %v646 = vsub.s32 0, %v563
      %v647 = vsel %vm645, %v646, %v563
      %v648 = vshrl.u32 %v647, 4
      %v649 = vand.u32 %v647, 15
      %v650 = vsub.s32 0, %v649
      %v651 = vsel %vm645, %v650, %v649
      %vm652 = vcmp.lt.s32.totalorder %v564, 0
      %v653 = vsub.s32 0, %v564
      %v654 = vsel %vm652, %v653, %v564
      %v655 = vshrl.u32 %v654, 4
      %v656 = vand.u32 %v654, 15
      %v657 = vsub.s32 0, %v656
      %v658 = vsel %vm652, %v657, %v656
      %vm659 = vcmp.lt.s32.totalorder %v565, 0
      %v660 = vsub.s32 0, %v565
      %v661 = vsel %vm659, %v660, %v565
      %v662 = vshrl.u32 %v661, 4
      %v663 = vand.u32 %v661, 15
      %v664 = vsub.s32 0, %v663
      %v665 = vsel %vm659, %v664, %v663
      %vm666 = vcmp.lt.s32.totalorder %v566, 0
      %v667 = vsub.s32 0, %v566
      %v668 = vsel %vm666, %v667, %v566
      %v669 = vshrl.u32 %v668, 4
      %v670 = vand.u32 %v668, 15
      %v671 = vsub.s32 0, %v670
      %v672 = vsel %vm666, %v671, %v670
      %vm673 = vcmp.lt.s32.totalorder %v567, 0
      %v674 = vsub.s32 0, %v567
      %v675 = vsel %vm673, %v674, %v567
      %v676 = vshrl.u32 %v675, 4
      %v677 = vand.u32 %v675, 15
      %v678 = vsub.s32 0, %v677
      %v679 = vsel %vm673, %v678, %v677
      %vm680 = vcmp.ne.s32.totalorder %v574, 0
      %vm681 = vcmp.ne.s32.totalorder %v581, 0
      %vm682 = vcmp.ne.s32.totalorder %v588, 0
      %vm683 = vcmp.ne.s32.totalorder %v595, 0
      %vm684 = vcmp.ne.s32.totalorder %v602, 0
      %vm685 = vcmp.ne.s32.totalorder %v609, 0
      %vm686 = vcmp.ne.s32.totalorder %v616, 0
      %vm687 = vcmp.ne.s32.totalorder %v623, 0
      %vm688 = vcmp.ne.s32.totalorder %v630, 0
      %vm689 = vcmp.ne.s32.totalorder %v637, 0
      %vm690 = vcmp.ne.s32.totalorder %v644, 0
      %vm691 = vcmp.ne.s32.totalorder %v651, 0
      %vm692 = vcmp.ne.s32.totalorder %v658, 0
      %vm693 = vcmp.ne.s32.totalorder %v665, 0
      %vm694 = vcmp.ne.s32.totalorder %v672, 0
      %vm695 = vcmp.ne.s32.totalorder %v679, 0
      %vm696 = vcmp.lt.s32.totalorder %v574, 0
      %vm697 = vcmp.lt.s32.totalorder %v581, 0
      %vm698 = vcmp.lt.s32.totalorder %v588, 0
      %vm699 = vcmp.lt.s32.totalorder %v595, 0
      %vm700 = vcmp.lt.s32.totalorder %v602, 0
      %vm701 = vcmp.lt.s32.totalorder %v609, 0
      %vm702 = vcmp.lt.s32.totalorder %v616, 0
      %vm703 = vcmp.lt.s32.totalorder %v623, 0
      %vm704 = vcmp.lt.s32.totalorder %v630, 0
      %vm705 = vcmp.lt.s32.totalorder %v637, 0
      %vm706 = vcmp.lt.s32.totalorder %v644, 0
      %vm707 = vcmp.lt.s32.totalorder %v651, 0
      %vm708 = vcmp.lt.s32.totalorder %v658, 0
      %vm709 = vcmp.lt.s32.totalorder %v665, 0
      %vm710 = vcmp.lt.s32.totalorder %v672, 0
      %vm711 = vcmp.lt.s32.totalorder %v679, 0
      %vm712 = vmand %vm696, %vm680
      %vm713 = vmand %vm697, %vm681
      %vm714 = vmand %vm698, %vm682
      %vm715 = vmand %vm699, %vm683
      %vm716 = vmand %vm700, %vm684
      %vm717 = vmand %vm701, %vm685
      %vm718 = vmand %vm702, %vm686
      %vm719 = vmand %vm703, %vm687
      %vm720 = vmand %vm704, %vm688
      %vm721 = vmand %vm705, %vm689
      %vm722 = vmand %vm706, %vm690
      %vm723 = vmand %vm707, %vm691
      %vm724 = vmand %vm708, %vm692
      %vm725 = vmand %vm709, %vm693
      %vm726 = vmand %vm710, %vm694
      %vm727 = vmand %vm711, %vm695
      %v728 = vadd.s32 %v574, 16
      %v729 = vadd.s32 %v581, 16
      %v730 = vadd.s32 %v588, 16
      %v731 = vadd.s32 %v595, 16
      %v732 = vadd.s32 %v602, 16
      %v733 = vadd.s32 %v609, 16
      %v734 = vadd.s32 %v616, 16
      %v735 = vadd.s32 %v623, 16
      %v736 = vadd.s32 %v630, 16
      %v737 = vadd.s32 %v637, 16
      %v738 = vadd.s32 %v644, 16
      %v739 = vadd.s32 %v651, 16
      %v740 = vadd.s32 %v658, 16
      %v741 = vadd.s32 %v665, 16
      %v742 = vadd.s32 %v672, 16
      %v743 = vadd.s32 %v679, 16
      %v744 = vsel %vm712, %v728, %v574
      %v745 = vsel %vm713, %v729, %v581
      %v746 = vsel %vm714, %v730, %v588
      %v747 = vsel %vm715, %v731, %v595
      %v748 = vsel %vm716, %v732, %v602
      %v749 = vsel %vm717, %v733, %v609
      %v750 = vsel %vm718, %v734, %v616
      %v751 = vsel %vm719, %v735, %v623
      %v752 = vsel %vm720, %v736, %v630
      %v753 = vsel %vm721, %v737, %v637
      %v754 = vsel %vm722, %v738, %v644
      %v755 = vsel %vm723, %v739, %v651
      %v756 = vsel %vm724, %v740, %v658
      %v757 = vsel %vm725, %v741, %v665
      %v758 = vsel %vm726, %v742, %v672
      %v759 = vsel %vm727, %v743, %v679
      %vm760 = vcmp.ne.s32.totalorder %v744, 0
      %vm761 = vcmp.ne.s32.totalorder %v745, 0
      %vm762 = vcmp.ne.s32.totalorder %v746, 0
      %vm763 = vcmp.ne.s32.totalorder %v747, 0
      %vm764 = vcmp.ne.s32.totalorder %v748, 0
      %vm765 = vcmp.ne.s32.totalorder %v749, 0
      %vm766 = vcmp.ne.s32.totalorder %v750, 0
      %vm767 = vcmp.ne.s32.totalorder %v751, 0
      %vm768 = vcmp.ne.s32.totalorder %v752, 0
      %vm769 = vcmp.ne.s32.totalorder %v753, 0
      %vm770 = vcmp.ne.s32.totalorder %v754, 0
      %vm771 = vcmp.ne.s32.totalorder %v755, 0
      %vm772 = vcmp.ne.s32.totalorder %v756, 0
      %vm773 = vcmp.ne.s32.totalorder %v757, 0
      %vm774 = vcmp.ne.s32.totalorder %v758, 0
      %vm775 = vcmp.ne.s32.totalorder %v759, 0
      %vm776 = vcmp.ne.s32.totalorder %v744, 15
      %vm777 = vcmp.ne.s32.totalorder %v745, 15
      %vm778 = vcmp.ne.s32.totalorder %v746, 15
      %vm779 = vcmp.ne.s32.totalorder %v747, 15
      %vm780 = vcmp.ne.s32.totalorder %v748, 15
      %vm781 = vcmp.ne.s32.totalorder %v749, 15
      %vm782 = vcmp.ne.s32.totalorder %v750, 15
      %vm783 = vcmp.ne.s32.totalorder %v751, 15
      %vm784 = vcmp.ne.s32.totalorder %v752, 15
      %vm785 = vcmp.ne.s32.totalorder %v753, 15
      %vm786 = vcmp.ne.s32.totalorder %v754, 15
      %vm787 = vcmp.ne.s32.totalorder %v755, 15
      %vm788 = vcmp.ne.s32.totalorder %v756, 15
      %vm789 = vcmp.ne.s32.totalorder %v757, 15
      %vm790 = vcmp.ne.s32.totalorder %v758, 15
      %vm791 = vcmp.ne.s32.totalorder %v759, 15
      %v792 = vld [vmem:[#allocation2 + $0x7] sm:$0xff]
      %v793 = vld [vmem:[#allocation2 + $0xf] sm:$0xff]
      %v794 = vld [vmem:[#allocation2 + $0x17] sm:$0xff]
      %v795 = vld [vmem:[#allocation2 + $0x1f] sm:$0xff]
      %v796 = vld [vmem:[#allocation2 + $0x27] sm:$0xff]
      %v797 = vld [vmem:[#allocation2 + $0x2f] sm:$0xff]
      %v798 = vld [vmem:[#allocation2 + $0x37] sm:$0xff]
      %v799 = vld [vmem:[#allocation2 + $0x3f] sm:$0xff]
      %v800 = vld [vmem:[#allocation2 + $0x47] sm:$0xff]
      %v801 = vld [vmem:[#allocation2 + $0x4f] sm:$0xff]
      %v802 = vld [vmem:[#allocation2 + $0x57] sm:$0xff]
      %v803 = vld [vmem:[#allocation2 + $0x5f] sm:$0xff]
      %v804 = vld [vmem:[#allocation2 + $0x67] sm:$0xff]
      %v805 = vld [vmem:[#allocation2 + $0x6f] sm:$0xff]
      %v806 = vld [vmem:[#allocation2 + $0x77] sm:$0xff]
      %v807 = vld [vmem:[#allocation2 + $0x7f] sm:$0xff]
      %v808 = vsel %vm760, 1, 0
      %v809 = vsel %vm761, 1, 0
      %v810 = vsel %vm762, 1, 0
      %v811 = vsel %vm763, 1, 0
      %v812 = vsel %vm764, 1, 0
      %v813 = vsel %vm765, 1, 0
      %v814 = vsel %vm766, 1, 0
      %v815 = vsel %vm767, 1, 0
      %v816 = vsel %vm768, 1, 0
      %v817 = vsel %vm769, 1, 0
      %v818 = vsel %vm770, 1, 0
      %v819 = vsel %vm771, 1, 0
      %v820 = vsel %vm772, 1, 0
      %v821 = vsel %vm773, 1, 0
      %v822 = vsel %vm774, 1, 0
      %v823 = vsel %vm775, 1, 0
      %vm824 = vcmp.eq.s32.totalorder %v808, 1
      %vm825 = vcmp.eq.s32.totalorder %v809, 1
      %vm826 = vcmp.eq.s32.totalorder %v810, 1
      %vm827 = vcmp.eq.s32.totalorder %v811, 1
      %vm828 = vcmp.eq.s32.totalorder %v812, 1
      %vm829 = vcmp.eq.s32.totalorder %v813, 1
      %vm830 = vcmp.eq.s32.totalorder %v814, 1
      %vm831 = vcmp.eq.s32.totalorder %v815, 1
      %vm832 = vcmp.eq.s32.totalorder %v816, 1
      %vm833 = vcmp.eq.s32.totalorder %v817, 1
      %vm834 = vcmp.eq.s32.totalorder %v818, 1
      %vm835 = vcmp.eq.s32.totalorder %v819, 1
      %vm836 = vcmp.eq.s32.totalorder %v820, 1
      %vm837 = vcmp.eq.s32.totalorder %v821, 1
      %vm838 = vcmp.eq.s32.totalorder %v822, 1
      %vm839 = vcmp.eq.s32.totalorder %v823, 1
      %v840 = vsel %vm824, %v792, 0.0
      %v841 = vsel %vm825, %v793, 0.0
      %v842 = vsel %vm826, %v794, 0.0
      %v843 = vsel %vm827, %v795, 0.0
      %v844 = vsel %vm828, %v796, 0.0
      %v845 = vsel %vm829, %v797, 0.0
      %v846 = vsel %vm830, %v798, 0.0
      %v847 = vsel %vm831, %v799, 0.0
      %v848 = vsel %vm832, %v800, 0.0
      %v849 = vsel %vm833, %v801, 0.0
      %v850 = vsel %vm834, %v802, 0.0
      %v851 = vsel %vm835, %v803, 0.0
      %v852 = vsel %vm836, %v804, 0.0
      %v853 = vsel %vm837, %v805, 0.0
      %v854 = vsel %vm838, %v806, 0.0
      %v855 = vsel %vm839, %v807, 0.0
      %v856 = vld [vmem:[%s4] sm:$0xf]
      %v857 = vld [vmem:[#allocation2 + $0x8] sm:$0xff]
      %v858 = vld [vmem:[#allocation2 + $0x10] sm:$0xff]
      %v859 = vld [vmem:[#allocation2 + $0x18] sm:$0xff]
      %v860 = vld [vmem:[#allocation2 + $0x20] sm:$0xff]
      %v861 = vld [vmem:[#allocation2 + $0x28] sm:$0xff]
      %v862 = vld [vmem:[#allocation2 + $0x30] sm:$0xff]
      %v863 = vld [vmem:[#allocation2 + $0x38] sm:$0xff]
      %v864 = vld [vmem:[#allocation2 + $0x40] sm:$0xff]
      %v865 = vld [vmem:[#allocation2 + $0x48] sm:$0xff]
      %v866 = vld [vmem:[#allocation2 + $0x50] sm:$0xff]
      %v867 = vld [vmem:[#allocation2 + $0x58] sm:$0xff]
      %v868 = vld [vmem:[#allocation2 + $0x60] sm:$0xff]
      %v869 = vld [vmem:[#allocation2 + $0x68] sm:$0xff]
      %v870 = vld [vmem:[#allocation2 + $0x70] sm:$0xff]
      %v871 = vld [vmem:[#allocation2 + $0x78] sm:$0xff]
      %v872 = vld [vmem:[#allocation2 + $0x80] sm:$0xff]
      %s873 = scalar_lea.vmem %s4, 4
      %v874 = vld [vmem:[%s873] sm:$0xf]
      %v876 = vsel %vm487, %v857, 0
      %v879 = vsel %vm487, %v858, 0
      %v882 = vsel %vm487, %v859, 0
      %v885 = vsel %vm487, %v860, 0
      %v888 = vsel %vm487, %v861, 0
      %v891 = vsel %vm487, %v862, 0
      %v894 = vsel %vm487, %v863, 0
      %v897 = vsel %vm487, %v864, 0
      %v900 = vsel %vm487, %v865, 0
      %v903 = vsel %vm487, %v866, 0
      %v906 = vsel %vm487, %v867, 0
      %v909 = vsel %vm487, %v868, 0
      %v912 = vsel %vm487, %v869, 0
      %v915 = vsel %vm487, %v870, 0
      %v918 = vsel %vm487, %v871, 0
      %v921 = vsel %vm487, %v872, 0
      %vm923 = vcmask 1043456
      %v925 = vsel %vm923, %v874, 0
      %927 = vmatprep.subr.mxu0 0.0
      %928 = vmatpush1.msra.mxu0 %v925
      %929 = vmatprep.subr.mxu0 0.0
      %930 = vmatpush1.msra.mxu0 0.0
      %931 = vmatprep.subr.mxu0 0.0
      %932 = vmatpush1.msra.mxu0 0.0
      %933 = vmatprep.subr.mxu0 0.0
      %934 = vmatpush1.msra.mxu0 0.0
      %935 = vmatprep.subr.mxu0 0.0
      %936 = vmatpush1.msra.mxu0 0.0
      %937 = vmatprep.subr.mxu0 0.0
      %938 = vmatpush1.msra.mxu0 0.0
      %939 = vmatprep.subr.mxu0 0.0
      %940 = vmatpush1.msra.mxu0 0.0
      %941 = vmatprep.subr.mxu0 0.0
      %942 = vmatpush1.msra.mxu0 0.0
      %943 = vmatprep.subr.mxu0 0.0
      %944 = vmatpush1.msra.mxu0 0.0
      %945 = vmatprep.subr.mxu0 0.0
      %946 = vmatpush1.msra.mxu0 0.0
      %947 = vmatprep.subr.mxu0 0.0
      %948 = vmatpush1.msra.mxu0 0.0
      %949 = vmatprep.subr.mxu0 0.0
      %950 = vmatpush1.msra.mxu0 0.0
      %951 = vmatprep.subr.mxu0 0.0
      %952 = vmatpush1.msra.mxu0 0.0
      %953 = vmatprep.subr.mxu0 0.0
      %954 = vmatpush1.msra.mxu0 0.0
      %955 = vmatprep.subr.mxu0 0.0
      %956 = vmatpush1.msra.mxu0 0.0
      %957 = vmatprep.subr.mxu0 0.0
      %958 = vmatpush1.msra.mxu0 0.0
      %959 = vmatprep.subr.mxu0 0.0
      %960 = vmatpush1.msra.mxu0 0.0
      %961 = vmatprep.subr.mxu0 0.0
      %962 = vmatpush1.msra.mxu0 0.0
      %963 = vmatprep.subr.mxu0 0.0
      %964 = vmatpush1.msra.mxu0 0.0
      %965 = vmatprep.subr.mxu0 0.0
      %966 = vmatpush1.msra.mxu0 0.0
      %967 = vmatprep.subr.mxu0 0.0
      %968 = vmatpush1.msra.mxu0 0.0
      %969 = vmatprep.subr.mxu0 0.0
      %970 = vmatpush1.msra.mxu0 0.0
      %971 = vmatprep.subr.mxu0 0.0
      %972 = vmatpush1.msra.mxu0 0.0
      %973 = vmatprep.subr.mxu0 0.0
      %974 = vmatpush1.msra.mxu0 0.0
      %975 = vmatprep.subr.mxu0 0.0
      %976 = vmatpush1.msra.mxu0 0.0
      %977 = vmatprep.subr.mxu0 0.0
      %978 = vmatpush1.msra.mxu0 0.0
      %979 = vmatprep.subr.mxu0 0.0
      %980 = vmatpush1.msra.mxu0 0.0
      %981 = vmatprep.subr.mxu0 0.0
      %982 = vmatpush1.msra.mxu0 0.0
      %983 = vmatprep.subr.mxu0 0.0
      %984 = vmatpush1.msra.mxu0 0.0
      %985 = vmatprep.subr.mxu0 0.0
      %986 = vmatpush1.msra.mxu0 0.0
      %987 = vmatprep.subr.mxu0 0.0
      %988 = vmatpush1.msra.mxu0 0.0
      %989 = vmatprep.subr.mxu0 0.0
      %990 = vmatpush1.msra.mxu0 0.0
      %991 = vmatprep.mubr.f32.mxu0 0.0
      %992 = vmatmul.mubr.f32.gmra.mrb[0].mxu0 %v876
      %v993 = vpop.f32.mrb[0].mxu0
      %v994 = vadd.f32 0.0, %v993
      %v995 = vpop.f32.mrb[0].mxu0
      %996 = vmatprep.mubr.f32.mxu0 0.0
      %997 = vmatmul.mubr.f32.gmra.mrb[0].mxu0 %v879
      %v998 = vpop.f32.mrb[0].mxu0
      %v999 = vadd.f32 0.0, %v998
      %v1000 = vpop.f32.mrb[0].mxu0
      %1001 = vmatprep.mubr.f32.mxu0 0.0
      %1002 = vmatmul.mubr.f32.gmra.mrb[0].mxu0 %v882
      %v1003 = vpop.f32.mrb[0].mxu0
      %v1004 = vadd.f32 0.0, %v1003
      %v1005 = vpop.f32.mrb[0].mxu0
      %1006 = vmatprep.mubr.f32.mxu0 0.0
      %1007 = vmatmul.mubr.f32.gmra.mrb[0].mxu0 %v885
      %v1008 = vpop.f32.mrb[0].mxu0
      %v1009 = vadd.f32 0.0, %v1008
      %v1010 = vpop.f32.mrb[0].mxu0
      %1011 = vmatprep.mubr.f32.mxu0 0.0
      %1012 = vmatmul.mubr.f32.gmra.mrb[0].mxu0 %v888
      %v1013 = vpop.f32.mrb[0].mxu0
      %v1014 = vadd.f32 0.0, %v1013
      %v1015 = vpop.f32.mrb[0].mxu0
      %1016 = vmatprep.mubr.f32.mxu0 0.0
      %1017 = vmatmul.mubr.f32.gmra.mrb[0].mxu0 %v891
      %v1018 = vpop.f32.mrb[0].mxu0
      %v1019 = vadd.f32 0.0, %v1018
      %v1020 = vpop.f32.mrb[0].mxu0
      %1021 = vmatprep.mubr.f32.mxu0 0.0
      %1022 = vmatmul.mubr.f32.gmra.mrb[0].mxu0 %v894
      %v1023 = vpop.f32.mrb[0].mxu0
      %v1024 = vadd.f32 0.0, %v1023
      %v1025 = vpop.f32.mrb[0].mxu0
      %1026 = vmatprep.mubr.f32.mxu0 0.0
      %1027 = vmatmul.mubr.f32.gmra.mrb[0].mxu0 %v897
      %v1028 = vpop.f32.mrb[0].mxu0
      %v1029 = vadd.f32 0.0, %v1028
      %v1030 = vpop.f32.mrb[0].mxu0
      %1031 = vmatprep.mubr.f32.mxu0 0.0
      %1032 = vmatmul.mubr.f32.gmra.mrb[0].mxu0 %v900
      %v1033 = vpop.f32.mrb[0].mxu0
      %v1034 = vadd.f32 0.0, %v1033
      %v1035 = vpop.f32.mrb[0].mxu0
      %1036 = vmatprep.mubr.f32.mxu0 0.0
      %1037 = vmatmul.mubr.f32.gmra.mrb[0].mxu0 %v903
      %v1038 = vpop.f32.mrb[0].mxu0
      %v1039 = vadd.f32 0.0, %v1038
      %v1040 = vpop.f32.mrb[0].mxu0
      %1041 = vmatprep.mubr.f32.mxu0 0.0
      %1042 = vmatmul.mubr.f32.gmra.mrb[0].mxu0 %v906
      %v1043 = vpop.f32.mrb[0].mxu0
      %v1044 = vadd.f32 0.0, %v1043
      %v1045 = vpop.f32.mrb[0].mxu0
      %1046 = vmatprep.mubr.f32.mxu0 0.0
      %1047 = vmatmul.mubr.f32.gmra.mrb[0].mxu0 %v909
      %v1048 = vpop.f32.mrb[0].mxu0
      %v1049 = vadd.f32 0.0, %v1048
      %v1050 = vpop.f32.mrb[0].mxu0
      %1051 = vmatprep.mubr.f32.mxu0 0.0
      %1052 = vmatmul.mubr.f32.gmra.mrb[0].mxu0 %v912
      %v1053 = vpop.f32.mrb[0].mxu0
      %v1054 = vadd.f32 0.0, %v1053
      %v1055 = vpop.f32.mrb[0].mxu0
      %1056 = vmatprep.mubr.f32.mxu0 0.0
      %1057 = vmatmul.mubr.f32.gmra.mrb[0].mxu0 %v915
      %v1058 = vpop.f32.mrb[0].mxu0
      %v1059 = vadd.f32 0.0, %v1058
      %v1060 = vpop.f32.mrb[0].mxu0
      %1061 = vmatprep.mubr.f32.mxu0 0.0
      %1062 = vmatmul.mubr.f32.gmra.mrb[0].mxu0 %v918
      %v1063 = vpop.f32.mrb[0].mxu0
      %v1064 = vadd.f32 0.0, %v1063
      %v1065 = vpop.f32.mrb[0].mxu0
      %1066 = vmatprep.mubr.f32.mxu0 0.0
      %1067 = vmatmul.mubr.f32.gmra.mrb[0].mxu0 %v921
      %v1068 = vpop.f32.mrb[0].mxu0
      %v1069 = vadd.f32 0.0, %v1068
      %v1070 = vpop.f32.mrb[0].mxu0
      %1071 = vdwg.mxu0
      %v1073 = vsel %vm487, %v840, 0
      %v1076 = vsel %vm487, %v841, 0
      %v1079 = vsel %vm487, %v842, 0
      %v1082 = vsel %vm487, %v843, 0
      %v1085 = vsel %vm487, %v844, 0
      %v1088 = vsel %vm487, %v845, 0
      %v1091 = vsel %vm487, %v846, 0
      %v1094 = vsel %vm487, %v847, 0
      %v1097 = vsel %vm487, %v848, 0
      %v1100 = vsel %vm487, %v849, 0
      %v1103 = vsel %vm487, %v850, 0
      %v1106 = vsel %vm487, %v851, 0
      %v1109 = vsel %vm487, %v852, 0
      %v1112 = vsel %vm487, %v853, 0
      %v1115 = vsel %vm487, %v854, 0
      %v1118 = vsel %vm487, %v855, 0
      %v1121 = vsel %vm923, %v856, 0
      %1123 = vmatprep.subr.mxu0 0.0
      %1124 = vmatpush1.msra.mxu0 %v1121
      %1125 = vmatprep.subr.mxu0 0.0
      %1126 = vmatpush1.msra.mxu0 0.0
      %1127 = vmatprep.subr.mxu0 0.0
      %1128 = vmatpush1.msra.mxu0 0.0
      %1129 = vmatprep.subr.mxu0 0.0
      %1130 = vmatpush1.msra.mxu0 0.0
      %1131 = vmatprep.subr.mxu0 0.0
      %1132 = vmatpush1.msra.mxu0 0.0
      %1133 = vmatprep.subr.mxu0 0.0
      %1134 = vmatpush1.msra.mxu0 0.0
      %1135 = vmatprep.subr.mxu0 0.0
      %1136 = vmatpush1.msra.mxu0 0.0
      %1137 = vmatprep.subr.mxu0 0.0
      %1138 = vmatpush1.msra.mxu0 0.0
      %1139 = vmatprep.subr.mxu0 0.0
      %1140 = vmatpush1.msra.mxu0 0.0
      %1141 = vmatprep.subr.mxu0 0.0
      %1142 = vmatpush1.msra.mxu0 0.0
      %1143 = vmatprep.subr.mxu0 0.0
      %1144 = vmatpush1.msra.mxu0 0.0
      %1145 = vmatprep.subr.mxu0 0.0
      %1146 = vmatpush1.msra.mxu0 0.0
      %1147 = vmatprep.subr.mxu0 0.0
      %1148 = vmatpush1.msra.mxu0 0.0
      %1149 = vmatprep.subr.mxu0 0.0
      %1150 = vmatpush1.msra.mxu0 0.0
      %1151 = vmatprep.subr.mxu0 0.0
      %1152 = vmatpush1.msra.mxu0 0.0
      %1153 = vmatprep.subr.mxu0 0.0
      %1154 = vmatpush1.msra.mxu0 0.0
      %1155 = vmatprep.subr.mxu0 0.0
      %1156 = vmatpush1.msra.mxu0 0.0
      %1157 = vmatprep.subr.mxu0 0.0
      %1158 = vmatpush1.msra.mxu0 0.0
      %1159 = vmatprep.subr.mxu0 0.0
      %1160 = vmatpush1.msra.mxu0 0.0
      %1161 = vmatprep.subr.mxu0 0.0
      %1162 = vmatpush1.msra.mxu0 0.0
      %1163 = vmatprep.subr.mxu0 0.0
      %1164 = vmatpush1.msra.mxu0 0.0
      %1165 = vmatprep.subr.mxu0 0.0
      %1166 = vmatpush1.msra.mxu0 0.0
      %1167 = vmatprep.subr.mxu0 0.0
      %1168 = vmatpush1.msra.mxu0 0.0
      %1169 = vmatprep.subr.mxu0 0.0
      %1170 = vmatpush1.msra.mxu0 0.0
      %1171 = vmatprep.subr.mxu0 0.0
      %1172 = vmatpush1.msra.mxu0 0.0
      %1173 = vmatprep.subr.mxu0 0.0
      %1174 = vmatpush1.msra.mxu0 0.0
      %1175 = vmatprep.subr.mxu0 0.0
      %1176 = vmatpush1.msra.mxu0 0.0
      %1177 = vmatprep.subr.mxu0 0.0
      %1178 = vmatpush1.msra.mxu0 0.0
      %1179 = vmatprep.subr.mxu0 0.0
      %1180 = vmatpush1.msra.mxu0 0.0
      %1181 = vmatprep.subr.mxu0 0.0
      %1182 = vmatpush1.msra.mxu0 0.0
      %1183 = vmatprep.subr.mxu0 0.0
      %1184 = vmatpush1.msra.mxu0 0.0
      %1185 = vmatprep.subr.mxu0 0.0
      %1186 = vmatpush1.msra.mxu0 0.0
      %1187 = vmatprep.mubr.f32.mxu0 0.0
      %1188 = vmatmul.mubr.f32.gmra.mrb[0].mxu0 %v1073
      %v1189 = vpop.f32.mrb[0].mxu0
      %v1190 = vadd.f32 %v994, %v1189
      %v1191 = vpop.f32.mrb[0].mxu0
      %1192 = vmatprep.mubr.f32.mxu0 0.0
      %1193 = vmatmul.mubr.f32.gmra.mrb[0].mxu0 %v1076
      %v1194 = vpop.f32.mrb[0].mxu0
      %v1195 = vadd.f32 %v999, %v1194
      %v1196 = vpop.f32.mrb[0].mxu0
      %1197 = vmatprep.mubr.f32.mxu0 0.0
      %1198 = vmatmul.mubr.f32.gmra.mrb[0].mxu0 %v1079
      %v1199 = vpop.f32.mrb[0].mxu0
      %v1200 = vadd.f32 %v1004, %v1199
      %v1201 = vpop.f32.mrb[0].mxu0
      %1202 = vmatprep.mubr.f32.mxu0 0.0
      %1203 = vmatmul.mubr.f32.gmra.mrb[0].mxu0 %v1082
      %v1204 = vpop.f32.mrb[0].mxu0
      %v1205 = vadd.f32 %v1009, %v1204
      %v1206 = vpop.f32.mrb[0].mxu0
      %1207 = vmatprep.mubr.f32.mxu0 0.0
      %1208 = vmatmul.mubr.f32.gmra.mrb[0].mxu0 %v1085
      %v1209 = vpop.f32.mrb[0].mxu0
      %v1210 = vadd.f32 %v1014, %v1209
      %v1211 = vpop.f32.mrb[0].mxu0
      %1212 = vmatprep.mubr.f32.mxu0 0.0
      %1213 = vmatmul.mubr.f32.gmra.mrb[0].mxu0 %v1088
      %v1214 = vpop.f32.mrb[0].mxu0
      %v1215 = vadd.f32 %v1019, %v1214
      %v1216 = vpop.f32.mrb[0].mxu0
      %1217 = vmatprep.mubr.f32.mxu0 0.0
      %1218 = vmatmul.mubr.f32.gmra.mrb[0].mxu0 %v1091
      %v1219 = vpop.f32.mrb[0].mxu0
      %v1220 = vadd.f32 %v1024, %v1219
      %v1221 = vpop.f32.mrb[0].mxu0
      %1222 = vmatprep.mubr.f32.mxu0 0.0
      %1223 = vmatmul.mubr.f32.gmra.mrb[0].mxu0 %v1094
      %v1224 = vpop.f32.mrb[0].mxu0
      %v1225 = vadd.f32 %v1029, %v1224
      %v1226 = vpop.f32.mrb[0].mxu0
      %1227 = vmatprep.mubr.f32.mxu0 0.0
      %1228 = vmatmul.mubr.f32.gmra.mrb[0].mxu0 %v1097
      %v1229 = vpop.f32.mrb[0].mxu0
      %v1230 = vadd.f32 %v1034, %v1229
      %v1231 = vpop.f32.mrb[0].mxu0
      %1232 = vmatprep.mubr.f32.mxu0 0.0
      %1233 = vmatmul.mubr.f32.gmra.mrb[0].mxu0 %v1100
      %v1234 = vpop.f32.mrb[0].mxu0
      %v1235 = vadd.f32 %v1039, %v1234
      %v1236 = vpop.f32.mrb[0].mxu0
      %1237 = vmatprep.mubr.f32.mxu0 0.0
      %1238 = vmatmul.mubr.f32.gmra.mrb[0].mxu0 %v1103
      %v1239 = vpop.f32.mrb[0].mxu0
      %v1240 = vadd.f32 %v1044, %v1239
      %v1241 = vpop.f32.mrb[0].mxu0
      %1242 = vmatprep.mubr.f32.mxu0 0.0
      %1243 = vmatmul.mubr.f32.gmra.mrb[0].mxu0 %v1106
      %v1244 = vpop.f32.mrb[0].mxu0
      %v1245 = vadd.f32 %v1049, %v1244
      %v1246 = vpop.f32.mrb[0].mxu0
      %1247 = vmatprep.mubr.f32.mxu0 0.0
      %1248 = vmatmul.mubr.f32.gmra.mrb[0].mxu0 %v1109
      %v1249 = vpop.f32.mrb[0].mxu0
      %v1250 = vadd.f32 %v1054, %v1249
      %v1251 = vpop.f32.mrb[0].mxu0
      %1252 = vmatprep.mubr.f32.mxu0 0.0
      %1253 = vmatmul.mubr.f32.gmra.mrb[0].mxu0 %v1112
      %v1254 = vpop.f32.mrb[0].mxu0
      %v1255 = vadd.f32 %v1059, %v1254
      %v1256 = vpop.f32.mrb[0].mxu0
      %1257 = vmatprep.mubr.f32.mxu0 0.0
      %1258 = vmatmul.mubr.f32.gmra.mrb[0].mxu0 %v1115
      %v1259 = vpop.f32.mrb[0].mxu0
      %v1260 = vadd.f32 %v1064, %v1259
      %v1261 = vpop.f32.mrb[0].mxu0
      %1262 = vmatprep.mubr.f32.mxu0 0.0
      %1263 = vmatmul.mubr.f32.gmra.mrb[0].mxu0 %v1118
      %v1264 = vpop.f32.mrb[0].mxu0
      %v1265 = vadd.f32 %v1069, %v1264
      %v1266 = vpop.f32.mrb[0].mxu0
      %1267 = vdwg.mxu0
      %v1268 = vld [vmem:[#allocation2 + $0x9] sm:$0xff]
      %v1269 = vld [vmem:[#allocation2 + $0x11] sm:$0xff]
      %v1270 = vld [vmem:[#allocation2 + $0x19] sm:$0xff]
      %v1271 = vld [vmem:[#allocation2 + $0x21] sm:$0xff]
      %v1272 = vld [vmem:[#allocation2 + $0x29] sm:$0xff]
      %v1273 = vld [vmem:[#allocation2 + $0x31] sm:$0xff]
      %v1274 = vld [vmem:[#allocation2 + $0x39] sm:$0xff]
      %v1275 = vld [vmem:[#allocation2 + $0x41] sm:$0xff]
      %v1276 = vld [vmem:[#allocation2 + $0x49] sm:$0xff]
      %v1277 = vld [vmem:[#allocation2 + $0x51] sm:$0xff]
      %v1278 = vld [vmem:[#allocation2 + $0x59] sm:$0xff]
      %v1279 = vld [vmem:[#allocation2 + $0x61] sm:$0xff]
      %v1280 = vld [vmem:[#allocation2 + $0x69] sm:$0xff]
      %v1281 = vld [vmem:[#allocation2 + $0x71] sm:$0xff]
      %v1282 = vld [vmem:[#allocation2 + $0x79] sm:$0xff]
      %v1283 = vld [vmem:[#allocation2 + $0x81] sm:$0xff]
      %v1284 = vsel %vm776, 1, 0
      %v1285 = vsel %vm777, 1, 0
      %v1286 = vsel %vm778, 1, 0
      %v1287 = vsel %vm779, 1, 0
      %v1288 = vsel %vm780, 1, 0
      %v1289 = vsel %vm781, 1, 0
      %v1290 = vsel %vm782, 1, 0
      %v1291 = vsel %vm783, 1, 0
      %v1292 = vsel %vm784, 1, 0
      %v1293 = vsel %vm785, 1, 0
      %v1294 = vsel %vm786, 1, 0
      %v1295 = vsel %vm787, 1, 0
      %v1296 = vsel %vm788, 1, 0
      %v1297 = vsel %vm789, 1, 0
      %v1298 = vsel %vm790, 1, 0
      %v1299 = vsel %vm791, 1, 0
      %vm1300 = vcmp.eq.s32.totalorder %v1284, 1
      %vm1301 = vcmp.eq.s32.totalorder %v1285, 1
      %vm1302 = vcmp.eq.s32.totalorder %v1286, 1
      %vm1303 = vcmp.eq.s32.totalorder %v1287, 1
      %vm1304 = vcmp.eq.s32.totalorder %v1288, 1
      %vm1305 = vcmp.eq.s32.totalorder %v1289, 1
      %vm1306 = vcmp.eq.s32.totalorder %v1290, 1
      %vm1307 = vcmp.eq.s32.totalorder %v1291, 1
      %vm1308 = vcmp.eq.s32.totalorder %v1292, 1
      %vm1309 = vcmp.eq.s32.totalorder %v1293, 1
      %vm1310 = vcmp.eq.s32.totalorder %v1294, 1
      %vm1311 = vcmp.eq.s32.totalorder %v1295, 1
      %vm1312 = vcmp.eq.s32.totalorder %v1296, 1
      %vm1313 = vcmp.eq.s32.totalorder %v1297, 1
      %vm1314 = vcmp.eq.s32.totalorder %v1298, 1
      %vm1315 = vcmp.eq.s32.totalorder %v1299, 1
      %v1316 = vsel %vm1300, %v1268, 0.0
      %v1317 = vsel %vm1301, %v1269, 0.0
      %v1318 = vsel %vm1302, %v1270, 0.0
      %v1319 = vsel %vm1303, %v1271, 0.0
      %v1320 = vsel %vm1304, %v1272, 0.0
      %v1321 = vsel %vm1305, %v1273, 0.0
      %v1322 = vsel %vm1306, %v1274, 0.0
      %v1323 = vsel %vm1307, %v1275, 0.0
      %v1324 = vsel %vm1308, %v1276, 0.0
      %v1325 = vsel %vm1309, %v1277, 0.0
      %v1326 = vsel %vm1310, %v1278, 0.0
      %v1327 = vsel %vm1311, %v1279, 0.0
      %v1328 = vsel %vm1312, %v1280, 0.0
      %v1329 = vsel %vm1313, %v1281, 0.0
      %v1330 = vsel %vm1314, %v1282, 0.0
      %v1331 = vsel %vm1315, %v1283, 0.0
      %s1332 = scalar_lea.vmem %s4, 8
      %v1333 = vld [vmem:[%s1332] sm:$0xf]
      %v1335 = vsel %vm487, %v1316, 0
      %v1338 = vsel %vm487, %v1317, 0
      %v1341 = vsel %vm487, %v1318, 0
      %v1344 = vsel %vm487, %v1319, 0
      %v1347 = vsel %vm487, %v1320, 0
      %v1350 = vsel %vm487, %v1321, 0
      %v1353 = vsel %vm487, %v1322, 0
      %v1356 = vsel %vm487, %v1323, 0
      %v1359 = vsel %vm487, %v1324, 0
      %v1362 = vsel %vm487, %v1325, 0
      %v1365 = vsel %vm487, %v1326, 0
      %v1368 = vsel %vm487, %v1327, 0
      %v1371 = vsel %vm487, %v1328, 0
      %v1374 = vsel %vm487, %v1329, 0
      %v1377 = vsel %vm487, %v1330, 0
      %v1380 = vsel %vm487, %v1331, 0
      %v1383 = vsel %vm923, %v1333, 0
      %1385 = vmatprep.subr.mxu0 0.0
      %1386 = vmatpush1.msra.mxu0 %v1383
      %1387 = vmatprep.subr.mxu0 0.0
      %1388 = vmatpush1.msra.mxu0 0.0
      %1389 = vmatprep.subr.mxu0 0.0
      %1390 = vmatpush1.msra.mxu0 0.0
      %1391 = vmatprep.subr.mxu0 0.0
      %1392 = vmatpush1.msra.mxu0 0.0
      %1393 = vmatprep.subr.mxu0 0.0
      %1394 = vmatpush1.msra.mxu0 0.0
      %1395 = vmatprep.subr.mxu0 0.0
      %1396 = vmatpush1.msra.mxu0 0.0
      %1397 = vmatprep.subr.mxu0 0.0
      %1398 = vmatpush1.msra.mxu0 0.0
      %1399 = vmatprep.subr.mxu0 0.0
      %1400 = vmatpush1.msra.mxu0 0.0
      %1401 = vmatprep.subr.mxu0 0.0
      %1402 = vmatpush1.msra.mxu0 0.0
      %1403 = vmatprep.subr.mxu0 0.0
      %1404 = vmatpush1.msra.mxu0 0.0
      %1405 = vmatprep.subr.mxu0 0.0
      %1406 = vmatpush1.msra.mxu0 0.0
      %1407 = vmatprep.subr.mxu0 0.0
      %1408 = vmatpush1.msra.mxu0 0.0
      %1409 = vmatprep.subr.mxu0 0.0
      %1410 = vmatpush1.msra.mxu0 0.0
      %1411 = vmatprep.subr.mxu0 0.0
      %1412 = vmatpush1.msra.mxu0 0.0
      %1413 = vmatprep.subr.mxu0 0.0
      %1414 = vmatpush1.msra.mxu0 0.0
      %1415 = vmatprep.subr.mxu0 0.0
      %1416 = vmatpush1.msra.mxu0 0.0
      %1417 = vmatprep.subr.mxu0 0.0
      %1418 = vmatpush1.msra.mxu0 0.0
      %1419 = vmatprep.subr.mxu0 0.0
      %1420 = vmatpush1.msra.mxu0 0.0
      %1421 = vmatprep.subr.mxu0 0.0
      %1422 = vmatpush1.msra.mxu0 0.0
      %1423 = vmatprep.subr.mxu0 0.0
      %1424 = vmatpush1.msra.mxu0 0.0
      %1425 = vmatprep.subr.mxu0 0.0
      %1426 = vmatpush1.msra.mxu0 0.0
      %1427 = vmatprep.subr.mxu0 0.0
      %1428 = vmatpush1.msra.mxu0 0.0
      %1429 = vmatprep.subr.mxu0 0.0
      %1430 = vmatpush1.msra.mxu0 0.0
      %1431 = vmatprep.subr.mxu0 0.0
      %1432 = vmatpush1.msra.mxu0 0.0
      %1433 = vmatprep.subr.mxu0 0.0
      %1434 = vmatpush1.msra.mxu0 0.0
      %1435 = vmatprep.subr.mxu0 0.0
      %1436 = vmatpush1.msra.mxu0 0.0
      %1437 = vmatprep.subr.mxu0 0.0
      %1438 = vmatpush1.msra.mxu0 0.0
      %1439 = vmatprep.subr.mxu0 0.0
      %1440 = vmatpush1.msra.mxu0 0.0
      %1441 = vmatprep.subr.mxu0 0.0
      %1442 = vmatpush1.msra.mxu0 0.0
      %1443 = vmatprep.subr.mxu0 0.0
      %1444 = vmatpush1.msra.mxu0 0.0
      %1445 = vmatprep.subr.mxu0 0.0
      %1446 = vmatpush1.msra.mxu0 0.0
      %1447 = vmatprep.subr.mxu0 0.0
      %1448 = vmatpush1.msra.mxu0 0.0
      %1449 = vmatprep.mubr.f32.mxu0 0.0
      %1450 = vmatmul.mubr.f32.gmra.mrb[0].mxu0 %v1335
      %v1451 = vpop.f32.mrb[0].mxu0
      %v1452 = vadd.f32 0.0, %v1451
      %v1453 = vpop.f32.mrb[0].mxu0
      %1454 = vmatprep.mubr.f32.mxu0 0.0
      %1455 = vmatmul.mubr.f32.gmra.mrb[0].mxu0 %v1338
      %v1456 = vpop.f32.mrb[0].mxu0
      %v1457 = vadd.f32 0.0, %v1456
      %v1458 = vpop.f32.mrb[0].mxu0
      %1459 = vmatprep.mubr.f32.mxu0 0.0
      %1460 = vmatmul.mubr.f32.gmra.mrb[0].mxu0 %v1341
      %v1461 = vpop.f32.mrb[0].mxu0
      %v1462 = vadd.f32 0.0, %v1461
      %v1463 = vpop.f32.mrb[0].mxu0
      %1464 = vmatprep.mubr.f32.mxu0 0.0
      %1465 = vmatmul.mubr.f32.gmra.mrb[0].mxu0 %v1344
      %v1466 = vpop.f32.mrb[0].mxu0
      %v1467 = vadd.f32 0.0, %v1466
      %v1468 = vpop.f32.mrb[0].mxu0
      %1469 = vmatprep.mubr.f32.mxu0 0.0
      %1470 = vmatmul.mubr.f32.gmra.mrb[0].mxu0 %v1347
      %v1471 = vpop.f32.mrb[0].mxu0
      %v1472 = vadd.f32 0.0, %v1471
      %v1473 = vpop.f32.mrb[0].mxu0
      %1474 = vmatprep.mubr.f32.mxu0 0.0
      %1475 = vmatmul.mubr.f32.gmra.mrb[0].mxu0 %v1350
      %v1476 = vpop.f32.mrb[0].mxu0
      %v1477 = vadd.f32 0.0, %v1476
      %v1478 = vpop.f32.mrb[0].mxu0
      %1479 = vmatprep.mubr.f32.mxu0 0.0
      %1480 = vmatmul.mubr.f32.gmra.mrb[0].mxu0 %v1353
      %v1481 = vpop.f32.mrb[0].mxu0
      %v1482 = vadd.f32 0.0, %v1481
      %v1483 = vpop.f32.mrb[0].mxu0
      %1484 = vmatprep.mubr.f32.mxu0 0.0
      %1485 = vmatmul.mubr.f32.gmra.mrb[0].mxu0 %v1356
      %v1486 = vpop.f32.mrb[0].mxu0
      %v1487 = vadd.f32 0.0, %v1486
      %v1488 = vpop.f32.mrb[0].mxu0
      %1489 = vmatprep.mubr.f32.mxu0 0.0
      %1490 = vmatmul.mubr.f32.gmra.mrb[0].mxu0 %v1359
      %v1491 = vpop.f32.mrb[0].mxu0
      %v1492 = vadd.f32 0.0, %v1491
      %v1493 = vpop.f32.mrb[0].mxu0
      %1494 = vmatprep.mubr.f32.mxu0 0.0
      %1495 = vmatmul.mubr.f32.gmra.mrb[0].mxu0 %v1362
      %v1496 = vpop.f32.mrb[0].mxu0
      %v1497 = vadd.f32 0.0, %v1496
      %v1498 = vpop.f32.mrb[0].mxu0
      %1499 = vmatprep.mubr.f32.mxu0 0.0
      %1500 = vmatmul.mubr.f32.gmra.mrb[0].mxu0 %v1365
      %v1501 = vpop.f32.mrb[0].mxu0
      %v1502 = vadd.f32 0.0, %v1501
      %v1503 = vpop.f32.mrb[0].mxu0
      %1504 = vmatprep.mubr.f32.mxu0 0.0
      %1505 = vmatmul.mubr.f32.gmra.mrb[0].mxu0 %v1368
      %v1506 = vpop.f32.mrb[0].mxu0
      %v1507 = vadd.f32 0.0, %v1506
      %v1508 = vpop.f32.mrb[0].mxu0
      %1509 = vmatprep.mubr.f32.mxu0 0.0
      %1510 = vmatmul.mubr.f32.gmra.mrb[0].mxu0 %v1371
      %v1511 = vpop.f32.mrb[0].mxu0
      %v1512 = vadd.f32 0.0, %v1511
      %v1513 = vpop.f32.mrb[0].mxu0
      %1514 = vmatprep.mubr.f32.mxu0 0.0
      %1515 = vmatmul.mubr.f32.gmra.mrb[0].mxu0 %v1374
      %v1516 = vpop.f32.mrb[0].mxu0
      %v1517 = vadd.f32 0.0, %v1516
      %v1518 = vpop.f32.mrb[0].mxu0
      %1519 = vmatprep.mubr.f32.mxu0 0.0
      %1520 = vmatmul.mubr.f32.gmra.mrb[0].mxu0 %v1377
      %v1521 = vpop.f32.mrb[0].mxu0
      %v1522 = vadd.f32 0.0, %v1521
      %v1523 = vpop.f32.mrb[0].mxu0
      %1524 = vmatprep.mubr.f32.mxu0 0.0
      %1525 = vmatmul.mubr.f32.gmra.mrb[0].mxu0 %v1380
      %v1526 = vpop.f32.mrb[0].mxu0
      %v1527 = vadd.f32 0.0, %v1526
      %v1528 = vpop.f32.mrb[0].mxu0
      %1529 = vdwg.mxu0
      %v1530 = vadd.f32 %v1190, %v1452
      %v1531 = vadd.f32 %v1195, %v1457
      %v1532 = vadd.f32 %v1200, %v1462
      %v1533 = vadd.f32 %v1205, %v1467
      %v1534 = vadd.f32 %v1210, %v1472
      %v1535 = vadd.f32 %v1215, %v1477
      %v1536 = vadd.f32 %v1220, %v1482
      %v1537 = vadd.f32 %v1225, %v1487
      %v1538 = vadd.f32 %v1230, %v1492
      %v1539 = vadd.f32 %v1235, %v1497
      %v1540 = vadd.f32 %v1240, %v1502
      %v1541 = vadd.f32 %v1245, %v1507
      %v1542 = vadd.f32 %v1250, %v1512
      %v1543 = vadd.f32 %v1255, %v1517
      %v1544 = vadd.f32 %v1260, %v1522
      %v1545 = vadd.f32 %v1265, %v1527
      %v1546 = vld [vmem:[#allocation2 + $0x17] sm:$0xff]
      %v1547 = vld [vmem:[#allocation2 + $0x1f] sm:$0xff]
      %v1548 = vld [vmem:[#allocation2 + $0x27] sm:$0xff]
      %v1549 = vld [vmem:[#allocation2 + $0x2f] sm:$0xff]
      %v1550 = vld [vmem:[#allocation2 + $0x37] sm:$0xff]
      %v1551 = vld [vmem:[#allocation2 + $0x3f] sm:$0xff]
      %v1552 = vld [vmem:[#allocation2 + $0x47] sm:$0xff]
      %v1553 = vld [vmem:[#allocation2 + $0x4f] sm:$0xff]
      %v1554 = vld [vmem:[#allocation2 + $0x57] sm:$0xff]
      %v1555 = vld [vmem:[#allocation2 + $0x5f] sm:$0xff]
      %v1556 = vld [vmem:[#allocation2 + $0x67] sm:$0xff]
      %v1557 = vld [vmem:[#allocation2 + $0x6f] sm:$0xff]
      %v1558 = vld [vmem:[#allocation2 + $0x77] sm:$0xff]
      %v1559 = vld [vmem:[#allocation2 + $0x7f] sm:$0xff]
      %v1560 = vld [vmem:[#allocation2 + $0x87] sm:$0xff]
      %v1561 = vld [vmem:[#allocation2 + $0x8f] sm:$0xff]
      %v1562 = vsel %vm824, %v1546, 0.0
      %v1563 = vsel %vm825, %v1547, 0.0
      %v1564 = vsel %vm826, %v1548, 0.0
      %v1565 = vsel %vm827, %v1549, 0.0
      %v1566 = vsel %vm828, %v1550, 0.0
      %v1567 = vsel %vm829, %v1551, 0.0
      %v1568 = vsel %vm830, %v1552, 0.0
      %v1569 = vsel %vm831, %v1553, 0.0
      %v1570 = vsel %vm832, %v1554, 0.0
      %v1571 = vsel %vm833, %v1555, 0.0
      %v1572 = vsel %vm834, %v1556, 0.0
      %v1573 = vsel %vm835, %v1557, 0.0
      %v1574 = vsel %vm836, %v1558, 0.0
      %v1575 = vsel %vm837, %v1559, 0.0
      %v1576 = vsel %vm838, %v1560, 0.0
      %v1577 = vsel %vm839, %v1561, 0.0
      %s1578 = scalar_lea.vmem %s4, 12
      %v1579 = vld [vmem:[%s1578] sm:$0xf]
      %v1581 = vsel %vm487, %v1562, 0
      %v1584 = vsel %vm487, %v1563, 0
      %v1587 = vsel %vm487, %v1564, 0
      %v1590 = vsel %vm487, %v1565, 0
      %v1593 = vsel %vm487, %v1566, 0
      %v1596 = vsel %vm487, %v1567, 0
      %v1599 = vsel %vm487, %v1568, 0
      %v1602 = vsel %vm487, %v1569, 0
      %v1605 = vsel %vm487, %v1570, 0
      %v1608 = vsel %vm487, %v1571, 0
      %v1611 = vsel %vm487, %v1572, 0
      %v1614 = vsel %vm487, %v1573, 0
      %v1617 = vsel %vm487, %v1574, 0
      %v1620 = vsel %vm487, %v1575, 0
      %v1623 = vsel %vm487, %v1576, 0
      %v1626 = vsel %vm487, %v1577, 0
      %v1629 = vsel %vm923, %v1579, 0
      %1631 = vmatprep.subr.mxu0 0.0
      %1632 = vmatpush1.msra.mxu0 %v1629
      %1633 = vmatprep.subr.mxu0 0.0
      %1634 = vmatpush1.msra.mxu0 0.0
      %1635 = vmatprep.subr.mxu0 0.0
      %1636 = vmatpush1.msra.mxu0 0.0
      %1637 = vmatprep.subr.mxu0 0.0
      %1638 = vmatpush1.msra.mxu0 0.0
      %1639 = vmatprep.subr.mxu0 0.0
      %1640 = vmatpush1.msra.mxu0 0.0
      %1641 = vmatprep.subr.mxu0 0.0
      %1642 = vmatpush1.msra.mxu0 0.0
      %1643 = vmatprep.subr.mxu0 0.0
      %1644 = vmatpush1.msra.mxu0 0.0
      %1645 = vmatprep.subr.mxu0 0.0
      %1646 = vmatpush1.msra.mxu0 0.0
      %1647 = vmatprep.subr.mxu0 0.0
      %1648 = vmatpush1.msra.mxu0 0.0
      %1649 = vmatprep.subr.mxu0 0.0
      %1650 = vmatpush1.msra.mxu0 0.0
      %1651 = vmatprep.subr.mxu0 0.0
      %1652 = vmatpush1.msra.mxu0 0.0
      %1653 = vmatprep.subr.mxu0 0.0
      %1654 = vmatpush1.msra.mxu0 0.0
      %1655 = vmatprep.subr.mxu0 0.0
      %1656 = vmatpush1.msra.mxu0 0.0
      %1657 = vmatprep.subr.mxu0 0.0
      %1658 = vmatpush1.msra.mxu0 0.0
      %1659 = vmatprep.subr.mxu0 0.0
      %1660 = vmatpush1.msra.mxu0 0.0
      %1661 = vmatprep.subr.mxu0 0.0
      %1662 = vmatpush1.msra.mxu0 0.0
      %1663 = vmatprep.subr.mxu0 0.0
      %1664 = vmatpush1.msra.mxu0 0.0
      %1665 = vmatprep.subr.mxu0 0.0
      %1666 = vmatpush1.msra.mxu0 0.0
      %1667 = vmatprep.subr.mxu0 0.0
      %1668 = vmatpush1.msra.mxu0 0.0
      %1669 = vmatprep.subr.mxu0 0.0
      %1670 = vmatpush1.msra.mxu0 0.0
      %1671 = vmatprep.subr.mxu0 0.0
      %1672 = vmatpush1.msra.mxu0 0.0
      %1673 = vmatprep.subr.mxu0 0.0
      %1674 = vmatpush1.msra.mxu0 0.0
      %1675 = vmatprep.subr.mxu0 0.0
      %1676 = vmatpush1.msra.mxu0 0.0
      %1677 = vmatprep.subr.mxu0 0.0
      %1678 = vmatpush1.msra.mxu0 0.0
      %1679 = vmatprep.subr.mxu0 0.0
      %1680 = vmatpush1.msra.mxu0 0.0
      %1681 = vmatprep.subr.mxu0 0.0
      %1682 = vmatpush1.msra.mxu0 0.0
      %1683 = vmatprep.subr.mxu0 0.0
      %1684 = vmatpush1.msra.mxu0 0.0
      %1685 = vmatprep.subr.mxu0 0.0
      %1686 = vmatpush1.msra.mxu0 0.0
      %1687 = vmatprep.subr.mxu0 0.0
      %1688 = vmatpush1.msra.mxu0 0.0
      %1689 = vmatprep.subr.mxu0 0.0
      %1690 = vmatpush1.msra.mxu0 0.0
      %1691 = vmatprep.subr.mxu0 0.0
      %1692 = vmatpush1.msra.mxu0 0.0
      %1693 = vmatprep.subr.mxu0 0.0
      %1694 = vmatpush1.msra.mxu0 0.0
      %1695 = vmatprep.mubr.f32.mxu0 0.0
      %1696 = vmatmul.mubr.f32.gmra.mrb[0].mxu0 %v1581
      %v1697 = vpop.f32.mrb[0].mxu0
      %v1698 = vadd.f32 0.0, %v1697
      %v1699 = vpop.f32.mrb[0].mxu0
      %1700 = vmatprep.mubr.f32.mxu0 0.0
      %1701 = vmatmul.mubr.f32.gmra.mrb[0].mxu0 %v1584
      %v1702 = vpop.f32.mrb[0].mxu0
      %v1703 = vadd.f32 0.0, %v1702
      %v1704 = vpop.f32.mrb[0].mxu0
      %1705 = vmatprep.mubr.f32.mxu0 0.0
      %1706 = vmatmul.mubr.f32.gmra.mrb[0].mxu0 %v1587
      %v1707 = vpop.f32.mrb[0].mxu0
      %v1708 = vadd.f32 0.0, %v1707
      %v1709 = vpop.f32.mrb[0].mxu0
      %1710 = vmatprep.mubr.f32.mxu0 0.0
      %1711 = vmatmul.mubr.f32.gmra.mrb[0].mxu0 %v1590
      %v1712 = vpop.f32.mrb[0].mxu0
      %v1713 = vadd.f32 0.0, %v1712
      %v1714 = vpop.f32.mrb[0].mxu0
      %1715 = vmatprep.mubr.f32.mxu0 0.0
      %1716 = vmatmul.mubr.f32.gmra.mrb[0].mxu0 %v1593
      %v1717 = vpop.f32.mrb[0].mxu0
      %v1718 = vadd.f32 0.0, %v1717
      %v1719 = vpop.f32.mrb[0].mxu0
      %1720 = vmatprep.mubr.f32.mxu0 0.0
      %1721 = vmatmul.mubr.f32.gmra.mrb[0].mxu0 %v1596
      %v1722 = vpop.f32.mrb[0].mxu0
      %v1723 = vadd.f32 0.0, %v1722
      %v1724 = vpop.f32.mrb[0].mxu0
      %1725 = vmatprep.mubr.f32.mxu0 0.0
      %1726 = vmatmul.mubr.f32.gmra.mrb[0].mxu0 %v1599
      %v1727 = vpop.f32.mrb[0].mxu0
      %v1728 = vadd.f32 0.0, %v1727
      %v1729 = vpop.f32.mrb[0].mxu0
      %1730 = vmatprep.mubr.f32.mxu0 0.0
      %1731 = vmatmul.mubr.f32.gmra.mrb[0].mxu0 %v1602
      %v1732 = vpop.f32.mrb[0].mxu0
      %v1733 = vadd.f32 0.0, %v1732
      %v1734 = vpop.f32.mrb[0].mxu0
      %1735 = vmatprep.mubr.f32.mxu0 0.0
      %1736 = vmatmul.mubr.f32.gmra.mrb[0].mxu0 %v1605
      %v1737 = vpop.f32.mrb[0].mxu0
      %v1738 = vadd.f32 0.0, %v1737
      %v1739 = vpop.f32.mrb[0].mxu0
      %1740 = vmatprep.mubr.f32.mxu0 0.0
      %1741 = vmatmul.mubr.f32.gmra.mrb[0].mxu0 %v1608
      %v1742 = vpop.f32.mrb[0].mxu0
      %v1743 = vadd.f32 0.0, %v1742
      %v1744 = vpop.f32.mrb[0].mxu0
      %1745 = vmatprep.mubr.f32.mxu0 0.0
      %1746 = vmatmul.mubr.f32.gmra.mrb[0].mxu0 %v1611
      %v1747 = vpop.f32.mrb[0].mxu0
      %v1748 = vadd.f32 0.0, %v1747
      %v1749 = vpop.f32.mrb[0].mxu0
      %1750 = vmatprep.mubr.f32.mxu0 0.0
      %1751 = vmatmul.mubr.f32.gmra.mrb[0].mxu0 %v1614
      %v1752 = vpop.f32.mrb[0].mxu0
      %v1753 = vadd.f32 0.0, %v1752
      %v1754 = vpop.f32.mrb[0].mxu0
      %1755 = vmatprep.mubr.f32.mxu0 0.0
      %1756 = vmatmul.mubr.f32.gmra.mrb[0].mxu0 %v1617
      %v1757 = vpop.f32.mrb[0].mxu0
      %v1758 = vadd.f32 0.0, %v1757
      %v1759 = vpop.f32.mrb[0].mxu0
      %1760 = vmatprep.mubr.f32.mxu0 0.0
      %1761 = vmatmul.mubr.f32.gmra.mrb[0].mxu0 %v1620
      %v1762 = vpop.f32.mrb[0].mxu0
      %v1763 = vadd.f32 0.0, %v1762
      %v1764 = vpop.f32.mrb[0].mxu0
      %1765 = vmatprep.mubr.f32.mxu0 0.0
      %1766 = vmatmul.mubr.f32.gmra.mrb[0].mxu0 %v1623
      %v1767 = vpop.f32.mrb[0].mxu0
      %v1768 = vadd.f32 0.0, %v1767
      %v1769 = vpop.f32.mrb[0].mxu0
      %1770 = vmatprep.mubr.f32.mxu0 0.0
      %1771 = vmatmul.mubr.f32.gmra.mrb[0].mxu0 %v1626
      %v1772 = vpop.f32.mrb[0].mxu0
      %v1773 = vadd.f32 0.0, %v1772
      %v1774 = vpop.f32.mrb[0].mxu0
      %1775 = vdwg.mxu0
      %v1776 = vadd.f32 %v1530, %v1698
      %v1777 = vadd.f32 %v1531, %v1703
      %v1778 = vadd.f32 %v1532, %v1708
      %v1779 = vadd.f32 %v1533, %v1713
      %v1780 = vadd.f32 %v1534, %v1718
      %v1781 = vadd.f32 %v1535, %v1723
      %v1782 = vadd.f32 %v1536, %v1728
      %v1783 = vadd.f32 %v1537, %v1733
      %v1784 = vadd.f32 %v1538, %v1738
      %v1785 = vadd.f32 %v1539, %v1743
      %v1786 = vadd.f32 %v1540, %v1748
      %v1787 = vadd.f32 %v1541, %v1753
      %v1788 = vadd.f32 %v1542, %v1758
      %v1789 = vadd.f32 %v1543, %v1763
      %v1790 = vadd.f32 %v1544, %v1768
      %v1791 = vadd.f32 %v1545, %v1773
      %v1792 = vld [vmem:[#allocation2 + $0x18] sm:$0xff]
      %v1793 = vld [vmem:[#allocation2 + $0x20] sm:$0xff]
      %v1794 = vld [vmem:[#allocation2 + $0x28] sm:$0xff]
      %v1795 = vld [vmem:[#allocation2 + $0x30] sm:$0xff]
      %v1796 = vld [vmem:[#allocation2 + $0x38] sm:$0xff]
      %v1797 = vld [vmem:[#allocation2 + $0x40] sm:$0xff]
      %v1798 = vld [vmem:[#allocation2 + $0x48] sm:$0xff]
      %v1799 = vld [vmem:[#allocation2 + $0x50] sm:$0xff]
      %v1800 = vld [vmem:[#allocation2 + $0x58] sm:$0xff]
      %v1801 = vld [vmem:[#allocation2 + $0x60] sm:$0xff]
      %v1802 = vld [vmem:[#allocation2 + $0x68] sm:$0xff]
      %v1803 = vld [vmem:[#allocation2 + $0x70] sm:$0xff]
      %v1804 = vld [vmem:[#allocation2 + $0x78] sm:$0xff]
      %v1805 = vld [vmem:[#allocation2 + $0x80] sm:$0xff]
      %v1806 = vld [vmem:[#allocation2 + $0x88] sm:$0xff]
      %v1807 = vld [vmem:[#allocation2 + $0x90] sm:$0xff]
      %s1808 = scalar_lea.vmem %s4, 16
      %v1809 = vld [vmem:[%s1808] sm:$0xf]
      %v1811 = vsel %vm487, %v1792, 0
      %v1814 = vsel %vm487, %v1793, 0
      %v1817 = vsel %vm487, %v1794, 0
      %v1820 = vsel %vm487, %v1795, 0
      %v1823 = vsel %vm487, %v1796, 0
      %v1826 = vsel %vm487, %v1797, 0
      %v1829 = vsel %vm487, %v1798, 0
      %v1832 = vsel %vm487, %v1799, 0
      %v1835 = vsel %vm487, %v1800, 0
      %v1838 = vsel %vm487, %v1801, 0
      %v1841 = vsel %vm487, %v1802, 0
      %v1844 = vsel %vm487, %v1803, 0
      %v1847 = vsel %vm487, %v1804, 0
      %v1850 = vsel %vm487, %v1805, 0
      %v1853 = vsel %vm487, %v1806, 0
      %v1856 = vsel %vm487, %v1807, 0
      %v1859 = vsel %vm923, %v1809, 0
      %1861 = vmatprep.subr.mxu0 0.0
      %1862 = vmatpush1.msra.mxu0 %v1859
      %1863 = vmatprep.subr.mxu0 0.0
      %1864 = vmatpush1.msra.mxu0 0.0
      %1865 = vmatprep.subr.mxu0 0.0
      %1866 = vmatpush1.msra.mxu0 0.0
      %1867 = vmatprep.subr.mxu0 0.0
      %1868 = vmatpush1.msra.mxu0 0.0
      %1869 = vmatprep.subr.mxu0 0.0
      %1870 = vmatpush1.msra.mxu0 0.0
      %1871 = vmatprep.subr.mxu0 0.0
      %1872 = vmatpush1.msra.mxu0 0.0
      %1873 = vmatprep.subr.mxu0 0.0
      %1874 = vmatpush1.msra.mxu0 0.0
      %1875 = vmatprep.subr.mxu0 0.0
      %1876 = vmatpush1.msra.mxu0 0.0
      %1877 = vmatprep.subr.mxu0 0.0
      %1878 = vmatpush1.msra.mxu0 0.0
      %1879 = vmatprep.subr.mxu0 0.0
      %1880 = vmatpush1.msra.mxu0 0.0
      %1881 = vmatprep.subr.mxu0 0.0
      %1882 = vmatpush1.msra.mxu0 0.0
      %1883 = vmatprep.subr.mxu0 0.0
      %1884 = vmatpush1.msra.mxu0 0.0
      %1885 = vmatprep.subr.mxu0 0.0
      %1886 = vmatpush1.msra.mxu0 0.0
      %1887 = vmatprep.subr.mxu0 0.0
      %1888 = vmatpush1.msra.mxu0 0.0
      %1889 = vmatprep.subr.mxu0 0.0
      %1890 = vmatpush1.msra.mxu0 0.0
      %1891 = vmatprep.subr.mxu0 0.0
      %1892 = vmatpush1.msra.mxu0 0.0
      %1893 = vmatprep.subr.mxu0 0.0
      %1894 = vmatpush1.msra.mxu0 0.0
      %1895 = vmatprep.subr.mxu0 0.0
      %1896 = vmatpush1.msra.mxu0 0.0
      %1897 = vmatprep.subr.mxu0 0.0
      %1898 = vmatpush1.msra.mxu0 0.0
      %1899 = vmatprep.subr.mxu0 0.0
      %1900 = vmatpush1.msra.mxu0 0.0
      %1901 = vmatprep.subr.mxu0 0.0
      %1902 = vmatpush1.msra.mxu0 0.0
      %1903 = vmatprep.subr.mxu0 0.0
      %1904 = vmatpush1.msra.mxu0 0.0
      %1905 = vmatprep.subr.mxu0 0.0
      %1906 = vmatpush1.msra.mxu0 0.0
      %1907 = vmatprep.subr.mxu0 0.0
      %1908 = vmatpush1.msra.mxu0 0.0
      %1909 = vmatprep.subr.mxu0 0.0
      %1910 = vmatpush1.msra.mxu0 0.0
      %1911 = vmatprep.subr.mxu0 0.0
      %1912 = vmatpush1.msra.mxu0 0.0
      %1913 = vmatprep.subr.mxu0 0.0
      %1914 = vmatpush1.msra.mxu0 0.0
      %1915 = vmatprep.subr.mxu0 0.0
      %1916 = vmatpush1.msra.mxu0 0.0
      %1917 = vmatprep.subr.mxu0 0.0
      %1918 = vmatpush1.msra.mxu0 0.0
      %1919 = vmatprep.subr.mxu0 0.0
      %1920 = vmatpush1.msra.mxu0 0.0
      %1921 = vmatprep.subr.mxu0 0.0
      %1922 = vmatpush1.msra.mxu0 0.0
      %1923 = vmatprep.subr.mxu0 0.0
      %1924 = vmatpush1.msra.mxu0 0.0
      %1925 = vmatprep.mubr.f32.mxu0 0.0
      %1926 = vmatmul.mubr.f32.gmra.mrb[0].mxu0 %v1811
      %v1927 = vpop.f32.mrb[0].mxu0
      %v1928 = vadd.f32 0.0, %v1927
      %v1929 = vpop.f32.mrb[0].mxu0
      %1930 = vmatprep.mubr.f32.mxu0 0.0
      %1931 = vmatmul.mubr.f32.gmra.mrb[0].mxu0 %v1814
      %v1932 = vpop.f32.mrb[0].mxu0
      %v1933 = vadd.f32 0.0, %v1932
      %v1934 = vpop.f32.mrb[0].mxu0
      %1935 = vmatprep.mubr.f32.mxu0 0.0
      %1936 = vmatmul.mubr.f32.gmra.mrb[0].mxu0 %v1817
      %v1937 = vpop.f32.mrb[0].mxu0
      %v1938 = vadd.f32 0.0, %v1937
      %v1939 = vpop.f32.mrb[0].mxu0
      %1940 = vmatprep.mubr.f32.mxu0 0.0
      %1941 = vmatmul.mubr.f32.gmra.mrb[0].mxu0 %v1820
      %v1942 = vpop.f32.mrb[0].mxu0
      %v1943 = vadd.f32 0.0, %v1942
      %v1944 = vpop.f32.mrb[0].mxu0
      %1945 = vmatprep.mubr.f32.mxu0 0.0
      %1946 = vmatmul.mubr.f32.gmra.mrb[0].mxu0 %v1823
      %v1947 = vpop.f32.mrb[0].mxu0
      %v1948 = vadd.f32 0.0, %v1947
      %v1949 = vpop.f32.mrb[0].mxu0
      %1950 = vmatprep.mubr.f32.mxu0 0.0
      %1951 = vmatmul.mubr.f32.gmra.mrb[0].mxu0 %v1826
      %v1952 = vpop.f32.mrb[0].mxu0
      %v1953 = vadd.f32 0.0, %v1952
      %v1954 = vpop.f32.mrb[0].mxu0
      %1955 = vmatprep.mubr.f32.mxu0 0.0
      %1956 = vmatmul.mubr.f32.gmra.mrb[0].mxu0 %v1829
      %v1957 = vpop.f32.mrb[0].mxu0
      %v1958 = vadd.f32 0.0, %v1957
      %v1959 = vpop.f32.mrb[0].mxu0
      %1960 = vmatprep.mubr.f32.mxu0 0.0
      %1961 = vmatmul.mubr.f32.gmra.mrb[0].mxu0 %v1832
      %v1962 = vpop.f32.mrb[0].mxu0
      %v1963 = vadd.f32 0.0, %v1962
      %v1964 = vpop.f32.mrb[0].mxu0
      %1965 = vmatprep.mubr.f32.mxu0 0.0
      %1966 = vmatmul.mubr.f32.gmra.mrb[0].mxu0 %v1835
      %v1967 = vpop.f32.mrb[0].mxu0
      %v1968 = vadd.f32 0.0, %v1967
      %v1969 = vpop.f32.mrb[0].mxu0
      %1970 = vmatprep.mubr.f32.mxu0 0.0
      %1971 = vmatmul.mubr.f32.gmra.mrb[0].mxu0 %v1838
      %v1972 = vpop.f32.mrb[0].mxu0
      %v1973 = vadd.f32 0.0, %v1972
      %v1974 = vpop.f32.mrb[0].mxu0
      %1975 = vmatprep.mubr.f32.mxu0 0.0
      %1976 = vmatmul.mubr.f32.gmra.mrb[0].mxu0 %v1841
      %v1977 = vpop.f32.mrb[0].mxu0
      %v1978 = vadd.f32 0.0, %v1977
      %v1979 = vpop.f32.mrb[0].mxu0
      %1980 = vmatprep.mubr.f32.mxu0 0.0
      %1981 = vmatmul.mubr.f32.gmra.mrb[0].mxu0 %v1844
      %v1982 = vpop.f32.mrb[0].mxu0
      %v1983 = vadd.f32 0.0, %v1982
      %v1984 = vpop.f32.mrb[0].mxu0
      %1985 = vmatprep.mubr.f32.mxu0 0.0
      %1986 = vmatmul.mubr.f32.gmra.mrb[0].mxu0 %v1847
      %v1987 = vpop.f32.mrb[0].mxu0
      %v1988 = vadd.f32 0.0, %v1987
      %v1989 = vpop.f32.mrb[0].mxu0
      %1990 = vmatprep.mubr.f32.mxu0 0.0
      %1991 = vmatmul.mubr.f32.gmra.mrb[0].mxu0 %v1850
      %v1992 = vpop.f32.mrb[0].mxu0
      %v1993 = vadd.f32 0.0, %v1992
      %v1994 = vpop.f32.mrb[0].mxu0
      %1995 = vmatprep.mubr.f32.mxu0 0.0
      %1996 = vmatmul.mubr.f32.gmra.mrb[0].mxu0 %v1853
      %v1997 = vpop.f32.mrb[0].mxu0
      %v1998 = vadd.f32 0.0, %v1997
      %v1999 = vpop.f32.mrb[0].mxu0
      %2000 = vmatprep.mubr.f32.mxu0 0.0
      %2001 = vmatmul.mubr.f32.gmra.mrb[0].mxu0 %v1856
      %v2002 = vpop.f32.mrb[0].mxu0
      %v2003 = vadd.f32 0.0, %v2002
      %v2004 = vpop.f32.mrb[0].mxu0
      %2005 = vdwg.mxu0
      %v2006 = vadd.f32 %v1776, %v1928
      %v2007 = vadd.f32 %v1777, %v1933
      %v2008 = vadd.f32 %v1778, %v1938
      %v2009 = vadd.f32 %v1779, %v1943
      %v2010 = vadd.f32 %v1780, %v1948
      %v2011 = vadd.f32 %v1781, %v1953
      %v2012 = vadd.f32 %v1782, %v1958
      %v2013 = vadd.f32 %v1783, %v1963
      %v2014 = vadd.f32 %v1784, %v1968
      %v2015 = vadd.f32 %v1785, %v1973
      %v2016 = vadd.f32 %v1786, %v1978
      %v2017 = vadd.f32 %v1787, %v1983
      %v2018 = vadd.f32 %v1788, %v1988
      %v2019 = vadd.f32 %v1789, %v1993
      %v2020 = vadd.f32 %v1790, %v1998
      %v2021 = vadd.f32 %v1791, %v2003
      %v2022 = vld [vmem:[#allocation2 + $0x19] sm:$0xff]
      %v2023 = vld [vmem:[#allocation2 + $0x21] sm:$0xff]
      %v2024 = vld [vmem:[#allocation2 + $0x29] sm:$0xff]
      %v2025 = vld [vmem:[#allocation2 + $0x31] sm:$0xff]
      %v2026 = vld [vmem:[#allocation2 + $0x39] sm:$0xff]
      %v2027 = vld [vmem:[#allocation2 + $0x41] sm:$0xff]
      %v2028 = vld [vmem:[#allocation2 + $0x49] sm:$0xff]
      %v2029 = vld [vmem:[#allocation2 + $0x51] sm:$0xff]
      %v2030 = vld [vmem:[#allocation2 + $0x59] sm:$0xff]
      %v2031 = vld [vmem:[#allocation2 + $0x61] sm:$0xff]
      %v2032 = vld [vmem:[#allocation2 + $0x69] sm:$0xff]
      %v2033 = vld [vmem:[#allocation2 + $0x71] sm:$0xff]
      %v2034 = vld [vmem:[#allocation2 + $0x79] sm:$0xff]
      %v2035 = vld [vmem:[#allocation2 + $0x81] sm:$0xff]
      %v2036 = vld [vmem:[#allocation2 + $0x89] sm:$0xff]
      %v2037 = vld [vmem:[#allocation2 + $0x91] sm:$0xff]
      %v2038 = vsel %vm1300, %v2022, 0.0
      %v2039 = vsel %vm1301, %v2023, 0.0
      %v2040 = vsel %vm1302, %v2024, 0.0
      %v2041 = vsel %vm1303, %v2025, 0.0
      %v2042 = vsel %vm1304, %v2026, 0.0
      %v2043 = vsel %vm1305, %v2027, 0.0
      %v2044 = vsel %vm1306, %v2028, 0.0
      %v2045 = vsel %vm1307, %v2029, 0.0
      %v2046 = vsel %vm1308, %v2030, 0.0
      %v2047 = vsel %vm1309, %v2031, 0.0
      %v2048 = vsel %vm1310, %v2032, 0.0
      %v2049 = vsel %vm1311, %v2033, 0.0
      %v2050 = vsel %vm1312, %v2034, 0.0
      %v2051 = vsel %vm1313, %v2035, 0.0
      %v2052 = vsel %vm1314, %v2036, 0.0
      %v2053 = vsel %vm1315, %v2037, 0.0
      %s2054 = scalar_lea.vmem %s4, 20
      %v2055 = vld [vmem:[%s2054] sm:$0xf]
      %v2057 = vsel %vm487, %v2038, 0
      %v2060 = vsel %vm487, %v2039, 0
      %v2063 = vsel %vm487, %v2040, 0
      %v2066 = vsel %vm487, %v2041, 0
      %v2069 = vsel %vm487, %v2042, 0
      %v2072 = vsel %vm487, %v2043, 0
      %v2075 = vsel %vm487, %v2044, 0
      %v2078 = vsel %vm487, %v2045, 0
      %v2081 = vsel %vm487, %v2046, 0
      %v2084 = vsel %vm487, %v2047, 0
      %v2087 = vsel %vm487, %v2048, 0
      %v2090 = vsel %vm487, %v2049, 0
      %v2093 = vsel %vm487, %v2050, 0
      %v2096 = vsel %vm487, %v2051, 0
      %v2099 = vsel %vm487, %v2052, 0
      %v2102 = vsel %vm487, %v2053, 0
      %v2105 = vsel %vm923, %v2055, 0
      %2107 = vmatprep.subr.mxu0 0.0
      %2108 = vmatpush1.msra.mxu0 %v2105
      %2109 = vmatprep.subr.mxu0 0.0
      %2110 = vmatpush1.msra.mxu0 0.0
      %2111 = vmatprep.subr.mxu0 0.0
      %2112 = vmatpush1.msra.mxu0 0.0
      %2113 = vmatprep.subr.mxu0 0.0
      %2114 = vmatpush1.msra.mxu0 0.0
      %2115 = vmatprep.subr.mxu0 0.0
      %2116 = vmatpush1.msra.mxu0 0.0
      %2117 = vmatprep.subr.mxu0 0.0
      %2118 = vmatpush1.msra.mxu0 0.0
      %2119 = vmatprep.subr.mxu0 0.0
      %2120 = vmatpush1.msra.mxu0 0.0
      %2121 = vmatprep.subr.mxu0 0.0
      %2122 = vmatpush1.msra.mxu0 0.0
      %2123 = vmatprep.subr.mxu0 0.0
      %2124 = vmatpush1.msra.mxu0 0.0
      %2125 = vmatprep.subr.mxu0 0.0
      %2126 = vmatpush1.msra.mxu0 0.0
      %2127 = vmatprep.subr.mxu0 0.0
      %2128 = vmatpush1.msra.mxu0 0.0
      %2129 = vmatprep.subr.mxu0 0.0
      %2130 = vmatpush1.msra.mxu0 0.0
      %2131 = vmatprep.subr.mxu0 0.0
      %2132 = vmatpush1.msra.mxu0 0.0
      %2133 = vmatprep.subr.mxu0 0.0
      %2134 = vmatpush1.msra.mxu0 0.0
      %2135 = vmatprep.subr.mxu0 0.0
      %2136 = vmatpush1.msra.mxu0 0.0
      %2137 = vmatprep.subr.mxu0 0.0
      %2138 = vmatpush1.msra.mxu0 0.0
      %2139 = vmatprep.subr.mxu0 0.0
      %2140 = vmatpush1.msra.mxu0 0.0
      %2141 = vmatprep.subr.mxu0 0.0
      %2142 = vmatpush1.msra.mxu0 0.0
      %2143 = vmatprep.subr.mxu0 0.0
      %2144 = vmatpush1.msra.mxu0 0.0
      %2145 = vmatprep.subr.mxu0 0.0
      %2146 = vmatpush1.msra.mxu0 0.0
      %2147 = vmatprep.subr.mxu0 0.0
      %2148 = vmatpush1.msra.mxu0 0.0
      %2149 = vmatprep.subr.mxu0 0.0
      %2150 = vmatpush1.msra.mxu0 0.0
      %2151 = vmatprep.subr.mxu0 0.0
      %2152 = vmatpush1.msra.mxu0 0.0
      %2153 = vmatprep.subr.mxu0 0.0
      %2154 = vmatpush1.msra.mxu0 0.0
      %2155 = vmatprep.subr.mxu0 0.0
      %2156 = vmatpush1.msra.mxu0 0.0
      %2157 = vmatprep.subr.mxu0 0.0
      %2158 = vmatpush1.msra.mxu0 0.0
      %2159 = vmatprep.subr.mxu0 0.0
      %2160 = vmatpush1.msra.mxu0 0.0
      %2161 = vmatprep.subr.mxu0 0.0
      %2162 = vmatpush1.msra.mxu0 0.0
      %2163 = vmatprep.subr.mxu0 0.0
      %2164 = vmatpush1.msra.mxu0 0.0
      %2165 = vmatprep.subr.mxu0 0.0
      %2166 = vmatpush1.msra.mxu0 0.0
      %2167 = vmatprep.subr.mxu0 0.0
      %2168 = vmatpush1.msra.mxu0 0.0
      %2169 = vmatprep.subr.mxu0 0.0
      %2170 = vmatpush1.msra.mxu0 0.0
      %2171 = vmatprep.mubr.f32.mxu0 0.0
      %2172 = vmatmul.mubr.f32.gmra.mrb[0].mxu0 %v2057
      %v2173 = vpop.f32.mrb[0].mxu0
      %v2174 = vadd.f32 0.0, %v2173
      %v2175 = vpop.f32.mrb[0].mxu0
      %2176 = vmatprep.mubr.f32.mxu0 0.0
      %2177 = vmatmul.mubr.f32.gmra.mrb[0].mxu0 %v2060
      %v2178 = vpop.f32.mrb[0].mxu0
      %v2179 = vadd.f32 0.0, %v2178
      %v2180 = vpop.f32.mrb[0].mxu0
      %2181 = vmatprep.mubr.f32.mxu0 0.0
      %2182 = vmatmul.mubr.f32.gmra.mrb[0].mxu0 %v2063
      %v2183 = vpop.f32.mrb[0].mxu0
      %v2184 = vadd.f32 0.0, %v2183
      %v2185 = vpop.f32.mrb[0].mxu0
      %2186 = vmatprep.mubr.f32.mxu0 0.0
      %2187 = vmatmul.mubr.f32.gmra.mrb[0].mxu0 %v2066
      %v2188 = vpop.f32.mrb[0].mxu0
      %v2189 = vadd.f32 0.0, %v2188
      %v2190 = vpop.f32.mrb[0].mxu0
      %2191 = vmatprep.mubr.f32.mxu0 0.0
      %2192 = vmatmul.mubr.f32.gmra.mrb[0].mxu0 %v2069
      %v2193 = vpop.f32.mrb[0].mxu0
      %v2194 = vadd.f32 0.0, %v2193
      %v2195 = vpop.f32.mrb[0].mxu0
      %2196 = vmatprep.mubr.f32.mxu0 0.0
      %2197 = vmatmul.mubr.f32.gmra.mrb[0].mxu0 %v2072
      %v2198 = vpop.f32.mrb[0].mxu0
      %v2199 = vadd.f32 0.0, %v2198
      %v2200 = vpop.f32.mrb[0].mxu0
      %2201 = vmatprep.mubr.f32.mxu0 0.0
      %2202 = vmatmul.mubr.f32.gmra.mrb[0].mxu0 %v2075
      %v2203 = vpop.f32.mrb[0].mxu0
      %v2204 = vadd.f32 0.0, %v2203
      %v2205 = vpop.f32.mrb[0].mxu0
      %2206 = vmatprep.mubr.f32.mxu0 0.0
      %2207 = vmatmul.mubr.f32.gmra.mrb[0].mxu0 %v2078
      %v2208 = vpop.f32.mrb[0].mxu0
      %v2209 = vadd.f32 0.0, %v2208
      %v2210 = vpop.f32.mrb[0].mxu0
      %2211 = vmatprep.mubr.f32.mxu0 0.0
      %2212 = vmatmul.mubr.f32.gmra.mrb[0].mxu0 %v2081
      %v2213 = vpop.f32.mrb[0].mxu0
      %v2214 = vadd.f32 0.0, %v2213
      %v2215 = vpop.f32.mrb[0].mxu0
      %2216 = vmatprep.mubr.f32.mxu0 0.0
      %2217 = vmatmul.mubr.f32.gmra.mrb[0].mxu0 %v2084
      %v2218 = vpop.f32.mrb[0].mxu0
      %v2219 = vadd.f32 0.0, %v2218
      %v2220 = vpop.f32.mrb[0].mxu0
      %2221 = vmatprep.mubr.f32.mxu0 0.0
      %2222 = vmatmul.mubr.f32.gmra.mrb[0].mxu0 %v2087
      %v2223 = vpop.f32.mrb[0].mxu0
      %v2224 = vadd.f32 0.0, %v2223
      %v2225 = vpop.f32.mrb[0].mxu0
      %2226 = vmatprep.mubr.f32.mxu0 0.0
      %2227 = vmatmul.mubr.f32.gmra.mrb[0].mxu0 %v2090
      %v2228 = vpop.f32.mrb[0].mxu0
      %v2229 = vadd.f32 0.0, %v2228
      %v2230 = vpop.f32.mrb[0].mxu0
      %2231 = vmatprep.mubr.f32.mxu0 0.0
      %2232 = vmatmul.mubr.f32.gmra.mrb[0].mxu0 %v2093
      %v2233 = vpop.f32.mrb[0].mxu0
      %v2234 = vadd.f32 0.0, %v2233
      %v2235 = vpop.f32.mrb[0].mxu0
      %2236 = vmatprep.mubr.f32.mxu0 0.0
      %2237 = vmatmul.mubr.f32.gmra.mrb[0].mxu0 %v2096
      %v2238 = vpop.f32.mrb[0].mxu0
      %v2239 = vadd.f32 0.0, %v2238
      %v2240 = vpop.f32.mrb[0].mxu0
      %2241 = vmatprep.mubr.f32.mxu0 0.0
      %2242 = vmatmul.mubr.f32.gmra.mrb[0].mxu0 %v2099
      %v2243 = vpop.f32.mrb[0].mxu0
      %v2244 = vadd.f32 0.0, %v2243
      %v2245 = vpop.f32.mrb[0].mxu0
      %2246 = vmatprep.mubr.f32.mxu0 0.0
      %2247 = vmatmul.mubr.f32.gmra.mrb[0].mxu0 %v2102
      %v2248 = vpop.f32.mrb[0].mxu0
      %v2249 = vadd.f32 0.0, %v2248
      %v2250 = vpop.f32.mrb[0].mxu0
      %2251 = vdwg.mxu0
      %v2252 = vadd.f32 %v2006, %v2174
      %v2253 = vadd.f32 %v2007, %v2179
      %v2254 = vadd.f32 %v2008, %v2184
      %v2255 = vadd.f32 %v2009, %v2189
      %v2256 = vadd.f32 %v2010, %v2194
      %v2257 = vadd.f32 %v2011, %v2199
      %v2258 = vadd.f32 %v2012, %v2204
      %v2259 = vadd.f32 %v2013, %v2209
      %v2260 = vadd.f32 %v2014, %v2214
      %v2261 = vadd.f32 %v2015, %v2219
      %v2262 = vadd.f32 %v2016, %v2224
      %v2263 = vadd.f32 %v2017, %v2229
      %v2264 = vadd.f32 %v2018, %v2234
      %v2265 = vadd.f32 %v2019, %v2239
      %v2266 = vadd.f32 %v2020, %v2244
      %v2267 = vadd.f32 %v2021, %v2249
      %v2268 = vld [vmem:[#allocation2 + $0x27] sm:$0xff]
      %v2269 = vld [vmem:[#allocation2 + $0x2f] sm:$0xff]
      %v2270 = vld [vmem:[#allocation2 + $0x37] sm:$0xff]
      %v2271 = vld [vmem:[#allocation2 + $0x3f] sm:$0xff]
      %v2272 = vld [vmem:[#allocation2 + $0x47] sm:$0xff]
      %v2273 = vld [vmem:[#allocation2 + $0x4f] sm:$0xff]
      %v2274 = vld [vmem:[#allocation2 + $0x57] sm:$0xff]
      %v2275 = vld [vmem:[#allocation2 + $0x5f] sm:$0xff]
      %v2276 = vld [vmem:[#allocation2 + $0x67] sm:$0xff]
      %v2277 = vld [vmem:[#allocation2 + $0x6f] sm:$0xff]
      %v2278 = vld [vmem:[#allocation2 + $0x77] sm:$0xff]
      %v2279 = vld [vmem:[#allocation2 + $0x7f] sm:$0xff]
      %v2280 = vld [vmem:[#allocation2 + $0x87] sm:$0xff]
      %v2281 = vld [vmem:[#allocation2 + $0x8f] sm:$0xff]
      %v2282 = vld [vmem:[#allocation2 + $0x97] sm:$0xff]
      %v2283 = vld [vmem:[#allocation2 + $0x9f] sm:$0xff]
      %v2284 = vsel %vm824, %v2268, 0.0
      %v2285 = vsel %vm825, %v2269, 0.0
      %v2286 = vsel %vm826, %v2270, 0.0
      %v2287 = vsel %vm827, %v2271, 0.0
      %v2288 = vsel %vm828, %v2272, 0.0
      %v2289 = vsel %vm829, %v2273, 0.0
      %v2290 = vsel %vm830, %v2274, 0.0
      %v2291 = vsel %vm831, %v2275, 0.0
      %v2292 = vsel %vm832, %v2276, 0.0
      %v2293 = vsel %vm833, %v2277, 0.0
      %v2294 = vsel %vm834, %v2278, 0.0
      %v2295 = vsel %vm835, %v2279, 0.0
      %v2296 = vsel %vm836, %v2280, 0.0
      %v2297 = vsel %vm837, %v2281, 0.0
      %v2298 = vsel %vm838, %v2282, 0.0
      %v2299 = vsel %vm839, %v2283, 0.0
      %s2300 = scalar_lea.vmem %s4, 24
      %v2301 = vld [vmem:[%s2300] sm:$0xf]
      %v2303 = vsel %vm487, %v2284, 0
      %v2306 = vsel %vm487, %v2285, 0
      %v2309 = vsel %vm487, %v2286, 0
      %v2312 = vsel %vm487, %v2287, 0
      %v2315 = vsel %vm487, %v2288, 0
      %v2318 = vsel %vm487, %v2289, 0
      %v2321 = vsel %vm487, %v2290, 0
      %v2324 = vsel %vm487, %v2291, 0
      %v2327 = vsel %vm487, %v2292, 0
      %v2330 = vsel %vm487, %v2293, 0
      %v2333 = vsel %vm487, %v2294, 0
      %v2336 = vsel %vm487, %v2295, 0
      %v2339 = vsel %vm487, %v2296, 0
      %v2342 = vsel %vm487, %v2297, 0
      %v2345 = vsel %vm487, %v2298, 0
      %v2348 = vsel %vm487, %v2299, 0
      %v2351 = vsel %vm923, %v2301, 0
      %2353 = vmatprep.subr.mxu0 0.0
      %2354 = vmatpush1.msra.mxu0 %v2351
      %2355 = vmatprep.subr.mxu0 0.0
      %2356 = vmatpush1.msra.mxu0 0.0
      %2357 = vmatprep.subr.mxu0 0.0
      %2358 = vmatpush1.msra.mxu0 0.0
      %2359 = vmatprep.subr.mxu0 0.0
      %2360 = vmatpush1.msra.mxu0 0.0
      %2361 = vmatprep.subr.mxu0 0.0
      %2362 = vmatpush1.msra.mxu0 0.0
      %2363 = vmatprep.subr.mxu0 0.0
      %2364 = vmatpush1.msra.mxu0 0.0
      %2365 = vmatprep.subr.mxu0 0.0
      %2366 = vmatpush1.msra.mxu0 0.0
      %2367 = vmatprep.subr.mxu0 0.0
      %2368 = vmatpush1.msra.mxu0 0.0
      %2369 = vmatprep.subr.mxu0 0.0
      %2370 = vmatpush1.msra.mxu0 0.0
      %2371 = vmatprep.subr.mxu0 0.0
      %2372 = vmatpush1.msra.mxu0 0.0
      %2373 = vmatprep.subr.mxu0 0.0
      %2374 = vmatpush1.msra.mxu0 0.0
      %2375 = vmatprep.subr.mxu0 0.0
      %2376 = vmatpush1.msra.mxu0 0.0
      %2377 = vmatprep.subr.mxu0 0.0
      %2378 = vmatpush1.msra.mxu0 0.0
      %2379 = vmatprep.subr.mxu0 0.0
      %2380 = vmatpush1.msra.mxu0 0.0
      %2381 = vmatprep.subr.mxu0 0.0
      %2382 = vmatpush1.msra.mxu0 0.0
      %2383 = vmatprep.subr.mxu0 0.0
      %2384 = vmatpush1.msra.mxu0 0.0
      %2385 = vmatprep.subr.mxu0 0.0
      %2386 = vmatpush1.msra.mxu0 0.0
      %2387 = vmatprep.subr.mxu0 0.0
      %2388 = vmatpush1.msra.mxu0 0.0
      %2389 = vmatprep.subr.mxu0 0.0
      %2390 = vmatpush1.msra.mxu0 0.0
      %2391 = vmatprep.subr.mxu0 0.0
      %2392 = vmatpush1.msra.mxu0 0.0
      %2393 = vmatprep.subr.mxu0 0.0
      %2394 = vmatpush1.msra.mxu0 0.0
      %2395 = vmatprep.subr.mxu0 0.0
      %2396 = vmatpush1.msra.mxu0 0.0
      %2397 = vmatprep.subr.mxu0 0.0
      %2398 = vmatpush1.msra.mxu0 0.0
      %2399 = vmatprep.subr.mxu0 0.0
      %2400 = vmatpush1.msra.mxu0 0.0
      %2401 = vmatprep.subr.mxu0 0.0
      %2402 = vmatpush1.msra.mxu0 0.0
      %2403 = vmatprep.subr.mxu0 0.0
      %2404 = vmatpush1.msra.mxu0 0.0
      %2405 = vmatprep.subr.mxu0 0.0
      %2406 = vmatpush1.msra.mxu0 0.0
      %2407 = vmatprep.subr.mxu0 0.0
      %2408 = vmatpush1.msra.mxu0 0.0
      %2409 = vmatprep.subr.mxu0 0.0
      %2410 = vmatpush1.msra.mxu0 0.0
      %2411 = vmatprep.subr.mxu0 0.0
      %2412 = vmatpush1.msra.mxu0 0.0
      %2413 = vmatprep.subr.mxu0 0.0
      %2414 = vmatpush1.msra.mxu0 0.0
      %2415 = vmatprep.subr.mxu0 0.0
      %2416 = vmatpush1.msra.mxu0 0.0
      %2417 = vmatprep.mubr.f32.mxu0 0.0
      %2418 = vmatmul.mubr.f32.gmra.mrb[0].mxu0 %v2303
      %v2419 = vpop.f32.mrb[0].mxu0
      %v2420 = vadd.f32 0.0, %v2419
      %v2421 = vpop.f32.mrb[0].mxu0
      %2422 = vmatprep.mubr.f32.mxu0 0.0
      %2423 = vmatmul.mubr.f32.gmra.mrb[0].mxu0 %v2306
      %v2424 = vpop.f32.mrb[0].mxu0
      %v2425 = vadd.f32 0.0, %v2424
      %v2426 = vpop.f32.mrb[0].mxu0
      %2427 = vmatprep.mubr.f32.mxu0 0.0
      %2428 = vmatmul.mubr.f32.gmra.mrb[0].mxu0 %v2309
      %v2429 = vpop.f32.mrb[0].mxu0
      %v2430 = vadd.f32 0.0, %v2429
      %v2431 = vpop.f32.mrb[0].mxu0
      %2432 = vmatprep.mubr.f32.mxu0 0.0
      %2433 = vmatmul.mubr.f32.gmra.mrb[0].mxu0 %v2312
      %v2434 = vpop.f32.mrb[0].mxu0
      %v2435 = vadd.f32 0.0, %v2434
      %v2436 = vpop.f32.mrb[0].mxu0
      %2437 = vmatprep.mubr.f32.mxu0 0.0
      %2438 = vmatmul.mubr.f32.gmra.mrb[0].mxu0 %v2315
      %v2439 = vpop.f32.mrb[0].mxu0
      %v2440 = vadd.f32 0.0, %v2439
      %v2441 = vpop.f32.mrb[0].mxu0
      %2442 = vmatprep.mubr.f32.mxu0 0.0
      %2443 = vmatmul.mubr.f32.gmra.mrb[0].mxu0 %v2318
      %v2444 = vpop.f32.mrb[0].mxu0
      %v2445 = vadd.f32 0.0, %v2444
      %v2446 = vpop.f32.mrb[0].mxu0
      %2447 = vmatprep.mubr.f32.mxu0 0.0
      %2448 = vmatmul.mubr.f32.gmra.mrb[0].mxu0 %v2321
      %v2449 = vpop.f32.mrb[0].mxu0
      %v2450 = vadd.f32 0.0, %v2449
      %v2451 = vpop.f32.mrb[0].mxu0
      %2452 = vmatprep.mubr.f32.mxu0 0.0
      %2453 = vmatmul.mubr.f32.gmra.mrb[0].mxu0 %v2324
      %v2454 = vpop.f32.mrb[0].mxu0
      %v2455 = vadd.f32 0.0, %v2454
      %v2456 = vpop.f32.mrb[0].mxu0
      %2457 = vmatprep.mubr.f32.mxu0 0.0
      %2458 = vmatmul.mubr.f32.gmra.mrb[0].mxu0 %v2327
      %v2459 = vpop.f32.mrb[0].mxu0
      %v2460 = vadd.f32 0.0, %v2459
      %v2461 = vpop.f32.mrb[0].mxu0
      %2462 = vmatprep.mubr.f32.mxu0 0.0
      %2463 = vmatmul.mubr.f32.gmra.mrb[0].mxu0 %v2330
      %v2464 = vpop.f32.mrb[0].mxu0
      %v2465 = vadd.f32 0.0, %v2464
      %v2466 = vpop.f32.mrb[0].mxu0
      %2467 = vmatprep.mubr.f32.mxu0 0.0
      %2468 = vmatmul.mubr.f32.gmra.mrb[0].mxu0 %v2333
      %v2469 = vpop.f32.mrb[0].mxu0
      %v2470 = vadd.f32 0.0, %v2469
      %v2471 = vpop.f32.mrb[0].mxu0
      %2472 = vmatprep.mubr.f32.mxu0 0.0
      %2473 = vmatmul.mubr.f32.gmra.mrb[0].mxu0 %v2336
      %v2474 = vpop.f32.mrb[0].mxu0
      %v2475 = vadd.f32 0.0, %v2474
      %v2476 = vpop.f32.mrb[0].mxu0
      %2477 = vmatprep.mubr.f32.mxu0 0.0
      %2478 = vmatmul.mubr.f32.gmra.mrb[0].mxu0 %v2339
      %v2479 = vpop.f32.mrb[0].mxu0
      %v2480 = vadd.f32 0.0, %v2479
      %v2481 = vpop.f32.mrb[0].mxu0
      %2482 = vmatprep.mubr.f32.mxu0 0.0
      %2483 = vmatmul.mubr.f32.gmra.mrb[0].mxu0 %v2342
      %v2484 = vpop.f32.mrb[0].mxu0
      %v2485 = vadd.f32 0.0, %v2484
      %v2486 = vpop.f32.mrb[0].mxu0
      %2487 = vmatprep.mubr.f32.mxu0 0.0
      %2488 = vmatmul.mubr.f32.gmra.mrb[0].mxu0 %v2345
      %v2489 = vpop.f32.mrb[0].mxu0
      %v2490 = vadd.f32 0.0, %v2489
      %v2491 = vpop.f32.mrb[0].mxu0
      %2492 = vmatprep.mubr.f32.mxu0 0.0
      %2493 = vmatmul.mubr.f32.gmra.mrb[0].mxu0 %v2348
      %v2494 = vpop.f32.mrb[0].mxu0
      %v2495 = vadd.f32 0.0, %v2494
      %v2496 = vpop.f32.mrb[0].mxu0
      %2497 = vdwg.mxu0
      %v2498 = vadd.f32 %v2252, %v2420
      %v2499 = vadd.f32 %v2253, %v2425
      %v2500 = vadd.f32 %v2254, %v2430
      %v2501 = vadd.f32 %v2255, %v2435
      %v2502 = vadd.f32 %v2256, %v2440
      %v2503 = vadd.f32 %v2257, %v2445
      %v2504 = vadd.f32 %v2258, %v2450
      %v2505 = vadd.f32 %v2259, %v2455
      %v2506 = vadd.f32 %v2260, %v2460
      %v2507 = vadd.f32 %v2261, %v2465
      %v2508 = vadd.f32 %v2262, %v2470
      %v2509 = vadd.f32 %v2263, %v2475
      %v2510 = vadd.f32 %v2264, %v2480
      %v2511 = vadd.f32 %v2265, %v2485
      %v2512 = vadd.f32 %v2266, %v2490
      %v2513 = vadd.f32 %v2267, %v2495
      %v2514 = vld [vmem:[#allocation2 + $0x28] sm:$0xff]
      %v2515 = vld [vmem:[#allocation2 + $0x30] sm:$0xff]
      %v2516 = vld [vmem:[#allocation2 + $0x38] sm:$0xff]
      %v2517 = vld [vmem:[#allocation2 + $0x40] sm:$0xff]
      %v2518 = vld [vmem:[#allocation2 + $0x48] sm:$0xff]
      %v2519 = vld [vmem:[#allocation2 + $0x50] sm:$0xff]
      %v2520 = vld [vmem:[#allocation2 + $0x58] sm:$0xff]
      %v2521 = vld [vmem:[#allocation2 + $0x60] sm:$0xff]
      %v2522 = vld [vmem:[#allocation2 + $0x68] sm:$0xff]
      %v2523 = vld [vmem:[#allocation2 + $0x70] sm:$0xff]
      %v2524 = vld [vmem:[#allocation2 + $0x78] sm:$0xff]
      %v2525 = vld [vmem:[#allocation2 + $0x80] sm:$0xff]
      %v2526 = vld [vmem:[#allocation2 + $0x88] sm:$0xff]
      %v2527 = vld [vmem:[#allocation2 + $0x90] sm:$0xff]
      %v2528 = vld [vmem:[#allocation2 + $0x98] sm:$0xff]
      %v2529 = vld [vmem:[#allocation2 + $0xa0] sm:$0xff]
      %s2530 = scalar_lea.vmem %s4, 28
      %v2531 = vld [vmem:[%s2530] sm:$0xf]
      %v2533 = vsel %vm487, %v2514, 0
      %v2536 = vsel %vm487, %v2515, 0
      %v2539 = vsel %vm487, %v2516, 0
      %v2542 = vsel %vm487, %v2517, 0
      %v2545 = vsel %vm487, %v2518, 0
      %v2548 = vsel %vm487, %v2519, 0
      %v2551 = vsel %vm487, %v2520, 0
      %v2554 = vsel %vm487, %v2521, 0
      %v2557 = vsel %vm487, %v2522, 0
      %v2560 = vsel %vm487, %v2523, 0
      %v2563 = vsel %vm487, %v2524, 0
      %v2566 = vsel %vm487, %v2525, 0
      %v2569 = vsel %vm487, %v2526, 0
      %v2572 = vsel %vm487, %v2527, 0
      %v2575 = vsel %vm487, %v2528, 0
      %v2578 = vsel %vm487, %v2529, 0
      %v2581 = vsel %vm923, %v2531, 0
      %2583 = vmatprep.subr.mxu0 0.0
      %2584 = vmatpush1.msra.mxu0 %v2581
      %2585 = vmatprep.subr.mxu0 0.0
      %2586 = vmatpush1.msra.mxu0 0.0
      %2587 = vmatprep.subr.mxu0 0.0
      %2588 = vmatpush1.msra.mxu0 0.0
      %2589 = vmatprep.subr.mxu0 0.0
      %2590 = vmatpush1.msra.mxu0 0.0
      %2591 = vmatprep.subr.mxu0 0.0
      %2592 = vmatpush1.msra.mxu0 0.0
      %2593 = vmatprep.subr.mxu0 0.0
      %2594 = vmatpush1.msra.mxu0 0.0
      %2595 = vmatprep.subr.mxu0 0.0
      %2596 = vmatpush1.msra.mxu0 0.0
      %2597 = vmatprep.subr.mxu0 0.0
      %2598 = vmatpush1.msra.mxu0 0.0
      %2599 = vmatprep.subr.mxu0 0.0
      %2600 = vmatpush1.msra.mxu0 0.0
      %2601 = vmatprep.subr.mxu0 0.0
      %2602 = vmatpush1.msra.mxu0 0.0
      %2603 = vmatprep.subr.mxu0 0.0
      %2604 = vmatpush1.msra.mxu0 0.0
      %2605 = vmatprep.subr.mxu0 0.0
      %2606 = vmatpush1.msra.mxu0 0.0
      %2607 = vmatprep.subr.mxu0 0.0
      %2608 = vmatpush1.msra.mxu0 0.0
      %2609 = vmatprep.subr.mxu0 0.0
      %2610 = vmatpush1.msra.mxu0 0.0
      %2611 = vmatprep.subr.mxu0 0.0
      %2612 = vmatpush1.msra.mxu0 0.0
      %2613 = vmatprep.subr.mxu0 0.0
      %2614 = vmatpush1.msra.mxu0 0.0
      %2615 = vmatprep.subr.mxu0 0.0
      %2616 = vmatpush1.msra.mxu0 0.0
      %2617 = vmatprep.subr.mxu0 0.0
      %2618 = vmatpush1.msra.mxu0 0.0
      %2619 = vmatprep.subr.mxu0 0.0
      %2620 = vmatpush1.msra.mxu0 0.0
      %2621 = vmatprep.subr.mxu0 0.0
      %2622 = vmatpush1.msra.mxu0 0.0
      %2623 = vmatprep.subr.mxu0 0.0
      %2624 = vmatpush1.msra.mxu0 0.0
      %2625 = vmatprep.subr.mxu0 0.0
      %2626 = vmatpush1.msra.mxu0 0.0
      %2627 = vmatprep.subr.mxu0 0.0
      %2628 = vmatpush1.msra.mxu0 0.0
      %2629 = vmatprep.subr.mxu0 0.0
      %2630 = vmatpush1.msra.mxu0 0.0
      %2631 = vmatprep.subr.mxu0 0.0
      %2632 = vmatpush1.msra.mxu0 0.0
      %2633 = vmatprep.subr.mxu0 0.0
      %2634 = vmatpush1.msra.mxu0 0.0
      %2635 = vmatprep.subr.mxu0 0.0
      %2636 = vmatpush1.msra.mxu0 0.0
      %2637 = vmatprep.subr.mxu0 0.0
      %2638 = vmatpush1.msra.mxu0 0.0
      %2639 = vmatprep.subr.mxu0 0.0
      %2640 = vmatpush1.msra.mxu0 0.0
      %2641 = vmatprep.subr.mxu0 0.0
      %2642 = vmatpush1.msra.mxu0 0.0
      %2643 = vmatprep.subr.mxu0 0.0
      %2644 = vmatpush1.msra.mxu0 0.0
      %2645 = vmatprep.subr.mxu0 0.0
      %2646 = vmatpush1.msra.mxu0 0.0
      %2647 = vmatprep.mubr.f32.mxu0 0.0
      %2648 = vmatmul.mubr.f32.gmra.mrb[0].mxu0 %v2533
      %v2649 = vpop.f32.mrb[0].mxu0
      %v2650 = vadd.f32 0.0, %v2649
      %v2651 = vpop.f32.mrb[0].mxu0
      %2652 = vmatprep.mubr.f32.mxu0 0.0
      %2653 = vmatmul.mubr.f32.gmra.mrb[0].mxu0 %v2536
      %v2654 = vpop.f32.mrb[0].mxu0
      %v2655 = vadd.f32 0.0, %v2654
      %v2656 = vpop.f32.mrb[0].mxu0
      %2657 = vmatprep.mubr.f32.mxu0 0.0
      %2658 = vmatmul.mubr.f32.gmra.mrb[0].mxu0 %v2539
      %v2659 = vpop.f32.mrb[0].mxu0
      %v2660 = vadd.f32 0.0, %v2659
      %v2661 = vpop.f32.mrb[0].mxu0
      %2662 = vmatprep.mubr.f32.mxu0 0.0
      %2663 = vmatmul.mubr.f32.gmra.mrb[0].mxu0 %v2542
      %v2664 = vpop.f32.mrb[0].mxu0
      %v2665 = vadd.f32 0.0, %v2664
      %v2666 = vpop.f32.mrb[0].mxu0
      %2667 = vmatprep.mubr.f32.mxu0 0.0
      %2668 = vmatmul.mubr.f32.gmra.mrb[0].mxu0 %v2545
      %v2669 = vpop.f32.mrb[0].mxu0
      %v2670 = vadd.f32 0.0, %v2669
      %v2671 = vpop.f32.mrb[0].mxu0
      %2672 = vmatprep.mubr.f32.mxu0 0.0
      %2673 = vmatmul.mubr.f32.gmra.mrb[0].mxu0 %v2548
      %v2674 = vpop.f32.mrb[0].mxu0
      %v2675 = vadd.f32 0.0, %v2674
      %v2676 = vpop.f32.mrb[0].mxu0
      %2677 = vmatprep.mubr.f32.mxu0 0.0
      %2678 = vmatmul.mubr.f32.gmra.mrb[0].mxu0 %v2551
      %v2679 = vpop.f32.mrb[0].mxu0
      %v2680 = vadd.f32 0.0, %v2679
      %v2681 = vpop.f32.mrb[0].mxu0
      %2682 = vmatprep.mubr.f32.mxu0 0.0
      %2683 = vmatmul.mubr.f32.gmra.mrb[0].mxu0 %v2554
      %v2684 = vpop.f32.mrb[0].mxu0
      %v2685 = vadd.f32 0.0, %v2684
      %v2686 = vpop.f32.mrb[0].mxu0
      %2687 = vmatprep.mubr.f32.mxu0 0.0
      %2688 = vmatmul.mubr.f32.gmra.mrb[0].mxu0 %v2557
      %v2689 = vpop.f32.mrb[0].mxu0
      %v2690 = vadd.f32 0.0, %v2689
      %v2691 = vpop.f32.mrb[0].mxu0
      %2692 = vmatprep.mubr.f32.mxu0 0.0
      %2693 = vmatmul.mubr.f32.gmra.mrb[0].mxu0 %v2560
      %v2694 = vpop.f32.mrb[0].mxu0
      %v2695 = vadd.f32 0.0, %v2694
      %v2696 = vpop.f32.mrb[0].mxu0
      %2697 = vmatprep.mubr.f32.mxu0 0.0
      %2698 = vmatmul.mubr.f32.gmra.mrb[0].mxu0 %v2563
      %v2699 = vpop.f32.mrb[0].mxu0
      %v2700 = vadd.f32 0.0, %v2699
      %v2701 = vpop.f32.mrb[0].mxu0
      %2702 = vmatprep.mubr.f32.mxu0 0.0
      %2703 = vmatmul.mubr.f32.gmra.mrb[0].mxu0 %v2566
      %v2704 = vpop.f32.mrb[0].mxu0
      %v2705 = vadd.f32 0.0, %v2704
      %v2706 = vpop.f32.mrb[0].mxu0
      %2707 = vmatprep.mubr.f32.mxu0 0.0
      %2708 = vmatmul.mubr.f32.gmra.mrb[0].mxu0 %v2569
      %v2709 = vpop.f32.mrb[0].mxu0
      %v2710 = vadd.f32 0.0, %v2709
      %v2711 = vpop.f32.mrb[0].mxu0
      %2712 = vmatprep.mubr.f32.mxu0 0.0
      %2713 = vmatmul.mubr.f32.gmra.mrb[0].mxu0 %v2572
      %v2714 = vpop.f32.mrb[0].mxu0
      %v2715 = vadd.f32 0.0, %v2714
      %v2716 = vpop.f32.mrb[0].mxu0
      %2717 = vmatprep.mubr.f32.mxu0 0.0
      %2718 = vmatmul.mubr.f32.gmra.mrb[0].mxu0 %v2575
      %v2719 = vpop.f32.mrb[0].mxu0
      %v2720 = vadd.f32 0.0, %v2719
      %v2721 = vpop.f32.mrb[0].mxu0
      %2722 = vmatprep.mubr.f32.mxu0 0.0
      %2723 = vmatmul.mubr.f32.gmra.mrb[0].mxu0 %v2578
      %v2724 = vpop.f32.mrb[0].mxu0
      %v2725 = vadd.f32 0.0, %v2724
      %v2726 = vpop.f32.mrb[0].mxu0
      %2727 = vdwg.mxu0
      %v2728 = vadd.f32 %v2498, %v2650
      %v2729 = vadd.f32 %v2499, %v2655
      %v2730 = vadd.f32 %v2500, %v2660
      %v2731 = vadd.f32 %v2501, %v2665
      %v2732 = vadd.f32 %v2502, %v2670
      %v2733 = vadd.f32 %v2503, %v2675
      %v2734 = vadd.f32 %v2504, %v2680
      %v2735 = vadd.f32 %v2505, %v2685
      %v2736 = vadd.f32 %v2506, %v2690
      %v2737 = vadd.f32 %v2507, %v2695
      %v2738 = vadd.f32 %v2508, %v2700
      %v2739 = vadd.f32 %v2509, %v2705
      %v2740 = vadd.f32 %v2510, %v2710
      %v2741 = vadd.f32 %v2511, %v2715
      %v2742 = vadd.f32 %v2512, %v2720
      %v2743 = vadd.f32 %v2513, %v2725
      %v2744 = vld [vmem:[#allocation2 + $0x29] sm:$0xff]
      %v2745 = vld [vmem:[#allocation2 + $0x31] sm:$0xff]
      %v2746 = vld [vmem:[#allocation2 + $0x39] sm:$0xff]
      %v2747 = vld [vmem:[#allocation2 + $0x41] sm:$0xff]
      %v2748 = vld [vmem:[#allocation2 + $0x49] sm:$0xff]
      %v2749 = vld [vmem:[#allocation2 + $0x51] sm:$0xff]
      %v2750 = vld [vmem:[#allocation2 + $0x59] sm:$0xff]
      %v2751 = vld [vmem:[#allocation2 + $0x61] sm:$0xff]
      %v2752 = vld [vmem:[#allocation2 + $0x69] sm:$0xff]
      %v2753 = vld [vmem:[#allocation2 + $0x71] sm:$0xff]
      %v2754 = vld [vmem:[#allocation2 + $0x79] sm:$0xff]
      %v2755 = vld [vmem:[#allocation2 + $0x81] sm:$0xff]
      %v2756 = vld [vmem:[#allocation2 + $0x89] sm:$0xff]
      %v2757 = vld [vmem:[#allocation2 + $0x91] sm:$0xff]
      %v2758 = vld [vmem:[#allocation2 + $0x99] sm:$0xff]
      %v2759 = vld [vmem:[#allocation2 + $0xa1] sm:$0xff]
      %v2760 = vsel %vm1300, %v2744, 0.0
      %v2761 = vsel %vm1301, %v2745, 0.0
      %v2762 = vsel %vm1302, %v2746, 0.0
      %v2763 = vsel %vm1303, %v2747, 0.0
      %v2764 = vsel %vm1304, %v2748, 0.0
      %v2765 = vsel %vm1305, %v2749, 0.0
      %v2766 = vsel %vm1306, %v2750, 0.0
      %v2767 = vsel %vm1307, %v2751, 0.0
      %v2768 = vsel %vm1308, %v2752, 0.0
      %v2769 = vsel %vm1309, %v2753, 0.0
      %v2770 = vsel %vm1310, %v2754, 0.0
      %v2771 = vsel %vm1311, %v2755, 0.0
      %v2772 = vsel %vm1312, %v2756, 0.0
      %v2773 = vsel %vm1313, %v2757, 0.0
      %v2774 = vsel %vm1314, %v2758, 0.0
      %v2775 = vsel %vm1315, %v2759, 0.0
      %s2776 = scalar_lea.vmem %s4, 32
      %v2777 = vld [vmem:[%s2776] sm:$0xf]
      %v2779 = vsel %vm487, %v2760, 0
      %v2782 = vsel %vm487, %v2761, 0
      %v2785 = vsel %vm487, %v2762, 0
      %v2788 = vsel %vm487, %v2763, 0
      %v2791 = vsel %vm487, %v2764, 0
      %v2794 = vsel %vm487, %v2765, 0
      %v2797 = vsel %vm487, %v2766, 0
      %v2800 = vsel %vm487, %v2767, 0
      %v2803 = vsel %vm487, %v2768, 0
      %v2806 = vsel %vm487, %v2769, 0
      %v2809 = vsel %vm487, %v2770, 0
      %v2812 = vsel %vm487, %v2771, 0
      %v2815 = vsel %vm487, %v2772, 0
      %v2818 = vsel %vm487, %v2773, 0
      %v2821 = vsel %vm487, %v2774, 0
      %v2824 = vsel %vm487, %v2775, 0
      %v2827 = vsel %vm923, %v2777, 0
      %2829 = vmatprep.subr.mxu0 0.0
      %2830 = vmatpush1.msra.mxu0 %v2827
      %2831 = vmatprep.subr.mxu0 0.0
      %2832 = vmatpush1.msra.mxu0 0.0
      %2833 = vmatprep.subr.mxu0 0.0
      %2834 = vmatpush1.msra.mxu0 0.0
      %2835 = vmatprep.subr.mxu0 0.0
      %2836 = vmatpush1.msra.mxu0 0.0
      %2837 = vmatprep.subr.mxu0 0.0
      %2838 = vmatpush1.msra.mxu0 0.0
      %2839 = vmatprep.subr.mxu0 0.0
      %2840 = vmatpush1.msra.mxu0 0.0
      %2841 = vmatprep.subr.mxu0 0.0
      %2842 = vmatpush1.msra.mxu0 0.0
      %2843 = vmatprep.subr.mxu0 0.0
      %2844 = vmatpush1.msra.mxu0 0.0
      %2845 = vmatprep.subr.mxu0 0.0
      %2846 = vmatpush1.msra.mxu0 0.0
      %2847 = vmatprep.subr.mxu0 0.0
      %2848 = vmatpush1.msra.mxu0 0.0
      %2849 = vmatprep.subr.mxu0 0.0
      %2850 = vmatpush1.msra.mxu0 0.0
      %2851 = vmatprep.subr.mxu0 0.0
      %2852 = vmatpush1.msra.mxu0 0.0
      %2853 = vmatprep.subr.mxu0 0.0
      %2854 = vmatpush1.msra.mxu0 0.0
      %2855 = vmatprep.subr.mxu0 0.0
      %2856 = vmatpush1.msra.mxu0 0.0
      %2857 = vmatprep.subr.mxu0 0.0
      %2858 = vmatpush1.msra.mxu0 0.0
      %2859 = vmatprep.subr.mxu0 0.0
      %2860 = vmatpush1.msra.mxu0 0.0
      %2861 = vmatprep.subr.mxu0 0.0
      %2862 = vmatpush1.msra.mxu0 0.0
      %2863 = vmatprep.subr.mxu0 0.0
      %2864 = vmatpush1.msra.mxu0 0.0
      %2865 = vmatprep.subr.mxu0 0.0
      %2866 = vmatpush1.msra.mxu0 0.0
      %2867 = vmatprep.subr.mxu0 0.0
      %2868 = vmatpush1.msra.mxu0 0.0
      %2869 = vmatprep.subr.mxu0 0.0
      %2870 = vmatpush1.msra.mxu0 0.0
      %2871 = vmatprep.subr.mxu0 0.0
      %2872 = vmatpush1.msra.mxu0 0.0
      %2873 = vmatprep.subr.mxu0 0.0
      %2874 = vmatpush1.msra.mxu0 0.0
      %2875 = vmatprep.subr.mxu0 0.0
      %2876 = vmatpush1.msra.mxu0 0.0
      %2877 = vmatprep.subr.mxu0 0.0
      %2878 = vmatpush1.msra.mxu0 0.0
      %2879 = vmatprep.subr.mxu0 0.0
      %2880 = vmatpush1.msra.mxu0 0.0
      %2881 = vmatprep.subr.mxu0 0.0
      %2882 = vmatpush1.msra.mxu0 0.0
      %2883 = vmatprep.subr.mxu0 0.0
      %2884 = vmatpush1.msra.mxu0 0.0
      %2885 = vmatprep.subr.mxu0 0.0
      %2886 = vmatpush1.msra.mxu0 0.0
      %2887 = vmatprep.subr.mxu0 0.0
      %2888 = vmatpush1.msra.mxu0 0.0
      %2889 = vmatprep.subr.mxu0 0.0
      %2890 = vmatpush1.msra.mxu0 0.0
      %2891 = vmatprep.subr.mxu0 0.0
      %2892 = vmatpush1.msra.mxu0 0.0
      %2893 = vmatprep.mubr.f32.mxu0 0.0
      %2894 = vmatmul.mubr.f32.gmra.mrb[0].mxu0 %v2779
      %v2895 = vpop.f32.mrb[0].mxu0
      %v2896 = vadd.f32 0.0, %v2895
      %v2897 = vpop.f32.mrb[0].mxu0
      %2898 = vmatprep.mubr.f32.mxu0 0.0
      %2899 = vmatmul.mubr.f32.gmra.mrb[0].mxu0 %v2782
      %v2900 = vpop.f32.mrb[0].mxu0
      %v2901 = vadd.f32 0.0, %v2900
      %v2902 = vpop.f32.mrb[0].mxu0
      %2903 = vmatprep.mubr.f32.mxu0 0.0
      %2904 = vmatmul.mubr.f32.gmra.mrb[0].mxu0 %v2785
      %v2905 = vpop.f32.mrb[0].mxu0
      %v2906 = vadd.f32 0.0, %v2905
      %v2907 = vpop.f32.mrb[0].mxu0
      %2908 = vmatprep.mubr.f32.mxu0 0.0
      %2909 = vmatmul.mubr.f32.gmra.mrb[0].mxu0 %v2788
      %v2910 = vpop.f32.mrb[0].mxu0
      %v2911 = vadd.f32 0.0, %v2910
      %v2912 = vpop.f32.mrb[0].mxu0
      %2913 = vmatprep.mubr.f32.mxu0 0.0
      %2914 = vmatmul.mubr.f32.gmra.mrb[0].mxu0 %v2791
      %v2915 = vpop.f32.mrb[0].mxu0
      %v2916 = vadd.f32 0.0, %v2915
      %v2917 = vpop.f32.mrb[0].mxu0
      %2918 = vmatprep.mubr.f32.mxu0 0.0
      %2919 = vmatmul.mubr.f32.gmra.mrb[0].mxu0 %v2794
      %v2920 = vpop.f32.mrb[0].mxu0
      %v2921 = vadd.f32 0.0, %v2920
      %v2922 = vpop.f32.mrb[0].mxu0
      %2923 = vmatprep.mubr.f32.mxu0 0.0
      %2924 = vmatmul.mubr.f32.gmra.mrb[0].mxu0 %v2797
      %v2925 = vpop.f32.mrb[0].mxu0
      %v2926 = vadd.f32 0.0, %v2925
      %v2927 = vpop.f32.mrb[0].mxu0
      %2928 = vmatprep.mubr.f32.mxu0 0.0
      %2929 = vmatmul.mubr.f32.gmra.mrb[0].mxu0 %v2800
      %v2930 = vpop.f32.mrb[0].mxu0
      %v2931 = vadd.f32 0.0, %v2930
      %v2932 = vpop.f32.mrb[0].mxu0
      %2933 = vmatprep.mubr.f32.mxu0 0.0
      %2934 = vmatmul.mubr.f32.gmra.mrb[0].mxu0 %v2803
      %v2935 = vpop.f32.mrb[0].mxu0
      %v2936 = vadd.f32 0.0, %v2935
      %v2937 = vpop.f32.mrb[0].mxu0
      %2938 = vmatprep.mubr.f32.mxu0 0.0
      %2939 = vmatmul.mubr.f32.gmra.mrb[0].mxu0 %v2806
      %v2940 = vpop.f32.mrb[0].mxu0
      %v2941 = vadd.f32 0.0, %v2940
      %v2942 = vpop.f32.mrb[0].mxu0
      %2943 = vmatprep.mubr.f32.mxu0 0.0
      %2944 = vmatmul.mubr.f32.gmra.mrb[0].mxu0 %v2809
      %v2945 = vpop.f32.mrb[0].mxu0
      %v2946 = vadd.f32 0.0, %v2945
      %v2947 = vpop.f32.mrb[0].mxu0
      %2948 = vmatprep.mubr.f32.mxu0 0.0
      %2949 = vmatmul.mubr.f32.gmra.mrb[0].mxu0 %v2812
      %v2950 = vpop.f32.mrb[0].mxu0
      %v2951 = vadd.f32 0.0, %v2950
      %v2952 = vpop.f32.mrb[0].mxu0
      %2953 = vmatprep.mubr.f32.mxu0 0.0
      %2954 = vmatmul.mubr.f32.gmra.mrb[0].mxu0 %v2815
      %v2955 = vpop.f32.mrb[0].mxu0
      %v2956 = vadd.f32 0.0, %v2955
      %v2957 = vpop.f32.mrb[0].mxu0
      %2958 = vmatprep.mubr.f32.mxu0 0.0
      %2959 = vmatmul.mubr.f32.gmra.mrb[0].mxu0 %v2818
      %v2960 = vpop.f32.mrb[0].mxu0
      %v2961 = vadd.f32 0.0, %v2960
      %v2962 = vpop.f32.mrb[0].mxu0
      %2963 = vmatprep.mubr.f32.mxu0 0.0
      %2964 = vmatmul.mubr.f32.gmra.mrb[0].mxu0 %v2821
      %v2965 = vpop.f32.mrb[0].mxu0
      %v2966 = vadd.f32 0.0, %v2965
      %v2967 = vpop.f32.mrb[0].mxu0
      %2968 = vmatprep.mubr.f32.mxu0 0.0
      %2969 = vmatmul.mubr.f32.gmra.mrb[0].mxu0 %v2824
      %v2970 = vpop.f32.mrb[0].mxu0
      %v2971 = vadd.f32 0.0, %v2970
      %v2972 = vpop.f32.mrb[0].mxu0
      %2973 = vdwg.mxu0
      %v2974 = vadd.f32 %v2728, %v2896
      %v2975 = vadd.f32 %v2729, %v2901
      %v2976 = vadd.f32 %v2730, %v2906
      %v2977 = vadd.f32 %v2731, %v2911
      %v2978 = vadd.f32 %v2732, %v2916
      %v2979 = vadd.f32 %v2733, %v2921
      %v2980 = vadd.f32 %v2734, %v2926
      %v2981 = vadd.f32 %v2735, %v2931
      %v2982 = vadd.f32 %v2736, %v2936
      %v2983 = vadd.f32 %v2737, %v2941
      %v2984 = vadd.f32 %v2738, %v2946
      %v2985 = vadd.f32 %v2739, %v2951
      %v2986 = vadd.f32 %v2740, %v2956
      %v2987 = vadd.f32 %v2741, %v2961
      %v2988 = vadd.f32 %v2742, %v2966
      %v2989 = vadd.f32 %v2743, %v2971
      %v2990 = vld [vmem:[%s349] sm:$0xf]
      %v2991 = vld [vmem:[%s349 + $0x4] sm:$0xf]
      %v2992 = vld [vmem:[%s349 + $0x8] sm:$0xf]
      %v2993 = vld [vmem:[%s349 + $0xc] sm:$0xf]
      %v2994 = vld [vmem:[%s349 + $0x10] sm:$0xf]
      %v2995 = vld [vmem:[%s349 + $0x14] sm:$0xf]
      %v2996 = vld [vmem:[%s349 + $0x18] sm:$0xf]
      %v2997 = vld [vmem:[%s349 + $0x1c] sm:$0xf]
      %v2998 = vld [vmem:[%s349 + $0x20] sm:$0xf]
      %v2999 = vld [vmem:[%s349 + $0x24] sm:$0xf]
      %v3000 = vld [vmem:[%s349 + $0x28] sm:$0xf]
      %v3001 = vld [vmem:[%s349 + $0x2c] sm:$0xf]
      %v3002 = vld [vmem:[%s349 + $0x30] sm:$0xf]
      %v3003 = vld [vmem:[%s349 + $0x34] sm:$0xf]
      %v3004 = vld [vmem:[%s349 + $0x38] sm:$0xf]
      %v3005 = vld [vmem:[%s349 + $0x3c] sm:$0xf]
      %v3006 = vunpack.c.l.bf16 %v2990
      %v3007 = vunpack.c.l.bf16 %v2991
      %v3008 = vunpack.c.l.bf16 %v2992
      %v3009 = vunpack.c.l.bf16 %v2993
      %v3010 = vunpack.c.l.bf16 %v2994
      %v3011 = vunpack.c.l.bf16 %v2995
      %v3012 = vunpack.c.l.bf16 %v2996
      %v3013 = vunpack.c.l.bf16 %v2997
      %v3014 = vunpack.c.l.bf16 %v2998
      %v3015 = vunpack.c.l.bf16 %v2999
      %v3016 = vunpack.c.l.bf16 %v3000
      %v3017 = vunpack.c.l.bf16 %v3001
      %v3018 = vunpack.c.l.bf16 %v3002
      %v3019 = vunpack.c.l.bf16 %v3003
      %v3020 = vunpack.c.l.bf16 %v3004
      %v3021 = vunpack.c.l.bf16 %v3005
      %v3022 = vadd.f32 %v3006, %v2974
      %v3023 = vadd.f32 %v3007, %v2975
      %v3024 = vadd.f32 %v3008, %v2976
      %v3025 = vadd.f32 %v3009, %v2977
      %v3026 = vadd.f32 %v3010, %v2978
      %v3027 = vadd.f32 %v3011, %v2979
      %v3028 = vadd.f32 %v3012, %v2980
      %v3029 = vadd.f32 %v3013, %v2981
      %v3030 = vadd.f32 %v3014, %v2982
      %v3031 = vadd.f32 %v3015, %v2983
      %v3032 = vadd.f32 %v3016, %v2984
      %v3033 = vadd.f32 %v3017, %v2985
      %v3034 = vadd.f32 %v3018, %v2986
      %v3035 = vadd.f32 %v3019, %v2987
      %v3036 = vadd.f32 %v3020, %v2988
      %v3037 = vadd.f32 %v3021, %v2989
      %3038 = vst.msk [vmem:[%s359] sm:$0xff] %vm487, %v3022
      %3039 = vst.msk [vmem:[%s359 + $0x8] sm:$0xff] %vm487, %v3023
      %3040 = vst.msk [vmem:[%s359 + $0x10] sm:$0xff] %vm487, %v3024
      %3041 = vst.msk [vmem:[%s359 + $0x18] sm:$0xff] %vm487, %v3025
      %3042 = vst.msk [vmem:[%s359 + $0x20] sm:$0xff] %vm487, %v3026
      %3043 = vst.msk [vmem:[%s359 + $0x28] sm:$0xff] %vm487, %v3027
      %3044 = vst.msk [vmem:[%s359 + $0x30] sm:$0xff] %vm487, %v3028
      %3045 = vst.msk [vmem:[%s359 + $0x38] sm:$0xff] %vm487, %v3029
      %3046 = vst.msk [vmem:[%s359 + $0x40] sm:$0xff] %vm487, %v3030
      %3047 = vst.msk [vmem:[%s359 + $0x48] sm:$0xff] %vm487, %v3031
      %3048 = vst.msk [vmem:[%s359 + $0x50] sm:$0xff] %vm487, %v3032
      %3049 = vst.msk [vmem:[%s359 + $0x58] sm:$0xff] %vm487, %v3033
      %3050 = vst.msk [vmem:[%s359 + $0x60] sm:$0xff] %vm487, %v3034
      %3051 = vst.msk [vmem:[%s359 + $0x68] sm:$0xff] %vm487, %v3035
      %3052 = vst.msk [vmem:[%s359 + $0x70] sm:$0xff] %vm487, %v3036
      %3053 = vst.msk [vmem:[%s359 + $0x78] sm:$0xff] %vm487, %v3037
      %s3054 = smul.u32 16, %s22
      %p3055 = scmp.lt.s32.totalorder %s21, 1
      %s3056 = scalar_select %p3055, %s21, 1
      %p3057 = scmp.lt.s32.totalorder %s3054, 31
      %s3058 = scalar_select %p3057, %s3054, 31
      %s3059 = smul.addr %s3056, 32
      %s3060 = sadd.s32 %s3058, %s3059
      %s3061 = smul.addr %s3060, 8
      %s3062 = scalar_lea.vmem %s6, %s3061
      // Predicated region
      $region45: #{up_forward.5} parent=43 // pred_check
        %p3063 = pneg %p196
      $region46: #{up_forward.5} parent=43 // pred_check_branch
        %3065 = sbr.rel (%p3063) target = $region48
      $region47: #{up_forward.5} parent=43 // pred_region
        %s3066 = smul.u32 16, %s22
      $region48: #{up_forward.5} parent=43 // pred_fallthru
        _
    $region44: #{up_forward.5} parent=5 // pred_fallthru
      _
    %p3067 = scmp.le.s32.totalorder 2, %s12
    // Predicated region
    $region49: #{up_forward.5} parent=5 // pred_check
      %p3068 = pneg %p3067
    $region50: #{up_forward.5} parent=5 // pred_check_branch
      %3070 = sbr.rel (%p3068) target = $region52
    $region51: #{up_forward.5} parent=5 // pred_region
      %s3071 = ssub.s32 %s12, 2
      // Predicated region
      $region53: #{up_forward.5} parent=51 // pred_check
        %p3072 = pneg %p202
      $region54: #{up_forward.5} parent=51 // pred_check_branch
        %3074 = sbr.rel (%p3072) target = $region56
      $region55: #{up_forward.5} parent=51 // pred_region
        %s3075 = smul.u32 16, %s24
        %p3076 = scmp.lt.s32.totalorder %s23, 1
        %s3077 = scalar_select %p3076, %s23, 1
        %p3078 = scmp.lt.s32.totalorder %s3075, 31
        %s3079 = scalar_select %p3078, %s3075, 31
        %s3080 = smul.addr %s3077, 32
        %s3081 = sadd.s32 %s3079, %s3080
        %s3082 = smul.addr %s3081, 8
        %s3083 = scalar_lea.vmem %s6, %s3082
      $region56: #{up_forward.5} parent=51 // pred_fallthru
        _
    $region52: #{up_forward.5} parent=5 // pred_fallthru
      _
  $region6: #{up_forward.5} parent=0 // loop_footer
    %s16 = sadd.s32 1, %s12
  $region7: #{up_forward.5} parent=0 // loop_footer_branch
    %11 = sbr.rel target = $region3
  $region8: #{up_forward.5} parent=0 // loop_exit
    _

</llo_original>
